<compile_context>
chip_gen: v7x
topology: tpu7x:2x2x1
jax: 0.10.0
libtpu: 0.0.40
codegen_flags: <defaults>
</compile_context>

<pallas_src>
import functools

import jax
import jax.numpy as jnp
from jax.experimental import pallas as pl
from jax.experimental.pallas import tpu as pltpu


def _fused_basic_block_kernel(x_ref, w1_ref, b1_ref, w2_ref, b2_ref, o_ref,
                              xpad_ref, mpad_ref, *, H, W, halo):
    """One image: out = relu( BN2(conv2( relu(BN1(conv1(x))) )) + x ).

    x_ref   : (1, H, W, C)        input block (compute dtype)
    w1_ref  : (9, C, P)           conv1 3x3 weights, BN1 scale folded in
    b1_ref  : (1, P)  f32         folded BN1 bias
    w2_ref  : (9, P, P)           conv2 3x3 weights, BN2 scale folded in
    b2_ref  : (1, P)  f32         folded BN2 bias
    o_ref   : (1, H, W, P) f32    output block
    xpad_ref: VMEM (H+2, 2*halo+W, C)  zero-halo padded input scratch
    mpad_ref: VMEM (H+2, 2*halo+W, P)  zero-halo padded out1 scratch
    """
    C = x_ref.shape[-1]
    P = o_ref.shape[-1]
    cdt = xpad_ref.dtype

    # Establish the conv halo (zeros), then write the interior at a
    # sublane-tile-aligned column offset (`halo`) -> plain aligned stores.
    xpad_ref[...] = jnp.zeros_like(xpad_ref)
    mpad_ref[...] = jnp.zeros_like(mpad_ref)

    xv = x_ref[0]                                        # (H, W, C)
    xpad_ref[1:H + 1, halo:halo + W, :] = xv

    def conv3x3(src_ref, w_ref, cin):
        # 3x3, stride 1, pad 1 == sum of 9 shifted (HW, cin) @ (cin, P) MXU dots
        # reading shifted windows straight out of the padded VMEM scratch.
        acc = jnp.zeros((H * W, P), jnp.float32)
        for ky in range(3):
            for kx in range(3):
                patch = src_ref[ky:ky + H, halo - 1 + kx:halo - 1 + kx + W, :]
                acc += jnp.dot(patch.reshape(H * W, cin), w_ref[ky * 3 + kx],
                               preferred_element_type=jnp.float32)
        return acc

    # Stage 1: conv1 + BN1 (scale pre-folded, bias here) + ReLU, kept in VMEM.
    out1 = jnp.maximum(conv3x3(xpad_ref, w1_ref, C) + b1_ref[0], 0.0)
    mpad_ref[1:H + 1, halo:halo + W, :] = out1.reshape(H, W, P).astype(cdt)

    # Stage 2: conv2 + BN2 + identity residual (reuse the resident input) + ReLU.
    out2 = (conv3x3(mpad_ref, w2_ref, P) + b2_ref[0]
            + xv.reshape(H * W, C).astype(jnp.float32))
    o_ref[0] = jnp.maximum(out2, 0.0).reshape(H, W, P).astype(o_ref.dtype)


def fold_bn(gamma, beta, mean, var, eps=1e-5):
    scale = gamma / jnp.sqrt(var + eps)
    bias = beta - mean * scale
    return scale, bias


def basic_block_forward(x_nchw, params, *, compute_dtype=jnp.bfloat16):
    """Fused Pallas BasicBlock forward.  Input/output NCHW f32 (torch contract)."""
    x = jnp.transpose(x_nchw, (0, 2, 3, 1))                    # -> NHWC
    N, H, W, C = x.shape
    P = params["w1"].shape[-1]
    assert C == P, "identity shortcut only (stride=1, inplanes == planes)"

    s1, b1 = fold_bn(params["g1"], params["be1"], params["m1"], params["v1"])
    s2, b2 = fold_bn(params["g2"], params["be2"], params["m2"], params["v2"])

    # Fold BN scale into the conv weights (wrapper-side constant fold); the
    # kernel only adds the bias.  Tap index = ky*3 + kx, channels fastest.
    w1 = (params["w1"] * s1).reshape(9, C, P).astype(compute_dtype)
    w2 = (params["w2"] * s2).reshape(9, P, P).astype(compute_dtype)
    b1 = b1.reshape(1, P).astype(jnp.float32)
    b2 = b2.reshape(1, P).astype(jnp.float32)
    xk = x.astype(compute_dtype)

    # Left-halo width = sublane tile of the compute dtype (8 cols f32 / 16 cols
    # bf16) so the interior scratch write lands on a tile boundary.
    halo = 32 // jnp.dtype(compute_dtype).itemsize
    wpad = 2 * halo + W

    kernel = functools.partial(_fused_basic_block_kernel, H=H, W=W, halo=halo)

    out = pl.pallas_call(
        kernel,
        out_shape=jax.ShapeDtypeStruct((N, H, W, P), jnp.float32),
        grid_spec=pltpu.PrefetchScalarGridSpec(
            num_scalar_prefetch=0,
            grid=(N,),
            in_specs=[
                pl.BlockSpec((1, H, W, C), lambda n: (n, 0, 0, 0)),
                pl.BlockSpec((9, C, P), lambda n: (0, 0, 0)),
                pl.BlockSpec((1, P), lambda n: (0, 0)),
                pl.BlockSpec((9, P, P), lambda n: (0, 0, 0)),
                pl.BlockSpec((1, P), lambda n: (0, 0)),
            ],
            out_specs=pl.BlockSpec((1, H, W, P), lambda n: (n, 0, 0, 0)),
            scratch_shapes=[
                pltpu.VMEM((H + 2, wpad, C), compute_dtype),
                pltpu.VMEM((H + 2, wpad, P), compute_dtype),
            ],
        ),
        compiler_params=pltpu.CompilerParams(
            dimension_semantics=("parallel",),
            vmem_limit_bytes=32 * 1024 * 1024,
        ),
    )(xk, w1, b1, w2, b2)

    return jnp.transpose(out, (0, 3, 1, 2))                    # -> NCHW


def reference_forward(x_nchw, params):
    """Pure-JAX reference (lax.conv), NCHW, for the correctness check."""
    def conv(x, w):  # w: (3,3,Cin,Cout) -> OIHW
        w_oihw = jnp.transpose(w, (3, 2, 0, 1))
        return jax.lax.conv_general_dilated(
            x, w_oihw, window_strides=(1, 1), padding=((1, 1), (1, 1)),
            dimension_numbers=("NCHW", "OIHW", "NCHW"))

    def bn(x, g, b, m, v, eps=1e-5):
        sc = g / jnp.sqrt(v + eps)
        return x * sc[None, :, None, None] + (b - m * sc)[None, :, None, None]

    out = jax.nn.relu(bn(conv(x_nchw, params["w1"]),
                         params["g1"], params["be1"], params["m1"], params["v1"]))
    out = bn(conv(out, params["w2"]),
             params["g2"], params["be2"], params["m2"], params["v2"])
    return jax.nn.relu(out + x_nchw)


if __name__ == "__main__":
    key = jax.random.PRNGKey(0)
    k = jax.random.split(key, 8)

    N, C, H, W = 2, 4, 16, 16          # inplanes = planes = 4, stride = 1
    planes = C

    x = jax.random.normal(k[0], (N, C, H, W), jnp.float32)

    params = {
        "w1": 0.2 * jax.random.normal(k[1], (3, 3, C, planes), jnp.float32),
        "w2": 0.2 * jax.random.normal(k[2], (3, 3, planes, planes), jnp.float32),
        "g1": 1.0 + 0.1 * jax.random.normal(k[3], (planes,), jnp.float32),
        "be1": 0.1 * jax.random.normal(k[4], (planes,), jnp.float32),
        "m1": 0.05 * jax.random.normal(k[5], (planes,), jnp.float32),
        "v1": jnp.abs(jax.random.normal(k[6], (planes,), jnp.float32)) * 0.1 + 0.9,
        "g2": jnp.ones((planes,), jnp.float32),
        "be2": jnp.zeros((planes,), jnp.float32),
        "m2": 0.05 * jax.random.normal(k[7], (planes,), jnp.float32),
        "v2": jnp.ones((planes,), jnp.float32),
    }

    ref = jax.block_until_ready(reference_forward(x, params))

    # f32 compute path: tight numerical check against the lax.conv reference.
    out_f32 = jax.block_until_ready(
        basic_block_forward(x, params, compute_dtype=jnp.float32))
    assert out_f32.shape == (N, planes, H, W)
    assert jnp.allclose(out_f32, ref, atol=1e-4, rtol=1e-4), "f32 mismatch vs reference"

    # bf16 compute path (the performance configuration): loose tolerance for
    # the reduced-precision weights/activations.
    out_bf16 = jax.block_until_ready(
        basic_block_forward(x, params, compute_dtype=jnp.bfloat16))
    assert out_bf16.shape == (N, planes, H, W)
    assert jnp.allclose(out_bf16, ref, atol=1e-1, rtol=1e-1), "bf16 mismatch vs reference"

    print("KERNEL_OK")
</pallas_src>

<mosaic_0001>
module attributes {stable_mosaic.version = 11 : i64} {
  func.func @_fused_basic_block_kernel(%arg0: i32, %arg1: memref<1x16x16x4xf32, #tpu.memory_space<vmem>>, %arg2: memref<9x4x4xf32, #tpu.memory_space<vmem>>, %arg3: memref<1x4xf32, #tpu.memory_space<vmem>>, %arg4: memref<9x4x4xf32, #tpu.memory_space<vmem>>, %arg5: memref<1x4xf32, #tpu.memory_space<vmem>>, %arg6: memref<1x16x16x4xf32, #tpu.memory_space<vmem>>, %arg7: memref<18x32x4xf32, #tpu.memory_space<vmem>>, %arg8: memref<18x32x4xf32, #tpu.memory_space<vmem>>) attributes {dimension_semantics = [#tpu.dimension_semantics<parallel>], iteration_bounds = array<i64: 2>, scalar_prefetch = 0 : i64, scratch_operands = 2 : i64, tpu.core_type = #tpu.core_type<tc>, window_params = [{transform_indices = @transform_0, window_bounds = array<i64: 1, 16, 16, 4>}, {pipeline_mode = #tpu.pipeline_mode<synchronous>, transform_indices = @transform_1, window_bounds = array<i64: 9, 4, 4>}, {pipeline_mode = #tpu.pipeline_mode<synchronous>, transform_indices = @transform_2, window_bounds = array<i64: 1, 4>}, {pipeline_mode = #tpu.pipeline_mode<synchronous>, transform_indices = @transform_3, window_bounds = array<i64: 9, 4, 4>}, {pipeline_mode = #tpu.pipeline_mode<synchronous>, transform_indices = @transform_4, window_bounds = array<i64: 1, 4>}, {transform_indices = @transform_5, window_bounds = array<i64: 1, 16, 16, 4>}]} {
    %cst = arith.constant 0.000000e+00 : f32
    %0 = vector.broadcast %cst : f32 to vector<18x32x4xf32>
    %c0 = arith.constant 0 : index
    %c0_0 = arith.constant 0 : index
    %c0_1 = arith.constant 0 : index
    %1 = vector.load %arg7[%c0, %c0_0, %c0_1] : memref<18x32x4xf32, #tpu.memory_space<vmem>>, vector<18x32x4xf32>
    tpu.vector_store %arg7[%c0, %c0_0, %c0_1], %0 {strides = array<i32>} : memref<18x32x4xf32, #tpu.memory_space<vmem>>, vector<18x32x4xf32>,
    %cst_2 = arith.constant 0.000000e+00 : f32
    %2 = vector.broadcast %cst_2 : f32 to vector<18x32x4xf32>
    %c0_3 = arith.constant 0 : index
    %c0_4 = arith.constant 0 : index
    %c0_5 = arith.constant 0 : index
    %3 = vector.load %arg8[%c0_3, %c0_4, %c0_5] : memref<18x32x4xf32, #tpu.memory_space<vmem>>, vector<18x32x4xf32>
    tpu.vector_store %arg8[%c0_3, %c0_4, %c0_5], %2 {strides = array<i32>} : memref<18x32x4xf32, #tpu.memory_space<vmem>>, vector<18x32x4xf32>,
    %c0_6 = arith.constant 0 : index
    %c0_7 = arith.constant 0 : index
    %c0_8 = arith.constant 0 : index
    %c0_9 = arith.constant 0 : index
    %4 = vector.load %arg1[%c0_6, %c0_7, %c0_8, %c0_9] : memref<1x16x16x4xf32, #tpu.memory_space<vmem>>, vector<1x16x16x4xf32>
    %5 = vector.shape_cast %4 : vector<1x16x16x4xf32> to vector<16x16x4xf32>
    %c1 = arith.constant 1 : index
    %c8 = arith.constant 8 : index
    %c0_10 = arith.constant 0 : index
    %6 = vector.load %arg7[%c1, %c8, %c0_10] : memref<18x32x4xf32, #tpu.memory_space<vmem>>, vector<16x16x4xf32>
    tpu.vector_store %arg7[%c1, %c8, %c0_10], %5 {strides = array<i32>} : memref<18x32x4xf32, #tpu.memory_space<vmem>>, vector<16x16x4xf32>,
    %cst_11 = arith.constant 0.000000e+00 : f32
    %7 = vector.broadcast %cst_11 : f32 to vector<256x4xf32>
    %c0_12 = arith.constant 0 : index
    %c7 = arith.constant 7 : index
    %c0_13 = arith.constant 0 : index
    %8 = vector.load %arg7[%c0_12, %c7, %c0_13] : memref<18x32x4xf32, #tpu.memory_space<vmem>>, vector<16x16x4xf32>
    %9 = vector.shape_cast %8 : vector<16x16x4xf32> to vector<256x4xf32>
    %c0_14 = arith.constant 0 : index
    %c0_15 = arith.constant 0 : index
    %c0_16 = arith.constant 0 : index
    %10 = vector.load %arg2[%c0_14, %c0_15, %c0_16] : memref<9x4x4xf32, #tpu.memory_space<vmem>>, vector<1x4x4xf32>
    %11 = vector.shape_cast %10 : vector<1x4x4xf32> to vector<4x4xf32>
    %cst_17 = arith.constant dense<0.000000e+00> : vector<256x4xf32>
    %12 = tpu.matmul %9, %11, %cst_17 {dimension_numbers = #tpu.dot_dimension_numbers<[1], [0], [0], [1], [0, 0, 1, 1], [], []>} : vector<256x4xf32>, vector<4x4xf32>, vector<256x4xf32> -> vector<256x4xf32>
    %13 = arith.addf %7, %12 : vector<256x4xf32>
    %c0_18 = arith.constant 0 : index
    %c8_19 = arith.constant 8 : index
    %c0_20 = arith.constant 0 : index
    %14 = vector.load %arg7[%c0_18, %c8_19, %c0_20] : memref<18x32x4xf32, #tpu.memory_space<vmem>>, vector<16x16x4xf32>
    %15 = vector.shape_cast %14 : vector<16x16x4xf32> to vector<256x4xf32>
    %c1_21 = arith.constant 1 : index
    %c0_22 = arith.constant 0 : index
    %c0_23 = arith.constant 0 : index
    %16 = vector.load %arg2[%c1_21, %c0_22, %c0_23] : memref<9x4x4xf32, #tpu.memory_space<vmem>>, vector<1x4x4xf32>
    %17 = vector.shape_cast %16 : vector<1x4x4xf32> to vector<4x4xf32>
    %cst_24 = arith.constant dense<0.000000e+00> : vector<256x4xf32>
    %18 = tpu.matmul %15, %17, %cst_24 {dimension_numbers = #tpu.dot_dimension_numbers<[1], [0], [0], [1], [0, 0, 1, 1], [], []>} : vector<256x4xf32>, vector<4x4xf32>, vector<256x4xf32> -> vector<256x4xf32>
    %19 = arith.addf %13, %18 : vector<256x4xf32>
    %c0_25 = arith.constant 0 : index
    %c9 = arith.constant 9 : index
    %c0_26 = arith.constant 0 : index
    %20 = vector.load %arg7[%c0_25, %c9, %c0_26] : memref<18x32x4xf32, #tpu.memory_space<vmem>>, vector<16x16x4xf32>
    %21 = vector.shape_cast %20 : vector<16x16x4xf32> to vector<256x4xf32>
    %c2 = arith.constant 2 : index
    %c0_27 = arith.constant 0 : index
    %c0_28 = arith.constant 0 : index
    %22 = vector.load %arg2[%c2, %c0_27, %c0_28] : memref<9x4x4xf32, #tpu.memory_space<vmem>>, vector<1x4x4xf32>
    %23 = vector.shape_cast %22 : vector<1x4x4xf32> to vector<4x4xf32>
    %cst_29 = arith.constant dense<0.000000e+00> : vector<256x4xf32>
    %24 = tpu.matmul %21, %23, %cst_29 {dimension_numbers = #tpu.dot_dimension_numbers<[1], [0], [0], [1], [0, 0, 1, 1], [], []>} : vector<256x4xf32>, vector<4x4xf32>, vector<256x4xf32> -> vector<256x4xf32>
    %25 = arith.addf %19, %24 : vector<256x4xf32>
    %c1_30 = arith.constant 1 : index
    %c7_31 = arith.constant 7 : index
    %c0_32 = arith.constant 0 : index
    %26 = vector.load %arg7[%c1_30, %c7_31, %c0_32] : memref<18x32x4xf32, #tpu.memory_space<vmem>>, vector<16x16x4xf32>
    %27 = vector.shape_cast %26 : vector<16x16x4xf32> to vector<256x4xf32>
    %c3 = arith.constant 3 : index
    %c0_33 = arith.constant 0 : index
    %c0_34 = arith.constant 0 : index
    %28 = vector.load %arg2[%c3, %c0_33, %c0_34] : memref<9x4x4xf32, #tpu.memory_space<vmem>>, vector<1x4x4xf32>
    %29 = vector.shape_cast %28 : vector<1x4x4xf32> to vector<4x4xf32>
    %cst_35 = arith.constant dense<0.000000e+00> : vector<256x4xf32>
    %30 = tpu.matmul %27, %29, %cst_35 {dimension_numbers = #tpu.dot_dimension_numbers<[1], [0], [0], [1], [0, 0, 1, 1], [], []>} : vector<256x4xf32>, vector<4x4xf32>, vector<256x4xf32> -> vector<256x4xf32>
    %31 = arith.addf %25, %30 : vector<256x4xf32>
    %c1_36 = arith.constant 1 : index
    %c8_37 = arith.constant 8 : index
    %c0_38 = arith.constant 0 : index
    %32 = vector.load %arg7[%c1_36, %c8_37, %c0_38] : memref<18x32x4xf32, #tpu.memory_space<vmem>>, vector<16x16x4xf32>
    %33 = vector.shape_cast %32 : vector<16x16x4xf32> to vector<256x4xf32>
    %c4 = arith.constant 4 : index
    %c0_39 = arith.constant 0 : index
    %c0_40 = arith.constant 0 : index
    %34 = vector.load %arg2[%c4, %c0_39, %c0_40] : memref<9x4x4xf32, #tpu.memory_space<vmem>>, vector<1x4x4xf32>
    %35 = vector.shape_cast %34 : vector<1x4x4xf32> to vector<4x4xf32>
    %cst_41 = arith.constant dense<0.000000e+00> : vector<256x4xf32>
    %36 = tpu.matmul %33, %35, %cst_41 {dimension_numbers = #tpu.dot_dimension_numbers<[1], [0], [0], [1], [0, 0, 1, 1], [], []>} : vector<256x4xf32>, vector<4x4xf32>, vector<256x4xf32> -> vector<256x4xf32>
    %37 = arith.addf %31, %36 : vector<256x4xf32>
    %c1_42 = arith.constant 1 : index
    %c9_43 = arith.constant 9 : index
    %c0_44 = arith.constant 0 : index
    %38 = vector.load %arg7[%c1_42, %c9_43, %c0_44] : memref<18x32x4xf32, #tpu.memory_space<vmem>>, vector<16x16x4xf32>
    %39 = vector.shape_cast %38 : vector<16x16x4xf32> to vector<256x4xf32>
    %c5 = arith.constant 5 : index
    %c0_45 = arith.constant 0 : index
    %c0_46 = arith.constant 0 : index
    %40 = vector.load %arg2[%c5, %c0_45, %c0_46] : memref<9x4x4xf32, #tpu.memory_space<vmem>>, vector<1x4x4xf32>
    %41 = vector.shape_cast %40 : vector<1x4x4xf32> to vector<4x4xf32>
    %cst_47 = arith.constant dense<0.000000e+00> : vector<256x4xf32>
    %42 = tpu.matmul %39, %41, %cst_47 {dimension_numbers = #tpu.dot_dimension_numbers<[1], [0], [0], [1], [0, 0, 1, 1], [], []>} : vector<256x4xf32>, vector<4x4xf32>, vector<256x4xf32> -> vector<256x4xf32>
    %43 = arith.addf %37, %42 : vector<256x4xf32>
    %c2_48 = arith.constant 2 : index
    %c7_49 = arith.constant 7 : index
    %c0_50 = arith.constant 0 : index
    %44 = vector.load %arg7[%c2_48, %c7_49, %c0_50] : memref<18x32x4xf32, #tpu.memory_space<vmem>>, vector<16x16x4xf32>
    %45 = vector.shape_cast %44 : vector<16x16x4xf32> to vector<256x4xf32>
    %c6 = arith.constant 6 : index
    %c0_51 = arith.constant 0 : index
    %c0_52 = arith.constant 0 : index
    %46 = vector.load %arg2[%c6, %c0_51, %c0_52] : memref<9x4x4xf32, #tpu.memory_space<vmem>>, vector<1x4x4xf32>
    %47 = vector.shape_cast %46 : vector<1x4x4xf32> to vector<4x4xf32>
    %cst_53 = arith.constant dense<0.000000e+00> : vector<256x4xf32>
    %48 = tpu.matmul %45, %47, %cst_53 {dimension_numbers = #tpu.dot_dimension_numbers<[1], [0], [0], [1], [0, 0, 1, 1], [], []>} : vector<256x4xf32>, vector<4x4xf32>, vector<256x4xf32> -> vector<256x4xf32>
    %49 = arith.addf %43, %48 : vector<256x4xf32>
    %c2_54 = arith.constant 2 : index
    %c8_55 = arith.constant 8 : index
    %c0_56 = arith.constant 0 : index
    %50 = vector.load %arg7[%c2_54, %c8_55, %c0_56] : memref<18x32x4xf32, #tpu.memory_space<vmem>>, vector<16x16x4xf32>
    %51 = vector.shape_cast %50 : vector<16x16x4xf32> to vector<256x4xf32>
    %c7_57 = arith.constant 7 : index
    %c0_58 = arith.constant 0 : index
    %c0_59 = arith.constant 0 : index
    %52 = vector.load %arg2[%c7_57, %c0_58, %c0_59] : memref<9x4x4xf32, #tpu.memory_space<vmem>>, vector<1x4x4xf32>
    %53 = vector.shape_cast %52 : vector<1x4x4xf32> to vector<4x4xf32>
    %cst_60 = arith.constant dense<0.000000e+00> : vector<256x4xf32>
    %54 = tpu.matmul %51, %53, %cst_60 {dimension_numbers = #tpu.dot_dimension_numbers<[1], [0], [0], [1], [0, 0, 1, 1], [], []>} : vector<256x4xf32>, vector<4x4xf32>, vector<256x4xf32> -> vector<256x4xf32>
    %55 = arith.addf %49, %54 : vector<256x4xf32>
    %c2_61 = arith.constant 2 : index
    %c9_62 = arith.constant 9 : index
    %c0_63 = arith.constant 0 : index
    %56 = vector.load %arg7[%c2_61, %c9_62, %c0_63] : memref<18x32x4xf32, #tpu.memory_space<vmem>>, vector<16x16x4xf32>
    %57 = vector.shape_cast %56 : vector<16x16x4xf32> to vector<256x4xf32>
    %c8_64 = arith.constant 8 : index
    %c0_65 = arith.constant 0 : index
    %c0_66 = arith.constant 0 : index
    %58 = vector.load %arg2[%c8_64, %c0_65, %c0_66] : memref<9x4x4xf32, #tpu.memory_space<vmem>>, vector<1x4x4xf32>
    %59 = vector.shape_cast %58 : vector<1x4x4xf32> to vector<4x4xf32>
    %cst_67 = arith.constant dense<0.000000e+00> : vector<256x4xf32>
    %60 = tpu.matmul %57, %59, %cst_67 {dimension_numbers = #tpu.dot_dimension_numbers<[1], [0], [0], [1], [0, 0, 1, 1], [], []>} : vector<256x4xf32>, vector<4x4xf32>, vector<256x4xf32> -> vector<256x4xf32>
    %61 = arith.addf %55, %60 : vector<256x4xf32>
    %c0_68 = arith.constant 0 : index
    %c0_69 = arith.constant 0 : index
    %62 = vector.load %arg3[%c0_68, %c0_69] : memref<1x4xf32, #tpu.memory_space<vmem>>, vector<1x4xf32>
    %63 = vector.shape_cast %62 : vector<1x4xf32> to vector<4xf32>
    %64 = vector.shape_cast %63 : vector<4xf32> to vector<1x4xf32>
    %65 = vector.broadcast %64 : vector<1x4xf32> to vector<256x4xf32>
    %66 = arith.addf %61, %65 : vector<256x4xf32>
    %cst_70 = arith.constant 0.000000e+00 : f32
    %67 = vector.broadcast %cst_70 : f32 to vector<256x4xf32>
    %68 = arith.maximumf %66, %67 : vector<256x4xf32>
    %69 = vector.shape_cast %68 : vector<256x4xf32> to vector<16x16x4xf32>
    %c1_71 = arith.constant 1 : index
    %c8_72 = arith.constant 8 : index
    %c0_73 = arith.constant 0 : index
    %70 = vector.load %arg8[%c1_71, %c8_72, %c0_73] : memref<18x32x4xf32, #tpu.memory_space<vmem>>, vector<16x16x4xf32>
    tpu.vector_store %arg8[%c1_71, %c8_72, %c0_73], %69 {strides = array<i32>} : memref<18x32x4xf32, #tpu.memory_space<vmem>>, vector<16x16x4xf32>,
    %cst_74 = arith.constant 0.000000e+00 : f32
    %71 = vector.broadcast %cst_74 : f32 to vector<256x4xf32>
    %c0_75 = arith.constant 0 : index
    %c7_76 = arith.constant 7 : index
    %c0_77 = arith.constant 0 : index
    %72 = vector.load %arg8[%c0_75, %c7_76, %c0_77] : memref<18x32x4xf32, #tpu.memory_space<vmem>>, vector<16x16x4xf32>
    %73 = vector.shape_cast %72 : vector<16x16x4xf32> to vector<256x4xf32>
    %c0_78 = arith.constant 0 : index
    %c0_79 = arith.constant 0 : index
    %c0_80 = arith.constant 0 : index
    %74 = vector.load %arg4[%c0_78, %c0_79, %c0_80] : memref<9x4x4xf32, #tpu.memory_space<vmem>>, vector<1x4x4xf32>
    %75 = vector.shape_cast %74 : vector<1x4x4xf32> to vector<4x4xf32>
    %cst_81 = arith.constant dense<0.000000e+00> : vector<256x4xf32>
    %76 = tpu.matmul %73, %75, %cst_81 {dimension_numbers = #tpu.dot_dimension_numbers<[1], [0], [0], [1], [0, 0, 1, 1], [], []>} : vector<256x4xf32>, vector<4x4xf32>, vector<256x4xf32> -> vector<256x4xf32>
    %77 = arith.addf %71, %76 : vector<256x4xf32>
    %c0_82 = arith.constant 0 : index
    %c8_83 = arith.constant 8 : index
    %c0_84 = arith.constant 0 : index
    %78 = vector.load %arg8[%c0_82, %c8_83, %c0_84] : memref<18x32x4xf32, #tpu.memory_space<vmem>>, vector<16x16x4xf32>
    %79 = vector.shape_cast %78 : vector<16x16x4xf32> to vector<256x4xf32>
    %c1_85 = arith.constant 1 : index
    %c0_86 = arith.constant 0 : index
    %c0_87 = arith.constant 0 : index
    %80 = vector.load %arg4[%c1_85, %c0_86, %c0_87] : memref<9x4x4xf32, #tpu.memory_space<vmem>>, vector<1x4x4xf32>
    %81 = vector.shape_cast %80 : vector<1x4x4xf32> to vector<4x4xf32>
    %cst_88 = arith.constant dense<0.000000e+00> : vector<256x4xf32>
    %82 = tpu.matmul %79, %81, %cst_88 {dimension_numbers = #tpu.dot_dimension_numbers<[1], [0], [0], [1], [0, 0, 1, 1], [], []>} : vector<256x4xf32>, vector<4x4xf32>, vector<256x4xf32> -> vector<256x4xf32>
    %83 = arith.addf %77, %82 : vector<256x4xf32>
    %c0_89 = arith.constant 0 : index
    %c9_90 = arith.constant 9 : index
    %c0_91 = arith.constant 0 : index
    %84 = vector.load %arg8[%c0_89, %c9_90, %c0_91] : memref<18x32x4xf32, #tpu.memory_space<vmem>>, vector<16x16x4xf32>
    %85 = vector.shape_cast %84 : vector<16x16x4xf32> to vector<256x4xf32>
    %c2_92 = arith.constant 2 : index
    %c0_93 = arith.constant 0 : index
    %c0_94 = arith.constant 0 : index
    %86 = vector.load %arg4[%c2_92, %c0_93, %c0_94] : memref<9x4x4xf32, #tpu.memory_space<vmem>>, vector<1x4x4xf32>
    %87 = vector.shape_cast %86 : vector<1x4x4xf32> to vector<4x4xf32>
    %cst_95 = arith.constant dense<0.000000e+00> : vector<256x4xf32>
    %88 = tpu.matmul %85, %87, %cst_95 {dimension_numbers = #tpu.dot_dimension_numbers<[1], [0], [0], [1], [0, 0, 1, 1], [], []>} : vector<256x4xf32>, vector<4x4xf32>, vector<256x4xf32> -> vector<256x4xf32>
    %89 = arith.addf %83, %88 : vector<256x4xf32>
    %c1_96 = arith.constant 1 : index
    %c7_97 = arith.constant 7 : index
    %c0_98 = arith.constant 0 : index
    %90 = vector.load %arg8[%c1_96, %c7_97, %c0_98] : memref<18x32x4xf32, #tpu.memory_space<vmem>>, vector<16x16x4xf32>
    %91 = vector.shape_cast %90 : vector<16x16x4xf32> to vector<256x4xf32>
    %c3_99 = arith.constant 3 : index
    %c0_100 = arith.constant 0 : index
    %c0_101 = arith.constant 0 : index
    %92 = vector.load %arg4[%c3_99, %c0_100, %c0_101] : memref<9x4x4xf32, #tpu.memory_space<vmem>>, vector<1x4x4xf32>
    %93 = vector.shape_cast %92 : vector<1x4x4xf32> to vector<4x4xf32>
    %cst_102 = arith.constant dense<0.000000e+00> : vector<256x4xf32>
    %94 = tpu.matmul %91, %93, %cst_102 {dimension_numbers = #tpu.dot_dimension_numbers<[1], [0], [0], [1], [0, 0, 1, 1], [], []>} : vector<256x4xf32>, vector<4x4xf32>, vector<256x4xf32> -> vector<256x4xf32>
    %95 = arith.addf %89, %94 : vector<256x4xf32>
    %c1_103 = arith.constant 1 : index
    %c8_104 = arith.constant 8 : index
    %c0_105 = arith.constant 0 : index
    %96 = vector.load %arg8[%c1_103, %c8_104, %c0_105] : memref<18x32x4xf32, #tpu.memory_space<vmem>>, vector<16x16x4xf32>
    %97 = vector.shape_cast %96 : vector<16x16x4xf32> to vector<256x4xf32>
    %c4_106 = arith.constant 4 : index
    %c0_107 = arith.constant 0 : index
    %c0_108 = arith.constant 0 : index
    %98 = vector.load %arg4[%c4_106, %c0_107, %c0_108] : memref<9x4x4xf32, #tpu.memory_space<vmem>>, vector<1x4x4xf32>
    %99 = vector.shape_cast %98 : vector<1x4x4xf32> to vector<4x4xf32>
    %cst_109 = arith.constant dense<0.000000e+00> : vector<256x4xf32>
    %100 = tpu.matmul %97, %99, %cst_109 {dimension_numbers = #tpu.dot_dimension_numbers<[1], [0], [0], [1], [0, 0, 1, 1], [], []>} : vector<256x4xf32>, vector<4x4xf32>, vector<256x4xf32> -> vector<256x4xf32>
    %101 = arith.addf %95, %100 : vector<256x4xf32>
    %c1_110 = arith.constant 1 : index
    %c9_111 = arith.constant 9 : index
    %c0_112 = arith.constant 0 : index
    %102 = vector.load %arg8[%c1_110, %c9_111, %c0_112] : memref<18x32x4xf32, #tpu.memory_space<vmem>>, vector<16x16x4xf32>
    %103 = vector.shape_cast %102 : vector<16x16x4xf32> to vector<256x4xf32>
    %c5_113 = arith.constant 5 : index
    %c0_114 = arith.constant 0 : index
    %c0_115 = arith.constant 0 : index
    %104 = vector.load %arg4[%c5_113, %c0_114, %c0_115] : memref<9x4x4xf32, #tpu.memory_space<vmem>>, vector<1x4x4xf32>
    %105 = vector.shape_cast %104 : vector<1x4x4xf32> to vector<4x4xf32>
    %cst_116 = arith.constant dense<0.000000e+00> : vector<256x4xf32>
    %106 = tpu.matmul %103, %105, %cst_116 {dimension_numbers = #tpu.dot_dimension_numbers<[1], [0], [0], [1], [0, 0, 1, 1], [], []>} : vector<256x4xf32>, vector<4x4xf32>, vector<256x4xf32> -> vector<256x4xf32>
    %107 = arith.addf %101, %106 : vector<256x4xf32>
    %c2_117 = arith.constant 2 : index
    %c7_118 = arith.constant 7 : index
    %c0_119 = arith.constant 0 : index
    %108 = vector.load %arg8[%c2_117, %c7_118, %c0_119] : memref<18x32x4xf32, #tpu.memory_space<vmem>>, vector<16x16x4xf32>
    %109 = vector.shape_cast %108 : vector<16x16x4xf32> to vector<256x4xf32>
    %c6_120 = arith.constant 6 : index
    %c0_121 = arith.constant 0 : index
    %c0_122 = arith.constant 0 : index
    %110 = vector.load %arg4[%c6_120, %c0_121, %c0_122] : memref<9x4x4xf32, #tpu.memory_space<vmem>>, vector<1x4x4xf32>
    %111 = vector.shape_cast %110 : vector<1x4x4xf32> to vector<4x4xf32>
    %cst_123 = arith.constant dense<0.000000e+00> : vector<256x4xf32>
    %112 = tpu.matmul %109, %111, %cst_123 {dimension_numbers = #tpu.dot_dimension_numbers<[1], [0], [0], [1], [0, 0, 1, 1], [], []>} : vector<256x4xf32>, vector<4x4xf32>, vector<256x4xf32> -> vector<256x4xf32>
    %113 = arith.addf %107, %112 : vector<256x4xf32>
    %c2_124 = arith.constant 2 : index
    %c8_125 = arith.constant 8 : index
    %c0_126 = arith.constant 0 : index
    %114 = vector.load %arg8[%c2_124, %c8_125, %c0_126] : memref<18x32x4xf32, #tpu.memory_space<vmem>>, vector<16x16x4xf32>
    %115 = vector.shape_cast %114 : vector<16x16x4xf32> to vector<256x4xf32>
    %c7_127 = arith.constant 7 : index
    %c0_128 = arith.constant 0 : index
    %c0_129 = arith.constant 0 : index
    %116 = vector.load %arg4[%c7_127, %c0_128, %c0_129] : memref<9x4x4xf32, #tpu.memory_space<vmem>>, vector<1x4x4xf32>
    %117 = vector.shape_cast %116 : vector<1x4x4xf32> to vector<4x4xf32>
    %cst_130 = arith.constant dense<0.000000e+00> : vector<256x4xf32>
    %118 = tpu.matmul %115, %117, %cst_130 {dimension_numbers = #tpu.dot_dimension_numbers<[1], [0], [0], [1], [0, 0, 1, 1], [], []>} : vector<256x4xf32>, vector<4x4xf32>, vector<256x4xf32> -> vector<256x4xf32>
    %119 = arith.addf %113, %118 : vector<256x4xf32>
    %c2_131 = arith.constant 2 : index
    %c9_132 = arith.constant 9 : index
    %c0_133 = arith.constant 0 : index
    %120 = vector.load %arg8[%c2_131, %c9_132, %c0_133] : memref<18x32x4xf32, #tpu.memory_space<vmem>>, vector<16x16x4xf32>
    %121 = vector.shape_cast %120 : vector<16x16x4xf32> to vector<256x4xf32>
    %c8_134 = arith.constant 8 : index
    %c0_135 = arith.constant 0 : index
    %c0_136 = arith.constant 0 : index
    %122 = vector.load %arg4[%c8_134, %c0_135, %c0_136] : memref<9x4x4xf32, #tpu.memory_space<vmem>>, vector<1x4x4xf32>
    %123 = vector.shape_cast %122 : vector<1x4x4xf32> to vector<4x4xf32>
    %cst_137 = arith.constant dense<0.000000e+00> : vector<256x4xf32>
    %124 = tpu.matmul %121, %123, %cst_137 {dimension_numbers = #tpu.dot_dimension_numbers<[1], [0], [0], [1], [0, 0, 1, 1], [], []>} : vector<256x4xf32>, vector<4x4xf32>, vector<256x4xf32> -> vector<256x4xf32>
    %125 = arith.addf %119, %124 : vector<256x4xf32>
    %c0_138 = arith.constant 0 : index
    %c0_139 = arith.constant 0 : index
    %126 = vector.load %arg5[%c0_138, %c0_139] : memref<1x4xf32, #tpu.memory_space<vmem>>, vector<1x4xf32>
    %127 = vector.shape_cast %126 : vector<1x4xf32> to vector<4xf32>
    %128 = vector.shape_cast %127 : vector<4xf32> to vector<1x4xf32>
    %129 = vector.broadcast %128 : vector<1x4xf32> to vector<256x4xf32>
    %130 = arith.addf %125, %129 : vector<256x4xf32>
    %131 = vector.shape_cast %5 : vector<16x16x4xf32> to vector<256x4xf32>
    %132 = arith.addf %130, %131 : vector<256x4xf32>
    %cst_140 = arith.constant 0.000000e+00 : f32
    %133 = vector.broadcast %cst_140 : f32 to vector<256x4xf32>
    %134 = arith.maximumf %132, %133 : vector<256x4xf32>
    %135 = vector.shape_cast %134 : vector<256x4xf32> to vector<16x16x4xf32>
    %c0_141 = arith.constant 0 : index
    %c0_142 = arith.constant 0 : index
    %c0_143 = arith.constant 0 : index
    %c0_144 = arith.constant 0 : index
    %136 = vector.load %arg6[%c0_141, %c0_142, %c0_143, %c0_144] : memref<1x16x16x4xf32, #tpu.memory_space<vmem>>, vector<1x16x16x4xf32>
    %137 = vector.shape_cast %136 : vector<1x16x16x4xf32> to vector<16x16x4xf32>
    %138 = vector.shape_cast %135 : vector<16x16x4xf32> to vector<1x16x16x4xf32>
    tpu.vector_store %arg6[%c0_141, %c0_142, %c0_143, %c0_144], %138 {strides = array<i32>} : memref<1x16x16x4xf32, #tpu.memory_space<vmem>>, vector<1x16x16x4xf32>,
    return
  }
  func.func @transform_0(%arg0: i32) -> (i32, i32, i32, i32) {
    %c0_i32 = arith.constant 0 : i32
    %c0_i32_0 = arith.constant 0 : i32
    %c0_i32_1 = arith.constant 0 : i32
    %c0_i32_2 = arith.constant 0 : i32
    return %arg0, %c0_i32, %c0_i32_0, %c0_i32_1 : i32, i32, i32, i32
  }
  func.func @transform_1(%arg0: i32) -> (i32, i32, i32) {
    %c0_i32 = arith.constant 0 : i32
    %c0_i32_0 = arith.constant 0 : i32
    %c0_i32_1 = arith.constant 0 : i32
    %c0_i32_2 = arith.constant 0 : i32
    return %c0_i32, %c0_i32_0, %c0_i32_1 : i32, i32, i32
  }
  func.func @transform_2(%arg0: i32) -> (i32, i32) {
    %c0_i32 = arith.constant 0 : i32
    %c0_i32_0 = arith.constant 0 : i32
    %c0_i32_1 = arith.constant 0 : i32
    return %c0_i32, %c0_i32_0 : i32, i32
  }
  func.func @transform_3(%arg0: i32) -> (i32, i32, i32) {
    %c0_i32 = arith.constant 0 : i32
    %c0_i32_0 = arith.constant 0 : i32
    %c0_i32_1 = arith.constant 0 : i32
    %c0_i32_2 = arith.constant 0 : i32
    return %c0_i32, %c0_i32_0, %c0_i32_1 : i32, i32, i32
  }
  func.func @transform_4(%arg0: i32) -> (i32, i32) {
    %c0_i32 = arith.constant 0 : i32
    %c0_i32_0 = arith.constant 0 : i32
    %c0_i32_1 = arith.constant 0 : i32
    return %c0_i32, %c0_i32_0 : i32, i32
  }
  func.func @transform_5(%arg0: i32) -> (i32, i32, i32, i32) {
    %c0_i32 = arith.constant 0 : i32
    %c0_i32_0 = arith.constant 0 : i32
    %c0_i32_1 = arith.constant 0 : i32
    %c0_i32_2 = arith.constant 0 : i32
    return %arg0, %c0_i32, %c0_i32_0, %c0_i32_1 : i32, i32, i32, i32
  }
}

</mosaic_0001>

<llo_original>
// kernel: tpu_custom_call.1
$region0: #{tpu_custom_call.1}
  #allocation0 [shape = 'u32[]', space=smem, size = 0x4, offset = 0x4, fixed_abs, tag = 'smem constant byte address 0x4 - core index']
  #allocation1 [shape = 'u32[144,128]{1,0:T(1,128)}', space=vmem, size = 0x12000, scoped, tag = 'internal scratch']
  #allocation2 [shape = 'f32[18,32,4]{2,1,0:T(8,128)}', space=vmem, size = 0x48000, scoped, tag = 'scratch operand']
  #allocation3 [shape = 'f32[18,32,4]{2,1,0:T(8,128)}', space=vmem, size = 0x48000, scoped, tag = 'scratch operand']
  %s0 = inlined_call_operand.vmem [shape: f32[2,16,16,4], index: 0, kind: input, shape index: {}]
  %s1 = inlined_call_operand.vmem [shape: f32[9,4,4], index: 1, kind: input, shape index: {}]
  %s2 = inlined_call_operand.vmem [shape: f32[1,4], index: 2, kind: input, shape index: {}]
  %s3 = inlined_call_operand.vmem [shape: f32[9,4,4], index: 3, kind: input, shape index: {}]
  %s4 = inlined_call_operand.vmem [shape: f32[1,4], index: 4, kind: input, shape index: {}]
  %s5 = inlined_call_operand.vmem [shape: f32[2,16,16,4], index: 5, kind: output, shape index: {}]
  %s6 = sld [smem:[#allocation0]]
  $region53: #{tpu_custom_call.1} parent=0
    _
  %s8 = ssub.s32 1, %s6
  %s9 = scalar_select 0, %s8, %s6
  loop: start=0, step=1, limit=4
  $region2: #{tpu_custom_call.1} parent=0 // loop_pre_header
    _
  $region3: #{tpu_custom_call.1} parent=0 // loop_header
    %s11 = sphi 0, %s15
    %p12 = scmp.ge.s32.totalorder %s11, 4
    %s21 = sphi 0, %s23
    %s24 = sphi 0, %s21
    %s25 = sphi 0, %s24
    %s41 = sphi 0, %s25
    %s45 = sphi 0, %s45
    %s47 = sphi 0, %s45
    %s48 = sphi 0, %s47
    %s62 = sphi 0, %s48
    %s66 = sphi 0, %s66
    %s68 = sphi 0, %s66
    %s69 = sphi 0, %s68
    %s83 = sphi 0, %s69
    %s87 = sphi 0, %s87
    %s89 = sphi 0, %s87
    %s90 = sphi 0, %s89
    %s104 = sphi 0, %s90
    %s108 = sphi 0, %s108
    %s110 = sphi 0, %s108
    %s111 = sphi 0, %s110
    %s125 = sphi 0, %s111
    %s131 = sphi 0, %s133
    %s134 = sphi 0, %s131
    %s135 = sphi 0, %s134
    %s151 = sphi 0, %s135
  $region4: #{tpu_custom_call.1} parent=0 // loop_header_branch
    %14 = sbr.rel (%p12) target = $region8
  $region5: #{tpu_custom_call.1} parent=0 // loop_body
    %s16 = ssub.s32 %s11, 1
    %s17 = ssub.s32 %s11, 2
    %s18 = sadd.s32 %s11, 1
    %s19 = ssub.s32 %s11, %s18
    %p20 = scmp.eq.s32.totalorder %s19, 0
    %s22 = sadd.s32 %s21, 1
    %s23 = scalar_select %p20, %s21, %s22
    %p26 = pneg %p20
    %p27 = scmp.eq.s32.totalorder %s11, 1
    %p28 = por %p26, %p27
    %p29 = scmp.ne.s32.totalorder %s21, %s24
    %p30 = scmp.eq.s32.totalorder %s11, 0
    %p31 = por %p29, %p30
    %p32 = scmp.ne.s32.totalorder %s21, %s24
    %p33 = scmp.eq.s32.totalorder %s16, 1
    %p34 = por %p32, %p33
    %p35 = scmp.ne.s32.totalorder %s24, %s25
    %p36 = scmp.eq.s32.totalorder %s16, 0
    %p37 = por %p35, %p36
    %p38 = scmp.ne.s32.totalorder %s24, %s25
    %p39 = scmp.eq.s32.totalorder %s17, 1
    %p40 = por %p38, %p39
    %p42 = scmp.ne.s32.totalorder %s25, %s41
    %p43 = scmp.eq.s32.totalorder %s17, 0
    %p44 = por %p42, %p43
    %s46 = sadd.s32 %s45, 1
    %p49 = scmp.eq.s32.totalorder %s11, 1
    %p50 = scmp.ne.s32.totalorder %s45, %s47
    %p51 = scmp.eq.s32.totalorder %s11, 0
    %p52 = por %p50, %p51
    %p53 = scmp.ne.s32.totalorder %s45, %s47
    %p54 = scmp.eq.s32.totalorder %s16, 1
    %p55 = por %p53, %p54
    %p56 = scmp.ne.s32.totalorder %s47, %s48
    %p57 = scmp.eq.s32.totalorder %s16, 0
    %p58 = por %p56, %p57
    %p59 = scmp.ne.s32.totalorder %s47, %s48
    %p60 = scmp.eq.s32.totalorder %s17, 1
    %p61 = por %p59, %p60
    %p63 = scmp.ne.s32.totalorder %s48, %s62
    %p64 = scmp.eq.s32.totalorder %s17, 0
    %p65 = por %p63, %p64
    %s67 = sadd.s32 %s66, 1
    %p70 = scmp.eq.s32.totalorder %s11, 1
    %p71 = scmp.ne.s32.totalorder %s66, %s68
    %p72 = scmp.eq.s32.totalorder %s11, 0
    %p73 = por %p71, %p72
    %p74 = scmp.ne.s32.totalorder %s66, %s68
    %p75 = scmp.eq.s32.totalorder %s16, 1
    %p76 = por %p74, %p75
    %p77 = scmp.ne.s32.totalorder %s68, %s69
    %p78 = scmp.eq.s32.totalorder %s16, 0
    %p79 = por %p77, %p78
    %p80 = scmp.ne.s32.totalorder %s68, %s69
    %p81 = scmp.eq.s32.totalorder %s17, 1
    %p82 = por %p80, %p81
    %p84 = scmp.ne.s32.totalorder %s69, %s83
    %p85 = scmp.eq.s32.totalorder %s17, 0
    %p86 = por %p84, %p85
    %s88 = sadd.s32 %s87, 1
    %p91 = scmp.eq.s32.totalorder %s11, 1
    %p92 = scmp.ne.s32.totalorder %s87, %s89
    %p93 = scmp.eq.s32.totalorder %s11, 0
    %p94 = por %p92, %p93
    %p95 = scmp.ne.s32.totalorder %s87, %s89
    %p96 = scmp.eq.s32.totalorder %s16, 1
    %p97 = por %p95, %p96
    %p98 = scmp.ne.s32.totalorder %s89, %s90
    %p99 = scmp.eq.s32.totalorder %s16, 0
    %p100 = por %p98, %p99
    %p101 = scmp.ne.s32.totalorder %s89, %s90
    %p102 = scmp.eq.s32.totalorder %s17, 1
    %p103 = por %p101, %p102
    %p105 = scmp.ne.s32.totalorder %s90, %s104
    %p106 = scmp.eq.s32.totalorder %s17, 0
    %p107 = por %p105, %p106
    %s109 = sadd.s32 %s108, 1
    %p112 = scmp.eq.s32.totalorder %s11, 1
    %p113 = scmp.ne.s32.totalorder %s108, %s110
    %p114 = scmp.eq.s32.totalorder %s11, 0
    %p115 = por %p113, %p114
    %p116 = scmp.ne.s32.totalorder %s108, %s110
    %p117 = scmp.eq.s32.totalorder %s16, 1
    %p118 = por %p116, %p117
    %p119 = scmp.ne.s32.totalorder %s110, %s111
    %p120 = scmp.eq.s32.totalorder %s16, 0
    %p121 = por %p119, %p120
    %p122 = scmp.ne.s32.totalorder %s110, %s111
    %p123 = scmp.eq.s32.totalorder %s17, 1
    %p124 = por %p122, %p123
    %p126 = scmp.ne.s32.totalorder %s111, %s125
    %p127 = scmp.eq.s32.totalorder %s17, 0
    %p128 = por %p126, %p127
    %s129 = ssub.s32 %s11, %s18
    %p130 = scmp.eq.s32.totalorder %s129, 0
    %s132 = sadd.s32 %s131, 1
    %s133 = scalar_select %p130, %s131, %s132
    %p136 = pneg %p130
    %p137 = scmp.eq.s32.totalorder %s11, 1
    %p138 = por %p136, %p137
    %p139 = scmp.ne.s32.totalorder %s131, %s134
    %p140 = scmp.eq.s32.totalorder %s11, 0
    %p141 = por %p139, %p140
    %p142 = scmp.ne.s32.totalorder %s131, %s134
    %p143 = scmp.eq.s32.totalorder %s16, 1
    %p144 = por %p142, %p143
    %p145 = scmp.ne.s32.totalorder %s134, %s135
    %p146 = scmp.eq.s32.totalorder %s16, 0
    %p147 = por %p145, %p146
    %p148 = scmp.ne.s32.totalorder %s134, %s135
    %p149 = scmp.eq.s32.totalorder %s17, 1
    %p150 = por %p148, %p149
    %p152 = scmp.ne.s32.totalorder %s135, %s151
    %p153 = scmp.eq.s32.totalorder %s17, 0
    %p154 = por %p152, %p153
    %p155 = scmp.le.s32.totalorder 1, %s11
    %p156 = scmp.lt.s32.totalorder %s11, 3
    %p157 = pnand %p155, %p156
    %p158 = pneg %p157
    // Predicated region
    $region9: #{tpu_custom_call.1} parent=5 // pred_check
      _
    $region10: #{tpu_custom_call.1} parent=5 // pred_check_branch
      %160 = sbr.rel (%p157) target = $region12
    $region11: #{tpu_custom_call.1} parent=5 // pred_region
      %s161 = ssub.s32 %s11, 1
      // Predicated region
      $region13: #{tpu_custom_call.1} parent=11 // pred_check
        %p162 = pneg %p58
      $region14: #{tpu_custom_call.1} parent=11 // pred_check_branch
        %164 = sbr.rel (%p162) target = $region16
      $region15: #{tpu_custom_call.1} parent=11 // pred_region
        _
      $region16: #{tpu_custom_call.1} parent=11 // pred_fallthru
        _
      // Predicated region
      $region17: #{tpu_custom_call.1} parent=11 // pred_check
        %p165 = pneg %p79
      $region18: #{tpu_custom_call.1} parent=11 // pred_check_branch
        %167 = sbr.rel (%p165) target = $region20
      $region19: #{tpu_custom_call.1} parent=11 // pred_region
        _
      $region20: #{tpu_custom_call.1} parent=11 // pred_fallthru
        _
      // Predicated region
      $region21: #{tpu_custom_call.1} parent=11 // pred_check
        %p168 = pneg %p100
      $region22: #{tpu_custom_call.1} parent=11 // pred_check_branch
        %170 = sbr.rel (%p168) target = $region24
      $region23: #{tpu_custom_call.1} parent=11 // pred_region
        _
      $region24: #{tpu_custom_call.1} parent=11 // pred_fallthru
        _
      // Predicated region
      $region25: #{tpu_custom_call.1} parent=11 // pred_check
        %p171 = pneg %p121
      $region26: #{tpu_custom_call.1} parent=11 // pred_check_branch
        %173 = sbr.rel (%p171) target = $region28
      $region27: #{tpu_custom_call.1} parent=11 // pred_region
        _
      $region28: #{tpu_custom_call.1} parent=11 // pred_fallthru
        _
    $region12: #{tpu_custom_call.1} parent=5 // pred_fallthru
      _
    %p174 = scmp.lt.s32.totalorder %s11, 2
    // Predicated region
    $region29: #{tpu_custom_call.1} parent=5 // pred_check
      %p175 = pneg %p174
    $region30: #{tpu_custom_call.1} parent=5 // pred_check_branch
      %177 = sbr.rel (%p175) target = $region32
    $region31: #{tpu_custom_call.1} parent=5 // pred_region
      // Predicated region
      $region33: #{tpu_custom_call.1} parent=31 // pred_check
        %p178 = pneg %p31
      $region34: #{tpu_custom_call.1} parent=31 // pred_check_branch
        %180 = sbr.rel (%p178) target = $region36
      $region35: #{tpu_custom_call.1} parent=31 // pred_region
        %p181 = scmp.lt.s32.totalorder %s11, 1
        %s182 = scalar_select %p181, %s11, 1
        %s183 = smul.addr %s182, 32
        %s184 = smul.addr %s183, 8
        %s185 = scalar_lea.vmem %s0, %s184
      $region36: #{tpu_custom_call.1} parent=31 // pred_fallthru
        _
    $region32: #{tpu_custom_call.1} parent=5 // pred_fallthru
      _
    %p186 = scmp.le.s32.totalorder 1, %s11
    %p187 = scmp.lt.s32.totalorder %s11, 3
    %p188 = pnand %p186, %p187
    %p189 = pneg %p188
    // Predicated region
    $region37: #{tpu_custom_call.1} parent=5 // pred_check
      _
    $region38: #{tpu_custom_call.1} parent=5 // pred_check_branch
      %191 = sbr.rel (%p188) target = $region40
    $region39: #{tpu_custom_call.1} parent=5 // pred_region
      %s192 = ssub.s32 %s11, 1
      %p193 = scmp.lt.s32.totalorder %s16, 1
      %s194 = scalar_select %p193, %s16, 1
      %s195 = smul.addr %s194, 32
      %s196 = smul.addr %s195, 8
      %s197 = scalar_lea.vmem %s0, %s196
      %p198 = pneg %p37
      %p199 = pneg %p34
      %p200 = pneg %p58
      %p201 = pneg %p55
      %p202 = pneg %p79
      %p203 = pneg %p76
      %p204 = pneg %p100
      %p205 = pneg %p97
      %p206 = pneg %p121
      %p207 = pneg %p118
      %p208 = pneg %p147
      %p209 = pneg %p144
      %p210 = scmp.lt.s32.totalorder %s16, 1
      %s211 = scalar_select %p210, %s16, 1
      %s212 = smul.addr %s211, 32
      %s213 = smul.addr %s212, 8
      %s214 = scalar_lea.vmem %s5, %s213
      %p215 = scmp.lt.s32.totalorder %s16, 1
      %s216 = scalar_select %p215, %s16, 1
      %s217 = smul.addr %s216, 32
      %s218 = smul.addr %s217, 8
      %s219 = scalar_lea.vmem %s0, %s218
      %p220 = scmp.lt.s32.totalorder %s16, 1
      %s221 = scalar_select %p220, %s16, 1
      %s222 = smul.addr %s221, 32
      %s223 = smul.addr %s222, 8
      %s224 = scalar_lea.vmem %s5, %s223
      %vm225 = vcmask 31744
      %226 = vst.msk [vmem:[#allocation2] sm:$0xff] %vm225, 0.0
      %227 = vst.msk [vmem:[#allocation2 + $0x8] sm:$0xff] %vm225, 0.0
      %228 = vst.msk [vmem:[#allocation2 + $0x10] sm:$0xff] %vm225, 0.0
      %229 = vst.msk [vmem:[#allocation2 + $0x18] sm:$0xff] %vm225, 0.0
      %230 = vst.msk [vmem:[#allocation2 + $0x20] sm:$0xff] %vm225, 0.0
      %231 = vst.msk [vmem:[#allocation2 + $0x28] sm:$0xff] %vm225, 0.0
      %232 = vst.msk [vmem:[#allocation2 + $0x30] sm:$0xff] %vm225, 0.0
      %233 = vst.msk [vmem:[#allocation2 + $0x38] sm:$0xff] %vm225, 0.0
      %234 = vst.msk [vmem:[#allocation2 + $0x40] sm:$0xff] %vm225, 0.0
      %235 = vst.msk [vmem:[#allocation2 + $0x48] sm:$0xff] %vm225, 0.0
      %236 = vst.msk [vmem:[#allocation2 + $0x50] sm:$0xff] %vm225, 0.0
      %237 = vst.msk [vmem:[#allocation2 + $0x58] sm:$0xff] %vm225, 0.0
      %238 = vst.msk [vmem:[#allocation2 + $0x60] sm:$0xff] %vm225, 0.0
      %239 = vst.msk [vmem:[#allocation2 + $0x68] sm:$0xff] %vm225, 0.0
      %240 = vst.msk [vmem:[#allocation2 + $0x70] sm:$0xff] %vm225, 0.0
      %241 = vst.msk [vmem:[#allocation2 + $0x78] sm:$0xff] %vm225, 0.0
      %242 = vst.msk [vmem:[#allocation2 + $0x80] sm:$0xff] %vm225, 0.0
      %243 = vst.msk [vmem:[#allocation2 + $0x88] sm:$0xff] %vm225, 0.0
      %244 = vst.msk [vmem:[#allocation2 + $0x90] sm:$0xff] %vm225, 0.0
      %245 = vst.msk [vmem:[#allocation2 + $0x98] sm:$0xff] %vm225, 0.0
      %246 = vst.msk [vmem:[#allocation2 + $0xa0] sm:$0xff] %vm225, 0.0
      %247 = vst.msk [vmem:[#allocation2 + $0xa8] sm:$0xff] %vm225, 0.0
      %248 = vst.msk [vmem:[#allocation2 + $0xb0] sm:$0xff] %vm225, 0.0
      %249 = vst.msk [vmem:[#allocation2 + $0xb8] sm:$0xff] %vm225, 0.0
      %250 = vst.msk [vmem:[#allocation2 + $0xc0] sm:$0xff] %vm225, 0.0
      %251 = vst.msk [vmem:[#allocation2 + $0xc8] sm:$0xff] %vm225, 0.0
      %252 = vst.msk [vmem:[#allocation2 + $0xd0] sm:$0xff] %vm225, 0.0
      %253 = vst.msk [vmem:[#allocation2 + $0xd8] sm:$0xff] %vm225, 0.0
      %254 = vst.msk [vmem:[#allocation2 + $0xe0] sm:$0xff] %vm225, 0.0
      %255 = vst.msk [vmem:[#allocation2 + $0xe8] sm:$0xff] %vm225, 0.0
      %256 = vst.msk [vmem:[#allocation2 + $0xf0] sm:$0xff] %vm225, 0.0
      %257 = vst.msk [vmem:[#allocation2 + $0xf8] sm:$0xff] %vm225, 0.0
      %258 = vst.msk [vmem:[#allocation2 + $0x100] sm:$0xff] %vm225, 0.0
      %259 = vst.msk [vmem:[#allocation2 + $0x108] sm:$0xff] %vm225, 0.0
      %260 = vst.msk [vmem:[#allocation2 + $0x110] sm:$0xff] %vm225, 0.0
      %261 = vst.msk [vmem:[#allocation2 + $0x118] sm:$0xff] %vm225, 0.0
      %262 = vst.msk [vmem:[#allocation2 + $0x120] sm:$0xff] %vm225, 0.0
      %263 = vst.msk [vmem:[#allocation2 + $0x128] sm:$0xff] %vm225, 0.0
      %264 = vst.msk [vmem:[#allocation2 + $0x130] sm:$0xff] %vm225, 0.0
      %265 = vst.msk [vmem:[#allocation2 + $0x138] sm:$0xff] %vm225, 0.0
      %266 = vst.msk [vmem:[#allocation2 + $0x140] sm:$0xff] %vm225, 0.0
      %267 = vst.msk [vmem:[#allocation2 + $0x148] sm:$0xff] %vm225, 0.0
      %268 = vst.msk [vmem:[#allocation2 + $0x150] sm:$0xff] %vm225, 0.0
      %269 = vst.msk [vmem:[#allocation2 + $0x158] sm:$0xff] %vm225, 0.0
      %270 = vst.msk [vmem:[#allocation2 + $0x160] sm:$0xff] %vm225, 0.0
      %271 = vst.msk [vmem:[#allocation2 + $0x168] sm:$0xff] %vm225, 0.0
      %272 = vst.msk [vmem:[#allocation2 + $0x170] sm:$0xff] %vm225, 0.0
      %273 = vst.msk [vmem:[#allocation2 + $0x178] sm:$0xff] %vm225, 0.0
      %274 = vst.msk [vmem:[#allocation2 + $0x180] sm:$0xff] %vm225, 0.0
      %275 = vst.msk [vmem:[#allocation2 + $0x188] sm:$0xff] %vm225, 0.0
      %276 = vst.msk [vmem:[#allocation2 + $0x190] sm:$0xff] %vm225, 0.0
      %277 = vst.msk [vmem:[#allocation2 + $0x198] sm:$0xff] %vm225, 0.0
      %278 = vst.msk [vmem:[#allocation2 + $0x1a0] sm:$0xff] %vm225, 0.0
      %279 = vst.msk [vmem:[#allocation2 + $0x1a8] sm:$0xff] %vm225, 0.0
      %280 = vst.msk [vmem:[#allocation2 + $0x1b0] sm:$0xff] %vm225, 0.0
      %281 = vst.msk [vmem:[#allocation2 + $0x1b8] sm:$0xff] %vm225, 0.0
      %282 = vst.msk [vmem:[#allocation2 + $0x1c0] sm:$0xff] %vm225, 0.0
      %283 = vst.msk [vmem:[#allocation2 + $0x1c8] sm:$0xff] %vm225, 0.0
      %284 = vst.msk [vmem:[#allocation2 + $0x1d0] sm:$0xff] %vm225, 0.0
      %285 = vst.msk [vmem:[#allocation2 + $0x1d8] sm:$0xff] %vm225, 0.0
      %286 = vst.msk [vmem:[#allocation2 + $0x1e0] sm:$0xff] %vm225, 0.0
      %287 = vst.msk [vmem:[#allocation2 + $0x1e8] sm:$0xff] %vm225, 0.0
      %288 = vst.msk [vmem:[#allocation2 + $0x1f0] sm:$0xff] %vm225, 0.0
      %289 = vst.msk [vmem:[#allocation2 + $0x1f8] sm:$0xff] %vm225, 0.0
      %290 = vst.msk [vmem:[#allocation2 + $0x200] sm:$0xff] %vm225, 0.0
      %291 = vst.msk [vmem:[#allocation2 + $0x208] sm:$0xff] %vm225, 0.0
      %292 = vst.msk [vmem:[#allocation2 + $0x210] sm:$0xff] %vm225, 0.0
      %293 = vst.msk [vmem:[#allocation2 + $0x218] sm:$0xff] %vm225, 0.0
      %294 = vst.msk [vmem:[#allocation2 + $0x220] sm:$0xff] %vm225, 0.0
      %295 = vst.msk [vmem:[#allocation2 + $0x228] sm:$0xff] %vm225, 0.0
      %296 = vst.msk [vmem:[#allocation2 + $0x230] sm:$0xff] %vm225, 0.0
      %297 = vst.msk [vmem:[#allocation2 + $0x238] sm:$0xff] %vm225, 0.0
      %298 = vst.msk [vmem:[#allocation3] sm:$0xff] %vm225, 0.0
      %299 = vst.msk [vmem:[#allocation3 + $0x8] sm:$0xff] %vm225, 0.0
      %300 = vst.msk [vmem:[#allocation3 + $0x10] sm:$0xff] %vm225, 0.0
      %301 = vst.msk [vmem:[#allocation3 + $0x18] sm:$0xff] %vm225, 0.0
      %302 = vst.msk [vmem:[#allocation3 + $0x20] sm:$0xff] %vm225, 0.0
      %303 = vst.msk [vmem:[#allocation3 + $0x28] sm:$0xff] %vm225, 0.0
      %304 = vst.msk [vmem:[#allocation3 + $0x30] sm:$0xff] %vm225, 0.0
      %305 = vst.msk [vmem:[#allocation3 + $0x38] sm:$0xff] %vm225, 0.0
      %306 = vst.msk [vmem:[#allocation3 + $0x40] sm:$0xff] %vm225, 0.0
      %307 = vst.msk [vmem:[#allocation3 + $0x48] sm:$0xff] %vm225, 0.0
      %308 = vst.msk [vmem:[#allocation3 + $0x50] sm:$0xff] %vm225, 0.0
      %309 = vst.msk [vmem:[#allocation3 + $0x58] sm:$0xff] %vm225, 0.0
      %310 = vst.msk [vmem:[#allocation3 + $0x60] sm:$0xff] %vm225, 0.0
      %311 = vst.msk [vmem:[#allocation3 + $0x68] sm:$0xff] %vm225, 0.0
      %312 = vst.msk [vmem:[#allocation3 + $0x70] sm:$0xff] %vm225, 0.0
      %313 = vst.msk [vmem:[#allocation3 + $0x78] sm:$0xff] %vm225, 0.0
      %314 = vst.msk [vmem:[#allocation3 + $0x80] sm:$0xff] %vm225, 0.0
      %315 = vst.msk [vmem:[#allocation3 + $0x88] sm:$0xff] %vm225, 0.0
      %316 = vst.msk [vmem:[#allocation3 + $0x90] sm:$0xff] %vm225, 0.0
      %317 = vst.msk [vmem:[#allocation3 + $0x98] sm:$0xff] %vm225, 0.0
      %318 = vst.msk [vmem:[#allocation3 + $0xa0] sm:$0xff] %vm225, 0.0
      %319 = vst.msk [vmem:[#allocation3 + $0xa8] sm:$0xff] %vm225, 0.0
      %320 = vst.msk [vmem:[#allocation3 + $0xb0] sm:$0xff] %vm225, 0.0
      %321 = vst.msk [vmem:[#allocation3 + $0xb8] sm:$0xff] %vm225, 0.0
      %322 = vst.msk [vmem:[#allocation3 + $0xc0] sm:$0xff] %vm225, 0.0
      %323 = vst.msk [vmem:[#allocation3 + $0xc8] sm:$0xff] %vm225, 0.0
      %324 = vst.msk [vmem:[#allocation3 + $0xd0] sm:$0xff] %vm225, 0.0
      %325 = vst.msk [vmem:[#allocation3 + $0xd8] sm:$0xff] %vm225, 0.0
      %326 = vst.msk [vmem:[#allocation3 + $0xe0] sm:$0xff] %vm225, 0.0
      %327 = vst.msk [vmem:[#allocation3 + $0xe8] sm:$0xff] %vm225, 0.0
      %328 = vst.msk [vmem:[#allocation3 + $0xf0] sm:$0xff] %vm225, 0.0
      %329 = vst.msk [vmem:[#allocation3 + $0xf8] sm:$0xff] %vm225, 0.0
      %330 = vst.msk [vmem:[#allocation3 + $0x100] sm:$0xff] %vm225, 0.0
      %331 = vst.msk [vmem:[#allocation3 + $0x108] sm:$0xff] %vm225, 0.0
      %332 = vst.msk [vmem:[#allocation3 + $0x110] sm:$0xff] %vm225, 0.0
      %333 = vst.msk [vmem:[#allocation3 + $0x118] sm:$0xff] %vm225, 0.0
      %334 = vst.msk [vmem:[#allocation3 + $0x120] sm:$0xff] %vm225, 0.0
      %335 = vst.msk [vmem:[#allocation3 + $0x128] sm:$0xff] %vm225, 0.0
      %336 = vst.msk [vmem:[#allocation3 + $0x130] sm:$0xff] %vm225, 0.0
      %337 = vst.msk [vmem:[#allocation3 + $0x138] sm:$0xff] %vm225, 0.0
      %338 = vst.msk [vmem:[#allocation3 + $0x140] sm:$0xff] %vm225, 0.0
      %339 = vst.msk [vmem:[#allocation3 + $0x148] sm:$0xff] %vm225, 0.0
      %340 = vst.msk [vmem:[#allocation3 + $0x150] sm:$0xff] %vm225, 0.0
      %341 = vst.msk [vmem:[#allocation3 + $0x158] sm:$0xff] %vm225, 0.0
      %342 = vst.msk [vmem:[#allocation3 + $0x160] sm:$0xff] %vm225, 0.0
      %343 = vst.msk [vmem:[#allocation3 + $0x168] sm:$0xff] %vm225, 0.0
      %344 = vst.msk [vmem:[#allocation3 + $0x170] sm:$0xff] %vm225, 0.0
      %345 = vst.msk [vmem:[#allocation3 + $0x178] sm:$0xff] %vm225, 0.0
      %346 = vst.msk [vmem:[#allocation3 + $0x180] sm:$0xff] %vm225, 0.0
      %347 = vst.msk [vmem:[#allocation3 + $0x188] sm:$0xff] %vm225, 0.0
      %348 = vst.msk [vmem:[#allocation3 + $0x190] sm:$0xff] %vm225, 0.0
      %349 = vst.msk [vmem:[#allocation3 + $0x198] sm:$0xff] %vm225, 0.0
      %350 = vst.msk [vmem:[#allocation3 + $0x1a0] sm:$0xff] %vm225, 0.0
      %351 = vst.msk [vmem:[#allocation3 + $0x1a8] sm:$0xff] %vm225, 0.0
      %352 = vst.msk [vmem:[#allocation3 + $0x1b0] sm:$0xff] %vm225, 0.0
      %353 = vst.msk [vmem:[#allocation3 + $0x1b8] sm:$0xff] %vm225, 0.0
      %354 = vst.msk [vmem:[#allocation3 + $0x1c0] sm:$0xff] %vm225, 0.0
      %355 = vst.msk [vmem:[#allocation3 + $0x1c8] sm:$0xff] %vm225, 0.0
      %356 = vst.msk [vmem:[#allocation3 + $0x1d0] sm:$0xff] %vm225, 0.0
      %357 = vst.msk [vmem:[#allocation3 + $0x1d8] sm:$0xff] %vm225, 0.0
      %358 = vst.msk [vmem:[#allocation3 + $0x1e0] sm:$0xff] %vm225, 0.0
      %359 = vst.msk [vmem:[#allocation3 + $0x1e8] sm:$0xff] %vm225, 0.0
      %360 = vst.msk [vmem:[#allocation3 + $0x1f0] sm:$0xff] %vm225, 0.0
      %361 = vst.msk [vmem:[#allocation3 + $0x1f8] sm:$0xff] %vm225, 0.0
      %362 = vst.msk [vmem:[#allocation3 + $0x200] sm:$0xff] %vm225, 0.0
      %363 = vst.msk [vmem:[#allocation3 + $0x208] sm:$0xff] %vm225, 0.0
      %364 = vst.msk [vmem:[#allocation3 + $0x210] sm:$0xff] %vm225, 0.0
      %365 = vst.msk [vmem:[#allocation3 + $0x218] sm:$0xff] %vm225, 0.0
      %366 = vst.msk [vmem:[#allocation3 + $0x220] sm:$0xff] %vm225, 0.0
      %367 = vst.msk [vmem:[#allocation3 + $0x228] sm:$0xff] %vm225, 0.0
      %368 = vst.msk [vmem:[#allocation3 + $0x230] sm:$0xff] %vm225, 0.0
      %369 = vst.msk [vmem:[#allocation3 + $0x238] sm:$0xff] %vm225, 0.0
      %v370 = vld [vmem:[%s219] sm:$0xff]
      %v371 = vld [vmem:[%s219 + $0x8] sm:$0xff]
      %v372 = vld [vmem:[%s219 + $0x10] sm:$0xff]
      %v373 = vld [vmem:[%s219 + $0x18] sm:$0xff]
      %v374 = vld [vmem:[%s219 + $0x20] sm:$0xff]
      %v375 = vld [vmem:[%s219 + $0x28] sm:$0xff]
      %v376 = vld [vmem:[%s219 + $0x30] sm:$0xff]
      %v377 = vld [vmem:[%s219 + $0x38] sm:$0xff]
      %v378 = vld [vmem:[%s219 + $0x40] sm:$0xff]
      %v379 = vld [vmem:[%s219 + $0x48] sm:$0xff]
      %v380 = vld [vmem:[%s219 + $0x50] sm:$0xff]
      %v381 = vld [vmem:[%s219 + $0x58] sm:$0xff]
      %v382 = vld [vmem:[%s219 + $0x60] sm:$0xff]
      %v383 = vld [vmem:[%s219 + $0x68] sm:$0xff]
      %v384 = vld [vmem:[%s219 + $0x70] sm:$0xff]
      %v385 = vld [vmem:[%s219 + $0x78] sm:$0xff]
      %v386 = vld [vmem:[%s219 + $0x80] sm:$0xff]
      %v387 = vld [vmem:[%s219 + $0x88] sm:$0xff]
      %v388 = vld [vmem:[%s219 + $0x90] sm:$0xff]
      %v389 = vld [vmem:[%s219 + $0x98] sm:$0xff]
      %v390 = vld [vmem:[%s219 + $0xa0] sm:$0xff]
      %v391 = vld [vmem:[%s219 + $0xa8] sm:$0xff]
      %v392 = vld [vmem:[%s219 + $0xb0] sm:$0xff]
      %v393 = vld [vmem:[%s219 + $0xb8] sm:$0xff]
      %v394 = vld [vmem:[%s219 + $0xc0] sm:$0xff]
      %v395 = vld [vmem:[%s219 + $0xc8] sm:$0xff]
      %v396 = vld [vmem:[%s219 + $0xd0] sm:$0xff]
      %v397 = vld [vmem:[%s219 + $0xd8] sm:$0xff]
      %v398 = vld [vmem:[%s219 + $0xe0] sm:$0xff]
      %v399 = vld [vmem:[%s219 + $0xe8] sm:$0xff]
      %v400 = vld [vmem:[%s219 + $0xf0] sm:$0xff]
      %v401 = vld [vmem:[%s219 + $0xf8] sm:$0xff]
      %s402 = scalar_lea.vmem [#allocation2], 32
      %403 = vst.msk [vmem:[%s402 + $0x8] sm:$0xff] %vm225, %v370
      %404 = vst.msk [vmem:[%s402 + $0x10] sm:$0xff] %vm225, %v371
      %405 = vst.msk [vmem:[%s402 + $0x28] sm:$0xff] %vm225, %v372
      %406 = vst.msk [vmem:[%s402 + $0x30] sm:$0xff] %vm225, %v373
      %407 = vst.msk [vmem:[%s402 + $0x48] sm:$0xff] %vm225, %v374
      %408 = vst.msk [vmem:[%s402 + $0x50] sm:$0xff] %vm225, %v375
      %409 = vst.msk [vmem:[%s402 + $0x68] sm:$0xff] %vm225, %v376
      %410 = vst.msk [vmem:[%s402 + $0x70] sm:$0xff] %vm225, %v377
      %411 = vst.msk [vmem:[%s402 + $0x88] sm:$0xff] %vm225, %v378
      %412 = vst.msk [vmem:[%s402 + $0x90] sm:$0xff] %vm225, %v379
      %413 = vst.msk [vmem:[%s402 + $0xa8] sm:$0xff] %vm225, %v380
      %414 = vst.msk [vmem:[%s402 + $0xb0] sm:$0xff] %vm225, %v381
      %415 = vst.msk [vmem:[%s402 + $0xc8] sm:$0xff] %vm225, %v382
      %416 = vst.msk [vmem:[%s402 + $0xd0] sm:$0xff] %vm225, %v383
      %417 = vst.msk [vmem:[%s402 + $0xe8] sm:$0xff] %vm225, %v384
      %418 = vst.msk [vmem:[%s402 + $0xf0] sm:$0xff] %vm225, %v385
      %419 = vst.msk [vmem:[%s402 + $0x108] sm:$0xff] %vm225, %v386
      %420 = vst.msk [vmem:[%s402 + $0x110] sm:$0xff] %vm225, %v387
      %421 = vst.msk [vmem:[%s402 + $0x128] sm:$0xff] %vm225, %v388
      %422 = vst.msk [vmem:[%s402 + $0x130] sm:$0xff] %vm225, %v389
      %423 = vst.msk [vmem:[%s402 + $0x148] sm:$0xff] %vm225, %v390
      %424 = vst.msk [vmem:[%s402 + $0x150] sm:$0xff] %vm225, %v391
      %425 = vst.msk [vmem:[%s402 + $0x168] sm:$0xff] %vm225, %v392
      %426 = vst.msk [vmem:[%s402 + $0x170] sm:$0xff] %vm225, %v393
      %427 = vst.msk [vmem:[%s402 + $0x188] sm:$0xff] %vm225, %v394
      %428 = vst.msk [vmem:[%s402 + $0x190] sm:$0xff] %vm225, %v395
      %429 = vst.msk [vmem:[%s402 + $0x1a8] sm:$0xff] %vm225, %v396
      %430 = vst.msk [vmem:[%s402 + $0x1b0] sm:$0xff] %vm225, %v397
      %431 = vst.msk [vmem:[%s402 + $0x1c8] sm:$0xff] %vm225, %v398
      %432 = vst.msk [vmem:[%s402 + $0x1d0] sm:$0xff] %vm225, %v399
      %433 = vst.msk [vmem:[%s402 + $0x1e8] sm:$0xff] %vm225, %v400
      %434 = vst.msk [vmem:[%s402 + $0x1f0] sm:$0xff] %vm225, %v401
      %v435 = vld [vmem:[#allocation2 + $0x7] sm:$0xff]
      %v436 = vld [vmem:[#allocation2 + $0xf] sm:$0xff]
      %v437 = vld [vmem:[#allocation2 + $0x27] sm:$0xff]
      %v438 = vld [vmem:[#allocation2 + $0x2f] sm:$0xff]
      %v439 = vld [vmem:[#allocation2 + $0x47] sm:$0xff]
      %v440 = vld [vmem:[#allocation2 + $0x4f] sm:$0xff]
      %v441 = vld [vmem:[#allocation2 + $0x67] sm:$0xff]
      %v442 = vld [vmem:[#allocation2 + $0x6f] sm:$0xff]
      %v443 = vld [vmem:[#allocation2 + $0x87] sm:$0xff]
      %v444 = vld [vmem:[#allocation2 + $0x8f] sm:$0xff]
      %v445 = vld [vmem:[#allocation2 + $0xa7] sm:$0xff]
      %v446 = vld [vmem:[#allocation2 + $0xaf] sm:$0xff]
      %v447 = vld [vmem:[#allocation2 + $0xc7] sm:$0xff]
      %v448 = vld [vmem:[#allocation2 + $0xcf] sm:$0xff]
      %v449 = vld [vmem:[#allocation2 + $0xe7] sm:$0xff]
      %v450 = vld [vmem:[#allocation2 + $0xef] sm:$0xff]
      %v451 = vld [vmem:[#allocation2 + $0x107] sm:$0xff]
      %v452 = vld [vmem:[#allocation2 + $0x10f] sm:$0xff]
      %v453 = vld [vmem:[#allocation2 + $0x127] sm:$0xff]
      %v454 = vld [vmem:[#allocation2 + $0x12f] sm:$0xff]
      %v455 = vld [vmem:[#allocation2 + $0x147] sm:$0xff]
      %v456 = vld [vmem:[#allocation2 + $0x14f] sm:$0xff]
      %v457 = vld [vmem:[#allocation2 + $0x167] sm:$0xff]
      %v458 = vld [vmem:[#allocation2 + $0x16f] sm:$0xff]
      %v459 = vld [vmem:[#allocation2 + $0x187] sm:$0xff]
      %v460 = vld [vmem:[#allocation2 + $0x18f] sm:$0xff]
      %v461 = vld [vmem:[#allocation2 + $0x1a7] sm:$0xff]
      %v462 = vld [vmem:[#allocation2 + $0x1af] sm:$0xff]
      %v463 = vld [vmem:[#allocation2 + $0x1c7] sm:$0xff]
      %v464 = vld [vmem:[#allocation2 + $0x1cf] sm:$0xff]
      %v465 = vld [vmem:[#allocation2 + $0x1e7] sm:$0xff]
      %v466 = vld [vmem:[#allocation2 + $0x1ef] sm:$0xff]
      %v467 = vld [vmem:[%s1] sm:$0xf]
      %v468 = vld [vmem:[#allocation2 + $0x8] sm:$0xff]
      %v469 = vld [vmem:[#allocation2 + $0x10] sm:$0xff]
      %v470 = vld [vmem:[#allocation2 + $0x28] sm:$0xff]
      %v471 = vld [vmem:[#allocation2 + $0x30] sm:$0xff]
      %v472 = vld [vmem:[#allocation2 + $0x48] sm:$0xff]
      %v473 = vld [vmem:[#allocation2 + $0x50] sm:$0xff]
      %v474 = vld [vmem:[#allocation2 + $0x68] sm:$0xff]
      %v475 = vld [vmem:[#allocation2 + $0x70] sm:$0xff]
      %v476 = vld [vmem:[#allocation2 + $0x88] sm:$0xff]
      %v477 = vld [vmem:[#allocation2 + $0x90] sm:$0xff]
      %v478 = vld [vmem:[#allocation2 + $0xa8] sm:$0xff]
      %v479 = vld [vmem:[#allocation2 + $0xb0] sm:$0xff]
      %v480 = vld [vmem:[#allocation2 + $0xc8] sm:$0xff]
      %v481 = vld [vmem:[#allocation2 + $0xd0] sm:$0xff]
      %v482 = vld [vmem:[#allocation2 + $0xe8] sm:$0xff]
      %v483 = vld [vmem:[#allocation2 + $0xf0] sm:$0xff]
      %v484 = vld [vmem:[#allocation2 + $0x108] sm:$0xff]
      %v485 = vld [vmem:[#allocation2 + $0x110] sm:$0xff]
      %v486 = vld [vmem:[#allocation2 + $0x128] sm:$0xff]
      %v487 = vld [vmem:[#allocation2 + $0x130] sm:$0xff]
      %v488 = vld [vmem:[#allocation2 + $0x148] sm:$0xff]
      %v489 = vld [vmem:[#allocation2 + $0x150] sm:$0xff]
      %v490 = vld [vmem:[#allocation2 + $0x168] sm:$0xff]
      %v491 = vld [vmem:[#allocation2 + $0x170] sm:$0xff]
      %v492 = vld [vmem:[#allocation2 + $0x188] sm:$0xff]
      %v493 = vld [vmem:[#allocation2 + $0x190] sm:$0xff]
      %v494 = vld [vmem:[#allocation2 + $0x1a8] sm:$0xff]
      %v495 = vld [vmem:[#allocation2 + $0x1b0] sm:$0xff]
      %v496 = vld [vmem:[#allocation2 + $0x1c8] sm:$0xff]
      %v497 = vld [vmem:[#allocation2 + $0x1d0] sm:$0xff]
      %v498 = vld [vmem:[#allocation2 + $0x1e8] sm:$0xff]
      %v499 = vld [vmem:[#allocation2 + $0x1f0] sm:$0xff]
      %s500 = scalar_lea.vmem %s1, 4
      %v501 = vld [vmem:[%s500] sm:$0xf]
      %v503 = vsel %vm225, %v468, 0
      %v506 = vsel %vm225, %v469, 0
      %v509 = vsel %vm225, %v470, 0
      %v512 = vsel %vm225, %v471, 0
      %v515 = vsel %vm225, %v472, 0
      %v518 = vsel %vm225, %v473, 0
      %v521 = vsel %vm225, %v474, 0
      %v524 = vsel %vm225, %v475, 0
      %v527 = vsel %vm225, %v476, 0
      %v530 = vsel %vm225, %v477, 0
      %v533 = vsel %vm225, %v478, 0
      %v536 = vsel %vm225, %v479, 0
      %v539 = vsel %vm225, %v480, 0
      %v542 = vsel %vm225, %v481, 0
      %v545 = vsel %vm225, %v482, 0
      %v548 = vsel %vm225, %v483, 0
      %v551 = vsel %vm225, %v484, 0
      %v554 = vsel %vm225, %v485, 0
      %v557 = vsel %vm225, %v486, 0
      %v560 = vsel %vm225, %v487, 0
      %v563 = vsel %vm225, %v488, 0
      %v566 = vsel %vm225, %v489, 0
      %v569 = vsel %vm225, %v490, 0
      %v572 = vsel %vm225, %v491, 0
      %v575 = vsel %vm225, %v492, 0
      %v578 = vsel %vm225, %v493, 0
      %v581 = vsel %vm225, %v494, 0
      %v584 = vsel %vm225, %v495, 0
      %v587 = vsel %vm225, %v496, 0
      %v590 = vsel %vm225, %v497, 0
      %v593 = vsel %vm225, %v498, 0
      %v596 = vsel %vm225, %v499, 0
      %vm598 = vcmask 1043456
      %v600 = vsel %vm598, %v501, 0
      %602 = vmatprep.subr.mxu0 0.0
      %603 = vmatpush1.msra.mxu0 %v600
      %604 = vmatprep.subr.mxu0 0.0
      %605 = vmatpush1.msra.mxu0 0.0
      %606 = vmatprep.subr.mxu0 0.0
      %607 = vmatpush1.msra.mxu0 0.0
      %608 = vmatprep.subr.mxu0 0.0
      %609 = vmatpush1.msra.mxu0 0.0
      %610 = vmatprep.subr.mxu0 0.0
      %611 = vmatpush1.msra.mxu0 0.0
      %612 = vmatprep.subr.mxu0 0.0
      %613 = vmatpush1.msra.mxu0 0.0
      %614 = vmatprep.subr.mxu0 0.0
      %615 = vmatpush1.msra.mxu0 0.0
      %616 = vmatprep.subr.mxu0 0.0
      %617 = vmatpush1.msra.mxu0 0.0
      %618 = vmatprep.subr.mxu0 0.0
      %619 = vmatpush1.msra.mxu0 0.0
      %620 = vmatprep.subr.mxu0 0.0
      %621 = vmatpush1.msra.mxu0 0.0
      %622 = vmatprep.subr.mxu0 0.0
      %623 = vmatpush1.msra.mxu0 0.0
      %624 = vmatprep.subr.mxu0 0.0
      %625 = vmatpush1.msra.mxu0 0.0
      %626 = vmatprep.subr.mxu0 0.0
      %627 = vmatpush1.msra.mxu0 0.0
      %628 = vmatprep.subr.mxu0 0.0
      %629 = vmatpush1.msra.mxu0 0.0
      %630 = vmatprep.subr.mxu0 0.0
      %631 = vmatpush1.msra.mxu0 0.0
      %632 = vmatprep.subr.mxu0 0.0
      %633 = vmatpush1.msra.mxu0 0.0
      %634 = vmatprep.subr.mxu0 0.0
      %635 = vmatpush1.msra.mxu0 0.0
      %636 = vmatprep.subr.mxu0 0.0
      %637 = vmatpush1.msra.mxu0 0.0
      %638 = vmatprep.subr.mxu0 0.0
      %639 = vmatpush1.msra.mxu0 0.0
      %640 = vmatprep.subr.mxu0 0.0
      %641 = vmatpush1.msra.mxu0 0.0
      %642 = vmatprep.subr.mxu0 0.0
      %643 = vmatpush1.msra.mxu0 0.0
      %644 = vmatprep.subr.mxu0 0.0
      %645 = vmatpush1.msra.mxu0 0.0
      %646 = vmatprep.subr.mxu0 0.0
      %647 = vmatpush1.msra.mxu0 0.0
      %648 = vmatprep.subr.mxu0 0.0
      %649 = vmatpush1.msra.mxu0 0.0
      %650 = vmatprep.subr.mxu0 0.0
      %651 = vmatpush1.msra.mxu0 0.0
      %652 = vmatprep.subr.mxu0 0.0
      %653 = vmatpush1.msra.mxu0 0.0
      %654 = vmatprep.subr.mxu0 0.0
      %655 = vmatpush1.msra.mxu0 0.0
      %656 = vmatprep.subr.mxu0 0.0
      %657 = vmatpush1.msra.mxu0 0.0
      %658 = vmatprep.subr.mxu0 0.0
      %659 = vmatpush1.msra.mxu0 0.0
      %660 = vmatprep.subr.mxu0 0.0
      %661 = vmatpush1.msra.mxu0 0.0
      %662 = vmatprep.subr.mxu0 0.0
      %663 = vmatpush1.msra.mxu0 0.0
      %664 = vmatprep.subr.mxu0 0.0
      %665 = vmatpush1.msra.mxu0 0.0
      %666 = vmatprep.mubr.f32.mxu0 0.0
      %667 = vmatmul.mubr.f32.gmra.mrb[0].mxu0 %v503
      %v668 = vpop.f32.mrb[0].mxu0
      %v669 = vadd.f32 0.0, %v668
      %v670 = vpop.f32.mrb[0].mxu0
      %671 = vmatprep.mubr.f32.mxu0 0.0
      %672 = vmatmul.mubr.f32.gmra.mrb[0].mxu0 %v506
      %v673 = vpop.f32.mrb[0].mxu0
      %v674 = vadd.f32 0.0, %v673
      %v675 = vpop.f32.mrb[0].mxu0
      %676 = vmatprep.mubr.f32.mxu0 0.0
      %677 = vmatmul.mubr.f32.gmra.mrb[0].mxu0 %v509
      %v678 = vpop.f32.mrb[0].mxu0
      %v679 = vadd.f32 0.0, %v678
      %v680 = vpop.f32.mrb[0].mxu0
      %681 = vmatprep.mubr.f32.mxu0 0.0
      %682 = vmatmul.mubr.f32.gmra.mrb[0].mxu0 %v512
      %v683 = vpop.f32.mrb[0].mxu0
      %v684 = vadd.f32 0.0, %v683
      %v685 = vpop.f32.mrb[0].mxu0
      %686 = vmatprep.mubr.f32.mxu0 0.0
      %687 = vmatmul.mubr.f32.gmra.mrb[0].mxu0 %v515
      %v688 = vpop.f32.mrb[0].mxu0
      %v689 = vadd.f32 0.0, %v688
      %v690 = vpop.f32.mrb[0].mxu0
      %691 = vmatprep.mubr.f32.mxu0 0.0
      %692 = vmatmul.mubr.f32.gmra.mrb[0].mxu0 %v518
      %v693 = vpop.f32.mrb[0].mxu0
      %v694 = vadd.f32 0.0, %v693
      %v695 = vpop.f32.mrb[0].mxu0
      %696 = vmatprep.mubr.f32.mxu0 0.0
      %697 = vmatmul.mubr.f32.gmra.mrb[0].mxu0 %v521
      %v698 = vpop.f32.mrb[0].mxu0
      %v699 = vadd.f32 0.0, %v698
      %v700 = vpop.f32.mrb[0].mxu0
      %701 = vmatprep.mubr.f32.mxu0 0.0
      %702 = vmatmul.mubr.f32.gmra.mrb[0].mxu0 %v524
      %v703 = vpop.f32.mrb[0].mxu0
      %v704 = vadd.f32 0.0, %v703
      %v705 = vpop.f32.mrb[0].mxu0
      %706 = vmatprep.mubr.f32.mxu0 0.0
      %707 = vmatmul.mubr.f32.gmra.mrb[0].mxu0 %v527
      %v708 = vpop.f32.mrb[0].mxu0
      %v709 = vadd.f32 0.0, %v708
      %v710 = vpop.f32.mrb[0].mxu0
      %711 = vmatprep.mubr.f32.mxu0 0.0
      %712 = vmatmul.mubr.f32.gmra.mrb[0].mxu0 %v530
      %v713 = vpop.f32.mrb[0].mxu0
      %v714 = vadd.f32 0.0, %v713
      %v715 = vpop.f32.mrb[0].mxu0
      %716 = vmatprep.mubr.f32.mxu0 0.0
      %717 = vmatmul.mubr.f32.gmra.mrb[0].mxu0 %v533
      %v718 = vpop.f32.mrb[0].mxu0
      %v719 = vadd.f32 0.0, %v718
      %v720 = vpop.f32.mrb[0].mxu0
      %721 = vmatprep.mubr.f32.mxu0 0.0
      %722 = vmatmul.mubr.f32.gmra.mrb[0].mxu0 %v536
      %v723 = vpop.f32.mrb[0].mxu0
      %v724 = vadd.f32 0.0, %v723
      %v725 = vpop.f32.mrb[0].mxu0
      %726 = vmatprep.mubr.f32.mxu0 0.0
      %727 = vmatmul.mubr.f32.gmra.mrb[0].mxu0 %v539
      %v728 = vpop.f32.mrb[0].mxu0
      %v729 = vadd.f32 0.0, %v728
      %v730 = vpop.f32.mrb[0].mxu0
      %731 = vmatprep.mubr.f32.mxu0 0.0
      %732 = vmatmul.mubr.f32.gmra.mrb[0].mxu0 %v542
      %v733 = vpop.f32.mrb[0].mxu0
      %v734 = vadd.f32 0.0, %v733
      %v735 = vpop.f32.mrb[0].mxu0
      %736 = vmatprep.mubr.f32.mxu0 0.0
      %737 = vmatmul.mubr.f32.gmra.mrb[0].mxu0 %v545
      %v738 = vpop.f32.mrb[0].mxu0
      %v739 = vadd.f32 0.0, %v738
      %v740 = vpop.f32.mrb[0].mxu0
      %741 = vmatprep.mubr.f32.mxu0 0.0
      %742 = vmatmul.mubr.f32.gmra.mrb[0].mxu0 %v548
      %v743 = vpop.f32.mrb[0].mxu0
      %v744 = vadd.f32 0.0, %v743
      %v745 = vpop.f32.mrb[0].mxu0
      %746 = vmatprep.mubr.f32.mxu0 0.0
      %747 = vmatmul.mubr.f32.gmra.mrb[0].mxu0 %v551
      %v748 = vpop.f32.mrb[0].mxu0
      %v749 = vadd.f32 0.0, %v748
      %v750 = vpop.f32.mrb[0].mxu0
      %751 = vmatprep.mubr.f32.mxu0 0.0
      %752 = vmatmul.mubr.f32.gmra.mrb[0].mxu0 %v554
      %v753 = vpop.f32.mrb[0].mxu0
      %v754 = vadd.f32 0.0, %v753
      %v755 = vpop.f32.mrb[0].mxu0
      %756 = vmatprep.mubr.f32.mxu0 0.0
      %757 = vmatmul.mubr.f32.gmra.mrb[0].mxu0 %v557
      %v758 = vpop.f32.mrb[0].mxu0
      %v759 = vadd.f32 0.0, %v758
      %v760 = vpop.f32.mrb[0].mxu0
      %761 = vmatprep.mubr.f32.mxu0 0.0
      %762 = vmatmul.mubr.f32.gmra.mrb[0].mxu0 %v560
      %v763 = vpop.f32.mrb[0].mxu0
      %v764 = vadd.f32 0.0, %v763
      %v765 = vpop.f32.mrb[0].mxu0
      %766 = vmatprep.mubr.f32.mxu0 0.0
      %767 = vmatmul.mubr.f32.gmra.mrb[0].mxu0 %v563
      %v768 = vpop.f32.mrb[0].mxu0
      %v769 = vadd.f32 0.0, %v768
      %v770 = vpop.f32.mrb[0].mxu0
      %771 = vmatprep.mubr.f32.mxu0 0.0
      %772 = vmatmul.mubr.f32.gmra.mrb[0].mxu0 %v566
      %v773 = vpop.f32.mrb[0].mxu0
      %v774 = vadd.f32 0.0, %v773
      %v775 = vpop.f32.mrb[0].mxu0
      %776 = vmatprep.mubr.f32.mxu0 0.0
      %777 = vmatmul.mubr.f32.gmra.mrb[0].mxu0 %v569
      %v778 = vpop.f32.mrb[0].mxu0
      %v779 = vadd.f32 0.0, %v778
      %v780 = vpop.f32.mrb[0].mxu0
      %781 = vmatprep.mubr.f32.mxu0 0.0
      %782 = vmatmul.mubr.f32.gmra.mrb[0].mxu0 %v572
      %v783 = vpop.f32.mrb[0].mxu0
      %v784 = vadd.f32 0.0, %v783
      %v785 = vpop.f32.mrb[0].mxu0
      %786 = vmatprep.mubr.f32.mxu0 0.0
      %787 = vmatmul.mubr.f32.gmra.mrb[0].mxu0 %v575
      %v788 = vpop.f32.mrb[0].mxu0
      %v789 = vadd.f32 0.0, %v788
      %v790 = vpop.f32.mrb[0].mxu0
      %791 = vmatprep.mubr.f32.mxu0 0.0
      %792 = vmatmul.mubr.f32.gmra.mrb[0].mxu0 %v578
      %v793 = vpop.f32.mrb[0].mxu0
      %v794 = vadd.f32 0.0, %v793
      %v795 = vpop.f32.mrb[0].mxu0
      %796 = vmatprep.mubr.f32.mxu0 0.0
      %797 = vmatmul.mubr.f32.gmra.mrb[0].mxu0 %v581
      %v798 = vpop.f32.mrb[0].mxu0
      %v799 = vadd.f32 0.0, %v798
      %v800 = vpop.f32.mrb[0].mxu0
      %801 = vmatprep.mubr.f32.mxu0 0.0
      %802 = vmatmul.mubr.f32.gmra.mrb[0].mxu0 %v584
      %v803 = vpop.f32.mrb[0].mxu0
      %v804 = vadd.f32 0.0, %v803
      %v805 = vpop.f32.mrb[0].mxu0
      %806 = vmatprep.mubr.f32.mxu0 0.0
      %807 = vmatmul.mubr.f32.gmra.mrb[0].mxu0 %v587
      %v808 = vpop.f32.mrb[0].mxu0
      %v809 = vadd.f32 0.0, %v808
      %v810 = vpop.f32.mrb[0].mxu0
      %811 = vmatprep.mubr.f32.mxu0 0.0
      %812 = vmatmul.mubr.f32.gmra.mrb[0].mxu0 %v590
      %v813 = vpop.f32.mrb[0].mxu0
      %v814 = vadd.f32 0.0, %v813
      %v815 = vpop.f32.mrb[0].mxu0
      %816 = vmatprep.mubr.f32.mxu0 0.0
      %817 = vmatmul.mubr.f32.gmra.mrb[0].mxu0 %v593
      %v818 = vpop.f32.mrb[0].mxu0
      %v819 = vadd.f32 0.0, %v818
      %v820 = vpop.f32.mrb[0].mxu0
      %821 = vmatprep.mubr.f32.mxu0 0.0
      %822 = vmatmul.mubr.f32.gmra.mrb[0].mxu0 %v596
      %v823 = vpop.f32.mrb[0].mxu0
      %v824 = vadd.f32 0.0, %v823
      %v825 = vpop.f32.mrb[0].mxu0
      %826 = vdwg.mxu0
      %v828 = vsel %vm225, %v435, 0
      %v831 = vsel %vm225, %v436, 0
      %v834 = vsel %vm225, %v437, 0
      %v837 = vsel %vm225, %v438, 0
      %v840 = vsel %vm225, %v439, 0
      %v843 = vsel %vm225, %v440, 0
      %v846 = vsel %vm225, %v441, 0
      %v849 = vsel %vm225, %v442, 0
      %v852 = vsel %vm225, %v443, 0
      %v855 = vsel %vm225, %v444, 0
      %v858 = vsel %vm225, %v445, 0
      %v861 = vsel %vm225, %v446, 0
      %v864 = vsel %vm225, %v447, 0
      %v867 = vsel %vm225, %v448, 0
      %v870 = vsel %vm225, %v449, 0
      %v873 = vsel %vm225, %v450, 0
      %v876 = vsel %vm225, %v451, 0
      %v879 = vsel %vm225, %v452, 0
      %v882 = vsel %vm225, %v453, 0
      %v885 = vsel %vm225, %v454, 0
      %v888 = vsel %vm225, %v455, 0
      %v891 = vsel %vm225, %v456, 0
      %v894 = vsel %vm225, %v457, 0
      %v897 = vsel %vm225, %v458, 0
      %v900 = vsel %vm225, %v459, 0
      %v903 = vsel %vm225, %v460, 0
      %v906 = vsel %vm225, %v461, 0
      %v909 = vsel %vm225, %v462, 0
      %v912 = vsel %vm225, %v463, 0
      %v915 = vsel %vm225, %v464, 0
      %v918 = vsel %vm225, %v465, 0
      %v921 = vsel %vm225, %v466, 0
      %v924 = vsel %vm598, %v467, 0
      %926 = vmatprep.subr.mxu0 0.0
      %927 = vmatpush1.msra.mxu0 %v924
      %928 = vmatprep.subr.mxu0 0.0
      %929 = vmatpush1.msra.mxu0 0.0
      %930 = vmatprep.subr.mxu0 0.0
      %931 = vmatpush1.msra.mxu0 0.0
      %932 = vmatprep.subr.mxu0 0.0
      %933 = vmatpush1.msra.mxu0 0.0
      %934 = vmatprep.subr.mxu0 0.0
      %935 = vmatpush1.msra.mxu0 0.0
      %936 = vmatprep.subr.mxu0 0.0
      %937 = vmatpush1.msra.mxu0 0.0
      %938 = vmatprep.subr.mxu0 0.0
      %939 = vmatpush1.msra.mxu0 0.0
      %940 = vmatprep.subr.mxu0 0.0
      %941 = vmatpush1.msra.mxu0 0.0
      %942 = vmatprep.subr.mxu0 0.0
      %943 = vmatpush1.msra.mxu0 0.0
      %944 = vmatprep.subr.mxu0 0.0
      %945 = vmatpush1.msra.mxu0 0.0
      %946 = vmatprep.subr.mxu0 0.0
      %947 = vmatpush1.msra.mxu0 0.0
      %948 = vmatprep.subr.mxu0 0.0
      %949 = vmatpush1.msra.mxu0 0.0
      %950 = vmatprep.subr.mxu0 0.0
      %951 = vmatpush1.msra.mxu0 0.0
      %952 = vmatprep.subr.mxu0 0.0
      %953 = vmatpush1.msra.mxu0 0.0
      %954 = vmatprep.subr.mxu0 0.0
      %955 = vmatpush1.msra.mxu0 0.0
      %956 = vmatprep.subr.mxu0 0.0
      %957 = vmatpush1.msra.mxu0 0.0
      %958 = vmatprep.subr.mxu0 0.0
      %959 = vmatpush1.msra.mxu0 0.0
      %960 = vmatprep.subr.mxu0 0.0
      %961 = vmatpush1.msra.mxu0 0.0
      %962 = vmatprep.subr.mxu0 0.0
      %963 = vmatpush1.msra.mxu0 0.0
      %964 = vmatprep.subr.mxu0 0.0
      %965 = vmatpush1.msra.mxu0 0.0
      %966 = vmatprep.subr.mxu0 0.0
      %967 = vmatpush1.msra.mxu0 0.0
      %968 = vmatprep.subr.mxu0 0.0
      %969 = vmatpush1.msra.mxu0 0.0
      %970 = vmatprep.subr.mxu0 0.0
      %971 = vmatpush1.msra.mxu0 0.0
      %972 = vmatprep.subr.mxu0 0.0
      %973 = vmatpush1.msra.mxu0 0.0
      %974 = vmatprep.subr.mxu0 0.0
      %975 = vmatpush1.msra.mxu0 0.0
      %976 = vmatprep.subr.mxu0 0.0
      %977 = vmatpush1.msra.mxu0 0.0
      %978 = vmatprep.subr.mxu0 0.0
      %979 = vmatpush1.msra.mxu0 0.0
      %980 = vmatprep.subr.mxu0 0.0
      %981 = vmatpush1.msra.mxu0 0.0
      %982 = vmatprep.subr.mxu0 0.0
      %983 = vmatpush1.msra.mxu0 0.0
      %984 = vmatprep.subr.mxu0 0.0
      %985 = vmatpush1.msra.mxu0 0.0
      %986 = vmatprep.subr.mxu0 0.0
      %987 = vmatpush1.msra.mxu0 0.0
      %988 = vmatprep.subr.mxu0 0.0
      %989 = vmatpush1.msra.mxu0 0.0
      %990 = vmatprep.mubr.f32.mxu0 0.0
      %991 = vmatmul.mubr.f32.gmra.mrb[0].mxu0 %v828
      %v992 = vpop.f32.mrb[0].mxu0
      %v993 = vadd.f32 %v669, %v992
      %v994 = vpop.f32.mrb[0].mxu0
      %995 = vmatprep.mubr.f32.mxu0 0.0
      %996 = vmatmul.mubr.f32.gmra.mrb[0].mxu0 %v831
      %v997 = vpop.f32.mrb[0].mxu0
      %v998 = vadd.f32 %v674, %v997
      %v999 = vpop.f32.mrb[0].mxu0
      %1000 = vmatprep.mubr.f32.mxu0 0.0
      %1001 = vmatmul.mubr.f32.gmra.mrb[0].mxu0 %v834
      %v1002 = vpop.f32.mrb[0].mxu0
      %v1003 = vadd.f32 %v679, %v1002
      %v1004 = vpop.f32.mrb[0].mxu0
      %1005 = vmatprep.mubr.f32.mxu0 0.0
      %1006 = vmatmul.mubr.f32.gmra.mrb[0].mxu0 %v837
      %v1007 = vpop.f32.mrb[0].mxu0
      %v1008 = vadd.f32 %v684, %v1007
      %v1009 = vpop.f32.mrb[0].mxu0
      %1010 = vmatprep.mubr.f32.mxu0 0.0
      %1011 = vmatmul.mubr.f32.gmra.mrb[0].mxu0 %v840
      %v1012 = vpop.f32.mrb[0].mxu0
      %v1013 = vadd.f32 %v689, %v1012
      %v1014 = vpop.f32.mrb[0].mxu0
      %1015 = vmatprep.mubr.f32.mxu0 0.0
      %1016 = vmatmul.mubr.f32.gmra.mrb[0].mxu0 %v843
      %v1017 = vpop.f32.mrb[0].mxu0
      %v1018 = vadd.f32 %v694, %v1017
      %v1019 = vpop.f32.mrb[0].mxu0
      %1020 = vmatprep.mubr.f32.mxu0 0.0
      %1021 = vmatmul.mubr.f32.gmra.mrb[0].mxu0 %v846
      %v1022 = vpop.f32.mrb[0].mxu0
      %v1023 = vadd.f32 %v699, %v1022
      %v1024 = vpop.f32.mrb[0].mxu0
      %1025 = vmatprep.mubr.f32.mxu0 0.0
      %1026 = vmatmul.mubr.f32.gmra.mrb[0].mxu0 %v849
      %v1027 = vpop.f32.mrb[0].mxu0
      %v1028 = vadd.f32 %v704, %v1027
      %v1029 = vpop.f32.mrb[0].mxu0
      %1030 = vmatprep.mubr.f32.mxu0 0.0
      %1031 = vmatmul.mubr.f32.gmra.mrb[0].mxu0 %v852
      %v1032 = vpop.f32.mrb[0].mxu0
      %v1033 = vadd.f32 %v709, %v1032
      %v1034 = vpop.f32.mrb[0].mxu0
      %1035 = vmatprep.mubr.f32.mxu0 0.0
      %1036 = vmatmul.mubr.f32.gmra.mrb[0].mxu0 %v855
      %v1037 = vpop.f32.mrb[0].mxu0
      %v1038 = vadd.f32 %v714, %v1037
      %v1039 = vpop.f32.mrb[0].mxu0
      %1040 = vmatprep.mubr.f32.mxu0 0.0
      %1041 = vmatmul.mubr.f32.gmra.mrb[0].mxu0 %v858
      %v1042 = vpop.f32.mrb[0].mxu0
      %v1043 = vadd.f32 %v719, %v1042
      %v1044 = vpop.f32.mrb[0].mxu0
      %1045 = vmatprep.mubr.f32.mxu0 0.0
      %1046 = vmatmul.mubr.f32.gmra.mrb[0].mxu0 %v861
      %v1047 = vpop.f32.mrb[0].mxu0
      %v1048 = vadd.f32 %v724, %v1047
      %v1049 = vpop.f32.mrb[0].mxu0
      %1050 = vmatprep.mubr.f32.mxu0 0.0
      %1051 = vmatmul.mubr.f32.gmra.mrb[0].mxu0 %v864
      %v1052 = vpop.f32.mrb[0].mxu0
      %v1053 = vadd.f32 %v729, %v1052
      %v1054 = vpop.f32.mrb[0].mxu0
      %1055 = vmatprep.mubr.f32.mxu0 0.0
      %1056 = vmatmul.mubr.f32.gmra.mrb[0].mxu0 %v867
      %v1057 = vpop.f32.mrb[0].mxu0
      %v1058 = vadd.f32 %v734, %v1057
      %v1059 = vpop.f32.mrb[0].mxu0
      %1060 = vmatprep.mubr.f32.mxu0 0.0
      %1061 = vmatmul.mubr.f32.gmra.mrb[0].mxu0 %v870
      %v1062 = vpop.f32.mrb[0].mxu0
      %v1063 = vadd.f32 %v739, %v1062
      %v1064 = vpop.f32.mrb[0].mxu0
      %1065 = vmatprep.mubr.f32.mxu0 0.0
      %1066 = vmatmul.mubr.f32.gmra.mrb[0].mxu0 %v873
      %v1067 = vpop.f32.mrb[0].mxu0
      %v1068 = vadd.f32 %v744, %v1067
      %v1069 = vpop.f32.mrb[0].mxu0
      %1070 = vmatprep.mubr.f32.mxu0 0.0
      %1071 = vmatmul.mubr.f32.gmra.mrb[0].mxu0 %v876
      %v1072 = vpop.f32.mrb[0].mxu0
      %v1073 = vadd.f32 %v749, %v1072
      %v1074 = vpop.f32.mrb[0].mxu0
      %1075 = vmatprep.mubr.f32.mxu0 0.0
      %1076 = vmatmul.mubr.f32.gmra.mrb[0].mxu0 %v879
      %v1077 = vpop.f32.mrb[0].mxu0
      %v1078 = vadd.f32 %v754, %v1077
      %v1079 = vpop.f32.mrb[0].mxu0
      %1080 = vmatprep.mubr.f32.mxu0 0.0
      %1081 = vmatmul.mubr.f32.gmra.mrb[0].mxu0 %v882
      %v1082 = vpop.f32.mrb[0].mxu0
      %v1083 = vadd.f32 %v759, %v1082
      %v1084 = vpop.f32.mrb[0].mxu0
      %1085 = vmatprep.mubr.f32.mxu0 0.0
      %1086 = vmatmul.mubr.f32.gmra.mrb[0].mxu0 %v885
      %v1087 = vpop.f32.mrb[0].mxu0
      %v1088 = vadd.f32 %v764, %v1087
      %v1089 = vpop.f32.mrb[0].mxu0
      %1090 = vmatprep.mubr.f32.mxu0 0.0
      %1091 = vmatmul.mubr.f32.gmra.mrb[0].mxu0 %v888
      %v1092 = vpop.f32.mrb[0].mxu0
      %v1093 = vadd.f32 %v769, %v1092
      %v1094 = vpop.f32.mrb[0].mxu0
      %1095 = vmatprep.mubr.f32.mxu0 0.0
      %1096 = vmatmul.mubr.f32.gmra.mrb[0].mxu0 %v891
      %v1097 = vpop.f32.mrb[0].mxu0
      %v1098 = vadd.f32 %v774, %v1097
      %v1099 = vpop.f32.mrb[0].mxu0
      %1100 = vmatprep.mubr.f32.mxu0 0.0
      %1101 = vmatmul.mubr.f32.gmra.mrb[0].mxu0 %v894
      %v1102 = vpop.f32.mrb[0].mxu0
      %v1103 = vadd.f32 %v779, %v1102
      %v1104 = vpop.f32.mrb[0].mxu0
      %1105 = vmatprep.mubr.f32.mxu0 0.0
      %1106 = vmatmul.mubr.f32.gmra.mrb[0].mxu0 %v897
      %v1107 = vpop.f32.mrb[0].mxu0
      %v1108 = vadd.f32 %v784, %v1107
      %v1109 = vpop.f32.mrb[0].mxu0
      %1110 = vmatprep.mubr.f32.mxu0 0.0
      %1111 = vmatmul.mubr.f32.gmra.mrb[0].mxu0 %v900
      %v1112 = vpop.f32.mrb[0].mxu0
      %v1113 = vadd.f32 %v789, %v1112
      %v1114 = vpop.f32.mrb[0].mxu0
      %1115 = vmatprep.mubr.f32.mxu0 0.0
      %1116 = vmatmul.mubr.f32.gmra.mrb[0].mxu0 %v903
      %v1117 = vpop.f32.mrb[0].mxu0
      %v1118 = vadd.f32 %v794, %v1117
      %v1119 = vpop.f32.mrb[0].mxu0
      %1120 = vmatprep.mubr.f32.mxu0 0.0
      %1121 = vmatmul.mubr.f32.gmra.mrb[0].mxu0 %v906
      %v1122 = vpop.f32.mrb[0].mxu0
      %v1123 = vadd.f32 %v799, %v1122
      %v1124 = vpop.f32.mrb[0].mxu0
      %1125 = vmatprep.mubr.f32.mxu0 0.0
      %1126 = vmatmul.mubr.f32.gmra.mrb[0].mxu0 %v909
      %v1127 = vpop.f32.mrb[0].mxu0
      %v1128 = vadd.f32 %v804, %v1127
      %v1129 = vpop.f32.mrb[0].mxu0
      %1130 = vmatprep.mubr.f32.mxu0 0.0
      %1131 = vmatmul.mubr.f32.gmra.mrb[0].mxu0 %v912
      %v1132 = vpop.f32.mrb[0].mxu0
      %v1133 = vadd.f32 %v809, %v1132
      %v1134 = vpop.f32.mrb[0].mxu0
      %1135 = vmatprep.mubr.f32.mxu0 0.0
      %1136 = vmatmul.mubr.f32.gmra.mrb[0].mxu0 %v915
      %v1137 = vpop.f32.mrb[0].mxu0
      %v1138 = vadd.f32 %v814, %v1137
      %v1139 = vpop.f32.mrb[0].mxu0
      %1140 = vmatprep.mubr.f32.mxu0 0.0
      %1141 = vmatmul.mubr.f32.gmra.mrb[0].mxu0 %v918
      %v1142 = vpop.f32.mrb[0].mxu0
      %v1143 = vadd.f32 %v819, %v1142
      %v1144 = vpop.f32.mrb[0].mxu0
      %1145 = vmatprep.mubr.f32.mxu0 0.0
      %1146 = vmatmul.mubr.f32.gmra.mrb[0].mxu0 %v921
      %v1147 = vpop.f32.mrb[0].mxu0
      %v1148 = vadd.f32 %v824, %v1147
      %v1149 = vpop.f32.mrb[0].mxu0
      %1150 = vdwg.mxu0
      %v1151 = vld [vmem:[#allocation2 + $0x9] sm:$0xff]
      %v1152 = vld [vmem:[#allocation2 + $0x11] sm:$0xff]
      %v1153 = vld [vmem:[#allocation2 + $0x29] sm:$0xff]
      %v1154 = vld [vmem:[#allocation2 + $0x31] sm:$0xff]
      %v1155 = vld [vmem:[#allocation2 + $0x49] sm:$0xff]
      %v1156 = vld [vmem:[#allocation2 + $0x51] sm:$0xff]
      %v1157 = vld [vmem:[#allocation2 + $0x69] sm:$0xff]
      %v1158 = vld [vmem:[#allocation2 + $0x71] sm:$0xff]
      %v1159 = vld [vmem:[#allocation2 + $0x89] sm:$0xff]
      %v1160 = vld [vmem:[#allocation2 + $0x91] sm:$0xff]
      %v1161 = vld [vmem:[#allocation2 + $0xa9] sm:$0xff]
      %v1162 = vld [vmem:[#allocation2 + $0xb1] sm:$0xff]
      %v1163 = vld [vmem:[#allocation2 + $0xc9] sm:$0xff]
      %v1164 = vld [vmem:[#allocation2 + $0xd1] sm:$0xff]
      %v1165 = vld [vmem:[#allocation2 + $0xe9] sm:$0xff]
      %v1166 = vld [vmem:[#allocation2 + $0xf1] sm:$0xff]
      %v1167 = vld [vmem:[#allocation2 + $0x109] sm:$0xff]
      %v1168 = vld [vmem:[#allocation2 + $0x111] sm:$0xff]
      %v1169 = vld [vmem:[#allocation2 + $0x129] sm:$0xff]
      %v1170 = vld [vmem:[#allocation2 + $0x131] sm:$0xff]
      %v1171 = vld [vmem:[#allocation2 + $0x149] sm:$0xff]
      %v1172 = vld [vmem:[#allocation2 + $0x151] sm:$0xff]
      %v1173 = vld [vmem:[#allocation2 + $0x169] sm:$0xff]
      %v1174 = vld [vmem:[#allocation2 + $0x171] sm:$0xff]
      %v1175 = vld [vmem:[#allocation2 + $0x189] sm:$0xff]
      %v1176 = vld [vmem:[#allocation2 + $0x191] sm:$0xff]
      %v1177 = vld [vmem:[#allocation2 + $0x1a9] sm:$0xff]
      %v1178 = vld [vmem:[#allocation2 + $0x1b1] sm:$0xff]
      %v1179 = vld [vmem:[#allocation2 + $0x1c9] sm:$0xff]
      %v1180 = vld [vmem:[#allocation2 + $0x1d1] sm:$0xff]
      %v1181 = vld [vmem:[#allocation2 + $0x1e9] sm:$0xff]
      %v1182 = vld [vmem:[#allocation2 + $0x1f1] sm:$0xff]
      %s1183 = scalar_lea.vmem %s1, 8
      %v1184 = vld [vmem:[%s1183] sm:$0xf]
      %v1186 = vsel %vm225, %v1151, 0
      %v1189 = vsel %vm225, %v1152, 0
      %v1192 = vsel %vm225, %v1153, 0
      %v1195 = vsel %vm225, %v1154, 0
      %v1198 = vsel %vm225, %v1155, 0
      %v1201 = vsel %vm225, %v1156, 0
      %v1204 = vsel %vm225, %v1157, 0
      %v1207 = vsel %vm225, %v1158, 0
      %v1210 = vsel %vm225, %v1159, 0
      %v1213 = vsel %vm225, %v1160, 0
      %v1216 = vsel %vm225, %v1161, 0
      %v1219 = vsel %vm225, %v1162, 0
      %v1222 = vsel %vm225, %v1163, 0
      %v1225 = vsel %vm225, %v1164, 0
      %v1228 = vsel %vm225, %v1165, 0
      %v1231 = vsel %vm225, %v1166, 0
      %v1234 = vsel %vm225, %v1167, 0
      %v1237 = vsel %vm225, %v1168, 0
      %v1240 = vsel %vm225, %v1169, 0
      %v1243 = vsel %vm225, %v1170, 0
      %v1246 = vsel %vm225, %v1171, 0
      %v1249 = vsel %vm225, %v1172, 0
      %v1252 = vsel %vm225, %v1173, 0
      %v1255 = vsel %vm225, %v1174, 0
      %v1258 = vsel %vm225, %v1175, 0
      %v1261 = vsel %vm225, %v1176, 0
      %v1264 = vsel %vm225, %v1177, 0
      %v1267 = vsel %vm225, %v1178, 0
      %v1270 = vsel %vm225, %v1179, 0
      %v1273 = vsel %vm225, %v1180, 0
      %v1276 = vsel %vm225, %v1181, 0
      %v1279 = vsel %vm225, %v1182, 0
      %v1282 = vsel %vm598, %v1184, 0
      %1284 = vmatprep.subr.mxu0 0.0
      %1285 = vmatpush1.msra.mxu0 %v1282
      %1286 = vmatprep.subr.mxu0 0.0
      %1287 = vmatpush1.msra.mxu0 0.0
      %1288 = vmatprep.subr.mxu0 0.0
      %1289 = vmatpush1.msra.mxu0 0.0
      %1290 = vmatprep.subr.mxu0 0.0
      %1291 = vmatpush1.msra.mxu0 0.0
      %1292 = vmatprep.subr.mxu0 0.0
      %1293 = vmatpush1.msra.mxu0 0.0
      %1294 = vmatprep.subr.mxu0 0.0
      %1295 = vmatpush1.msra.mxu0 0.0
      %1296 = vmatprep.subr.mxu0 0.0
      %1297 = vmatpush1.msra.mxu0 0.0
      %1298 = vmatprep.subr.mxu0 0.0
      %1299 = vmatpush1.msra.mxu0 0.0
      %1300 = vmatprep.subr.mxu0 0.0
      %1301 = vmatpush1.msra.mxu0 0.0
      %1302 = vmatprep.subr.mxu0 0.0
      %1303 = vmatpush1.msra.mxu0 0.0
      %1304 = vmatprep.subr.mxu0 0.0
      %1305 = vmatpush1.msra.mxu0 0.0
      %1306 = vmatprep.subr.mxu0 0.0
      %1307 = vmatpush1.msra.mxu0 0.0
      %1308 = vmatprep.subr.mxu0 0.0
      %1309 = vmatpush1.msra.mxu0 0.0
      %1310 = vmatprep.subr.mxu0 0.0
      %1311 = vmatpush1.msra.mxu0 0.0
      %1312 = vmatprep.subr.mxu0 0.0
      %1313 = vmatpush1.msra.mxu0 0.0
      %1314 = vmatprep.subr.mxu0 0.0
      %1315 = vmatpush1.msra.mxu0 0.0
      %1316 = vmatprep.subr.mxu0 0.0
      %1317 = vmatpush1.msra.mxu0 0.0
      %1318 = vmatprep.subr.mxu0 0.0
      %1319 = vmatpush1.msra.mxu0 0.0
      %1320 = vmatprep.subr.mxu0 0.0
      %1321 = vmatpush1.msra.mxu0 0.0
      %1322 = vmatprep.subr.mxu0 0.0
      %1323 = vmatpush1.msra.mxu0 0.0
      %1324 = vmatprep.subr.mxu0 0.0
      %1325 = vmatpush1.msra.mxu0 0.0
      %1326 = vmatprep.subr.mxu0 0.0
      %1327 = vmatpush1.msra.mxu0 0.0
      %1328 = vmatprep.subr.mxu0 0.0
      %1329 = vmatpush1.msra.mxu0 0.0
      %1330 = vmatprep.subr.mxu0 0.0
      %1331 = vmatpush1.msra.mxu0 0.0
      %1332 = vmatprep.subr.mxu0 0.0
      %1333 = vmatpush1.msra.mxu0 0.0
      %1334 = vmatprep.subr.mxu0 0.0
      %1335 = vmatpush1.msra.mxu0 0.0
      %1336 = vmatprep.subr.mxu0 0.0
      %1337 = vmatpush1.msra.mxu0 0.0
      %1338 = vmatprep.subr.mxu0 0.0
      %1339 = vmatpush1.msra.mxu0 0.0
      %1340 = vmatprep.subr.mxu0 0.0
      %1341 = vmatpush1.msra.mxu0 0.0
      %1342 = vmatprep.subr.mxu0 0.0
      %1343 = vmatpush1.msra.mxu0 0.0
      %1344 = vmatprep.subr.mxu0 0.0
      %1345 = vmatpush1.msra.mxu0 0.0
      %1346 = vmatprep.subr.mxu0 0.0
      %1347 = vmatpush1.msra.mxu0 0.0
      %1348 = vmatprep.mubr.f32.mxu0 0.0
      %1349 = vmatmul.mubr.f32.gmra.mrb[0].mxu0 %v1186
      %v1350 = vpop.f32.mrb[0].mxu0
      %v1351 = vadd.f32 0.0, %v1350
      %v1352 = vpop.f32.mrb[0].mxu0
      %1353 = vmatprep.mubr.f32.mxu0 0.0
      %1354 = vmatmul.mubr.f32.gmra.mrb[0].mxu0 %v1189
      %v1355 = vpop.f32.mrb[0].mxu0
      %v1356 = vadd.f32 0.0, %v1355
      %v1357 = vpop.f32.mrb[0].mxu0
      %1358 = vmatprep.mubr.f32.mxu0 0.0
      %1359 = vmatmul.mubr.f32.gmra.mrb[0].mxu0 %v1192
      %v1360 = vpop.f32.mrb[0].mxu0
      %v1361 = vadd.f32 0.0, %v1360
      %v1362 = vpop.f32.mrb[0].mxu0
      %1363 = vmatprep.mubr.f32.mxu0 0.0
      %1364 = vmatmul.mubr.f32.gmra.mrb[0].mxu0 %v1195
      %v1365 = vpop.f32.mrb[0].mxu0
      %v1366 = vadd.f32 0.0, %v1365
      %v1367 = vpop.f32.mrb[0].mxu0
      %1368 = vmatprep.mubr.f32.mxu0 0.0
      %1369 = vmatmul.mubr.f32.gmra.mrb[0].mxu0 %v1198
      %v1370 = vpop.f32.mrb[0].mxu0
      %v1371 = vadd.f32 0.0, %v1370
      %v1372 = vpop.f32.mrb[0].mxu0
      %1373 = vmatprep.mubr.f32.mxu0 0.0
      %1374 = vmatmul.mubr.f32.gmra.mrb[0].mxu0 %v1201
      %v1375 = vpop.f32.mrb[0].mxu0
      %v1376 = vadd.f32 0.0, %v1375
      %v1377 = vpop.f32.mrb[0].mxu0
      %1378 = vmatprep.mubr.f32.mxu0 0.0
      %1379 = vmatmul.mubr.f32.gmra.mrb[0].mxu0 %v1204
      %v1380 = vpop.f32.mrb[0].mxu0
      %v1381 = vadd.f32 0.0, %v1380
      %v1382 = vpop.f32.mrb[0].mxu0
      %1383 = vmatprep.mubr.f32.mxu0 0.0
      %1384 = vmatmul.mubr.f32.gmra.mrb[0].mxu0 %v1207
      %v1385 = vpop.f32.mrb[0].mxu0
      %v1386 = vadd.f32 0.0, %v1385
      %v1387 = vpop.f32.mrb[0].mxu0
      %1388 = vmatprep.mubr.f32.mxu0 0.0
      %1389 = vmatmul.mubr.f32.gmra.mrb[0].mxu0 %v1210
      %v1390 = vpop.f32.mrb[0].mxu0
      %v1391 = vadd.f32 0.0, %v1390
      %v1392 = vpop.f32.mrb[0].mxu0
      %1393 = vmatprep.mubr.f32.mxu0 0.0
      %1394 = vmatmul.mubr.f32.gmra.mrb[0].mxu0 %v1213
      %v1395 = vpop.f32.mrb[0].mxu0
      %v1396 = vadd.f32 0.0, %v1395
      %v1397 = vpop.f32.mrb[0].mxu0
      %1398 = vmatprep.mubr.f32.mxu0 0.0
      %1399 = vmatmul.mubr.f32.gmra.mrb[0].mxu0 %v1216
      %v1400 = vpop.f32.mrb[0].mxu0
      %v1401 = vadd.f32 0.0, %v1400
      %v1402 = vpop.f32.mrb[0].mxu0
      %1403 = vmatprep.mubr.f32.mxu0 0.0
      %1404 = vmatmul.mubr.f32.gmra.mrb[0].mxu0 %v1219
      %v1405 = vpop.f32.mrb[0].mxu0
      %v1406 = vadd.f32 0.0, %v1405
      %v1407 = vpop.f32.mrb[0].mxu0
      %1408 = vmatprep.mubr.f32.mxu0 0.0
      %1409 = vmatmul.mubr.f32.gmra.mrb[0].mxu0 %v1222
      %v1410 = vpop.f32.mrb[0].mxu0
      %v1411 = vadd.f32 0.0, %v1410
      %v1412 = vpop.f32.mrb[0].mxu0
      %1413 = vmatprep.mubr.f32.mxu0 0.0
      %1414 = vmatmul.mubr.f32.gmra.mrb[0].mxu0 %v1225
      %v1415 = vpop.f32.mrb[0].mxu0
      %v1416 = vadd.f32 0.0, %v1415
      %v1417 = vpop.f32.mrb[0].mxu0
      %1418 = vmatprep.mubr.f32.mxu0 0.0
      %1419 = vmatmul.mubr.f32.gmra.mrb[0].mxu0 %v1228
      %v1420 = vpop.f32.mrb[0].mxu0
      %v1421 = vadd.f32 0.0, %v1420
      %v1422 = vpop.f32.mrb[0].mxu0
      %1423 = vmatprep.mubr.f32.mxu0 0.0
      %1424 = vmatmul.mubr.f32.gmra.mrb[0].mxu0 %v1231
      %v1425 = vpop.f32.mrb[0].mxu0
      %v1426 = vadd.f32 0.0, %v1425
      %v1427 = vpop.f32.mrb[0].mxu0
      %1428 = vmatprep.mubr.f32.mxu0 0.0
      %1429 = vmatmul.mubr.f32.gmra.mrb[0].mxu0 %v1234
      %v1430 = vpop.f32.mrb[0].mxu0
      %v1431 = vadd.f32 0.0, %v1430
      %v1432 = vpop.f32.mrb[0].mxu0
      %1433 = vmatprep.mubr.f32.mxu0 0.0
      %1434 = vmatmul.mubr.f32.gmra.mrb[0].mxu0 %v1237
      %v1435 = vpop.f32.mrb[0].mxu0
      %v1436 = vadd.f32 0.0, %v1435
      %v1437 = vpop.f32.mrb[0].mxu0
      %1438 = vmatprep.mubr.f32.mxu0 0.0
      %1439 = vmatmul.mubr.f32.gmra.mrb[0].mxu0 %v1240
      %v1440 = vpop.f32.mrb[0].mxu0
      %v1441 = vadd.f32 0.0, %v1440
      %v1442 = vpop.f32.mrb[0].mxu0
      %1443 = vmatprep.mubr.f32.mxu0 0.0
      %1444 = vmatmul.mubr.f32.gmra.mrb[0].mxu0 %v1243
      %v1445 = vpop.f32.mrb[0].mxu0
      %v1446 = vadd.f32 0.0, %v1445
      %v1447 = vpop.f32.mrb[0].mxu0
      %1448 = vmatprep.mubr.f32.mxu0 0.0
      %1449 = vmatmul.mubr.f32.gmra.mrb[0].mxu0 %v1246
      %v1450 = vpop.f32.mrb[0].mxu0
      %v1451 = vadd.f32 0.0, %v1450
      %v1452 = vpop.f32.mrb[0].mxu0
      %1453 = vmatprep.mubr.f32.mxu0 0.0
      %1454 = vmatmul.mubr.f32.gmra.mrb[0].mxu0 %v1249
      %v1455 = vpop.f32.mrb[0].mxu0
      %v1456 = vadd.f32 0.0, %v1455
      %v1457 = vpop.f32.mrb[0].mxu0
      %1458 = vmatprep.mubr.f32.mxu0 0.0
      %1459 = vmatmul.mubr.f32.gmra.mrb[0].mxu0 %v1252
      %v1460 = vpop.f32.mrb[0].mxu0
      %v1461 = vadd.f32 0.0, %v1460
      %v1462 = vpop.f32.mrb[0].mxu0
      %1463 = vmatprep.mubr.f32.mxu0 0.0
      %1464 = vmatmul.mubr.f32.gmra.mrb[0].mxu0 %v1255
      %v1465 = vpop.f32.mrb[0].mxu0
      %v1466 = vadd.f32 0.0, %v1465
      %v1467 = vpop.f32.mrb[0].mxu0
      %1468 = vmatprep.mubr.f32.mxu0 0.0
      %1469 = vmatmul.mubr.f32.gmra.mrb[0].mxu0 %v1258
      %v1470 = vpop.f32.mrb[0].mxu0
      %v1471 = vadd.f32 0.0, %v1470
      %v1472 = vpop.f32.mrb[0].mxu0
      %1473 = vmatprep.mubr.f32.mxu0 0.0
      %1474 = vmatmul.mubr.f32.gmra.mrb[0].mxu0 %v1261
      %v1475 = vpop.f32.mrb[0].mxu0
      %v1476 = vadd.f32 0.0, %v1475
      %v1477 = vpop.f32.mrb[0].mxu0
      %1478 = vmatprep.mubr.f32.mxu0 0.0
      %1479 = vmatmul.mubr.f32.gmra.mrb[0].mxu0 %v1264
      %v1480 = vpop.f32.mrb[0].mxu0
      %v1481 = vadd.f32 0.0, %v1480
      %v1482 = vpop.f32.mrb[0].mxu0
      %1483 = vmatprep.mubr.f32.mxu0 0.0
      %1484 = vmatmul.mubr.f32.gmra.mrb[0].mxu0 %v1267
      %v1485 = vpop.f32.mrb[0].mxu0
      %v1486 = vadd.f32 0.0, %v1485
      %v1487 = vpop.f32.mrb[0].mxu0
      %1488 = vmatprep.mubr.f32.mxu0 0.0
      %1489 = vmatmul.mubr.f32.gmra.mrb[0].mxu0 %v1270
      %v1490 = vpop.f32.mrb[0].mxu0
      %v1491 = vadd.f32 0.0, %v1490
      %v1492 = vpop.f32.mrb[0].mxu0
      %1493 = vmatprep.mubr.f32.mxu0 0.0
      %1494 = vmatmul.mubr.f32.gmra.mrb[0].mxu0 %v1273
      %v1495 = vpop.f32.mrb[0].mxu0
      %v1496 = vadd.f32 0.0, %v1495
      %v1497 = vpop.f32.mrb[0].mxu0
      %1498 = vmatprep.mubr.f32.mxu0 0.0
      %1499 = vmatmul.mubr.f32.gmra.mrb[0].mxu0 %v1276
      %v1500 = vpop.f32.mrb[0].mxu0
      %v1501 = vadd.f32 0.0, %v1500
      %v1502 = vpop.f32.mrb[0].mxu0
      %1503 = vmatprep.mubr.f32.mxu0 0.0
      %1504 = vmatmul.mubr.f32.gmra.mrb[0].mxu0 %v1279
      %v1505 = vpop.f32.mrb[0].mxu0
      %v1506 = vadd.f32 0.0, %v1505
      %v1507 = vpop.f32.mrb[0].mxu0
      %1508 = vdwg.mxu0
      %v1509 = vadd.f32 %v993, %v1351
      %v1510 = vadd.f32 %v998, %v1356
      %v1511 = vadd.f32 %v1003, %v1361
      %v1512 = vadd.f32 %v1008, %v1366
      %v1513 = vadd.f32 %v1013, %v1371
      %v1514 = vadd.f32 %v1018, %v1376
      %v1515 = vadd.f32 %v1023, %v1381
      %v1516 = vadd.f32 %v1028, %v1386
      %v1517 = vadd.f32 %v1033, %v1391
      %v1518 = vadd.f32 %v1038, %v1396
      %v1519 = vadd.f32 %v1043, %v1401
      %v1520 = vadd.f32 %v1048, %v1406
      %v1521 = vadd.f32 %v1053, %v1411
      %v1522 = vadd.f32 %v1058, %v1416
      %v1523 = vadd.f32 %v1063, %v1421
      %v1524 = vadd.f32 %v1068, %v1426
      %v1525 = vadd.f32 %v1073, %v1431
      %v1526 = vadd.f32 %v1078, %v1436
      %v1527 = vadd.f32 %v1083, %v1441
      %v1528 = vadd.f32 %v1088, %v1446
      %v1529 = vadd.f32 %v1093, %v1451
      %v1530 = vadd.f32 %v1098, %v1456
      %v1531 = vadd.f32 %v1103, %v1461
      %v1532 = vadd.f32 %v1108, %v1466
      %v1533 = vadd.f32 %v1113, %v1471
      %v1534 = vadd.f32 %v1118, %v1476
      %v1535 = vadd.f32 %v1123, %v1481
      %v1536 = vadd.f32 %v1128, %v1486
      %v1537 = vadd.f32 %v1133, %v1491
      %v1538 = vadd.f32 %v1138, %v1496
      %v1539 = vadd.f32 %v1143, %v1501
      %v1540 = vadd.f32 %v1148, %v1506
      %v1541 = vld [vmem:[%s402 + $0x7] sm:$0xff]
      %v1542 = vld [vmem:[%s402 + $0xf] sm:$0xff]
      %v1543 = vld [vmem:[%s402 + $0x27] sm:$0xff]
      %v1544 = vld [vmem:[%s402 + $0x2f] sm:$0xff]
      %v1545 = vld [vmem:[%s402 + $0x47] sm:$0xff]
      %v1546 = vld [vmem:[%s402 + $0x4f] sm:$0xff]
      %v1547 = vld [vmem:[%s402 + $0x67] sm:$0xff]
      %v1548 = vld [vmem:[%s402 + $0x6f] sm:$0xff]
      %v1549 = vld [vmem:[%s402 + $0x87] sm:$0xff]
      %v1550 = vld [vmem:[%s402 + $0x8f] sm:$0xff]
      %v1551 = vld [vmem:[%s402 + $0xa7] sm:$0xff]
      %v1552 = vld [vmem:[%s402 + $0xaf] sm:$0xff]
      %v1553 = vld [vmem:[%s402 + $0xc7] sm:$0xff]
      %v1554 = vld [vmem:[%s402 + $0xcf] sm:$0xff]
      %v1555 = vld [vmem:[%s402 + $0xe7] sm:$0xff]
      %v1556 = vld [vmem:[%s402 + $0xef] sm:$0xff]
      %v1557 = vld [vmem:[%s402 + $0x107] sm:$0xff]
      %v1558 = vld [vmem:[%s402 + $0x10f] sm:$0xff]
      %v1559 = vld [vmem:[%s402 + $0x127] sm:$0xff]
      %v1560 = vld [vmem:[%s402 + $0x12f] sm:$0xff]
      %v1561 = vld [vmem:[%s402 + $0x147] sm:$0xff]
      %v1562 = vld [vmem:[%s402 + $0x14f] sm:$0xff]
      %v1563 = vld [vmem:[%s402 + $0x167] sm:$0xff]
      %v1564 = vld [vmem:[%s402 + $0x16f] sm:$0xff]
      %v1565 = vld [vmem:[%s402 + $0x187] sm:$0xff]
      %v1566 = vld [vmem:[%s402 + $0x18f] sm:$0xff]
      %v1567 = vld [vmem:[%s402 + $0x1a7] sm:$0xff]
      %v1568 = vld [vmem:[%s402 + $0x1af] sm:$0xff]
      %v1569 = vld [vmem:[%s402 + $0x1c7] sm:$0xff]
      %v1570 = vld [vmem:[%s402 + $0x1cf] sm:$0xff]
      %v1571 = vld [vmem:[%s402 + $0x1e7] sm:$0xff]
      %v1572 = vld [vmem:[%s402 + $0x1ef] sm:$0xff]
      %s1573 = scalar_lea.vmem %s1, 12
      %v1574 = vld [vmem:[%s1573] sm:$0xf]
      %v1576 = vsel %vm225, %v1541, 0
      %v1579 = vsel %vm225, %v1542, 0
      %v1582 = vsel %vm225, %v1543, 0
      %v1585 = vsel %vm225, %v1544, 0
      %v1588 = vsel %vm225, %v1545, 0
      %v1591 = vsel %vm225, %v1546, 0
      %v1594 = vsel %vm225, %v1547, 0
      %v1597 = vsel %vm225, %v1548, 0
      %v1600 = vsel %vm225, %v1549, 0
      %v1603 = vsel %vm225, %v1550, 0
      %v1606 = vsel %vm225, %v1551, 0
      %v1609 = vsel %vm225, %v1552, 0
      %v1612 = vsel %vm225, %v1553, 0
      %v1615 = vsel %vm225, %v1554, 0
      %v1618 = vsel %vm225, %v1555, 0
      %v1621 = vsel %vm225, %v1556, 0
      %v1624 = vsel %vm225, %v1557, 0
      %v1627 = vsel %vm225, %v1558, 0
      %v1630 = vsel %vm225, %v1559, 0
      %v1633 = vsel %vm225, %v1560, 0
      %v1636 = vsel %vm225, %v1561, 0
      %v1639 = vsel %vm225, %v1562, 0
      %v1642 = vsel %vm225, %v1563, 0
      %v1645 = vsel %vm225, %v1564, 0
      %v1648 = vsel %vm225, %v1565, 0
      %v1651 = vsel %vm225, %v1566, 0
      %v1654 = vsel %vm225, %v1567, 0
      %v1657 = vsel %vm225, %v1568, 0
      %v1660 = vsel %vm225, %v1569, 0
      %v1663 = vsel %vm225, %v1570, 0
      %v1666 = vsel %vm225, %v1571, 0
      %v1669 = vsel %vm225, %v1572, 0
      %v1672 = vsel %vm598, %v1574, 0
      %1674 = vmatprep.subr.mxu0 0.0
      %1675 = vmatpush1.msra.mxu0 %v1672
      %1676 = vmatprep.subr.mxu0 0.0
      %1677 = vmatpush1.msra.mxu0 0.0
      %1678 = vmatprep.subr.mxu0 0.0
      %1679 = vmatpush1.msra.mxu0 0.0
      %1680 = vmatprep.subr.mxu0 0.0
      %1681 = vmatpush1.msra.mxu0 0.0
      %1682 = vmatprep.subr.mxu0 0.0
      %1683 = vmatpush1.msra.mxu0 0.0
      %1684 = vmatprep.subr.mxu0 0.0
      %1685 = vmatpush1.msra.mxu0 0.0
      %1686 = vmatprep.subr.mxu0 0.0
      %1687 = vmatpush1.msra.mxu0 0.0
      %1688 = vmatprep.subr.mxu0 0.0
      %1689 = vmatpush1.msra.mxu0 0.0
      %1690 = vmatprep.subr.mxu0 0.0
      %1691 = vmatpush1.msra.mxu0 0.0
      %1692 = vmatprep.subr.mxu0 0.0
      %1693 = vmatpush1.msra.mxu0 0.0
      %1694 = vmatprep.subr.mxu0 0.0
      %1695 = vmatpush1.msra.mxu0 0.0
      %1696 = vmatprep.subr.mxu0 0.0
      %1697 = vmatpush1.msra.mxu0 0.0
      %1698 = vmatprep.subr.mxu0 0.0
      %1699 = vmatpush1.msra.mxu0 0.0
      %1700 = vmatprep.subr.mxu0 0.0
      %1701 = vmatpush1.msra.mxu0 0.0
      %1702 = vmatprep.subr.mxu0 0.0
      %1703 = vmatpush1.msra.mxu0 0.0
      %1704 = vmatprep.subr.mxu0 0.0
      %1705 = vmatpush1.msra.mxu0 0.0
      %1706 = vmatprep.subr.mxu0 0.0
      %1707 = vmatpush1.msra.mxu0 0.0
      %1708 = vmatprep.subr.mxu0 0.0
      %1709 = vmatpush1.msra.mxu0 0.0
      %1710 = vmatprep.subr.mxu0 0.0
      %1711 = vmatpush1.msra.mxu0 0.0
      %1712 = vmatprep.subr.mxu0 0.0
      %1713 = vmatpush1.msra.mxu0 0.0
      %1714 = vmatprep.subr.mxu0 0.0
      %1715 = vmatpush1.msra.mxu0 0.0
      %1716 = vmatprep.subr.mxu0 0.0
      %1717 = vmatpush1.msra.mxu0 0.0
      %1718 = vmatprep.subr.mxu0 0.0
      %1719 = vmatpush1.msra.mxu0 0.0
      %1720 = vmatprep.subr.mxu0 0.0
      %1721 = vmatpush1.msra.mxu0 0.0
      %1722 = vmatprep.subr.mxu0 0.0
      %1723 = vmatpush1.msra.mxu0 0.0
      %1724 = vmatprep.subr.mxu0 0.0
      %1725 = vmatpush1.msra.mxu0 0.0
      %1726 = vmatprep.subr.mxu0 0.0
      %1727 = vmatpush1.msra.mxu0 0.0
      %1728 = vmatprep.subr.mxu0 0.0
      %1729 = vmatpush1.msra.mxu0 0.0
      %1730 = vmatprep.subr.mxu0 0.0
      %1731 = vmatpush1.msra.mxu0 0.0
      %1732 = vmatprep.subr.mxu0 0.0
      %1733 = vmatpush1.msra.mxu0 0.0
      %1734 = vmatprep.subr.mxu0 0.0
      %1735 = vmatpush1.msra.mxu0 0.0
      %1736 = vmatprep.subr.mxu0 0.0
      %1737 = vmatpush1.msra.mxu0 0.0
      %1738 = vmatprep.mubr.f32.mxu0 0.0
      %1739 = vmatmul.mubr.f32.gmra.mrb[0].mxu0 %v1576
      %v1740 = vpop.f32.mrb[0].mxu0
      %v1741 = vadd.f32 0.0, %v1740
      %v1742 = vpop.f32.mrb[0].mxu0
      %1743 = vmatprep.mubr.f32.mxu0 0.0
      %1744 = vmatmul.mubr.f32.gmra.mrb[0].mxu0 %v1579
      %v1745 = vpop.f32.mrb[0].mxu0
      %v1746 = vadd.f32 0.0, %v1745
      %v1747 = vpop.f32.mrb[0].mxu0
      %1748 = vmatprep.mubr.f32.mxu0 0.0
      %1749 = vmatmul.mubr.f32.gmra.mrb[0].mxu0 %v1582
      %v1750 = vpop.f32.mrb[0].mxu0
      %v1751 = vadd.f32 0.0, %v1750
      %v1752 = vpop.f32.mrb[0].mxu0
      %1753 = vmatprep.mubr.f32.mxu0 0.0
      %1754 = vmatmul.mubr.f32.gmra.mrb[0].mxu0 %v1585
      %v1755 = vpop.f32.mrb[0].mxu0
      %v1756 = vadd.f32 0.0, %v1755
      %v1757 = vpop.f32.mrb[0].mxu0
      %1758 = vmatprep.mubr.f32.mxu0 0.0
      %1759 = vmatmul.mubr.f32.gmra.mrb[0].mxu0 %v1588
      %v1760 = vpop.f32.mrb[0].mxu0
      %v1761 = vadd.f32 0.0, %v1760
      %v1762 = vpop.f32.mrb[0].mxu0
      %1763 = vmatprep.mubr.f32.mxu0 0.0
      %1764 = vmatmul.mubr.f32.gmra.mrb[0].mxu0 %v1591
      %v1765 = vpop.f32.mrb[0].mxu0
      %v1766 = vadd.f32 0.0, %v1765
      %v1767 = vpop.f32.mrb[0].mxu0
      %1768 = vmatprep.mubr.f32.mxu0 0.0
      %1769 = vmatmul.mubr.f32.gmra.mrb[0].mxu0 %v1594
      %v1770 = vpop.f32.mrb[0].mxu0
      %v1771 = vadd.f32 0.0, %v1770
      %v1772 = vpop.f32.mrb[0].mxu0
      %1773 = vmatprep.mubr.f32.mxu0 0.0
      %1774 = vmatmul.mubr.f32.gmra.mrb[0].mxu0 %v1597
      %v1775 = vpop.f32.mrb[0].mxu0
      %v1776 = vadd.f32 0.0, %v1775
      %v1777 = vpop.f32.mrb[0].mxu0
      %1778 = vmatprep.mubr.f32.mxu0 0.0
      %1779 = vmatmul.mubr.f32.gmra.mrb[0].mxu0 %v1600
      %v1780 = vpop.f32.mrb[0].mxu0
      %v1781 = vadd.f32 0.0, %v1780
      %v1782 = vpop.f32.mrb[0].mxu0
      %1783 = vmatprep.mubr.f32.mxu0 0.0
      %1784 = vmatmul.mubr.f32.gmra.mrb[0].mxu0 %v1603
      %v1785 = vpop.f32.mrb[0].mxu0
      %v1786 = vadd.f32 0.0, %v1785
      %v1787 = vpop.f32.mrb[0].mxu0
      %1788 = vmatprep.mubr.f32.mxu0 0.0
      %1789 = vmatmul.mubr.f32.gmra.mrb[0].mxu0 %v1606
      %v1790 = vpop.f32.mrb[0].mxu0
      %v1791 = vadd.f32 0.0, %v1790
      %v1792 = vpop.f32.mrb[0].mxu0
      %1793 = vmatprep.mubr.f32.mxu0 0.0
      %1794 = vmatmul.mubr.f32.gmra.mrb[0].mxu0 %v1609
      %v1795 = vpop.f32.mrb[0].mxu0
      %v1796 = vadd.f32 0.0, %v1795
      %v1797 = vpop.f32.mrb[0].mxu0
      %1798 = vmatprep.mubr.f32.mxu0 0.0
      %1799 = vmatmul.mubr.f32.gmra.mrb[0].mxu0 %v1612
      %v1800 = vpop.f32.mrb[0].mxu0
      %v1801 = vadd.f32 0.0, %v1800
      %v1802 = vpop.f32.mrb[0].mxu0
      %1803 = vmatprep.mubr.f32.mxu0 0.0
      %1804 = vmatmul.mubr.f32.gmra.mrb[0].mxu0 %v1615
      %v1805 = vpop.f32.mrb[0].mxu0
      %v1806 = vadd.f32 0.0, %v1805
      %v1807 = vpop.f32.mrb[0].mxu0
      %1808 = vmatprep.mubr.f32.mxu0 0.0
      %1809 = vmatmul.mubr.f32.gmra.mrb[0].mxu0 %v1618
      %v1810 = vpop.f32.mrb[0].mxu0
      %v1811 = vadd.f32 0.0, %v1810
      %v1812 = vpop.f32.mrb[0].mxu0
      %1813 = vmatprep.mubr.f32.mxu0 0.0
      %1814 = vmatmul.mubr.f32.gmra.mrb[0].mxu0 %v1621
      %v1815 = vpop.f32.mrb[0].mxu0
      %v1816 = vadd.f32 0.0, %v1815
      %v1817 = vpop.f32.mrb[0].mxu0
      %1818 = vmatprep.mubr.f32.mxu0 0.0
      %1819 = vmatmul.mubr.f32.gmra.mrb[0].mxu0 %v1624
      %v1820 = vpop.f32.mrb[0].mxu0
      %v1821 = vadd.f32 0.0, %v1820
      %v1822 = vpop.f32.mrb[0].mxu0
      %1823 = vmatprep.mubr.f32.mxu0 0.0
      %1824 = vmatmul.mubr.f32.gmra.mrb[0].mxu0 %v1627
      %v1825 = vpop.f32.mrb[0].mxu0
      %v1826 = vadd.f32 0.0, %v1825
      %v1827 = vpop.f32.mrb[0].mxu0
      %1828 = vmatprep.mubr.f32.mxu0 0.0
      %1829 = vmatmul.mubr.f32.gmra.mrb[0].mxu0 %v1630
      %v1830 = vpop.f32.mrb[0].mxu0
      %v1831 = vadd.f32 0.0, %v1830
      %v1832 = vpop.f32.mrb[0].mxu0
      %1833 = vmatprep.mubr.f32.mxu0 0.0
      %1834 = vmatmul.mubr.f32.gmra.mrb[0].mxu0 %v1633
      %v1835 = vpop.f32.mrb[0].mxu0
      %v1836 = vadd.f32 0.0, %v1835
      %v1837 = vpop.f32.mrb[0].mxu0
      %1838 = vmatprep.mubr.f32.mxu0 0.0
      %1839 = vmatmul.mubr.f32.gmra.mrb[0].mxu0 %v1636
      %v1840 = vpop.f32.mrb[0].mxu0
      %v1841 = vadd.f32 0.0, %v1840
      %v1842 = vpop.f32.mrb[0].mxu0
      %1843 = vmatprep.mubr.f32.mxu0 0.0
      %1844 = vmatmul.mubr.f32.gmra.mrb[0].mxu0 %v1639
      %v1845 = vpop.f32.mrb[0].mxu0
      %v1846 = vadd.f32 0.0, %v1845
      %v1847 = vpop.f32.mrb[0].mxu0
      %1848 = vmatprep.mubr.f32.mxu0 0.0
      %1849 = vmatmul.mubr.f32.gmra.mrb[0].mxu0 %v1642
      %v1850 = vpop.f32.mrb[0].mxu0
      %v1851 = vadd.f32 0.0, %v1850
      %v1852 = vpop.f32.mrb[0].mxu0
      %1853 = vmatprep.mubr.f32.mxu0 0.0
      %1854 = vmatmul.mubr.f32.gmra.mrb[0].mxu0 %v1645
      %v1855 = vpop.f32.mrb[0].mxu0
      %v1856 = vadd.f32 0.0, %v1855
      %v1857 = vpop.f32.mrb[0].mxu0
      %1858 = vmatprep.mubr.f32.mxu0 0.0
      %1859 = vmatmul.mubr.f32.gmra.mrb[0].mxu0 %v1648
      %v1860 = vpop.f32.mrb[0].mxu0
      %v1861 = vadd.f32 0.0, %v1860
      %v1862 = vpop.f32.mrb[0].mxu0
      %1863 = vmatprep.mubr.f32.mxu0 0.0
      %1864 = vmatmul.mubr.f32.gmra.mrb[0].mxu0 %v1651
      %v1865 = vpop.f32.mrb[0].mxu0
      %v1866 = vadd.f32 0.0, %v1865
      %v1867 = vpop.f32.mrb[0].mxu0
      %1868 = vmatprep.mubr.f32.mxu0 0.0
      %1869 = vmatmul.mubr.f32.gmra.mrb[0].mxu0 %v1654
      %v1870 = vpop.f32.mrb[0].mxu0
      %v1871 = vadd.f32 0.0, %v1870
      %v1872 = vpop.f32.mrb[0].mxu0
      %1873 = vmatprep.mubr.f32.mxu0 0.0
      %1874 = vmatmul.mubr.f32.gmra.mrb[0].mxu0 %v1657
      %v1875 = vpop.f32.mrb[0].mxu0
      %v1876 = vadd.f32 0.0, %v1875
      %v1877 = vpop.f32.mrb[0].mxu0
      %1878 = vmatprep.mubr.f32.mxu0 0.0
      %1879 = vmatmul.mubr.f32.gmra.mrb[0].mxu0 %v1660
      %v1880 = vpop.f32.mrb[0].mxu0
      %v1881 = vadd.f32 0.0, %v1880
      %v1882 = vpop.f32.mrb[0].mxu0
      %1883 = vmatprep.mubr.f32.mxu0 0.0
      %1884 = vmatmul.mubr.f32.gmra.mrb[0].mxu0 %v1663
      %v1885 = vpop.f32.mrb[0].mxu0
      %v1886 = vadd.f32 0.0, %v1885
      %v1887 = vpop.f32.mrb[0].mxu0
      %1888 = vmatprep.mubr.f32.mxu0 0.0
      %1889 = vmatmul.mubr.f32.gmra.mrb[0].mxu0 %v1666
      %v1890 = vpop.f32.mrb[0].mxu0
      %v1891 = vadd.f32 0.0, %v1890
      %v1892 = vpop.f32.mrb[0].mxu0
      %1893 = vmatprep.mubr.f32.mxu0 0.0
      %1894 = vmatmul.mubr.f32.gmra.mrb[0].mxu0 %v1669
      %v1895 = vpop.f32.mrb[0].mxu0
      %v1896 = vadd.f32 0.0, %v1895
      %v1897 = vpop.f32.mrb[0].mxu0
      %1898 = vdwg.mxu0
      %v1899 = vadd.f32 %v1509, %v1741
      %v1900 = vadd.f32 %v1510, %v1746
      %v1901 = vadd.f32 %v1511, %v1751
      %v1902 = vadd.f32 %v1512, %v1756
      %v1903 = vadd.f32 %v1513, %v1761
      %v1904 = vadd.f32 %v1514, %v1766
      %v1905 = vadd.f32 %v1515, %v1771
      %v1906 = vadd.f32 %v1516, %v1776
      %v1907 = vadd.f32 %v1517, %v1781
      %v1908 = vadd.f32 %v1518, %v1786
      %v1909 = vadd.f32 %v1519, %v1791
      %v1910 = vadd.f32 %v1520, %v1796
      %v1911 = vadd.f32 %v1521, %v1801
      %v1912 = vadd.f32 %v1522, %v1806
      %v1913 = vadd.f32 %v1523, %v1811
      %v1914 = vadd.f32 %v1524, %v1816
      %v1915 = vadd.f32 %v1525, %v1821
      %v1916 = vadd.f32 %v1526, %v1826
      %v1917 = vadd.f32 %v1527, %v1831
      %v1918 = vadd.f32 %v1528, %v1836
      %v1919 = vadd.f32 %v1529, %v1841
      %v1920 = vadd.f32 %v1530, %v1846
      %v1921 = vadd.f32 %v1531, %v1851
      %v1922 = vadd.f32 %v1532, %v1856
      %v1923 = vadd.f32 %v1533, %v1861
      %v1924 = vadd.f32 %v1534, %v1866
      %v1925 = vadd.f32 %v1535, %v1871
      %v1926 = vadd.f32 %v1536, %v1876
      %v1927 = vadd.f32 %v1537, %v1881
      %v1928 = vadd.f32 %v1538, %v1886
      %v1929 = vadd.f32 %v1539, %v1891
      %v1930 = vadd.f32 %v1540, %v1896
      %v1931 = vld [vmem:[%s402 + $0x8] sm:$0xff]
      %v1932 = vld [vmem:[%s402 + $0x10] sm:$0xff]
      %v1933 = vld [vmem:[%s402 + $0x28] sm:$0xff]
      %v1934 = vld [vmem:[%s402 + $0x30] sm:$0xff]
      %v1935 = vld [vmem:[%s402 + $0x48] sm:$0xff]
      %v1936 = vld [vmem:[%s402 + $0x50] sm:$0xff]
      %v1937 = vld [vmem:[%s402 + $0x68] sm:$0xff]
      %v1938 = vld [vmem:[%s402 + $0x70] sm:$0xff]
      %v1939 = vld [vmem:[%s402 + $0x88] sm:$0xff]
      %v1940 = vld [vmem:[%s402 + $0x90] sm:$0xff]
      %v1941 = vld [vmem:[%s402 + $0xa8] sm:$0xff]
      %v1942 = vld [vmem:[%s402 + $0xb0] sm:$0xff]
      %v1943 = vld [vmem:[%s402 + $0xc8] sm:$0xff]
      %v1944 = vld [vmem:[%s402 + $0xd0] sm:$0xff]
      %v1945 = vld [vmem:[%s402 + $0xe8] sm:$0xff]
      %v1946 = vld [vmem:[%s402 + $0xf0] sm:$0xff]
      %v1947 = vld [vmem:[%s402 + $0x108] sm:$0xff]
      %v1948 = vld [vmem:[%s402 + $0x110] sm:$0xff]
      %v1949 = vld [vmem:[%s402 + $0x128] sm:$0xff]
      %v1950 = vld [vmem:[%s402 + $0x130] sm:$0xff]
      %v1951 = vld [vmem:[%s402 + $0x148] sm:$0xff]
      %v1952 = vld [vmem:[%s402 + $0x150] sm:$0xff]
      %v1953 = vld [vmem:[%s402 + $0x168] sm:$0xff]
      %v1954 = vld [vmem:[%s402 + $0x170] sm:$0xff]
      %v1955 = vld [vmem:[%s402 + $0x188] sm:$0xff]
      %v1956 = vld [vmem:[%s402 + $0x190] sm:$0xff]
      %v1957 = vld [vmem:[%s402 + $0x1a8] sm:$0xff]
      %v1958 = vld [vmem:[%s402 + $0x1b0] sm:$0xff]
      %v1959 = vld [vmem:[%s402 + $0x1c8] sm:$0xff]
      %v1960 = vld [vmem:[%s402 + $0x1d0] sm:$0xff]
      %v1961 = vld [vmem:[%s402 + $0x1e8] sm:$0xff]
      %v1962 = vld [vmem:[%s402 + $0x1f0] sm:$0xff]
      %s1963 = scalar_lea.vmem %s1, 16
      %v1964 = vld [vmem:[%s1963] sm:$0xf]
      %v1966 = vsel %vm225, %v1931, 0
      %v1969 = vsel %vm225, %v1932, 0
      %v1972 = vsel %vm225, %v1933, 0
      %v1975 = vsel %vm225, %v1934, 0
      %v1978 = vsel %vm225, %v1935, 0
      %v1981 = vsel %vm225, %v1936, 0
      %v1984 = vsel %vm225, %v1937, 0
      %v1987 = vsel %vm225, %v1938, 0
      %v1990 = vsel %vm225, %v1939, 0
      %v1993 = vsel %vm225, %v1940, 0
      %v1996 = vsel %vm225, %v1941, 0
      %v1999 = vsel %vm225, %v1942, 0
      %v2002 = vsel %vm225, %v1943, 0
      %v2005 = vsel %vm225, %v1944, 0
      %v2008 = vsel %vm225, %v1945, 0
      %v2011 = vsel %vm225, %v1946, 0
      %v2014 = vsel %vm225, %v1947, 0
      %v2017 = vsel %vm225, %v1948, 0
      %v2020 = vsel %vm225, %v1949, 0
      %v2023 = vsel %vm225, %v1950, 0
      %v2026 = vsel %vm225, %v1951, 0
      %v2029 = vsel %vm225, %v1952, 0
      %v2032 = vsel %vm225, %v1953, 0
      %v2035 = vsel %vm225, %v1954, 0
      %v2038 = vsel %vm225, %v1955, 0
      %v2041 = vsel %vm225, %v1956, 0
      %v2044 = vsel %vm225, %v1957, 0
      %v2047 = vsel %vm225, %v1958, 0
      %v2050 = vsel %vm225, %v1959, 0
      %v2053 = vsel %vm225, %v1960, 0
      %v2056 = vsel %vm225, %v1961, 0
      %v2059 = vsel %vm225, %v1962, 0
      %v2062 = vsel %vm598, %v1964, 0
      %2064 = vmatprep.subr.mxu0 0.0
      %2065 = vmatpush1.msra.mxu0 %v2062
      %2066 = vmatprep.subr.mxu0 0.0
      %2067 = vmatpush1.msra.mxu0 0.0
      %2068 = vmatprep.subr.mxu0 0.0
      %2069 = vmatpush1.msra.mxu0 0.0
      %2070 = vmatprep.subr.mxu0 0.0
      %2071 = vmatpush1.msra.mxu0 0.0
      %2072 = vmatprep.subr.mxu0 0.0
      %2073 = vmatpush1.msra.mxu0 0.0
      %2074 = vmatprep.subr.mxu0 0.0
      %2075 = vmatpush1.msra.mxu0 0.0
      %2076 = vmatprep.subr.mxu0 0.0
      %2077 = vmatpush1.msra.mxu0 0.0
      %2078 = vmatprep.subr.mxu0 0.0
      %2079 = vmatpush1.msra.mxu0 0.0
      %2080 = vmatprep.subr.mxu0 0.0
      %2081 = vmatpush1.msra.mxu0 0.0
      %2082 = vmatprep.subr.mxu0 0.0
      %2083 = vmatpush1.msra.mxu0 0.0
      %2084 = vmatprep.subr.mxu0 0.0
      %2085 = vmatpush1.msra.mxu0 0.0
      %2086 = vmatprep.subr.mxu0 0.0
      %2087 = vmatpush1.msra.mxu0 0.0
      %2088 = vmatprep.subr.mxu0 0.0
      %2089 = vmatpush1.msra.mxu0 0.0
      %2090 = vmatprep.subr.mxu0 0.0
      %2091 = vmatpush1.msra.mxu0 0.0
      %2092 = vmatprep.subr.mxu0 0.0
      %2093 = vmatpush1.msra.mxu0 0.0
      %2094 = vmatprep.subr.mxu0 0.0
      %2095 = vmatpush1.msra.mxu0 0.0
      %2096 = vmatprep.subr.mxu0 0.0
      %2097 = vmatpush1.msra.mxu0 0.0
      %2098 = vmatprep.subr.mxu0 0.0
      %2099 = vmatpush1.msra.mxu0 0.0
      %2100 = vmatprep.subr.mxu0 0.0
      %2101 = vmatpush1.msra.mxu0 0.0
      %2102 = vmatprep.subr.mxu0 0.0
      %2103 = vmatpush1.msra.mxu0 0.0
      %2104 = vmatprep.subr.mxu0 0.0
      %2105 = vmatpush1.msra.mxu0 0.0
      %2106 = vmatprep.subr.mxu0 0.0
      %2107 = vmatpush1.msra.mxu0 0.0
      %2108 = vmatprep.subr.mxu0 0.0
      %2109 = vmatpush1.msra.mxu0 0.0
      %2110 = vmatprep.subr.mxu0 0.0
      %2111 = vmatpush1.msra.mxu0 0.0
      %2112 = vmatprep.subr.mxu0 0.0
      %2113 = vmatpush1.msra.mxu0 0.0
      %2114 = vmatprep.subr.mxu0 0.0
      %2115 = vmatpush1.msra.mxu0 0.0
      %2116 = vmatprep.subr.mxu0 0.0
      %2117 = vmatpush1.msra.mxu0 0.0
      %2118 = vmatprep.subr.mxu0 0.0
      %2119 = vmatpush1.msra.mxu0 0.0
      %2120 = vmatprep.subr.mxu0 0.0
      %2121 = vmatpush1.msra.mxu0 0.0
      %2122 = vmatprep.subr.mxu0 0.0
      %2123 = vmatpush1.msra.mxu0 0.0
      %2124 = vmatprep.subr.mxu0 0.0
      %2125 = vmatpush1.msra.mxu0 0.0
      %2126 = vmatprep.subr.mxu0 0.0
      %2127 = vmatpush1.msra.mxu0 0.0
      %2128 = vmatprep.mubr.f32.mxu0 0.0
      %2129 = vmatmul.mubr.f32.gmra.mrb[0].mxu0 %v1966
      %v2130 = vpop.f32.mrb[0].mxu0
      %v2131 = vadd.f32 0.0, %v2130
      %v2132 = vpop.f32.mrb[0].mxu0
      %2133 = vmatprep.mubr.f32.mxu0 0.0
      %2134 = vmatmul.mubr.f32.gmra.mrb[0].mxu0 %v1969
      %v2135 = vpop.f32.mrb[0].mxu0
      %v2136 = vadd.f32 0.0, %v2135
      %v2137 = vpop.f32.mrb[0].mxu0
      %2138 = vmatprep.mubr.f32.mxu0 0.0
      %2139 = vmatmul.mubr.f32.gmra.mrb[0].mxu0 %v1972
      %v2140 = vpop.f32.mrb[0].mxu0
      %v2141 = vadd.f32 0.0, %v2140
      %v2142 = vpop.f32.mrb[0].mxu0
      %2143 = vmatprep.mubr.f32.mxu0 0.0
      %2144 = vmatmul.mubr.f32.gmra.mrb[0].mxu0 %v1975
      %v2145 = vpop.f32.mrb[0].mxu0
      %v2146 = vadd.f32 0.0, %v2145
      %v2147 = vpop.f32.mrb[0].mxu0
      %2148 = vmatprep.mubr.f32.mxu0 0.0
      %2149 = vmatmul.mubr.f32.gmra.mrb[0].mxu0 %v1978
      %v2150 = vpop.f32.mrb[0].mxu0
      %v2151 = vadd.f32 0.0, %v2150
      %v2152 = vpop.f32.mrb[0].mxu0
      %2153 = vmatprep.mubr.f32.mxu0 0.0
      %2154 = vmatmul.mubr.f32.gmra.mrb[0].mxu0 %v1981
      %v2155 = vpop.f32.mrb[0].mxu0
      %v2156 = vadd.f32 0.0, %v2155
      %v2157 = vpop.f32.mrb[0].mxu0
      %2158 = vmatprep.mubr.f32.mxu0 0.0
      %2159 = vmatmul.mubr.f32.gmra.mrb[0].mxu0 %v1984
      %v2160 = vpop.f32.mrb[0].mxu0
      %v2161 = vadd.f32 0.0, %v2160
      %v2162 = vpop.f32.mrb[0].mxu0
      %2163 = vmatprep.mubr.f32.mxu0 0.0
      %2164 = vmatmul.mubr.f32.gmra.mrb[0].mxu0 %v1987
      %v2165 = vpop.f32.mrb[0].mxu0
      %v2166 = vadd.f32 0.0, %v2165
      %v2167 = vpop.f32.mrb[0].mxu0
      %2168 = vmatprep.mubr.f32.mxu0 0.0
      %2169 = vmatmul.mubr.f32.gmra.mrb[0].mxu0 %v1990
      %v2170 = vpop.f32.mrb[0].mxu0
      %v2171 = vadd.f32 0.0, %v2170
      %v2172 = vpop.f32.mrb[0].mxu0
      %2173 = vmatprep.mubr.f32.mxu0 0.0
      %2174 = vmatmul.mubr.f32.gmra.mrb[0].mxu0 %v1993
      %v2175 = vpop.f32.mrb[0].mxu0
      %v2176 = vadd.f32 0.0, %v2175
      %v2177 = vpop.f32.mrb[0].mxu0
      %2178 = vmatprep.mubr.f32.mxu0 0.0
      %2179 = vmatmul.mubr.f32.gmra.mrb[0].mxu0 %v1996
      %v2180 = vpop.f32.mrb[0].mxu0
      %v2181 = vadd.f32 0.0, %v2180
      %v2182 = vpop.f32.mrb[0].mxu0
      %2183 = vmatprep.mubr.f32.mxu0 0.0
      %2184 = vmatmul.mubr.f32.gmra.mrb[0].mxu0 %v1999
      %v2185 = vpop.f32.mrb[0].mxu0
      %v2186 = vadd.f32 0.0, %v2185
      %v2187 = vpop.f32.mrb[0].mxu0
      %2188 = vmatprep.mubr.f32.mxu0 0.0
      %2189 = vmatmul.mubr.f32.gmra.mrb[0].mxu0 %v2002
      %v2190 = vpop.f32.mrb[0].mxu0
      %v2191 = vadd.f32 0.0, %v2190
      %v2192 = vpop.f32.mrb[0].mxu0
      %2193 = vmatprep.mubr.f32.mxu0 0.0
      %2194 = vmatmul.mubr.f32.gmra.mrb[0].mxu0 %v2005
      %v2195 = vpop.f32.mrb[0].mxu0
      %v2196 = vadd.f32 0.0, %v2195
      %v2197 = vpop.f32.mrb[0].mxu0
      %2198 = vmatprep.mubr.f32.mxu0 0.0
      %2199 = vmatmul.mubr.f32.gmra.mrb[0].mxu0 %v2008
      %v2200 = vpop.f32.mrb[0].mxu0
      %v2201 = vadd.f32 0.0, %v2200
      %v2202 = vpop.f32.mrb[0].mxu0
      %2203 = vmatprep.mubr.f32.mxu0 0.0
      %2204 = vmatmul.mubr.f32.gmra.mrb[0].mxu0 %v2011
      %v2205 = vpop.f32.mrb[0].mxu0
      %v2206 = vadd.f32 0.0, %v2205
      %v2207 = vpop.f32.mrb[0].mxu0
      %2208 = vmatprep.mubr.f32.mxu0 0.0
      %2209 = vmatmul.mubr.f32.gmra.mrb[0].mxu0 %v2014
      %v2210 = vpop.f32.mrb[0].mxu0
      %v2211 = vadd.f32 0.0, %v2210
      %v2212 = vpop.f32.mrb[0].mxu0
      %2213 = vmatprep.mubr.f32.mxu0 0.0
      %2214 = vmatmul.mubr.f32.gmra.mrb[0].mxu0 %v2017
      %v2215 = vpop.f32.mrb[0].mxu0
      %v2216 = vadd.f32 0.0, %v2215
      %v2217 = vpop.f32.mrb[0].mxu0
      %2218 = vmatprep.mubr.f32.mxu0 0.0
      %2219 = vmatmul.mubr.f32.gmra.mrb[0].mxu0 %v2020
      %v2220 = vpop.f32.mrb[0].mxu0
      %v2221 = vadd.f32 0.0, %v2220
      %v2222 = vpop.f32.mrb[0].mxu0
      %2223 = vmatprep.mubr.f32.mxu0 0.0
      %2224 = vmatmul.mubr.f32.gmra.mrb[0].mxu0 %v2023
      %v2225 = vpop.f32.mrb[0].mxu0
      %v2226 = vadd.f32 0.0, %v2225
      %v2227 = vpop.f32.mrb[0].mxu0
      %2228 = vmatprep.mubr.f32.mxu0 0.0
      %2229 = vmatmul.mubr.f32.gmra.mrb[0].mxu0 %v2026
      %v2230 = vpop.f32.mrb[0].mxu0
      %v2231 = vadd.f32 0.0, %v2230
      %v2232 = vpop.f32.mrb[0].mxu0
      %2233 = vmatprep.mubr.f32.mxu0 0.0
      %2234 = vmatmul.mubr.f32.gmra.mrb[0].mxu0 %v2029
      %v2235 = vpop.f32.mrb[0].mxu0
      %v2236 = vadd.f32 0.0, %v2235
      %v2237 = vpop.f32.mrb[0].mxu0
      %2238 = vmatprep.mubr.f32.mxu0 0.0
      %2239 = vmatmul.mubr.f32.gmra.mrb[0].mxu0 %v2032
      %v2240 = vpop.f32.mrb[0].mxu0
      %v2241 = vadd.f32 0.0, %v2240
      %v2242 = vpop.f32.mrb[0].mxu0
      %2243 = vmatprep.mubr.f32.mxu0 0.0
      %2244 = vmatmul.mubr.f32.gmra.mrb[0].mxu0 %v2035
      %v2245 = vpop.f32.mrb[0].mxu0
      %v2246 = vadd.f32 0.0, %v2245
      %v2247 = vpop.f32.mrb[0].mxu0
      %2248 = vmatprep.mubr.f32.mxu0 0.0
      %2249 = vmatmul.mubr.f32.gmra.mrb[0].mxu0 %v2038
      %v2250 = vpop.f32.mrb[0].mxu0
      %v2251 = vadd.f32 0.0, %v2250
      %v2252 = vpop.f32.mrb[0].mxu0
      %2253 = vmatprep.mubr.f32.mxu0 0.0
      %2254 = vmatmul.mubr.f32.gmra.mrb[0].mxu0 %v2041
      %v2255 = vpop.f32.mrb[0].mxu0
      %v2256 = vadd.f32 0.0, %v2255
      %v2257 = vpop.f32.mrb[0].mxu0
      %2258 = vmatprep.mubr.f32.mxu0 0.0
      %2259 = vmatmul.mubr.f32.gmra.mrb[0].mxu0 %v2044
      %v2260 = vpop.f32.mrb[0].mxu0
      %v2261 = vadd.f32 0.0, %v2260
      %v2262 = vpop.f32.mrb[0].mxu0
      %2263 = vmatprep.mubr.f32.mxu0 0.0
      %2264 = vmatmul.mubr.f32.gmra.mrb[0].mxu0 %v2047
      %v2265 = vpop.f32.mrb[0].mxu0
      %v2266 = vadd.f32 0.0, %v2265
      %v2267 = vpop.f32.mrb[0].mxu0
      %2268 = vmatprep.mubr.f32.mxu0 0.0
      %2269 = vmatmul.mubr.f32.gmra.mrb[0].mxu0 %v2050
      %v2270 = vpop.f32.mrb[0].mxu0
      %v2271 = vadd.f32 0.0, %v2270
      %v2272 = vpop.f32.mrb[0].mxu0
      %2273 = vmatprep.mubr.f32.mxu0 0.0
      %2274 = vmatmul.mubr.f32.gmra.mrb[0].mxu0 %v2053
      %v2275 = vpop.f32.mrb[0].mxu0
      %v2276 = vadd.f32 0.0, %v2275
      %v2277 = vpop.f32.mrb[0].mxu0
      %2278 = vmatprep.mubr.f32.mxu0 0.0
      %2279 = vmatmul.mubr.f32.gmra.mrb[0].mxu0 %v2056
      %v2280 = vpop.f32.mrb[0].mxu0
      %v2281 = vadd.f32 0.0, %v2280
      %v2282 = vpop.f32.mrb[0].mxu0
      %2283 = vmatprep.mubr.f32.mxu0 0.0
      %2284 = vmatmul.mubr.f32.gmra.mrb[0].mxu0 %v2059
      %v2285 = vpop.f32.mrb[0].mxu0
      %v2286 = vadd.f32 0.0, %v2285
      %v2287 = vpop.f32.mrb[0].mxu0
      %2288 = vdwg.mxu0
      %v2289 = vadd.f32 %v1899, %v2131
      %v2290 = vadd.f32 %v1900, %v2136
      %v2291 = vadd.f32 %v1901, %v2141
      %v2292 = vadd.f32 %v1902, %v2146
      %v2293 = vadd.f32 %v1903, %v2151
      %v2294 = vadd.f32 %v1904, %v2156
      %v2295 = vadd.f32 %v1905, %v2161
      %v2296 = vadd.f32 %v1906, %v2166
      %v2297 = vadd.f32 %v1907, %v2171
      %v2298 = vadd.f32 %v1908, %v2176
      %v2299 = vadd.f32 %v1909, %v2181
      %v2300 = vadd.f32 %v1910, %v2186
      %v2301 = vadd.f32 %v1911, %v2191
      %v2302 = vadd.f32 %v1912, %v2196
      %v2303 = vadd.f32 %v1913, %v2201
      %v2304 = vadd.f32 %v1914, %v2206
      %v2305 = vadd.f32 %v1915, %v2211
      %v2306 = vadd.f32 %v1916, %v2216
      %v2307 = vadd.f32 %v1917, %v2221
      %v2308 = vadd.f32 %v1918, %v2226
      %v2309 = vadd.f32 %v1919, %v2231
      %v2310 = vadd.f32 %v1920, %v2236
      %v2311 = vadd.f32 %v1921, %v2241
      %v2312 = vadd.f32 %v1922, %v2246
      %v2313 = vadd.f32 %v1923, %v2251
      %v2314 = vadd.f32 %v1924, %v2256
      %v2315 = vadd.f32 %v1925, %v2261
      %v2316 = vadd.f32 %v1926, %v2266
      %v2317 = vadd.f32 %v1927, %v2271
      %v2318 = vadd.f32 %v1928, %v2276
      %v2319 = vadd.f32 %v1929, %v2281
      %v2320 = vadd.f32 %v1930, %v2286
      %v2321 = vld [vmem:[%s402 + $0x9] sm:$0xff]
      %v2322 = vld [vmem:[%s402 + $0x11] sm:$0xff]
      %v2323 = vld [vmem:[%s402 + $0x29] sm:$0xff]
      %v2324 = vld [vmem:[%s402 + $0x31] sm:$0xff]
      %v2325 = vld [vmem:[%s402 + $0x49] sm:$0xff]
      %v2326 = vld [vmem:[%s402 + $0x51] sm:$0xff]
      %v2327 = vld [vmem:[%s402 + $0x69] sm:$0xff]
      %v2328 = vld [vmem:[%s402 + $0x71] sm:$0xff]
      %v2329 = vld [vmem:[%s402 + $0x89] sm:$0xff]
      %v2330 = vld [vmem:[%s402 + $0x91] sm:$0xff]
      %v2331 = vld [vmem:[%s402 + $0xa9] sm:$0xff]
      %v2332 = vld [vmem:[%s402 + $0xb1] sm:$0xff]
      %v2333 = vld [vmem:[%s402 + $0xc9] sm:$0xff]
      %v2334 = vld [vmem:[%s402 + $0xd1] sm:$0xff]
      %v2335 = vld [vmem:[%s402 + $0xe9] sm:$0xff]
      %v2336 = vld [vmem:[%s402 + $0xf1] sm:$0xff]
      %v2337 = vld [vmem:[%s402 + $0x109] sm:$0xff]
      %v2338 = vld [vmem:[%s402 + $0x111] sm:$0xff]
      %v2339 = vld [vmem:[%s402 + $0x129] sm:$0xff]
      %v2340 = vld [vmem:[%s402 + $0x131] sm:$0xff]
      %v2341 = vld [vmem:[%s402 + $0x149] sm:$0xff]
      %v2342 = vld [vmem:[%s402 + $0x151] sm:$0xff]
      %v2343 = vld [vmem:[%s402 + $0x169] sm:$0xff]
      %v2344 = vld [vmem:[%s402 + $0x171] sm:$0xff]
      %v2345 = vld [vmem:[%s402 + $0x189] sm:$0xff]
      %v2346 = vld [vmem:[%s402 + $0x191] sm:$0xff]
      %v2347 = vld [vmem:[%s402 + $0x1a9] sm:$0xff]
      %v2348 = vld [vmem:[%s402 + $0x1b1] sm:$0xff]
      %v2349 = vld [vmem:[%s402 + $0x1c9] sm:$0xff]
      %v2350 = vld [vmem:[%s402 + $0x1d1] sm:$0xff]
      %v2351 = vld [vmem:[%s402 + $0x1e9] sm:$0xff]
      %v2352 = vld [vmem:[%s402 + $0x1f1] sm:$0xff]
      %s2353 = scalar_lea.vmem %s1, 20
      %v2354 = vld [vmem:[%s2353] sm:$0xf]
      %v2356 = vsel %vm225, %v2321, 0
      %v2359 = vsel %vm225, %v2322, 0
      %v2362 = vsel %vm225, %v2323, 0
      %v2365 = vsel %vm225, %v2324, 0
      %v2368 = vsel %vm225, %v2325, 0
      %v2371 = vsel %vm225, %v2326, 0
      %v2374 = vsel %vm225, %v2327, 0
      %v2377 = vsel %vm225, %v2328, 0
      %v2380 = vsel %vm225, %v2329, 0
      %v2383 = vsel %vm225, %v2330, 0
      %v2386 = vsel %vm225, %v2331, 0
      %v2389 = vsel %vm225, %v2332, 0
      %v2392 = vsel %vm225, %v2333, 0
      %v2395 = vsel %vm225, %v2334, 0
      %v2398 = vsel %vm225, %v2335, 0
      %v2401 = vsel %vm225, %v2336, 0
      %v2404 = vsel %vm225, %v2337, 0
      %v2407 = vsel %vm225, %v2338, 0
      %v2410 = vsel %vm225, %v2339, 0
      %v2413 = vsel %vm225, %v2340, 0
      %v2416 = vsel %vm225, %v2341, 0
      %v2419 = vsel %vm225, %v2342, 0
      %v2422 = vsel %vm225, %v2343, 0
      %v2425 = vsel %vm225, %v2344, 0
      %v2428 = vsel %vm225, %v2345, 0
      %v2431 = vsel %vm225, %v2346, 0
      %v2434 = vsel %vm225, %v2347, 0
      %v2437 = vsel %vm225, %v2348, 0
      %v2440 = vsel %vm225, %v2349, 0
      %v2443 = vsel %vm225, %v2350, 0
      %v2446 = vsel %vm225, %v2351, 0
      %v2449 = vsel %vm225, %v2352, 0
      %v2452 = vsel %vm598, %v2354, 0
      %2454 = vmatprep.subr.mxu0 0.0
      %2455 = vmatpush1.msra.mxu0 %v2452
      %2456 = vmatprep.subr.mxu0 0.0
      %2457 = vmatpush1.msra.mxu0 0.0
      %2458 = vmatprep.subr.mxu0 0.0
      %2459 = vmatpush1.msra.mxu0 0.0
      %2460 = vmatprep.subr.mxu0 0.0
      %2461 = vmatpush1.msra.mxu0 0.0
      %2462 = vmatprep.subr.mxu0 0.0
      %2463 = vmatpush1.msra.mxu0 0.0
      %2464 = vmatprep.subr.mxu0 0.0
      %2465 = vmatpush1.msra.mxu0 0.0
      %2466 = vmatprep.subr.mxu0 0.0
      %2467 = vmatpush1.msra.mxu0 0.0
      %2468 = vmatprep.subr.mxu0 0.0
      %2469 = vmatpush1.msra.mxu0 0.0
      %2470 = vmatprep.subr.mxu0 0.0
      %2471 = vmatpush1.msra.mxu0 0.0
      %2472 = vmatprep.subr.mxu0 0.0
      %2473 = vmatpush1.msra.mxu0 0.0
      %2474 = vmatprep.subr.mxu0 0.0
      %2475 = vmatpush1.msra.mxu0 0.0
      %2476 = vmatprep.subr.mxu0 0.0
      %2477 = vmatpush1.msra.mxu0 0.0
      %2478 = vmatprep.subr.mxu0 0.0
      %2479 = vmatpush1.msra.mxu0 0.0
      %2480 = vmatprep.subr.mxu0 0.0
      %2481 = vmatpush1.msra.mxu0 0.0
      %2482 = vmatprep.subr.mxu0 0.0
      %2483 = vmatpush1.msra.mxu0 0.0
      %2484 = vmatprep.subr.mxu0 0.0
      %2485 = vmatpush1.msra.mxu0 0.0
      %2486 = vmatprep.subr.mxu0 0.0
      %2487 = vmatpush1.msra.mxu0 0.0
      %2488 = vmatprep.subr.mxu0 0.0
      %2489 = vmatpush1.msra.mxu0 0.0
      %2490 = vmatprep.subr.mxu0 0.0
      %2491 = vmatpush1.msra.mxu0 0.0
      %2492 = vmatprep.subr.mxu0 0.0
      %2493 = vmatpush1.msra.mxu0 0.0
      %2494 = vmatprep.subr.mxu0 0.0
      %2495 = vmatpush1.msra.mxu0 0.0
      %2496 = vmatprep.subr.mxu0 0.0
      %2497 = vmatpush1.msra.mxu0 0.0
      %2498 = vmatprep.subr.mxu0 0.0
      %2499 = vmatpush1.msra.mxu0 0.0
      %2500 = vmatprep.subr.mxu0 0.0
      %2501 = vmatpush1.msra.mxu0 0.0
      %2502 = vmatprep.subr.mxu0 0.0
      %2503 = vmatpush1.msra.mxu0 0.0
      %2504 = vmatprep.subr.mxu0 0.0
      %2505 = vmatpush1.msra.mxu0 0.0
      %2506 = vmatprep.subr.mxu0 0.0
      %2507 = vmatpush1.msra.mxu0 0.0
      %2508 = vmatprep.subr.mxu0 0.0
      %2509 = vmatpush1.msra.mxu0 0.0
      %2510 = vmatprep.subr.mxu0 0.0
      %2511 = vmatpush1.msra.mxu0 0.0
      %2512 = vmatprep.subr.mxu0 0.0
      %2513 = vmatpush1.msra.mxu0 0.0
      %2514 = vmatprep.subr.mxu0 0.0
      %2515 = vmatpush1.msra.mxu0 0.0
      %2516 = vmatprep.subr.mxu0 0.0
      %2517 = vmatpush1.msra.mxu0 0.0
      %2518 = vmatprep.mubr.f32.mxu0 0.0
      %2519 = vmatmul.mubr.f32.gmra.mrb[0].mxu0 %v2356
      %v2520 = vpop.f32.mrb[0].mxu0
      %v2521 = vadd.f32 0.0, %v2520
      %v2522 = vpop.f32.mrb[0].mxu0
      %2523 = vmatprep.mubr.f32.mxu0 0.0
      %2524 = vmatmul.mubr.f32.gmra.mrb[0].mxu0 %v2359
      %v2525 = vpop.f32.mrb[0].mxu0
      %v2526 = vadd.f32 0.0, %v2525
      %v2527 = vpop.f32.mrb[0].mxu0
      %2528 = vmatprep.mubr.f32.mxu0 0.0
      %2529 = vmatmul.mubr.f32.gmra.mrb[0].mxu0 %v2362
      %v2530 = vpop.f32.mrb[0].mxu0
      %v2531 = vadd.f32 0.0, %v2530
      %v2532 = vpop.f32.mrb[0].mxu0
      %2533 = vmatprep.mubr.f32.mxu0 0.0
      %2534 = vmatmul.mubr.f32.gmra.mrb[0].mxu0 %v2365
      %v2535 = vpop.f32.mrb[0].mxu0
      %v2536 = vadd.f32 0.0, %v2535
      %v2537 = vpop.f32.mrb[0].mxu0
      %2538 = vmatprep.mubr.f32.mxu0 0.0
      %2539 = vmatmul.mubr.f32.gmra.mrb[0].mxu0 %v2368
      %v2540 = vpop.f32.mrb[0].mxu0
      %v2541 = vadd.f32 0.0, %v2540
      %v2542 = vpop.f32.mrb[0].mxu0
      %2543 = vmatprep.mubr.f32.mxu0 0.0
      %2544 = vmatmul.mubr.f32.gmra.mrb[0].mxu0 %v2371
      %v2545 = vpop.f32.mrb[0].mxu0
      %v2546 = vadd.f32 0.0, %v2545
      %v2547 = vpop.f32.mrb[0].mxu0
      %2548 = vmatprep.mubr.f32.mxu0 0.0
      %2549 = vmatmul.mubr.f32.gmra.mrb[0].mxu0 %v2374
      %v2550 = vpop.f32.mrb[0].mxu0
      %v2551 = vadd.f32 0.0, %v2550
      %v2552 = vpop.f32.mrb[0].mxu0
      %2553 = vmatprep.mubr.f32.mxu0 0.0
      %2554 = vmatmul.mubr.f32.gmra.mrb[0].mxu0 %v2377
      %v2555 = vpop.f32.mrb[0].mxu0
      %v2556 = vadd.f32 0.0, %v2555
      %v2557 = vpop.f32.mrb[0].mxu0
      %2558 = vmatprep.mubr.f32.mxu0 0.0
      %2559 = vmatmul.mubr.f32.gmra.mrb[0].mxu0 %v2380
      %v2560 = vpop.f32.mrb[0].mxu0
      %v2561 = vadd.f32 0.0, %v2560
      %v2562 = vpop.f32.mrb[0].mxu0
      %2563 = vmatprep.mubr.f32.mxu0 0.0
      %2564 = vmatmul.mubr.f32.gmra.mrb[0].mxu0 %v2383
      %v2565 = vpop.f32.mrb[0].mxu0
      %v2566 = vadd.f32 0.0, %v2565
      %v2567 = vpop.f32.mrb[0].mxu0
      %2568 = vmatprep.mubr.f32.mxu0 0.0
      %2569 = vmatmul.mubr.f32.gmra.mrb[0].mxu0 %v2386
      %v2570 = vpop.f32.mrb[0].mxu0
      %v2571 = vadd.f32 0.0, %v2570
      %v2572 = vpop.f32.mrb[0].mxu0
      %2573 = vmatprep.mubr.f32.mxu0 0.0
      %2574 = vmatmul.mubr.f32.gmra.mrb[0].mxu0 %v2389
      %v2575 = vpop.f32.mrb[0].mxu0
      %v2576 = vadd.f32 0.0, %v2575
      %v2577 = vpop.f32.mrb[0].mxu0
      %2578 = vmatprep.mubr.f32.mxu0 0.0
      %2579 = vmatmul.mubr.f32.gmra.mrb[0].mxu0 %v2392
      %v2580 = vpop.f32.mrb[0].mxu0
      %v2581 = vadd.f32 0.0, %v2580
      %v2582 = vpop.f32.mrb[0].mxu0
      %2583 = vmatprep.mubr.f32.mxu0 0.0
      %2584 = vmatmul.mubr.f32.gmra.mrb[0].mxu0 %v2395
      %v2585 = vpop.f32.mrb[0].mxu0
      %v2586 = vadd.f32 0.0, %v2585
      %v2587 = vpop.f32.mrb[0].mxu0
      %2588 = vmatprep.mubr.f32.mxu0 0.0
      %2589 = vmatmul.mubr.f32.gmra.mrb[0].mxu0 %v2398
      %v2590 = vpop.f32.mrb[0].mxu0
      %v2591 = vadd.f32 0.0, %v2590
      %v2592 = vpop.f32.mrb[0].mxu0
      %2593 = vmatprep.mubr.f32.mxu0 0.0
      %2594 = vmatmul.mubr.f32.gmra.mrb[0].mxu0 %v2401
      %v2595 = vpop.f32.mrb[0].mxu0
      %v2596 = vadd.f32 0.0, %v2595
      %v2597 = vpop.f32.mrb[0].mxu0
      %2598 = vmatprep.mubr.f32.mxu0 0.0
      %2599 = vmatmul.mubr.f32.gmra.mrb[0].mxu0 %v2404
      %v2600 = vpop.f32.mrb[0].mxu0
      %v2601 = vadd.f32 0.0, %v2600
      %v2602 = vpop.f32.mrb[0].mxu0
      %2603 = vmatprep.mubr.f32.mxu0 0.0
      %2604 = vmatmul.mubr.f32.gmra.mrb[0].mxu0 %v2407
      %v2605 = vpop.f32.mrb[0].mxu0
      %v2606 = vadd.f32 0.0, %v2605
      %v2607 = vpop.f32.mrb[0].mxu0
      %2608 = vmatprep.mubr.f32.mxu0 0.0
      %2609 = vmatmul.mubr.f32.gmra.mrb[0].mxu0 %v2410
      %v2610 = vpop.f32.mrb[0].mxu0
      %v2611 = vadd.f32 0.0, %v2610
      %v2612 = vpop.f32.mrb[0].mxu0
      %2613 = vmatprep.mubr.f32.mxu0 0.0
      %2614 = vmatmul.mubr.f32.gmra.mrb[0].mxu0 %v2413
      %v2615 = vpop.f32.mrb[0].mxu0
      %v2616 = vadd.f32 0.0, %v2615
      %v2617 = vpop.f32.mrb[0].mxu0
      %2618 = vmatprep.mubr.f32.mxu0 0.0
      %2619 = vmatmul.mubr.f32.gmra.mrb[0].mxu0 %v2416
      %v2620 = vpop.f32.mrb[0].mxu0
      %v2621 = vadd.f32 0.0, %v2620
      %v2622 = vpop.f32.mrb[0].mxu0
      %2623 = vmatprep.mubr.f32.mxu0 0.0
      %2624 = vmatmul.mubr.f32.gmra.mrb[0].mxu0 %v2419
      %v2625 = vpop.f32.mrb[0].mxu0
      %v2626 = vadd.f32 0.0, %v2625
      %v2627 = vpop.f32.mrb[0].mxu0
      %2628 = vmatprep.mubr.f32.mxu0 0.0
      %2629 = vmatmul.mubr.f32.gmra.mrb[0].mxu0 %v2422
      %v2630 = vpop.f32.mrb[0].mxu0
      %v2631 = vadd.f32 0.0, %v2630
      %v2632 = vpop.f32.mrb[0].mxu0
      %2633 = vmatprep.mubr.f32.mxu0 0.0
      %2634 = vmatmul.mubr.f32.gmra.mrb[0].mxu0 %v2425
      %v2635 = vpop.f32.mrb[0].mxu0
      %v2636 = vadd.f32 0.0, %v2635
      %v2637 = vpop.f32.mrb[0].mxu0
      %2638 = vmatprep.mubr.f32.mxu0 0.0
      %2639 = vmatmul.mubr.f32.gmra.mrb[0].mxu0 %v2428
      %v2640 = vpop.f32.mrb[0].mxu0
      %v2641 = vadd.f32 0.0, %v2640
      %v2642 = vpop.f32.mrb[0].mxu0
      %2643 = vmatprep.mubr.f32.mxu0 0.0
      %2644 = vmatmul.mubr.f32.gmra.mrb[0].mxu0 %v2431
      %v2645 = vpop.f32.mrb[0].mxu0
      %v2646 = vadd.f32 0.0, %v2645
      %v2647 = vpop.f32.mrb[0].mxu0
      %2648 = vmatprep.mubr.f32.mxu0 0.0
      %2649 = vmatmul.mubr.f32.gmra.mrb[0].mxu0 %v2434
      %v2650 = vpop.f32.mrb[0].mxu0
      %v2651 = vadd.f32 0.0, %v2650
      %v2652 = vpop.f32.mrb[0].mxu0
      %2653 = vmatprep.mubr.f32.mxu0 0.0
      %2654 = vmatmul.mubr.f32.gmra.mrb[0].mxu0 %v2437
      %v2655 = vpop.f32.mrb[0].mxu0
      %v2656 = vadd.f32 0.0, %v2655
      %v2657 = vpop.f32.mrb[0].mxu0
      %2658 = vmatprep.mubr.f32.mxu0 0.0
      %2659 = vmatmul.mubr.f32.gmra.mrb[0].mxu0 %v2440
      %v2660 = vpop.f32.mrb[0].mxu0
      %v2661 = vadd.f32 0.0, %v2660
      %v2662 = vpop.f32.mrb[0].mxu0
      %2663 = vmatprep.mubr.f32.mxu0 0.0
      %2664 = vmatmul.mubr.f32.gmra.mrb[0].mxu0 %v2443
      %v2665 = vpop.f32.mrb[0].mxu0
      %v2666 = vadd.f32 0.0, %v2665
      %v2667 = vpop.f32.mrb[0].mxu0
      %2668 = vmatprep.mubr.f32.mxu0 0.0
      %2669 = vmatmul.mubr.f32.gmra.mrb[0].mxu0 %v2446
      %v2670 = vpop.f32.mrb[0].mxu0
      %v2671 = vadd.f32 0.0, %v2670
      %v2672 = vpop.f32.mrb[0].mxu0
      %2673 = vmatprep.mubr.f32.mxu0 0.0
      %2674 = vmatmul.mubr.f32.gmra.mrb[0].mxu0 %v2449
      %v2675 = vpop.f32.mrb[0].mxu0
      %v2676 = vadd.f32 0.0, %v2675
      %v2677 = vpop.f32.mrb[0].mxu0
      %2678 = vdwg.mxu0
      %v2679 = vadd.f32 %v2289, %v2521
      %v2680 = vadd.f32 %v2290, %v2526
      %v2681 = vadd.f32 %v2291, %v2531
      %v2682 = vadd.f32 %v2292, %v2536
      %v2683 = vadd.f32 %v2293, %v2541
      %v2684 = vadd.f32 %v2294, %v2546
      %v2685 = vadd.f32 %v2295, %v2551
      %v2686 = vadd.f32 %v2296, %v2556
      %v2687 = vadd.f32 %v2297, %v2561
      %v2688 = vadd.f32 %v2298, %v2566
      %v2689 = vadd.f32 %v2299, %v2571
      %v2690 = vadd.f32 %v2300, %v2576
      %v2691 = vadd.f32 %v2301, %v2581
      %v2692 = vadd.f32 %v2302, %v2586
      %v2693 = vadd.f32 %v2303, %v2591
      %v2694 = vadd.f32 %v2304, %v2596
      %v2695 = vadd.f32 %v2305, %v2601
      %v2696 = vadd.f32 %v2306, %v2606
      %v2697 = vadd.f32 %v2307, %v2611
      %v2698 = vadd.f32 %v2308, %v2616
      %v2699 = vadd.f32 %v2309, %v2621
      %v2700 = vadd.f32 %v2310, %v2626
      %v2701 = vadd.f32 %v2311, %v2631
      %v2702 = vadd.f32 %v2312, %v2636
      %v2703 = vadd.f32 %v2313, %v2641
      %v2704 = vadd.f32 %v2314, %v2646
      %v2705 = vadd.f32 %v2315, %v2651
      %v2706 = vadd.f32 %v2316, %v2656
      %v2707 = vadd.f32 %v2317, %v2661
      %v2708 = vadd.f32 %v2318, %v2666
      %v2709 = vadd.f32 %v2319, %v2671
      %v2710 = vadd.f32 %v2320, %v2676
      %s2711 = scalar_lea.vmem [#allocation2], 64
      %v2712 = vld [vmem:[%s2711 + $0x7] sm:$0xff]
      %v2713 = vld [vmem:[%s2711 + $0xf] sm:$0xff]
      %v2714 = vld [vmem:[%s2711 + $0x27] sm:$0xff]
      %v2715 = vld [vmem:[%s2711 + $0x2f] sm:$0xff]
      %v2716 = vld [vmem:[%s2711 + $0x47] sm:$0xff]
      %v2717 = vld [vmem:[%s2711 + $0x4f] sm:$0xff]
      %v2718 = vld [vmem:[%s2711 + $0x67] sm:$0xff]
      %v2719 = vld [vmem:[%s2711 + $0x6f] sm:$0xff]
      %v2720 = vld [vmem:[%s2711 + $0x87] sm:$0xff]
      %v2721 = vld [vmem:[%s2711 + $0x8f] sm:$0xff]
      %v2722 = vld [vmem:[%s2711 + $0xa7] sm:$0xff]
      %v2723 = vld [vmem:[%s2711 + $0xaf] sm:$0xff]
      %v2724 = vld [vmem:[%s2711 + $0xc7] sm:$0xff]
      %v2725 = vld [vmem:[%s2711 + $0xcf] sm:$0xff]
      %v2726 = vld [vmem:[%s2711 + $0xe7] sm:$0xff]
      %v2727 = vld [vmem:[%s2711 + $0xef] sm:$0xff]
      %v2728 = vld [vmem:[%s2711 + $0x107] sm:$0xff]
      %v2729 = vld [vmem:[%s2711 + $0x10f] sm:$0xff]
      %v2730 = vld [vmem:[%s2711 + $0x127] sm:$0xff]
      %v2731 = vld [vmem:[%s2711 + $0x12f] sm:$0xff]
      %v2732 = vld [vmem:[%s2711 + $0x147] sm:$0xff]
      %v2733 = vld [vmem:[%s2711 + $0x14f] sm:$0xff]
      %v2734 = vld [vmem:[%s2711 + $0x167] sm:$0xff]
      %v2735 = vld [vmem:[%s2711 + $0x16f] sm:$0xff]
      %v2736 = vld [vmem:[%s2711 + $0x187] sm:$0xff]
      %v2737 = vld [vmem:[%s2711 + $0x18f] sm:$0xff]
      %v2738 = vld [vmem:[%s2711 + $0x1a7] sm:$0xff]
      %v2739 = vld [vmem:[%s2711 + $0x1af] sm:$0xff]
      %v2740 = vld [vmem:[%s2711 + $0x1c7] sm:$0xff]
      %v2741 = vld [vmem:[%s2711 + $0x1cf] sm:$0xff]
      %v2742 = vld [vmem:[%s2711 + $0x1e7] sm:$0xff]
      %v2743 = vld [vmem:[%s2711 + $0x1ef] sm:$0xff]
      %s2744 = scalar_lea.vmem %s1, 24
      %v2745 = vld [vmem:[%s2744] sm:$0xf]
      %v2747 = vsel %vm225, %v2712, 0
      %v2750 = vsel %vm225, %v2713, 0
      %v2753 = vsel %vm225, %v2714, 0
      %v2756 = vsel %vm225, %v2715, 0
      %v2759 = vsel %vm225, %v2716, 0
      %v2762 = vsel %vm225, %v2717, 0
      %v2765 = vsel %vm225, %v2718, 0
      %v2768 = vsel %vm225, %v2719, 0
      %v2771 = vsel %vm225, %v2720, 0
      %v2774 = vsel %vm225, %v2721, 0
      %v2777 = vsel %vm225, %v2722, 0
      %v2780 = vsel %vm225, %v2723, 0
      %v2783 = vsel %vm225, %v2724, 0
      %v2786 = vsel %vm225, %v2725, 0
      %v2789 = vsel %vm225, %v2726, 0
      %v2792 = vsel %vm225, %v2727, 0
      %v2795 = vsel %vm225, %v2728, 0
      %v2798 = vsel %vm225, %v2729, 0
      %v2801 = vsel %vm225, %v2730, 0
      %v2804 = vsel %vm225, %v2731, 0
      %v2807 = vsel %vm225, %v2732, 0
      %v2810 = vsel %vm225, %v2733, 0
      %v2813 = vsel %vm225, %v2734, 0
      %v2816 = vsel %vm225, %v2735, 0
      %v2819 = vsel %vm225, %v2736, 0
      %v2822 = vsel %vm225, %v2737, 0
      %v2825 = vsel %vm225, %v2738, 0
      %v2828 = vsel %vm225, %v2739, 0
      %v2831 = vsel %vm225, %v2740, 0
      %v2834 = vsel %vm225, %v2741, 0
      %v2837 = vsel %vm225, %v2742, 0
      %v2840 = vsel %vm225, %v2743, 0
      %v2843 = vsel %vm598, %v2745, 0
      %2845 = vmatprep.subr.mxu0 0.0
      %2846 = vmatpush1.msra.mxu0 %v2843
      %2847 = vmatprep.subr.mxu0 0.0
      %2848 = vmatpush1.msra.mxu0 0.0
      %2849 = vmatprep.subr.mxu0 0.0
      %2850 = vmatpush1.msra.mxu0 0.0
      %2851 = vmatprep.subr.mxu0 0.0
      %2852 = vmatpush1.msra.mxu0 0.0
      %2853 = vmatprep.subr.mxu0 0.0
      %2854 = vmatpush1.msra.mxu0 0.0
      %2855 = vmatprep.subr.mxu0 0.0
      %2856 = vmatpush1.msra.mxu0 0.0
      %2857 = vmatprep.subr.mxu0 0.0
      %2858 = vmatpush1.msra.mxu0 0.0
      %2859 = vmatprep.subr.mxu0 0.0
      %2860 = vmatpush1.msra.mxu0 0.0
      %2861 = vmatprep.subr.mxu0 0.0
      %2862 = vmatpush1.msra.mxu0 0.0
      %2863 = vmatprep.subr.mxu0 0.0
      %2864 = vmatpush1.msra.mxu0 0.0
      %2865 = vmatprep.subr.mxu0 0.0
      %2866 = vmatpush1.msra.mxu0 0.0
      %2867 = vmatprep.subr.mxu0 0.0
      %2868 = vmatpush1.msra.mxu0 0.0
      %2869 = vmatprep.subr.mxu0 0.0
      %2870 = vmatpush1.msra.mxu0 0.0
      %2871 = vmatprep.subr.mxu0 0.0
      %2872 = vmatpush1.msra.mxu0 0.0
      %2873 = vmatprep.subr.mxu0 0.0
      %2874 = vmatpush1.msra.mxu0 0.0
      %2875 = vmatprep.subr.mxu0 0.0
      %2876 = vmatpush1.msra.mxu0 0.0
      %2877 = vmatprep.subr.mxu0 0.0
      %2878 = vmatpush1.msra.mxu0 0.0
      %2879 = vmatprep.subr.mxu0 0.0
      %2880 = vmatpush1.msra.mxu0 0.0
      %2881 = vmatprep.subr.mxu0 0.0
      %2882 = vmatpush1.msra.mxu0 0.0
      %2883 = vmatprep.subr.mxu0 0.0
      %2884 = vmatpush1.msra.mxu0 0.0
      %2885 = vmatprep.subr.mxu0 0.0
      %2886 = vmatpush1.msra.mxu0 0.0
      %2887 = vmatprep.subr.mxu0 0.0
      %2888 = vmatpush1.msra.mxu0 0.0
      %2889 = vmatprep.subr.mxu0 0.0
      %2890 = vmatpush1.msra.mxu0 0.0
      %2891 = vmatprep.subr.mxu0 0.0
      %2892 = vmatpush1.msra.mxu0 0.0
      %2893 = vmatprep.subr.mxu0 0.0
      %2894 = vmatpush1.msra.mxu0 0.0
      %2895 = vmatprep.subr.mxu0 0.0
      %2896 = vmatpush1.msra.mxu0 0.0
      %2897 = vmatprep.subr.mxu0 0.0
      %2898 = vmatpush1.msra.mxu0 0.0
      %2899 = vmatprep.subr.mxu0 0.0
      %2900 = vmatpush1.msra.mxu0 0.0
      %2901 = vmatprep.subr.mxu0 0.0
      %2902 = vmatpush1.msra.mxu0 0.0
      %2903 = vmatprep.subr.mxu0 0.0
      %2904 = vmatpush1.msra.mxu0 0.0
      %2905 = vmatprep.subr.mxu0 0.0
      %2906 = vmatpush1.msra.mxu0 0.0
      %2907 = vmatprep.subr.mxu0 0.0
      %2908 = vmatpush1.msra.mxu0 0.0
      %2909 = vmatprep.mubr.f32.mxu0 0.0
      %2910 = vmatmul.mubr.f32.gmra.mrb[0].mxu0 %v2747
      %v2911 = vpop.f32.mrb[0].mxu0
      %v2912 = vadd.f32 0.0, %v2911
      %v2913 = vpop.f32.mrb[0].mxu0
      %2914 = vmatprep.mubr.f32.mxu0 0.0
      %2915 = vmatmul.mubr.f32.gmra.mrb[0].mxu0 %v2750
      %v2916 = vpop.f32.mrb[0].mxu0
      %v2917 = vadd.f32 0.0, %v2916
      %v2918 = vpop.f32.mrb[0].mxu0
      %2919 = vmatprep.mubr.f32.mxu0 0.0
      %2920 = vmatmul.mubr.f32.gmra.mrb[0].mxu0 %v2753
      %v2921 = vpop.f32.mrb[0].mxu0
      %v2922 = vadd.f32 0.0, %v2921
      %v2923 = vpop.f32.mrb[0].mxu0
      %2924 = vmatprep.mubr.f32.mxu0 0.0
      %2925 = vmatmul.mubr.f32.gmra.mrb[0].mxu0 %v2756
      %v2926 = vpop.f32.mrb[0].mxu0
      %v2927 = vadd.f32 0.0, %v2926
      %v2928 = vpop.f32.mrb[0].mxu0
      %2929 = vmatprep.mubr.f32.mxu0 0.0
      %2930 = vmatmul.mubr.f32.gmra.mrb[0].mxu0 %v2759
      %v2931 = vpop.f32.mrb[0].mxu0
      %v2932 = vadd.f32 0.0, %v2931
      %v2933 = vpop.f32.mrb[0].mxu0
      %2934 = vmatprep.mubr.f32.mxu0 0.0
      %2935 = vmatmul.mubr.f32.gmra.mrb[0].mxu0 %v2762
      %v2936 = vpop.f32.mrb[0].mxu0
      %v2937 = vadd.f32 0.0, %v2936
      %v2938 = vpop.f32.mrb[0].mxu0
      %2939 = vmatprep.mubr.f32.mxu0 0.0
      %2940 = vmatmul.mubr.f32.gmra.mrb[0].mxu0 %v2765
      %v2941 = vpop.f32.mrb[0].mxu0
      %v2942 = vadd.f32 0.0, %v2941
      %v2943 = vpop.f32.mrb[0].mxu0
      %2944 = vmatprep.mubr.f32.mxu0 0.0
      %2945 = vmatmul.mubr.f32.gmra.mrb[0].mxu0 %v2768
      %v2946 = vpop.f32.mrb[0].mxu0
      %v2947 = vadd.f32 0.0, %v2946
      %v2948 = vpop.f32.mrb[0].mxu0
      %2949 = vmatprep.mubr.f32.mxu0 0.0
      %2950 = vmatmul.mubr.f32.gmra.mrb[0].mxu0 %v2771
      %v2951 = vpop.f32.mrb[0].mxu0
      %v2952 = vadd.f32 0.0, %v2951
      %v2953 = vpop.f32.mrb[0].mxu0
      %2954 = vmatprep.mubr.f32.mxu0 0.0
      %2955 = vmatmul.mubr.f32.gmra.mrb[0].mxu0 %v2774
      %v2956 = vpop.f32.mrb[0].mxu0
      %v2957 = vadd.f32 0.0, %v2956
      %v2958 = vpop.f32.mrb[0].mxu0
      %2959 = vmatprep.mubr.f32.mxu0 0.0
      %2960 = vmatmul.mubr.f32.gmra.mrb[0].mxu0 %v2777
      %v2961 = vpop.f32.mrb[0].mxu0
      %v2962 = vadd.f32 0.0, %v2961
      %v2963 = vpop.f32.mrb[0].mxu0
      %2964 = vmatprep.mubr.f32.mxu0 0.0
      %2965 = vmatmul.mubr.f32.gmra.mrb[0].mxu0 %v2780
      %v2966 = vpop.f32.mrb[0].mxu0
      %v2967 = vadd.f32 0.0, %v2966
      %v2968 = vpop.f32.mrb[0].mxu0
      %2969 = vmatprep.mubr.f32.mxu0 0.0
      %2970 = vmatmul.mubr.f32.gmra.mrb[0].mxu0 %v2783
      %v2971 = vpop.f32.mrb[0].mxu0
      %v2972 = vadd.f32 0.0, %v2971
      %v2973 = vpop.f32.mrb[0].mxu0
      %2974 = vmatprep.mubr.f32.mxu0 0.0
      %2975 = vmatmul.mubr.f32.gmra.mrb[0].mxu0 %v2786
      %v2976 = vpop.f32.mrb[0].mxu0
      %v2977 = vadd.f32 0.0, %v2976
      %v2978 = vpop.f32.mrb[0].mxu0
      %2979 = vmatprep.mubr.f32.mxu0 0.0
      %2980 = vmatmul.mubr.f32.gmra.mrb[0].mxu0 %v2789
      %v2981 = vpop.f32.mrb[0].mxu0
      %v2982 = vadd.f32 0.0, %v2981
      %v2983 = vpop.f32.mrb[0].mxu0
      %2984 = vmatprep.mubr.f32.mxu0 0.0
      %2985 = vmatmul.mubr.f32.gmra.mrb[0].mxu0 %v2792
      %v2986 = vpop.f32.mrb[0].mxu0
      %v2987 = vadd.f32 0.0, %v2986
      %v2988 = vpop.f32.mrb[0].mxu0
      %2989 = vmatprep.mubr.f32.mxu0 0.0
      %2990 = vmatmul.mubr.f32.gmra.mrb[0].mxu0 %v2795
      %v2991 = vpop.f32.mrb[0].mxu0
      %v2992 = vadd.f32 0.0, %v2991
      %v2993 = vpop.f32.mrb[0].mxu0
      %2994 = vmatprep.mubr.f32.mxu0 0.0
      %2995 = vmatmul.mubr.f32.gmra.mrb[0].mxu0 %v2798
      %v2996 = vpop.f32.mrb[0].mxu0
      %v2997 = vadd.f32 0.0, %v2996
      %v2998 = vpop.f32.mrb[0].mxu0
      %2999 = vmatprep.mubr.f32.mxu0 0.0
      %3000 = vmatmul.mubr.f32.gmra.mrb[0].mxu0 %v2801
      %v3001 = vpop.f32.mrb[0].mxu0
      %v3002 = vadd.f32 0.0, %v3001
      %v3003 = vpop.f32.mrb[0].mxu0
      %3004 = vmatprep.mubr.f32.mxu0 0.0
      %3005 = vmatmul.mubr.f32.gmra.mrb[0].mxu0 %v2804
      %v3006 = vpop.f32.mrb[0].mxu0
      %v3007 = vadd.f32 0.0, %v3006
      %v3008 = vpop.f32.mrb[0].mxu0
      %3009 = vmatprep.mubr.f32.mxu0 0.0
      %3010 = vmatmul.mubr.f32.gmra.mrb[0].mxu0 %v2807
      %v3011 = vpop.f32.mrb[0].mxu0
      %v3012 = vadd.f32 0.0, %v3011
      %v3013 = vpop.f32.mrb[0].mxu0
      %3014 = vmatprep.mubr.f32.mxu0 0.0
      %3015 = vmatmul.mubr.f32.gmra.mrb[0].mxu0 %v2810
      %v3016 = vpop.f32.mrb[0].mxu0
      %v3017 = vadd.f32 0.0, %v3016
      %v3018 = vpop.f32.mrb[0].mxu0
      %3019 = vmatprep.mubr.f32.mxu0 0.0
      %3020 = vmatmul.mubr.f32.gmra.mrb[0].mxu0 %v2813
      %v3021 = vpop.f32.mrb[0].mxu0
      %v3022 = vadd.f32 0.0, %v3021
      %v3023 = vpop.f32.mrb[0].mxu0
      %3024 = vmatprep.mubr.f32.mxu0 0.0
      %3025 = vmatmul.mubr.f32.gmra.mrb[0].mxu0 %v2816
      %v3026 = vpop.f32.mrb[0].mxu0
      %v3027 = vadd.f32 0.0, %v3026
      %v3028 = vpop.f32.mrb[0].mxu0
      %3029 = vmatprep.mubr.f32.mxu0 0.0
      %3030 = vmatmul.mubr.f32.gmra.mrb[0].mxu0 %v2819
      %v3031 = vpop.f32.mrb[0].mxu0
      %v3032 = vadd.f32 0.0, %v3031
      %v3033 = vpop.f32.mrb[0].mxu0
      %3034 = vmatprep.mubr.f32.mxu0 0.0
      %3035 = vmatmul.mubr.f32.gmra.mrb[0].mxu0 %v2822
      %v3036 = vpop.f32.mrb[0].mxu0
      %v3037 = vadd.f32 0.0, %v3036
      %v3038 = vpop.f32.mrb[0].mxu0
      %3039 = vmatprep.mubr.f32.mxu0 0.0
      %3040 = vmatmul.mubr.f32.gmra.mrb[0].mxu0 %v2825
      %v3041 = vpop.f32.mrb[0].mxu0
      %v3042 = vadd.f32 0.0, %v3041
      %v3043 = vpop.f32.mrb[0].mxu0
      %3044 = vmatprep.mubr.f32.mxu0 0.0
      %3045 = vmatmul.mubr.f32.gmra.mrb[0].mxu0 %v2828
      %v3046 = vpop.f32.mrb[0].mxu0
      %v3047 = vadd.f32 0.0, %v3046
      %v3048 = vpop.f32.mrb[0].mxu0
      %3049 = vmatprep.mubr.f32.mxu0 0.0
      %3050 = vmatmul.mubr.f32.gmra.mrb[0].mxu0 %v2831
      %v3051 = vpop.f32.mrb[0].mxu0
      %v3052 = vadd.f32 0.0, %v3051
      %v3053 = vpop.f32.mrb[0].mxu0
      %3054 = vmatprep.mubr.f32.mxu0 0.0
      %3055 = vmatmul.mubr.f32.gmra.mrb[0].mxu0 %v2834
      %v3056 = vpop.f32.mrb[0].mxu0
      %v3057 = vadd.f32 0.0, %v3056
      %v3058 = vpop.f32.mrb[0].mxu0
      %3059 = vmatprep.mubr.f32.mxu0 0.0
      %3060 = vmatmul.mubr.f32.gmra.mrb[0].mxu0 %v2837
      %v3061 = vpop.f32.mrb[0].mxu0
      %v3062 = vadd.f32 0.0, %v3061
      %v3063 = vpop.f32.mrb[0].mxu0
      %3064 = vmatprep.mubr.f32.mxu0 0.0
      %3065 = vmatmul.mubr.f32.gmra.mrb[0].mxu0 %v2840
      %v3066 = vpop.f32.mrb[0].mxu0
      %v3067 = vadd.f32 0.0, %v3066
      %v3068 = vpop.f32.mrb[0].mxu0
      %3069 = vdwg.mxu0
      %v3070 = vadd.f32 %v2679, %v2912
      %v3071 = vadd.f32 %v2680, %v2917
      %v3072 = vadd.f32 %v2681, %v2922
      %v3073 = vadd.f32 %v2682, %v2927
      %v3074 = vadd.f32 %v2683, %v2932
      %v3075 = vadd.f32 %v2684, %v2937
      %v3076 = vadd.f32 %v2685, %v2942
      %v3077 = vadd.f32 %v2686, %v2947
      %v3078 = vadd.f32 %v2687, %v2952
      %v3079 = vadd.f32 %v2688, %v2957
      %v3080 = vadd.f32 %v2689, %v2962
      %v3081 = vadd.f32 %v2690, %v2967
      %v3082 = vadd.f32 %v2691, %v2972
      %v3083 = vadd.f32 %v2692, %v2977
      %v3084 = vadd.f32 %v2693, %v2982
      %v3085 = vadd.f32 %v2694, %v2987
      %v3086 = vadd.f32 %v2695, %v2992
      %v3087 = vadd.f32 %v2696, %v2997
      %v3088 = vadd.f32 %v2697, %v3002
      %v3089 = vadd.f32 %v2698, %v3007
      %v3090 = vadd.f32 %v2699, %v3012
      %v3091 = vadd.f32 %v2700, %v3017
      %v3092 = vadd.f32 %v2701, %v3022
      %v3093 = vadd.f32 %v2702, %v3027
      %v3094 = vadd.f32 %v2703, %v3032
      %v3095 = vadd.f32 %v2704, %v3037
      %v3096 = vadd.f32 %v2705, %v3042
      %v3097 = vadd.f32 %v2706, %v3047
      %v3098 = vadd.f32 %v2707, %v3052
      %v3099 = vadd.f32 %v2708, %v3057
      %v3100 = vadd.f32 %v2709, %v3062
      %v3101 = vadd.f32 %v2710, %v3067
      %v3102 = vld [vmem:[%s2711 + $0x8] sm:$0xff]
      %v3103 = vld [vmem:[%s2711 + $0x10] sm:$0xff]
      %v3104 = vld [vmem:[%s2711 + $0x28] sm:$0xff]
      %v3105 = vld [vmem:[%s2711 + $0x30] sm:$0xff]
      %v3106 = vld [vmem:[%s2711 + $0x48] sm:$0xff]
      %v3107 = vld [vmem:[%s2711 + $0x50] sm:$0xff]
      %v3108 = vld [vmem:[%s2711 + $0x68] sm:$0xff]
      %v3109 = vld [vmem:[%s2711 + $0x70] sm:$0xff]
      %v3110 = vld [vmem:[%s2711 + $0x88] sm:$0xff]
      %v3111 = vld [vmem:[%s2711 + $0x90] sm:$0xff]
      %v3112 = vld [vmem:[%s2711 + $0xa8] sm:$0xff]
      %v3113 = vld [vmem:[%s2711 + $0xb0] sm:$0xff]
      %v3114 = vld [vmem:[%s2711 + $0xc8] sm:$0xff]
      %v3115 = vld [vmem:[%s2711 + $0xd0] sm:$0xff]
      %v3116 = vld [vmem:[%s2711 + $0xe8] sm:$0xff]
      %v3117 = vld [vmem:[%s2711 + $0xf0] sm:$0xff]
      %v3118 = vld [vmem:[%s2711 + $0x108] sm:$0xff]
      %v3119 = vld [vmem:[%s2711 + $0x110] sm:$0xff]
      %v3120 = vld [vmem:[%s2711 + $0x128] sm:$0xff]
      %v3121 = vld [vmem:[%s2711 + $0x130] sm:$0xff]
      %v3122 = vld [vmem:[%s2711 + $0x148] sm:$0xff]
      %v3123 = vld [vmem:[%s2711 + $0x150] sm:$0xff]
      %v3124 = vld [vmem:[%s2711 + $0x168] sm:$0xff]
      %v3125 = vld [vmem:[%s2711 + $0x170] sm:$0xff]
      %v3126 = vld [vmem:[%s2711 + $0x188] sm:$0xff]
      %v3127 = vld [vmem:[%s2711 + $0x190] sm:$0xff]
      %v3128 = vld [vmem:[%s2711 + $0x1a8] sm:$0xff]
      %v3129 = vld [vmem:[%s2711 + $0x1b0] sm:$0xff]
      %v3130 = vld [vmem:[%s2711 + $0x1c8] sm:$0xff]
      %v3131 = vld [vmem:[%s2711 + $0x1d0] sm:$0xff]
      %v3132 = vld [vmem:[%s2711 + $0x1e8] sm:$0xff]
      %v3133 = vld [vmem:[%s2711 + $0x1f0] sm:$0xff]
      %s3134 = scalar_lea.vmem %s1, 28
      %v3135 = vld [vmem:[%s3134] sm:$0xf]
      %v3137 = vsel %vm225, %v3102, 0
      %v3140 = vsel %vm225, %v3103, 0
      %v3143 = vsel %vm225, %v3104, 0
      %v3146 = vsel %vm225, %v3105, 0
      %v3149 = vsel %vm225, %v3106, 0
      %v3152 = vsel %vm225, %v3107, 0
      %v3155 = vsel %vm225, %v3108, 0
      %v3158 = vsel %vm225, %v3109, 0
      %v3161 = vsel %vm225, %v3110, 0
      %v3164 = vsel %vm225, %v3111, 0
      %v3167 = vsel %vm225, %v3112, 0
      %v3170 = vsel %vm225, %v3113, 0
      %v3173 = vsel %vm225, %v3114, 0
      %v3176 = vsel %vm225, %v3115, 0
      %v3179 = vsel %vm225, %v3116, 0
      %v3182 = vsel %vm225, %v3117, 0
      %v3185 = vsel %vm225, %v3118, 0
      %v3188 = vsel %vm225, %v3119, 0
      %v3191 = vsel %vm225, %v3120, 0
      %v3194 = vsel %vm225, %v3121, 0
      %v3197 = vsel %vm225, %v3122, 0
      %v3200 = vsel %vm225, %v3123, 0
      %v3203 = vsel %vm225, %v3124, 0
      %v3206 = vsel %vm225, %v3125, 0
      %v3209 = vsel %vm225, %v3126, 0
      %v3212 = vsel %vm225, %v3127, 0
      %v3215 = vsel %vm225, %v3128, 0
      %v3218 = vsel %vm225, %v3129, 0
      %v3221 = vsel %vm225, %v3130, 0
      %v3224 = vsel %vm225, %v3131, 0
      %v3227 = vsel %vm225, %v3132, 0
      %v3230 = vsel %vm225, %v3133, 0
      %v3233 = vsel %vm598, %v3135, 0
      %3235 = vmatprep.subr.mxu0 0.0
      %3236 = vmatpush1.msra.mxu0 %v3233
      %3237 = vmatprep.subr.mxu0 0.0
      %3238 = vmatpush1.msra.mxu0 0.0
      %3239 = vmatprep.subr.mxu0 0.0
      %3240 = vmatpush1.msra.mxu0 0.0
      %3241 = vmatprep.subr.mxu0 0.0
      %3242 = vmatpush1.msra.mxu0 0.0
      %3243 = vmatprep.subr.mxu0 0.0
      %3244 = vmatpush1.msra.mxu0 0.0
      %3245 = vmatprep.subr.mxu0 0.0
      %3246 = vmatpush1.msra.mxu0 0.0
      %3247 = vmatprep.subr.mxu0 0.0
      %3248 = vmatpush1.msra.mxu0 0.0
      %3249 = vmatprep.subr.mxu0 0.0
      %3250 = vmatpush1.msra.mxu0 0.0
      %3251 = vmatprep.subr.mxu0 0.0
      %3252 = vmatpush1.msra.mxu0 0.0
      %3253 = vmatprep.subr.mxu0 0.0
      %3254 = vmatpush1.msra.mxu0 0.0
      %3255 = vmatprep.subr.mxu0 0.0
      %3256 = vmatpush1.msra.mxu0 0.0
      %3257 = vmatprep.subr.mxu0 0.0
      %3258 = vmatpush1.msra.mxu0 0.0
      %3259 = vmatprep.subr.mxu0 0.0
      %3260 = vmatpush1.msra.mxu0 0.0
      %3261 = vmatprep.subr.mxu0 0.0
      %3262 = vmatpush1.msra.mxu0 0.0
      %3263 = vmatprep.subr.mxu0 0.0
      %3264 = vmatpush1.msra.mxu0 0.0
      %3265 = vmatprep.subr.mxu0 0.0
      %3266 = vmatpush1.msra.mxu0 0.0
      %3267 = vmatprep.subr.mxu0 0.0
      %3268 = vmatpush1.msra.mxu0 0.0
      %3269 = vmatprep.subr.mxu0 0.0
      %3270 = vmatpush1.msra.mxu0 0.0
      %3271 = vmatprep.subr.mxu0 0.0
      %3272 = vmatpush1.msra.mxu0 0.0
      %3273 = vmatprep.subr.mxu0 0.0
      %3274 = vmatpush1.msra.mxu0 0.0
      %3275 = vmatprep.subr.mxu0 0.0
      %3276 = vmatpush1.msra.mxu0 0.0
      %3277 = vmatprep.subr.mxu0 0.0
      %3278 = vmatpush1.msra.mxu0 0.0
      %3279 = vmatprep.subr.mxu0 0.0
      %3280 = vmatpush1.msra.mxu0 0.0
      %3281 = vmatprep.subr.mxu0 0.0
      %3282 = vmatpush1.msra.mxu0 0.0
      %3283 = vmatprep.subr.mxu0 0.0
      %3284 = vmatpush1.msra.mxu0 0.0
      %3285 = vmatprep.subr.mxu0 0.0
      %3286 = vmatpush1.msra.mxu0 0.0
      %3287 = vmatprep.subr.mxu0 0.0
      %3288 = vmatpush1.msra.mxu0 0.0
      %3289 = vmatprep.subr.mxu0 0.0
      %3290 = vmatpush1.msra.mxu0 0.0
      %3291 = vmatprep.subr.mxu0 0.0
      %3292 = vmatpush1.msra.mxu0 0.0
      %3293 = vmatprep.subr.mxu0 0.0
      %3294 = vmatpush1.msra.mxu0 0.0
      %3295 = vmatprep.subr.mxu0 0.0
      %3296 = vmatpush1.msra.mxu0 0.0
      %3297 = vmatprep.subr.mxu0 0.0
      %3298 = vmatpush1.msra.mxu0 0.0
      %3299 = vmatprep.mubr.f32.mxu0 0.0
      %3300 = vmatmul.mubr.f32.gmra.mrb[0].mxu0 %v3137
      %v3301 = vpop.f32.mrb[0].mxu0
      %v3302 = vadd.f32 0.0, %v3301
      %v3303 = vpop.f32.mrb[0].mxu0
      %3304 = vmatprep.mubr.f32.mxu0 0.0
      %3305 = vmatmul.mubr.f32.gmra.mrb[0].mxu0 %v3140
      %v3306 = vpop.f32.mrb[0].mxu0
      %v3307 = vadd.f32 0.0, %v3306
      %v3308 = vpop.f32.mrb[0].mxu0
      %3309 = vmatprep.mubr.f32.mxu0 0.0
      %3310 = vmatmul.mubr.f32.gmra.mrb[0].mxu0 %v3143
      %v3311 = vpop.f32.mrb[0].mxu0
      %v3312 = vadd.f32 0.0, %v3311
      %v3313 = vpop.f32.mrb[0].mxu0
      %3314 = vmatprep.mubr.f32.mxu0 0.0
      %3315 = vmatmul.mubr.f32.gmra.mrb[0].mxu0 %v3146
      %v3316 = vpop.f32.mrb[0].mxu0
      %v3317 = vadd.f32 0.0, %v3316
      %v3318 = vpop.f32.mrb[0].mxu0
      %3319 = vmatprep.mubr.f32.mxu0 0.0
      %3320 = vmatmul.mubr.f32.gmra.mrb[0].mxu0 %v3149
      %v3321 = vpop.f32.mrb[0].mxu0
      %v3322 = vadd.f32 0.0, %v3321
      %v3323 = vpop.f32.mrb[0].mxu0
      %3324 = vmatprep.mubr.f32.mxu0 0.0
      %3325 = vmatmul.mubr.f32.gmra.mrb[0].mxu0 %v3152
      %v3326 = vpop.f32.mrb[0].mxu0
      %v3327 = vadd.f32 0.0, %v3326
      %v3328 = vpop.f32.mrb[0].mxu0
      %3329 = vmatprep.mubr.f32.mxu0 0.0
      %3330 = vmatmul.mubr.f32.gmra.mrb[0].mxu0 %v3155
      %v3331 = vpop.f32.mrb[0].mxu0
      %v3332 = vadd.f32 0.0, %v3331
      %v3333 = vpop.f32.mrb[0].mxu0
      %3334 = vmatprep.mubr.f32.mxu0 0.0
      %3335 = vmatmul.mubr.f32.gmra.mrb[0].mxu0 %v3158
      %v3336 = vpop.f32.mrb[0].mxu0
      %v3337 = vadd.f32 0.0, %v3336
      %v3338 = vpop.f32.mrb[0].mxu0
      %3339 = vmatprep.mubr.f32.mxu0 0.0
      %3340 = vmatmul.mubr.f32.gmra.mrb[0].mxu0 %v3161
      %v3341 = vpop.f32.mrb[0].mxu0
      %v3342 = vadd.f32 0.0, %v3341
      %v3343 = vpop.f32.mrb[0].mxu0
      %3344 = vmatprep.mubr.f32.mxu0 0.0
      %3345 = vmatmul.mubr.f32.gmra.mrb[0].mxu0 %v3164
      %v3346 = vpop.f32.mrb[0].mxu0
      %v3347 = vadd.f32 0.0, %v3346
      %v3348 = vpop.f32.mrb[0].mxu0
      %3349 = vmatprep.mubr.f32.mxu0 0.0
      %3350 = vmatmul.mubr.f32.gmra.mrb[0].mxu0 %v3167
      %v3351 = vpop.f32.mrb[0].mxu0
      %v3352 = vadd.f32 0.0, %v3351
      %v3353 = vpop.f32.mrb[0].mxu0
      %3354 = vmatprep.mubr.f32.mxu0 0.0
      %3355 = vmatmul.mubr.f32.gmra.mrb[0].mxu0 %v3170
      %v3356 = vpop.f32.mrb[0].mxu0
      %v3357 = vadd.f32 0.0, %v3356
      %v3358 = vpop.f32.mrb[0].mxu0
      %3359 = vmatprep.mubr.f32.mxu0 0.0
      %3360 = vmatmul.mubr.f32.gmra.mrb[0].mxu0 %v3173
      %v3361 = vpop.f32.mrb[0].mxu0
      %v3362 = vadd.f32 0.0, %v3361
      %v3363 = vpop.f32.mrb[0].mxu0
      %3364 = vmatprep.mubr.f32.mxu0 0.0
      %3365 = vmatmul.mubr.f32.gmra.mrb[0].mxu0 %v3176
      %v3366 = vpop.f32.mrb[0].mxu0
      %v3367 = vadd.f32 0.0, %v3366
      %v3368 = vpop.f32.mrb[0].mxu0
      %3369 = vmatprep.mubr.f32.mxu0 0.0
      %3370 = vmatmul.mubr.f32.gmra.mrb[0].mxu0 %v3179
      %v3371 = vpop.f32.mrb[0].mxu0
      %v3372 = vadd.f32 0.0, %v3371
      %v3373 = vpop.f32.mrb[0].mxu0
      %3374 = vmatprep.mubr.f32.mxu0 0.0
      %3375 = vmatmul.mubr.f32.gmra.mrb[0].mxu0 %v3182
      %v3376 = vpop.f32.mrb[0].mxu0
      %v3377 = vadd.f32 0.0, %v3376
      %v3378 = vpop.f32.mrb[0].mxu0
      %3379 = vmatprep.mubr.f32.mxu0 0.0
      %3380 = vmatmul.mubr.f32.gmra.mrb[0].mxu0 %v3185
      %v3381 = vpop.f32.mrb[0].mxu0
      %v3382 = vadd.f32 0.0, %v3381
      %v3383 = vpop.f32.mrb[0].mxu0
      %3384 = vmatprep.mubr.f32.mxu0 0.0
      %3385 = vmatmul.mubr.f32.gmra.mrb[0].mxu0 %v3188
      %v3386 = vpop.f32.mrb[0].mxu0
      %v3387 = vadd.f32 0.0, %v3386
      %v3388 = vpop.f32.mrb[0].mxu0
      %3389 = vmatprep.mubr.f32.mxu0 0.0
      %3390 = vmatmul.mubr.f32.gmra.mrb[0].mxu0 %v3191
      %v3391 = vpop.f32.mrb[0].mxu0
      %v3392 = vadd.f32 0.0, %v3391
      %v3393 = vpop.f32.mrb[0].mxu0
      %3394 = vmatprep.mubr.f32.mxu0 0.0
      %3395 = vmatmul.mubr.f32.gmra.mrb[0].mxu0 %v3194
      %v3396 = vpop.f32.mrb[0].mxu0
      %v3397 = vadd.f32 0.0, %v3396
      %v3398 = vpop.f32.mrb[0].mxu0
      %3399 = vmatprep.mubr.f32.mxu0 0.0
      %3400 = vmatmul.mubr.f32.gmra.mrb[0].mxu0 %v3197
      %v3401 = vpop.f32.mrb[0].mxu0
      %v3402 = vadd.f32 0.0, %v3401
      %v3403 = vpop.f32.mrb[0].mxu0
      %3404 = vmatprep.mubr.f32.mxu0 0.0
      %3405 = vmatmul.mubr.f32.gmra.mrb[0].mxu0 %v3200
      %v3406 = vpop.f32.mrb[0].mxu0
      %v3407 = vadd.f32 0.0, %v3406
      %v3408 = vpop.f32.mrb[0].mxu0
      %3409 = vmatprep.mubr.f32.mxu0 0.0
      %3410 = vmatmul.mubr.f32.gmra.mrb[0].mxu0 %v3203
      %v3411 = vpop.f32.mrb[0].mxu0
      %v3412 = vadd.f32 0.0, %v3411
      %v3413 = vpop.f32.mrb[0].mxu0
      %3414 = vmatprep.mubr.f32.mxu0 0.0
      %3415 = vmatmul.mubr.f32.gmra.mrb[0].mxu0 %v3206
      %v3416 = vpop.f32.mrb[0].mxu0
      %v3417 = vadd.f32 0.0, %v3416
      %v3418 = vpop.f32.mrb[0].mxu0
      %3419 = vmatprep.mubr.f32.mxu0 0.0
      %3420 = vmatmul.mubr.f32.gmra.mrb[0].mxu0 %v3209
      %v3421 = vpop.f32.mrb[0].mxu0
      %v3422 = vadd.f32 0.0, %v3421
      %v3423 = vpop.f32.mrb[0].mxu0
      %3424 = vmatprep.mubr.f32.mxu0 0.0
      %3425 = vmatmul.mubr.f32.gmra.mrb[0].mxu0 %v3212
      %v3426 = vpop.f32.mrb[0].mxu0
      %v3427 = vadd.f32 0.0, %v3426
      %v3428 = vpop.f32.mrb[0].mxu0
      %3429 = vmatprep.mubr.f32.mxu0 0.0
      %3430 = vmatmul.mubr.f32.gmra.mrb[0].mxu0 %v3215
      %v3431 = vpop.f32.mrb[0].mxu0
      %v3432 = vadd.f32 0.0, %v3431
      %v3433 = vpop.f32.mrb[0].mxu0
      %3434 = vmatprep.mubr.f32.mxu0 0.0
      %3435 = vmatmul.mubr.f32.gmra.mrb[0].mxu0 %v3218
      %v3436 = vpop.f32.mrb[0].mxu0
      %v3437 = vadd.f32 0.0, %v3436
      %v3438 = vpop.f32.mrb[0].mxu0
      %3439 = vmatprep.mubr.f32.mxu0 0.0
      %3440 = vmatmul.mubr.f32.gmra.mrb[0].mxu0 %v3221
      %v3441 = vpop.f32.mrb[0].mxu0
      %v3442 = vadd.f32 0.0, %v3441
      %v3443 = vpop.f32.mrb[0].mxu0
      %3444 = vmatprep.mubr.f32.mxu0 0.0
      %3445 = vmatmul.mubr.f32.gmra.mrb[0].mxu0 %v3224
      %v3446 = vpop.f32.mrb[0].mxu0
      %v3447 = vadd.f32 0.0, %v3446
      %v3448 = vpop.f32.mrb[0].mxu0
      %3449 = vmatprep.mubr.f32.mxu0 0.0
      %3450 = vmatmul.mubr.f32.gmra.mrb[0].mxu0 %v3227
      %v3451 = vpop.f32.mrb[0].mxu0
      %v3452 = vadd.f32 0.0, %v3451
      %v3453 = vpop.f32.mrb[0].mxu0
      %3454 = vmatprep.mubr.f32.mxu0 0.0
      %3455 = vmatmul.mubr.f32.gmra.mrb[0].mxu0 %v3230
      %v3456 = vpop.f32.mrb[0].mxu0
      %v3457 = vadd.f32 0.0, %v3456
      %v3458 = vpop.f32.mrb[0].mxu0
      %3459 = vdwg.mxu0
      %v3460 = vadd.f32 %v3070, %v3302
      %v3461 = vadd.f32 %v3071, %v3307
      %v3462 = vadd.f32 %v3072, %v3312
      %v3463 = vadd.f32 %v3073, %v3317
      %v3464 = vadd.f32 %v3074, %v3322
      %v3465 = vadd.f32 %v3075, %v3327
      %v3466 = vadd.f32 %v3076, %v3332
      %v3467 = vadd.f32 %v3077, %v3337
      %v3468 = vadd.f32 %v3078, %v3342
      %v3469 = vadd.f32 %v3079, %v3347
      %v3470 = vadd.f32 %v3080, %v3352
      %v3471 = vadd.f32 %v3081, %v3357
      %v3472 = vadd.f32 %v3082, %v3362
      %v3473 = vadd.f32 %v3083, %v3367
      %v3474 = vadd.f32 %v3084, %v3372
      %v3475 = vadd.f32 %v3085, %v3377
      %v3476 = vadd.f32 %v3086, %v3382
      %v3477 = vadd.f32 %v3087, %v3387
      %v3478 = vadd.f32 %v3088, %v3392
      %v3479 = vadd.f32 %v3089, %v3397
      %v3480 = vadd.f32 %v3090, %v3402
      %v3481 = vadd.f32 %v3091, %v3407
      %v3482 = vadd.f32 %v3092, %v3412
      %v3483 = vadd.f32 %v3093, %v3417
      %v3484 = vadd.f32 %v3094, %v3422
      %v3485 = vadd.f32 %v3095, %v3427
      %v3486 = vadd.f32 %v3096, %v3432
      %v3487 = vadd.f32 %v3097, %v3437
      %v3488 = vadd.f32 %v3098, %v3442
      %v3489 = vadd.f32 %v3099, %v3447
      %v3490 = vadd.f32 %v3100, %v3452
      %v3491 = vadd.f32 %v3101, %v3457
      %v3492 = vld [vmem:[%s2711 + $0x9] sm:$0xff]
      %v3493 = vld [vmem:[%s2711 + $0x11] sm:$0xff]
      %v3494 = vld [vmem:[%s2711 + $0x29] sm:$0xff]
      %v3495 = vld [vmem:[%s2711 + $0x31] sm:$0xff]
      %v3496 = vld [vmem:[%s2711 + $0x49] sm:$0xff]
      %v3497 = vld [vmem:[%s2711 + $0x51] sm:$0xff]
      %v3498 = vld [vmem:[%s2711 + $0x69] sm:$0xff]
      %v3499 = vld [vmem:[%s2711 + $0x71] sm:$0xff]
      %v3500 = vld [vmem:[%s2711 + $0x89] sm:$0xff]
      %v3501 = vld [vmem:[%s2711 + $0x91] sm:$0xff]
      %v3502 = vld [vmem:[%s2711 + $0xa9] sm:$0xff]
      %v3503 = vld [vmem:[%s2711 + $0xb1] sm:$0xff]
      %v3504 = vld [vmem:[%s2711 + $0xc9] sm:$0xff]
      %v3505 = vld [vmem:[%s2711 + $0xd1] sm:$0xff]
      %v3506 = vld [vmem:[%s2711 + $0xe9] sm:$0xff]
      %v3507 = vld [vmem:[%s2711 + $0xf1] sm:$0xff]
      %v3508 = vld [vmem:[%s2711 + $0x109] sm:$0xff]
      %v3509 = vld [vmem:[%s2711 + $0x111] sm:$0xff]
      %v3510 = vld [vmem:[%s2711 + $0x129] sm:$0xff]
      %v3511 = vld [vmem:[%s2711 + $0x131] sm:$0xff]
      %v3512 = vld [vmem:[%s2711 + $0x149] sm:$0xff]
      %v3513 = vld [vmem:[%s2711 + $0x151] sm:$0xff]
      %v3514 = vld [vmem:[%s2711 + $0x169] sm:$0xff]
      %v3515 = vld [vmem:[%s2711 + $0x171] sm:$0xff]
      %v3516 = vld [vmem:[%s2711 + $0x189] sm:$0xff]
      %v3517 = vld [vmem:[%s2711 + $0x191] sm:$0xff]
      %v3518 = vld [vmem:[%s2711 + $0x1a9] sm:$0xff]
      %v3519 = vld [vmem:[%s2711 + $0x1b1] sm:$0xff]
      %v3520 = vld [vmem:[%s2711 + $0x1c9] sm:$0xff]
      %v3521 = vld [vmem:[%s2711 + $0x1d1] sm:$0xff]
      %v3522 = vld [vmem:[%s2711 + $0x1e9] sm:$0xff]
      %v3523 = vld [vmem:[%s2711 + $0x1f1] sm:$0xff]
      %s3524 = scalar_lea.vmem %s1, 32
      %v3525 = vld [vmem:[%s3524] sm:$0xf]
      %v3527 = vsel %vm225, %v3492, 0
      %v3530 = vsel %vm225, %v3493, 0
      %v3533 = vsel %vm225, %v3494, 0
      %v3536 = vsel %vm225, %v3495, 0
      %v3539 = vsel %vm225, %v3496, 0
      %v3542 = vsel %vm225, %v3497, 0
      %v3545 = vsel %vm225, %v3498, 0
      %v3548 = vsel %vm225, %v3499, 0
      %v3551 = vsel %vm225, %v3500, 0
      %v3554 = vsel %vm225, %v3501, 0
      %v3557 = vsel %vm225, %v3502, 0
      %v3560 = vsel %vm225, %v3503, 0
      %v3563 = vsel %vm225, %v3504, 0
      %v3566 = vsel %vm225, %v3505, 0
      %v3569 = vsel %vm225, %v3506, 0
      %v3572 = vsel %vm225, %v3507, 0
      %v3575 = vsel %vm225, %v3508, 0
      %v3578 = vsel %vm225, %v3509, 0
      %v3581 = vsel %vm225, %v3510, 0
      %v3584 = vsel %vm225, %v3511, 0
      %v3587 = vsel %vm225, %v3512, 0
      %v3590 = vsel %vm225, %v3513, 0
      %v3593 = vsel %vm225, %v3514, 0
      %v3596 = vsel %vm225, %v3515, 0
      %v3599 = vsel %vm225, %v3516, 0
      %v3602 = vsel %vm225, %v3517, 0
      %v3605 = vsel %vm225, %v3518, 0
      %v3608 = vsel %vm225, %v3519, 0
      %v3611 = vsel %vm225, %v3520, 0
      %v3614 = vsel %vm225, %v3521, 0
      %v3617 = vsel %vm225, %v3522, 0
      %v3620 = vsel %vm225, %v3523, 0
      %v3623 = vsel %vm598, %v3525, 0
      %3625 = vmatprep.subr.mxu0 0.0
      %3626 = vmatpush1.msra.mxu0 %v3623
      %3627 = vmatprep.subr.mxu0 0.0
      %3628 = vmatpush1.msra.mxu0 0.0
      %3629 = vmatprep.subr.mxu0 0.0
      %3630 = vmatpush1.msra.mxu0 0.0
      %3631 = vmatprep.subr.mxu0 0.0
      %3632 = vmatpush1.msra.mxu0 0.0
      %3633 = vmatprep.subr.mxu0 0.0
      %3634 = vmatpush1.msra.mxu0 0.0
      %3635 = vmatprep.subr.mxu0 0.0
      %3636 = vmatpush1.msra.mxu0 0.0
      %3637 = vmatprep.subr.mxu0 0.0
      %3638 = vmatpush1.msra.mxu0 0.0
      %3639 = vmatprep.subr.mxu0 0.0
      %3640 = vmatpush1.msra.mxu0 0.0
      %3641 = vmatprep.subr.mxu0 0.0
      %3642 = vmatpush1.msra.mxu0 0.0
      %3643 = vmatprep.subr.mxu0 0.0
      %3644 = vmatpush1.msra.mxu0 0.0
      %3645 = vmatprep.subr.mxu0 0.0
      %3646 = vmatpush1.msra.mxu0 0.0
      %3647 = vmatprep.subr.mxu0 0.0
      %3648 = vmatpush1.msra.mxu0 0.0
      %3649 = vmatprep.subr.mxu0 0.0
      %3650 = vmatpush1.msra.mxu0 0.0
      %3651 = vmatprep.subr.mxu0 0.0
      %3652 = vmatpush1.msra.mxu0 0.0
      %3653 = vmatprep.subr.mxu0 0.0
      %3654 = vmatpush1.msra.mxu0 0.0
      %3655 = vmatprep.subr.mxu0 0.0
      %3656 = vmatpush1.msra.mxu0 0.0
      %3657 = vmatprep.subr.mxu0 0.0
      %3658 = vmatpush1.msra.mxu0 0.0
      %3659 = vmatprep.subr.mxu0 0.0
      %3660 = vmatpush1.msra.mxu0 0.0
      %3661 = vmatprep.subr.mxu0 0.0
      %3662 = vmatpush1.msra.mxu0 0.0
      %3663 = vmatprep.subr.mxu0 0.0
      %3664 = vmatpush1.msra.mxu0 0.0
      %3665 = vmatprep.subr.mxu0 0.0
      %3666 = vmatpush1.msra.mxu0 0.0
      %3667 = vmatprep.subr.mxu0 0.0
      %3668 = vmatpush1.msra.mxu0 0.0
      %3669 = vmatprep.subr.mxu0 0.0
      %3670 = vmatpush1.msra.mxu0 0.0
      %3671 = vmatprep.subr.mxu0 0.0
      %3672 = vmatpush1.msra.mxu0 0.0
      %3673 = vmatprep.subr.mxu0 0.0
      %3674 = vmatpush1.msra.mxu0 0.0
      %3675 = vmatprep.subr.mxu0 0.0
      %3676 = vmatpush1.msra.mxu0 0.0
      %3677 = vmatprep.subr.mxu0 0.0
      %3678 = vmatpush1.msra.mxu0 0.0
      %3679 = vmatprep.subr.mxu0 0.0
      %3680 = vmatpush1.msra.mxu0 0.0
      %3681 = vmatprep.subr.mxu0 0.0
      %3682 = vmatpush1.msra.mxu0 0.0
      %3683 = vmatprep.subr.mxu0 0.0
      %3684 = vmatpush1.msra.mxu0 0.0
      %3685 = vmatprep.subr.mxu0 0.0
      %3686 = vmatpush1.msra.mxu0 0.0
      %3687 = vmatprep.subr.mxu0 0.0
      %3688 = vmatpush1.msra.mxu0 0.0
      %3689 = vmatprep.mubr.f32.mxu0 0.0
      %3690 = vmatmul.mubr.f32.gmra.mrb[0].mxu0 %v3527
      %v3691 = vpop.f32.mrb[0].mxu0
      %v3692 = vadd.f32 0.0, %v3691
      %v3693 = vpop.f32.mrb[0].mxu0
      %3694 = vmatprep.mubr.f32.mxu0 0.0
      %3695 = vmatmul.mubr.f32.gmra.mrb[0].mxu0 %v3530
      %v3696 = vpop.f32.mrb[0].mxu0
      %v3697 = vadd.f32 0.0, %v3696
      %v3698 = vpop.f32.mrb[0].mxu0
      %3699 = vmatprep.mubr.f32.mxu0 0.0
      %3700 = vmatmul.mubr.f32.gmra.mrb[0].mxu0 %v3533
      %v3701 = vpop.f32.mrb[0].mxu0
      %v3702 = vadd.f32 0.0, %v3701
      %v3703 = vpop.f32.mrb[0].mxu0
      %3704 = vmatprep.mubr.f32.mxu0 0.0
      %3705 = vmatmul.mubr.f32.gmra.mrb[0].mxu0 %v3536
      %v3706 = vpop.f32.mrb[0].mxu0
      %v3707 = vadd.f32 0.0, %v3706
      %v3708 = vpop.f32.mrb[0].mxu0
      %3709 = vmatprep.mubr.f32.mxu0 0.0
      %3710 = vmatmul.mubr.f32.gmra.mrb[0].mxu0 %v3539
      %v3711 = vpop.f32.mrb[0].mxu0
      %v3712 = vadd.f32 0.0, %v3711
      %v3713 = vpop.f32.mrb[0].mxu0
      %3714 = vmatprep.mubr.f32.mxu0 0.0
      %3715 = vmatmul.mubr.f32.gmra.mrb[0].mxu0 %v3542
      %v3716 = vpop.f32.mrb[0].mxu0
      %v3717 = vadd.f32 0.0, %v3716
      %v3718 = vpop.f32.mrb[0].mxu0
      %3719 = vmatprep.mubr.f32.mxu0 0.0
      %3720 = vmatmul.mubr.f32.gmra.mrb[0].mxu0 %v3545
      %v3721 = vpop.f32.mrb[0].mxu0
      %v3722 = vadd.f32 0.0, %v3721
      %v3723 = vpop.f32.mrb[0].mxu0
      %3724 = vmatprep.mubr.f32.mxu0 0.0
      %3725 = vmatmul.mubr.f32.gmra.mrb[0].mxu0 %v3548
      %v3726 = vpop.f32.mrb[0].mxu0
      %v3727 = vadd.f32 0.0, %v3726
      %v3728 = vpop.f32.mrb[0].mxu0
      %3729 = vmatprep.mubr.f32.mxu0 0.0
      %3730 = vmatmul.mubr.f32.gmra.mrb[0].mxu0 %v3551
      %v3731 = vpop.f32.mrb[0].mxu0
      %v3732 = vadd.f32 0.0, %v3731
      %v3733 = vpop.f32.mrb[0].mxu0
      %3734 = vmatprep.mubr.f32.mxu0 0.0
      %3735 = vmatmul.mubr.f32.gmra.mrb[0].mxu0 %v3554
      %v3736 = vpop.f32.mrb[0].mxu0
      %v3737 = vadd.f32 0.0, %v3736
      %v3738 = vpop.f32.mrb[0].mxu0
      %3739 = vmatprep.mubr.f32.mxu0 0.0
      %3740 = vmatmul.mubr.f32.gmra.mrb[0].mxu0 %v3557
      %v3741 = vpop.f32.mrb[0].mxu0
      %v3742 = vadd.f32 0.0, %v3741
      %v3743 = vpop.f32.mrb[0].mxu0
      %3744 = vmatprep.mubr.f32.mxu0 0.0
      %3745 = vmatmul.mubr.f32.gmra.mrb[0].mxu0 %v3560
      %v3746 = vpop.f32.mrb[0].mxu0
      %v3747 = vadd.f32 0.0, %v3746
      %v3748 = vpop.f32.mrb[0].mxu0
      %3749 = vmatprep.mubr.f32.mxu0 0.0
      %3750 = vmatmul.mubr.f32.gmra.mrb[0].mxu0 %v3563
      %v3751 = vpop.f32.mrb[0].mxu0
      %v3752 = vadd.f32 0.0, %v3751
      %v3753 = vpop.f32.mrb[0].mxu0
      %3754 = vmatprep.mubr.f32.mxu0 0.0
      %3755 = vmatmul.mubr.f32.gmra.mrb[0].mxu0 %v3566
      %v3756 = vpop.f32.mrb[0].mxu0
      %v3757 = vadd.f32 0.0, %v3756
      %v3758 = vpop.f32.mrb[0].mxu0
      %3759 = vmatprep.mubr.f32.mxu0 0.0
      %3760 = vmatmul.mubr.f32.gmra.mrb[0].mxu0 %v3569
      %v3761 = vpop.f32.mrb[0].mxu0
      %v3762 = vadd.f32 0.0, %v3761
      %v3763 = vpop.f32.mrb[0].mxu0
      %3764 = vmatprep.mubr.f32.mxu0 0.0
      %3765 = vmatmul.mubr.f32.gmra.mrb[0].mxu0 %v3572
      %v3766 = vpop.f32.mrb[0].mxu0
      %v3767 = vadd.f32 0.0, %v3766
      %v3768 = vpop.f32.mrb[0].mxu0
      %3769 = vmatprep.mubr.f32.mxu0 0.0
      %3770 = vmatmul.mubr.f32.gmra.mrb[0].mxu0 %v3575
      %v3771 = vpop.f32.mrb[0].mxu0
      %v3772 = vadd.f32 0.0, %v3771
      %v3773 = vpop.f32.mrb[0].mxu0
      %3774 = vmatprep.mubr.f32.mxu0 0.0
      %3775 = vmatmul.mubr.f32.gmra.mrb[0].mxu0 %v3578
      %v3776 = vpop.f32.mrb[0].mxu0
      %v3777 = vadd.f32 0.0, %v3776
      %v3778 = vpop.f32.mrb[0].mxu0
      %3779 = vmatprep.mubr.f32.mxu0 0.0
      %3780 = vmatmul.mubr.f32.gmra.mrb[0].mxu0 %v3581
      %v3781 = vpop.f32.mrb[0].mxu0
      %v3782 = vadd.f32 0.0, %v3781
      %v3783 = vpop.f32.mrb[0].mxu0
      %3784 = vmatprep.mubr.f32.mxu0 0.0
      %3785 = vmatmul.mubr.f32.gmra.mrb[0].mxu0 %v3584
      %v3786 = vpop.f32.mrb[0].mxu0
      %v3787 = vadd.f32 0.0, %v3786
      %v3788 = vpop.f32.mrb[0].mxu0
      %3789 = vmatprep.mubr.f32.mxu0 0.0
      %3790 = vmatmul.mubr.f32.gmra.mrb[0].mxu0 %v3587
      %v3791 = vpop.f32.mrb[0].mxu0
      %v3792 = vadd.f32 0.0, %v3791
      %v3793 = vpop.f32.mrb[0].mxu0
      %3794 = vmatprep.mubr.f32.mxu0 0.0
      %3795 = vmatmul.mubr.f32.gmra.mrb[0].mxu0 %v3590
      %v3796 = vpop.f32.mrb[0].mxu0
      %v3797 = vadd.f32 0.0, %v3796
      %v3798 = vpop.f32.mrb[0].mxu0
      %3799 = vmatprep.mubr.f32.mxu0 0.0
      %3800 = vmatmul.mubr.f32.gmra.mrb[0].mxu0 %v3593
      %v3801 = vpop.f32.mrb[0].mxu0
      %v3802 = vadd.f32 0.0, %v3801
      %v3803 = vpop.f32.mrb[0].mxu0
      %3804 = vmatprep.mubr.f32.mxu0 0.0
      %3805 = vmatmul.mubr.f32.gmra.mrb[0].mxu0 %v3596
      %v3806 = vpop.f32.mrb[0].mxu0
      %v3807 = vadd.f32 0.0, %v3806
      %v3808 = vpop.f32.mrb[0].mxu0
      %3809 = vmatprep.mubr.f32.mxu0 0.0
      %3810 = vmatmul.mubr.f32.gmra.mrb[0].mxu0 %v3599
      %v3811 = vpop.f32.mrb[0].mxu0
      %v3812 = vadd.f32 0.0, %v3811
      %v3813 = vpop.f32.mrb[0].mxu0
      %3814 = vmatprep.mubr.f32.mxu0 0.0
      %3815 = vmatmul.mubr.f32.gmra.mrb[0].mxu0 %v3602
      %v3816 = vpop.f32.mrb[0].mxu0
      %v3817 = vadd.f32 0.0, %v3816
      %v3818 = vpop.f32.mrb[0].mxu0
      %3819 = vmatprep.mubr.f32.mxu0 0.0
      %3820 = vmatmul.mubr.f32.gmra.mrb[0].mxu0 %v3605
      %v3821 = vpop.f32.mrb[0].mxu0
      %v3822 = vadd.f32 0.0, %v3821
      %v3823 = vpop.f32.mrb[0].mxu0
      %3824 = vmatprep.mubr.f32.mxu0 0.0
      %3825 = vmatmul.mubr.f32.gmra.mrb[0].mxu0 %v3608
      %v3826 = vpop.f32.mrb[0].mxu0
      %v3827 = vadd.f32 0.0, %v3826
      %v3828 = vpop.f32.mrb[0].mxu0
      %3829 = vmatprep.mubr.f32.mxu0 0.0
      %3830 = vmatmul.mubr.f32.gmra.mrb[0].mxu0 %v3611
      %v3831 = vpop.f32.mrb[0].mxu0
      %v3832 = vadd.f32 0.0, %v3831
      %v3833 = vpop.f32.mrb[0].mxu0
      %3834 = vmatprep.mubr.f32.mxu0 0.0
      %3835 = vmatmul.mubr.f32.gmra.mrb[0].mxu0 %v3614
      %v3836 = vpop.f32.mrb[0].mxu0
      %v3837 = vadd.f32 0.0, %v3836
      %v3838 = vpop.f32.mrb[0].mxu0
      %3839 = vmatprep.mubr.f32.mxu0 0.0
      %3840 = vmatmul.mubr.f32.gmra.mrb[0].mxu0 %v3617
      %v3841 = vpop.f32.mrb[0].mxu0
      %v3842 = vadd.f32 0.0, %v3841
      %v3843 = vpop.f32.mrb[0].mxu0
      %3844 = vmatprep.mubr.f32.mxu0 0.0
      %3845 = vmatmul.mubr.f32.gmra.mrb[0].mxu0 %v3620
      %v3846 = vpop.f32.mrb[0].mxu0
      %v3847 = vadd.f32 0.0, %v3846
      %v3848 = vpop.f32.mrb[0].mxu0
      %3849 = vdwg.mxu0
      %v3850 = vadd.f32 %v3460, %v3692
      %v3851 = vadd.f32 %v3461, %v3697
      %v3852 = vadd.f32 %v3462, %v3702
      %v3853 = vadd.f32 %v3463, %v3707
      %v3854 = vadd.f32 %v3464, %v3712
      %v3855 = vadd.f32 %v3465, %v3717
      %v3856 = vadd.f32 %v3466, %v3722
      %v3857 = vadd.f32 %v3467, %v3727
      %v3858 = vadd.f32 %v3468, %v3732
      %v3859 = vadd.f32 %v3469, %v3737
      %v3860 = vadd.f32 %v3470, %v3742
      %v3861 = vadd.f32 %v3471, %v3747
      %v3862 = vadd.f32 %v3472, %v3752
      %v3863 = vadd.f32 %v3473, %v3757
      %v3864 = vadd.f32 %v3474, %v3762
      %v3865 = vadd.f32 %v3475, %v3767
      %v3866 = vadd.f32 %v3476, %v3772
      %v3867 = vadd.f32 %v3477, %v3777
      %v3868 = vadd.f32 %v3478, %v3782
      %v3869 = vadd.f32 %v3479, %v3787
      %v3870 = vadd.f32 %v3480, %v3792
      %v3871 = vadd.f32 %v3481, %v3797
      %v3872 = vadd.f32 %v3482, %v3802
      %v3873 = vadd.f32 %v3483, %v3807
      %v3874 = vadd.f32 %v3484, %v3812
      %v3875 = vadd.f32 %v3485, %v3817
      %v3876 = vadd.f32 %v3486, %v3822
      %v3877 = vadd.f32 %v3487, %v3827
      %v3878 = vadd.f32 %v3488, %v3832
      %v3879 = vadd.f32 %v3489, %v3837
      %v3880 = vadd.f32 %v3490, %v3842
      %v3881 = vadd.f32 %v3491, %v3847
      %v3882 = vld [vmem:[%s2] sm:$0x1]
      %v3884 = vlaneseq
      %v3885 = vshrl.u32 %v3884, 7
      %v3886 = vsub.s32 0, %v3885
      %v3887 = vrot.slane %v3882, %v3886
      %v3889 = vadd.f32 %v3850, %v3887
      %v3890 = vadd.f32 %v3851, %v3887
      %v3891 = vadd.f32 %v3852, %v3887
      %v3892 = vadd.f32 %v3853, %v3887
      %v3893 = vadd.f32 %v3854, %v3887
      %v3894 = vadd.f32 %v3855, %v3887
      %v3895 = vadd.f32 %v3856, %v3887
      %v3896 = vadd.f32 %v3857, %v3887
      %v3897 = vadd.f32 %v3858, %v3887
      %v3898 = vadd.f32 %v3859, %v3887
      %v3899 = vadd.f32 %v3860, %v3887
      %v3900 = vadd.f32 %v3861, %v3887
      %v3901 = vadd.f32 %v3862, %v3887
      %v3902 = vadd.f32 %v3863, %v3887
      %v3903 = vadd.f32 %v3864, %v3887
      %v3904 = vadd.f32 %v3865, %v3887
      %v3905 = vadd.f32 %v3866, %v3887
      %v3906 = vadd.f32 %v3867, %v3887
      %v3907 = vadd.f32 %v3868, %v3887
      %v3908 = vadd.f32 %v3869, %v3887
      %v3909 = vadd.f32 %v3870, %v3887
      %v3910 = vadd.f32 %v3871, %v3887
      %v3911 = vadd.f32 %v3872, %v3887
      %v3912 = vadd.f32 %v3873, %v3887
      %v3913 = vadd.f32 %v3874, %v3887
      %v3914 = vadd.f32 %v3875, %v3887
      %v3915 = vadd.f32 %v3876, %v3887
      %v3916 = vadd.f32 %v3877, %v3887
      %v3917 = vadd.f32 %v3878, %v3887
      %v3918 = vadd.f32 %v3879, %v3887
      %v3919 = vadd.f32 %v3880, %v3887
      %v3920 = vadd.f32 %v3881, %v3887
      %v3921 = vmax.f32 %v3889, 0.0
      %v3922 = vmax.f32 %v3890, 0.0
      %v3923 = vmax.f32 %v3891, 0.0
      %v3924 = vmax.f32 %v3892, 0.0
      %v3925 = vmax.f32 %v3893, 0.0
      %v3926 = vmax.f32 %v3894, 0.0
      %v3927 = vmax.f32 %v3895, 0.0
      %v3928 = vmax.f32 %v3896, 0.0
      %v3929 = vmax.f32 %v3897, 0.0
      %v3930 = vmax.f32 %v3898, 0.0
      %v3931 = vmax.f32 %v3899, 0.0
      %v3932 = vmax.f32 %v3900, 0.0
      %v3933 = vmax.f32 %v3901, 0.0
      %v3934 = vmax.f32 %v3902, 0.0
      %v3935 = vmax.f32 %v3903, 0.0
      %v3936 = vmax.f32 %v3904, 0.0
      %v3937 = vmax.f32 %v3905, 0.0
      %v3938 = vmax.f32 %v3906, 0.0
      %v3939 = vmax.f32 %v3907, 0.0
      %v3940 = vmax.f32 %v3908, 0.0
      %v3941 = vmax.f32 %v3909, 0.0
      %v3942 = vmax.f32 %v3910, 0.0
      %v3943 = vmax.f32 %v3911, 0.0
      %v3944 = vmax.f32 %v3912, 0.0
      %v3945 = vmax.f32 %v3913, 0.0
      %v3946 = vmax.f32 %v3914, 0.0
      %v3947 = vmax.f32 %v3915, 0.0
      %v3948 = vmax.f32 %v3916, 0.0
      %v3949 = vmax.f32 %v3917, 0.0
      %v3950 = vmax.f32 %v3918, 0.0
      %v3951 = vmax.f32 %v3919, 0.0
      %v3952 = vmax.f32 %v3920, 0.0
      %s3953 = scalar_lea.vmem [#allocation3], 32
      %3954 = vst.msk [vmem:[%s3953 + $0x8] sm:$0xff] %vm225, %v3921
      %3955 = vst.msk [vmem:[%s3953 + $0x10] sm:$0xff] %vm225, %v3922
      %3956 = vst.msk [vmem:[%s3953 + $0x28] sm:$0xff] %vm225, %v3923
      %3957 = vst.msk [vmem:[%s3953 + $0x30] sm:$0xff] %vm225, %v3924
      %3958 = vst.msk [vmem:[%s3953 + $0x48] sm:$0xff] %vm225, %v3925
      %3959 = vst.msk [vmem:[%s3953 + $0x50] sm:$0xff] %vm225, %v3926
      %3960 = vst.msk [vmem:[%s3953 + $0x68] sm:$0xff] %vm225, %v3927
      %3961 = vst.msk [vmem:[%s3953 + $0x70] sm:$0xff] %vm225, %v3928
      %3962 = vst.msk [vmem:[%s3953 + $0x88] sm:$0xff] %vm225, %v3929
      %3963 = vst.msk [vmem:[%s3953 + $0x90] sm:$0xff] %vm225, %v3930
      %3964 = vst.msk [vmem:[%s3953 + $0xa8] sm:$0xff] %vm225, %v3931
      %3965 = vst.msk [vmem:[%s3953 + $0xb0] sm:$0xff] %vm225, %v3932
      %3966 = vst.msk [vmem:[%s3953 + $0xc8] sm:$0xff] %vm225, %v3933
      %3967 = vst.msk [vmem:[%s3953 + $0xd0] sm:$0xff] %vm225, %v3934
      %3968 = vst.msk [vmem:[%s3953 + $0xe8] sm:$0xff] %vm225, %v3935
      %3969 = vst.msk [vmem:[%s3953 + $0xf0] sm:$0xff] %vm225, %v3936
      %3970 = vst.msk [vmem:[%s3953 + $0x108] sm:$0xff] %vm225, %v3937
      %3971 = vst.msk [vmem:[%s3953 + $0x110] sm:$0xff] %vm225, %v3938
      %3972 = vst.msk [vmem:[%s3953 + $0x128] sm:$0xff] %vm225, %v3939
      %3973 = vst.msk [vmem:[%s3953 + $0x130] sm:$0xff] %vm225, %v3940
      %3974 = vst.msk [vmem:[%s3953 + $0x148] sm:$0xff] %vm225, %v3941
      %3975 = vst.msk [vmem:[%s3953 + $0x150] sm:$0xff] %vm225, %v3942
      %3976 = vst.msk [vmem:[%s3953 + $0x168] sm:$0xff] %vm225, %v3943
      %3977 = vst.msk [vmem:[%s3953 + $0x170] sm:$0xff] %vm225, %v3944
      %3978 = vst.msk [vmem:[%s3953 + $0x188] sm:$0xff] %vm225, %v3945
      %3979 = vst.msk [vmem:[%s3953 + $0x190] sm:$0xff] %vm225, %v3946
      %3980 = vst.msk [vmem:[%s3953 + $0x1a8] sm:$0xff] %vm225, %v3947
      %3981 = vst.msk [vmem:[%s3953 + $0x1b0] sm:$0xff] %vm225, %v3948
      %3982 = vst.msk [vmem:[%s3953 + $0x1c8] sm:$0xff] %vm225, %v3949
      %3983 = vst.msk [vmem:[%s3953 + $0x1d0] sm:$0xff] %vm225, %v3950
      %3984 = vst.msk [vmem:[%s3953 + $0x1e8] sm:$0xff] %vm225, %v3951
      %3985 = vst.msk [vmem:[%s3953 + $0x1f0] sm:$0xff] %vm225, %v3952
      %v3986 = vld [vmem:[#allocation3 + $0x7] sm:$0xff]
      %v3987 = vld [vmem:[#allocation3 + $0xf] sm:$0xff]
      %v3988 = vld [vmem:[#allocation3 + $0x27] sm:$0xff]
      %v3989 = vld [vmem:[#allocation3 + $0x2f] sm:$0xff]
      %v3990 = vld [vmem:[#allocation3 + $0x47] sm:$0xff]
      %v3991 = vld [vmem:[#allocation3 + $0x4f] sm:$0xff]
      %v3992 = vld [vmem:[#allocation3 + $0x67] sm:$0xff]
      %v3993 = vld [vmem:[#allocation3 + $0x6f] sm:$0xff]
      %v3994 = vld [vmem:[#allocation3 + $0x87] sm:$0xff]
      %v3995 = vld [vmem:[#allocation3 + $0x8f] sm:$0xff]
      %v3996 = vld [vmem:[#allocation3 + $0xa7] sm:$0xff]
      %v3997 = vld [vmem:[#allocation3 + $0xaf] sm:$0xff]
      %v3998 = vld [vmem:[#allocation3 + $0xc7] sm:$0xff]
      %v3999 = vld [vmem:[#allocation3 + $0xcf] sm:$0xff]
      %v4000 = vld [vmem:[#allocation3 + $0xe7] sm:$0xff]
      %v4001 = vld [vmem:[#allocation3 + $0xef] sm:$0xff]
      %v4002 = vld [vmem:[#allocation3 + $0x107] sm:$0xff]
      %v4003 = vld [vmem:[#allocation3 + $0x10f] sm:$0xff]
      %v4004 = vld [vmem:[#allocation3 + $0x127] sm:$0xff]
      %v4005 = vld [vmem:[#allocation3 + $0x12f] sm:$0xff]
      %v4006 = vld [vmem:[#allocation3 + $0x147] sm:$0xff]
      %v4007 = vld [vmem:[#allocation3 + $0x14f] sm:$0xff]
      %v4008 = vld [vmem:[#allocation3 + $0x167] sm:$0xff]
      %v4009 = vld [vmem:[#allocation3 + $0x16f] sm:$0xff]
      %v4010 = vld [vmem:[#allocation3 + $0x187] sm:$0xff]
      %v4011 = vld [vmem:[#allocation3 + $0x18f] sm:$0xff]
      %v4012 = vld [vmem:[#allocation3 + $0x1a7] sm:$0xff]
      %v4013 = vld [vmem:[#allocation3 + $0x1af] sm:$0xff]
      %v4014 = vld [vmem:[#allocation3 + $0x1c7] sm:$0xff]
      %v4015 = vld [vmem:[#allocation3 + $0x1cf] sm:$0xff]
      %v4016 = vld [vmem:[#allocation3 + $0x1e7] sm:$0xff]
      %v4017 = vld [vmem:[#allocation3 + $0x1ef] sm:$0xff]
      %v4018 = vld [vmem:[%s3] sm:$0xf]
      %v4019 = vld [vmem:[#allocation3 + $0x8] sm:$0xff]
      %v4020 = vld [vmem:[#allocation3 + $0x10] sm:$0xff]
      %v4021 = vld [vmem:[#allocation3 + $0x28] sm:$0xff]
      %v4022 = vld [vmem:[#allocation3 + $0x30] sm:$0xff]
      %v4023 = vld [vmem:[#allocation3 + $0x48] sm:$0xff]
      %v4024 = vld [vmem:[#allocation3 + $0x50] sm:$0xff]
      %v4025 = vld [vmem:[#allocation3 + $0x68] sm:$0xff]
      %v4026 = vld [vmem:[#allocation3 + $0x70] sm:$0xff]
      %v4027 = vld [vmem:[#allocation3 + $0x88] sm:$0xff]
      %v4028 = vld [vmem:[#allocation3 + $0x90] sm:$0xff]
      %v4029 = vld [vmem:[#allocation3 + $0xa8] sm:$0xff]
      %v4030 = vld [vmem:[#allocation3 + $0xb0] sm:$0xff]
      %v4031 = vld [vmem:[#allocation3 + $0xc8] sm:$0xff]
      %v4032 = vld [vmem:[#allocation3 + $0xd0] sm:$0xff]
      %v4033 = vld [vmem:[#allocation3 + $0xe8] sm:$0xff]
      %v4034 = vld [vmem:[#allocation3 + $0xf0] sm:$0xff]
      %v4035 = vld [vmem:[#allocation3 + $0x108] sm:$0xff]
      %v4036 = vld [vmem:[#allocation3 + $0x110] sm:$0xff]
      %v4037 = vld [vmem:[#allocation3 + $0x128] sm:$0xff]
      %v4038 = vld [vmem:[#allocation3 + $0x130] sm:$0xff]
      %v4039 = vld [vmem:[#allocation3 + $0x148] sm:$0xff]
      %v4040 = vld [vmem:[#allocation3 + $0x150] sm:$0xff]
      %v4041 = vld [vmem:[#allocation3 + $0x168] sm:$0xff]
      %v4042 = vld [vmem:[#allocation3 + $0x170] sm:$0xff]
      %v4043 = vld [vmem:[#allocation3 + $0x188] sm:$0xff]
      %v4044 = vld [vmem:[#allocation3 + $0x190] sm:$0xff]
      %v4045 = vld [vmem:[#allocation3 + $0x1a8] sm:$0xff]
      %v4046 = vld [vmem:[#allocation3 + $0x1b0] sm:$0xff]
      %v4047 = vld [vmem:[#allocation3 + $0x1c8] sm:$0xff]
      %v4048 = vld [vmem:[#allocation3 + $0x1d0] sm:$0xff]
      %v4049 = vld [vmem:[#allocation3 + $0x1e8] sm:$0xff]
      %v4050 = vld [vmem:[#allocation3 + $0x1f0] sm:$0xff]
      %s4051 = scalar_lea.vmem %s3, 4
      %v4052 = vld [vmem:[%s4051] sm:$0xf]
      %v4054 = vsel %vm225, %v4019, 0
      %v4057 = vsel %vm225, %v4020, 0
      %v4060 = vsel %vm225, %v4021, 0
      %v4063 = vsel %vm225, %v4022, 0
      %v4066 = vsel %vm225, %v4023, 0
      %v4069 = vsel %vm225, %v4024, 0
      %v4072 = vsel %vm225, %v4025, 0
      %v4075 = vsel %vm225, %v4026, 0
      %v4078 = vsel %vm225, %v4027, 0
      %v4081 = vsel %vm225, %v4028, 0
      %v4084 = vsel %vm225, %v4029, 0
      %v4087 = vsel %vm225, %v4030, 0
      %v4090 = vsel %vm225, %v4031, 0
      %v4093 = vsel %vm225, %v4032, 0
      %v4096 = vsel %vm225, %v4033, 0
      %v4099 = vsel %vm225, %v4034, 0
      %v4102 = vsel %vm225, %v4035, 0
      %v4105 = vsel %vm225, %v4036, 0
      %v4108 = vsel %vm225, %v4037, 0
      %v4111 = vsel %vm225, %v4038, 0
      %v4114 = vsel %vm225, %v4039, 0
      %v4117 = vsel %vm225, %v4040, 0
      %v4120 = vsel %vm225, %v4041, 0
      %v4123 = vsel %vm225, %v4042, 0
      %v4126 = vsel %vm225, %v4043, 0
      %v4129 = vsel %vm225, %v4044, 0
      %v4132 = vsel %vm225, %v4045, 0
      %v4135 = vsel %vm225, %v4046, 0
      %v4138 = vsel %vm225, %v4047, 0
      %v4141 = vsel %vm225, %v4048, 0
      %v4144 = vsel %vm225, %v4049, 0
      %v4147 = vsel %vm225, %v4050, 0
      %v4150 = vsel %vm598, %v4052, 0
      %4152 = vmatprep.subr.mxu0 0.0
      %4153 = vmatpush1.msra.mxu0 %v4150
      %4154 = vmatprep.subr.mxu0 0.0
      %4155 = vmatpush1.msra.mxu0 0.0
      %4156 = vmatprep.subr.mxu0 0.0
      %4157 = vmatpush1.msra.mxu0 0.0
      %4158 = vmatprep.subr.mxu0 0.0
      %4159 = vmatpush1.msra.mxu0 0.0
      %4160 = vmatprep.subr.mxu0 0.0
      %4161 = vmatpush1.msra.mxu0 0.0
      %4162 = vmatprep.subr.mxu0 0.0
      %4163 = vmatpush1.msra.mxu0 0.0
      %4164 = vmatprep.subr.mxu0 0.0
      %4165 = vmatpush1.msra.mxu0 0.0
      %4166 = vmatprep.subr.mxu0 0.0
      %4167 = vmatpush1.msra.mxu0 0.0
      %4168 = vmatprep.subr.mxu0 0.0
      %4169 = vmatpush1.msra.mxu0 0.0
      %4170 = vmatprep.subr.mxu0 0.0
      %4171 = vmatpush1.msra.mxu0 0.0
      %4172 = vmatprep.subr.mxu0 0.0
      %4173 = vmatpush1.msra.mxu0 0.0
      %4174 = vmatprep.subr.mxu0 0.0
      %4175 = vmatpush1.msra.mxu0 0.0
      %4176 = vmatprep.subr.mxu0 0.0
      %4177 = vmatpush1.msra.mxu0 0.0
      %4178 = vmatprep.subr.mxu0 0.0
      %4179 = vmatpush1.msra.mxu0 0.0
      %4180 = vmatprep.subr.mxu0 0.0
      %4181 = vmatpush1.msra.mxu0 0.0
      %4182 = vmatprep.subr.mxu0 0.0
      %4183 = vmatpush1.msra.mxu0 0.0
      %4184 = vmatprep.subr.mxu0 0.0
      %4185 = vmatpush1.msra.mxu0 0.0
      %4186 = vmatprep.subr.mxu0 0.0
      %4187 = vmatpush1.msra.mxu0 0.0
      %4188 = vmatprep.subr.mxu0 0.0
      %4189 = vmatpush1.msra.mxu0 0.0
      %4190 = vmatprep.subr.mxu0 0.0
      %4191 = vmatpush1.msra.mxu0 0.0
      %4192 = vmatprep.subr.mxu0 0.0
      %4193 = vmatpush1.msra.mxu0 0.0
      %4194 = vmatprep.subr.mxu0 0.0
      %4195 = vmatpush1.msra.mxu0 0.0
      %4196 = vmatprep.subr.mxu0 0.0
      %4197 = vmatpush1.msra.mxu0 0.0
      %4198 = vmatprep.subr.mxu0 0.0
      %4199 = vmatpush1.msra.mxu0 0.0
      %4200 = vmatprep.subr.mxu0 0.0
      %4201 = vmatpush1.msra.mxu0 0.0
      %4202 = vmatprep.subr.mxu0 0.0
      %4203 = vmatpush1.msra.mxu0 0.0
      %4204 = vmatprep.subr.mxu0 0.0
      %4205 = vmatpush1.msra.mxu0 0.0
      %4206 = vmatprep.subr.mxu0 0.0
      %4207 = vmatpush1.msra.mxu0 0.0
      %4208 = vmatprep.subr.mxu0 0.0
      %4209 = vmatpush1.msra.mxu0 0.0
      %4210 = vmatprep.subr.mxu0 0.0
      %4211 = vmatpush1.msra.mxu0 0.0
      %4212 = vmatprep.subr.mxu0 0.0
      %4213 = vmatpush1.msra.mxu0 0.0
      %4214 = vmatprep.subr.mxu0 0.0
      %4215 = vmatpush1.msra.mxu0 0.0
      %4216 = vmatprep.mubr.f32.mxu0 0.0
      %4217 = vmatmul.mubr.f32.gmra.mrb[0].mxu0 %v4054
      %v4218 = vpop.f32.mrb[0].mxu0
      %v4219 = vadd.f32 0.0, %v4218
      %v4220 = vpop.f32.mrb[0].mxu0
      %4221 = vmatprep.mubr.f32.mxu0 0.0
      %4222 = vmatmul.mubr.f32.gmra.mrb[0].mxu0 %v4057
      %v4223 = vpop.f32.mrb[0].mxu0
      %v4224 = vadd.f32 0.0, %v4223
      %v4225 = vpop.f32.mrb[0].mxu0
      %4226 = vmatprep.mubr.f32.mxu0 0.0
      %4227 = vmatmul.mubr.f32.gmra.mrb[0].mxu0 %v4060
      %v4228 = vpop.f32.mrb[0].mxu0
      %v4229 = vadd.f32 0.0, %v4228
      %v4230 = vpop.f32.mrb[0].mxu0
      %4231 = vmatprep.mubr.f32.mxu0 0.0
      %4232 = vmatmul.mubr.f32.gmra.mrb[0].mxu0 %v4063
      %v4233 = vpop.f32.mrb[0].mxu0
      %v4234 = vadd.f32 0.0, %v4233
      %v4235 = vpop.f32.mrb[0].mxu0
      %4236 = vmatprep.mubr.f32.mxu0 0.0
      %4237 = vmatmul.mubr.f32.gmra.mrb[0].mxu0 %v4066
      %v4238 = vpop.f32.mrb[0].mxu0
      %v4239 = vadd.f32 0.0, %v4238
      %v4240 = vpop.f32.mrb[0].mxu0
      %4241 = vmatprep.mubr.f32.mxu0 0.0
      %4242 = vmatmul.mubr.f32.gmra.mrb[0].mxu0 %v4069
      %v4243 = vpop.f32.mrb[0].mxu0
      %v4244 = vadd.f32 0.0, %v4243
      %v4245 = vpop.f32.mrb[0].mxu0
      %4246 = vmatprep.mubr.f32.mxu0 0.0
      %4247 = vmatmul.mubr.f32.gmra.mrb[0].mxu0 %v4072
      %v4248 = vpop.f32.mrb[0].mxu0
      %v4249 = vadd.f32 0.0, %v4248
      %v4250 = vpop.f32.mrb[0].mxu0
      %4251 = vmatprep.mubr.f32.mxu0 0.0
      %4252 = vmatmul.mubr.f32.gmra.mrb[0].mxu0 %v4075
      %v4253 = vpop.f32.mrb[0].mxu0
      %v4254 = vadd.f32 0.0, %v4253
      %v4255 = vpop.f32.mrb[0].mxu0
      %4256 = vmatprep.mubr.f32.mxu0 0.0
      %4257 = vmatmul.mubr.f32.gmra.mrb[0].mxu0 %v4078
      %v4258 = vpop.f32.mrb[0].mxu0
      %v4259 = vadd.f32 0.0, %v4258
      %v4260 = vpop.f32.mrb[0].mxu0
      %4261 = vmatprep.mubr.f32.mxu0 0.0
      %4262 = vmatmul.mubr.f32.gmra.mrb[0].mxu0 %v4081
      %v4263 = vpop.f32.mrb[0].mxu0
      %v4264 = vadd.f32 0.0, %v4263
      %v4265 = vpop.f32.mrb[0].mxu0
      %4266 = vmatprep.mubr.f32.mxu0 0.0
      %4267 = vmatmul.mubr.f32.gmra.mrb[0].mxu0 %v4084
      %v4268 = vpop.f32.mrb[0].mxu0
      %v4269 = vadd.f32 0.0, %v4268
      %v4270 = vpop.f32.mrb[0].mxu0
      %4271 = vmatprep.mubr.f32.mxu0 0.0
      %4272 = vmatmul.mubr.f32.gmra.mrb[0].mxu0 %v4087
      %v4273 = vpop.f32.mrb[0].mxu0
      %v4274 = vadd.f32 0.0, %v4273
      %v4275 = vpop.f32.mrb[0].mxu0
      %4276 = vmatprep.mubr.f32.mxu0 0.0
      %4277 = vmatmul.mubr.f32.gmra.mrb[0].mxu0 %v4090
      %v4278 = vpop.f32.mrb[0].mxu0
      %v4279 = vadd.f32 0.0, %v4278
      %v4280 = vpop.f32.mrb[0].mxu0
      %4281 = vmatprep.mubr.f32.mxu0 0.0
      %4282 = vmatmul.mubr.f32.gmra.mrb[0].mxu0 %v4093
      %v4283 = vpop.f32.mrb[0].mxu0
      %v4284 = vadd.f32 0.0, %v4283
      %v4285 = vpop.f32.mrb[0].mxu0
      %4286 = vmatprep.mubr.f32.mxu0 0.0
      %4287 = vmatmul.mubr.f32.gmra.mrb[0].mxu0 %v4096
      %v4288 = vpop.f32.mrb[0].mxu0
      %v4289 = vadd.f32 0.0, %v4288
      %v4290 = vpop.f32.mrb[0].mxu0
      %4291 = vmatprep.mubr.f32.mxu0 0.0
      %4292 = vmatmul.mubr.f32.gmra.mrb[0].mxu0 %v4099
      %v4293 = vpop.f32.mrb[0].mxu0
      %v4294 = vadd.f32 0.0, %v4293
      %v4295 = vpop.f32.mrb[0].mxu0
      %4296 = vmatprep.mubr.f32.mxu0 0.0
      %4297 = vmatmul.mubr.f32.gmra.mrb[0].mxu0 %v4102
      %v4298 = vpop.f32.mrb[0].mxu0
      %v4299 = vadd.f32 0.0, %v4298
      %v4300 = vpop.f32.mrb[0].mxu0
      %4301 = vmatprep.mubr.f32.mxu0 0.0
      %4302 = vmatmul.mubr.f32.gmra.mrb[0].mxu0 %v4105
      %v4303 = vpop.f32.mrb[0].mxu0
      %v4304 = vadd.f32 0.0, %v4303
      %v4305 = vpop.f32.mrb[0].mxu0
      %4306 = vmatprep.mubr.f32.mxu0 0.0
      %4307 = vmatmul.mubr.f32.gmra.mrb[0].mxu0 %v4108
      %v4308 = vpop.f32.mrb[0].mxu0
      %v4309 = vadd.f32 0.0, %v4308
      %v4310 = vpop.f32.mrb[0].mxu0
      %4311 = vmatprep.mubr.f32.mxu0 0.0
      %4312 = vmatmul.mubr.f32.gmra.mrb[0].mxu0 %v4111
      %v4313 = vpop.f32.mrb[0].mxu0
      %v4314 = vadd.f32 0.0, %v4313
      %v4315 = vpop.f32.mrb[0].mxu0
      %4316 = vmatprep.mubr.f32.mxu0 0.0
      %4317 = vmatmul.mubr.f32.gmra.mrb[0].mxu0 %v4114
      %v4318 = vpop.f32.mrb[0].mxu0
      %v4319 = vadd.f32 0.0, %v4318
      %v4320 = vpop.f32.mrb[0].mxu0
      %4321 = vmatprep.mubr.f32.mxu0 0.0
      %4322 = vmatmul.mubr.f32.gmra.mrb[0].mxu0 %v4117
      %v4323 = vpop.f32.mrb[0].mxu0
      %v4324 = vadd.f32 0.0, %v4323
      %v4325 = vpop.f32.mrb[0].mxu0
      %4326 = vmatprep.mubr.f32.mxu0 0.0
      %4327 = vmatmul.mubr.f32.gmra.mrb[0].mxu0 %v4120
      %v4328 = vpop.f32.mrb[0].mxu0
      %v4329 = vadd.f32 0.0, %v4328
      %v4330 = vpop.f32.mrb[0].mxu0
      %4331 = vmatprep.mubr.f32.mxu0 0.0
      %4332 = vmatmul.mubr.f32.gmra.mrb[0].mxu0 %v4123
      %v4333 = vpop.f32.mrb[0].mxu0
      %v4334 = vadd.f32 0.0, %v4333
      %v4335 = vpop.f32.mrb[0].mxu0
      %4336 = vmatprep.mubr.f32.mxu0 0.0
      %4337 = vmatmul.mubr.f32.gmra.mrb[0].mxu0 %v4126
      %v4338 = vpop.f32.mrb[0].mxu0
      %v4339 = vadd.f32 0.0, %v4338
      %v4340 = vpop.f32.mrb[0].mxu0
      %4341 = vmatprep.mubr.f32.mxu0 0.0
      %4342 = vmatmul.mubr.f32.gmra.mrb[0].mxu0 %v4129
      %v4343 = vpop.f32.mrb[0].mxu0
      %v4344 = vadd.f32 0.0, %v4343
      %v4345 = vpop.f32.mrb[0].mxu0
      %4346 = vmatprep.mubr.f32.mxu0 0.0
      %4347 = vmatmul.mubr.f32.gmra.mrb[0].mxu0 %v4132
      %v4348 = vpop.f32.mrb[0].mxu0
      %v4349 = vadd.f32 0.0, %v4348
      %v4350 = vpop.f32.mrb[0].mxu0
      %4351 = vmatprep.mubr.f32.mxu0 0.0
      %4352 = vmatmul.mubr.f32.gmra.mrb[0].mxu0 %v4135
      %v4353 = vpop.f32.mrb[0].mxu0
      %v4354 = vadd.f32 0.0, %v4353
      %v4355 = vpop.f32.mrb[0].mxu0
      %4356 = vmatprep.mubr.f32.mxu0 0.0
      %4357 = vmatmul.mubr.f32.gmra.mrb[0].mxu0 %v4138
      %v4358 = vpop.f32.mrb[0].mxu0
      %v4359 = vadd.f32 0.0, %v4358
      %v4360 = vpop.f32.mrb[0].mxu0
      %4361 = vmatprep.mubr.f32.mxu0 0.0
      %4362 = vmatmul.mubr.f32.gmra.mrb[0].mxu0 %v4141
      %v4363 = vpop.f32.mrb[0].mxu0
      %v4364 = vadd.f32 0.0, %v4363
      %v4365 = vpop.f32.mrb[0].mxu0
      %4366 = vmatprep.mubr.f32.mxu0 0.0
      %4367 = vmatmul.mubr.f32.gmra.mrb[0].mxu0 %v4144
      %v4368 = vpop.f32.mrb[0].mxu0
      %v4369 = vadd.f32 0.0, %v4368
      %v4370 = vpop.f32.mrb[0].mxu0
      %4371 = vmatprep.mubr.f32.mxu0 0.0
      %4372 = vmatmul.mubr.f32.gmra.mrb[0].mxu0 %v4147
      %v4373 = vpop.f32.mrb[0].mxu0
      %v4374 = vadd.f32 0.0, %v4373
      %v4375 = vpop.f32.mrb[0].mxu0
      %4376 = vdwg.mxu0
      %v4378 = vsel %vm225, %v3986, 0
      %v4381 = vsel %vm225, %v3987, 0
      %v4384 = vsel %vm225, %v3988, 0
      %v4387 = vsel %vm225, %v3989, 0
      %v4390 = vsel %vm225, %v3990, 0
      %v4393 = vsel %vm225, %v3991, 0
      %v4396 = vsel %vm225, %v3992, 0
      %v4399 = vsel %vm225, %v3993, 0
      %v4402 = vsel %vm225, %v3994, 0
      %v4405 = vsel %vm225, %v3995, 0
      %v4408 = vsel %vm225, %v3996, 0
      %v4411 = vsel %vm225, %v3997, 0
      %v4414 = vsel %vm225, %v3998, 0
      %v4417 = vsel %vm225, %v3999, 0
      %v4420 = vsel %vm225, %v4000, 0
      %v4423 = vsel %vm225, %v4001, 0
      %v4426 = vsel %vm225, %v4002, 0
      %v4429 = vsel %vm225, %v4003, 0
      %v4432 = vsel %vm225, %v4004, 0
      %v4435 = vsel %vm225, %v4005, 0
      %v4438 = vsel %vm225, %v4006, 0
      %v4441 = vsel %vm225, %v4007, 0
      %v4444 = vsel %vm225, %v4008, 0
      %v4447 = vsel %vm225, %v4009, 0
      %v4450 = vsel %vm225, %v4010, 0
      %v4453 = vsel %vm225, %v4011, 0
      %v4456 = vsel %vm225, %v4012, 0
      %v4459 = vsel %vm225, %v4013, 0
      %v4462 = vsel %vm225, %v4014, 0
      %v4465 = vsel %vm225, %v4015, 0
      %v4468 = vsel %vm225, %v4016, 0
      %v4471 = vsel %vm225, %v4017, 0
      %v4474 = vsel %vm598, %v4018, 0
      %4476 = vmatprep.subr.mxu0 0.0
      %4477 = vmatpush1.msra.mxu0 %v4474
      %4478 = vmatprep.subr.mxu0 0.0
      %4479 = vmatpush1.msra.mxu0 0.0
      %4480 = vmatprep.subr.mxu0 0.0
      %4481 = vmatpush1.msra.mxu0 0.0
      %4482 = vmatprep.subr.mxu0 0.0
      %4483 = vmatpush1.msra.mxu0 0.0
      %4484 = vmatprep.subr.mxu0 0.0
      %4485 = vmatpush1.msra.mxu0 0.0
      %4486 = vmatprep.subr.mxu0 0.0
      %4487 = vmatpush1.msra.mxu0 0.0
      %4488 = vmatprep.subr.mxu0 0.0
      %4489 = vmatpush1.msra.mxu0 0.0
      %4490 = vmatprep.subr.mxu0 0.0
      %4491 = vmatpush1.msra.mxu0 0.0
      %4492 = vmatprep.subr.mxu0 0.0
      %4493 = vmatpush1.msra.mxu0 0.0
      %4494 = vmatprep.subr.mxu0 0.0
      %4495 = vmatpush1.msra.mxu0 0.0
      %4496 = vmatprep.subr.mxu0 0.0
      %4497 = vmatpush1.msra.mxu0 0.0
      %4498 = vmatprep.subr.mxu0 0.0
      %4499 = vmatpush1.msra.mxu0 0.0
      %4500 = vmatprep.subr.mxu0 0.0
      %4501 = vmatpush1.msra.mxu0 0.0
      %4502 = vmatprep.subr.mxu0 0.0
      %4503 = vmatpush1.msra.mxu0 0.0
      %4504 = vmatprep.subr.mxu0 0.0
      %4505 = vmatpush1.msra.mxu0 0.0
      %4506 = vmatprep.subr.mxu0 0.0
      %4507 = vmatpush1.msra.mxu0 0.0
      %4508 = vmatprep.subr.mxu0 0.0
      %4509 = vmatpush1.msra.mxu0 0.0
      %4510 = vmatprep.subr.mxu0 0.0
      %4511 = vmatpush1.msra.mxu0 0.0
      %4512 = vmatprep.subr.mxu0 0.0
      %4513 = vmatpush1.msra.mxu0 0.0
      %4514 = vmatprep.subr.mxu0 0.0
      %4515 = vmatpush1.msra.mxu0 0.0
      %4516 = vmatprep.subr.mxu0 0.0
      %4517 = vmatpush1.msra.mxu0 0.0
      %4518 = vmatprep.subr.mxu0 0.0
      %4519 = vmatpush1.msra.mxu0 0.0
      %4520 = vmatprep.subr.mxu0 0.0
      %4521 = vmatpush1.msra.mxu0 0.0
      %4522 = vmatprep.subr.mxu0 0.0
      %4523 = vmatpush1.msra.mxu0 0.0
      %4524 = vmatprep.subr.mxu0 0.0
      %4525 = vmatpush1.msra.mxu0 0.0
      %4526 = vmatprep.subr.mxu0 0.0
      %4527 = vmatpush1.msra.mxu0 0.0
      %4528 = vmatprep.subr.mxu0 0.0
      %4529 = vmatpush1.msra.mxu0 0.0
      %4530 = vmatprep.subr.mxu0 0.0
      %4531 = vmatpush1.msra.mxu0 0.0
      %4532 = vmatprep.subr.mxu0 0.0
      %4533 = vmatpush1.msra.mxu0 0.0
      %4534 = vmatprep.subr.mxu0 0.0
      %4535 = vmatpush1.msra.mxu0 0.0
      %4536 = vmatprep.subr.mxu0 0.0
      %4537 = vmatpush1.msra.mxu0 0.0
      %4538 = vmatprep.subr.mxu0 0.0
      %4539 = vmatpush1.msra.mxu0 0.0
      %4540 = vmatprep.mubr.f32.mxu0 0.0
      %4541 = vmatmul.mubr.f32.gmra.mrb[0].mxu0 %v4378
      %v4542 = vpop.f32.mrb[0].mxu0
      %v4543 = vadd.f32 %v4219, %v4542
      %v4544 = vpop.f32.mrb[0].mxu0
      %4545 = vmatprep.mubr.f32.mxu0 0.0
      %4546 = vmatmul.mubr.f32.gmra.mrb[0].mxu0 %v4381
      %v4547 = vpop.f32.mrb[0].mxu0
      %v4548 = vadd.f32 %v4224, %v4547
      %v4549 = vpop.f32.mrb[0].mxu0
      %4550 = vmatprep.mubr.f32.mxu0 0.0
      %4551 = vmatmul.mubr.f32.gmra.mrb[0].mxu0 %v4384
      %v4552 = vpop.f32.mrb[0].mxu0
      %v4553 = vadd.f32 %v4229, %v4552
      %v4554 = vpop.f32.mrb[0].mxu0
      %4555 = vmatprep.mubr.f32.mxu0 0.0
      %4556 = vmatmul.mubr.f32.gmra.mrb[0].mxu0 %v4387
      %v4557 = vpop.f32.mrb[0].mxu0
      %v4558 = vadd.f32 %v4234, %v4557
      %v4559 = vpop.f32.mrb[0].mxu0
      %4560 = vmatprep.mubr.f32.mxu0 0.0
      %4561 = vmatmul.mubr.f32.gmra.mrb[0].mxu0 %v4390
      %v4562 = vpop.f32.mrb[0].mxu0
      %v4563 = vadd.f32 %v4239, %v4562
      %v4564 = vpop.f32.mrb[0].mxu0
      %4565 = vmatprep.mubr.f32.mxu0 0.0
      %4566 = vmatmul.mubr.f32.gmra.mrb[0].mxu0 %v4393
      %v4567 = vpop.f32.mrb[0].mxu0
      %v4568 = vadd.f32 %v4244, %v4567
      %v4569 = vpop.f32.mrb[0].mxu0
      %4570 = vmatprep.mubr.f32.mxu0 0.0
      %4571 = vmatmul.mubr.f32.gmra.mrb[0].mxu0 %v4396
      %v4572 = vpop.f32.mrb[0].mxu0
      %v4573 = vadd.f32 %v4249, %v4572
      %v4574 = vpop.f32.mrb[0].mxu0
      %4575 = vmatprep.mubr.f32.mxu0 0.0
      %4576 = vmatmul.mubr.f32.gmra.mrb[0].mxu0 %v4399
      %v4577 = vpop.f32.mrb[0].mxu0
      %v4578 = vadd.f32 %v4254, %v4577
      %v4579 = vpop.f32.mrb[0].mxu0
      %4580 = vmatprep.mubr.f32.mxu0 0.0
      %4581 = vmatmul.mubr.f32.gmra.mrb[0].mxu0 %v4402
      %v4582 = vpop.f32.mrb[0].mxu0
      %v4583 = vadd.f32 %v4259, %v4582
      %v4584 = vpop.f32.mrb[0].mxu0
      %4585 = vmatprep.mubr.f32.mxu0 0.0
      %4586 = vmatmul.mubr.f32.gmra.mrb[0].mxu0 %v4405
      %v4587 = vpop.f32.mrb[0].mxu0
      %v4588 = vadd.f32 %v4264, %v4587
      %v4589 = vpop.f32.mrb[0].mxu0
      %4590 = vmatprep.mubr.f32.mxu0 0.0
      %4591 = vmatmul.mubr.f32.gmra.mrb[0].mxu0 %v4408
      %v4592 = vpop.f32.mrb[0].mxu0
      %v4593 = vadd.f32 %v4269, %v4592
      %v4594 = vpop.f32.mrb[0].mxu0
      %4595 = vmatprep.mubr.f32.mxu0 0.0
      %4596 = vmatmul.mubr.f32.gmra.mrb[0].mxu0 %v4411
      %v4597 = vpop.f32.mrb[0].mxu0
      %v4598 = vadd.f32 %v4274, %v4597
      %v4599 = vpop.f32.mrb[0].mxu0
      %4600 = vmatprep.mubr.f32.mxu0 0.0
      %4601 = vmatmul.mubr.f32.gmra.mrb[0].mxu0 %v4414
      %v4602 = vpop.f32.mrb[0].mxu0
      %v4603 = vadd.f32 %v4279, %v4602
      %v4604 = vpop.f32.mrb[0].mxu0
      %4605 = vmatprep.mubr.f32.mxu0 0.0
      %4606 = vmatmul.mubr.f32.gmra.mrb[0].mxu0 %v4417
      %v4607 = vpop.f32.mrb[0].mxu0
      %v4608 = vadd.f32 %v4284, %v4607
      %v4609 = vpop.f32.mrb[0].mxu0
      %4610 = vmatprep.mubr.f32.mxu0 0.0
      %4611 = vmatmul.mubr.f32.gmra.mrb[0].mxu0 %v4420
      %v4612 = vpop.f32.mrb[0].mxu0
      %v4613 = vadd.f32 %v4289, %v4612
      %v4614 = vpop.f32.mrb[0].mxu0
      %4615 = vmatprep.mubr.f32.mxu0 0.0
      %4616 = vmatmul.mubr.f32.gmra.mrb[0].mxu0 %v4423
      %v4617 = vpop.f32.mrb[0].mxu0
      %v4618 = vadd.f32 %v4294, %v4617
      %v4619 = vpop.f32.mrb[0].mxu0
      %4620 = vmatprep.mubr.f32.mxu0 0.0
      %4621 = vmatmul.mubr.f32.gmra.mrb[0].mxu0 %v4426
      %v4622 = vpop.f32.mrb[0].mxu0
      %v4623 = vadd.f32 %v4299, %v4622
      %v4624 = vpop.f32.mrb[0].mxu0
      %4625 = vmatprep.mubr.f32.mxu0 0.0
      %4626 = vmatmul.mubr.f32.gmra.mrb[0].mxu0 %v4429
      %v4627 = vpop.f32.mrb[0].mxu0
      %v4628 = vadd.f32 %v4304, %v4627
      %v4629 = vpop.f32.mrb[0].mxu0
      %4630 = vmatprep.mubr.f32.mxu0 0.0
      %4631 = vmatmul.mubr.f32.gmra.mrb[0].mxu0 %v4432
      %v4632 = vpop.f32.mrb[0].mxu0
      %v4633 = vadd.f32 %v4309, %v4632
      %v4634 = vpop.f32.mrb[0].mxu0
      %4635 = vmatprep.mubr.f32.mxu0 0.0
      %4636 = vmatmul.mubr.f32.gmra.mrb[0].mxu0 %v4435
      %v4637 = vpop.f32.mrb[0].mxu0
      %v4638 = vadd.f32 %v4314, %v4637
      %v4639 = vpop.f32.mrb[0].mxu0
      %4640 = vmatprep.mubr.f32.mxu0 0.0
      %4641 = vmatmul.mubr.f32.gmra.mrb[0].mxu0 %v4438
      %v4642 = vpop.f32.mrb[0].mxu0
      %v4643 = vadd.f32 %v4319, %v4642
      %v4644 = vpop.f32.mrb[0].mxu0
      %4645 = vmatprep.mubr.f32.mxu0 0.0
      %4646 = vmatmul.mubr.f32.gmra.mrb[0].mxu0 %v4441
      %v4647 = vpop.f32.mrb[0].mxu0
      %v4648 = vadd.f32 %v4324, %v4647
      %v4649 = vpop.f32.mrb[0].mxu0
      %4650 = vmatprep.mubr.f32.mxu0 0.0
      %4651 = vmatmul.mubr.f32.gmra.mrb[0].mxu0 %v4444
      %v4652 = vpop.f32.mrb[0].mxu0
      %v4653 = vadd.f32 %v4329, %v4652
      %v4654 = vpop.f32.mrb[0].mxu0
      %4655 = vmatprep.mubr.f32.mxu0 0.0
      %4656 = vmatmul.mubr.f32.gmra.mrb[0].mxu0 %v4447
      %v4657 = vpop.f32.mrb[0].mxu0
      %v4658 = vadd.f32 %v4334, %v4657
      %v4659 = vpop.f32.mrb[0].mxu0
      %4660 = vmatprep.mubr.f32.mxu0 0.0
      %4661 = vmatmul.mubr.f32.gmra.mrb[0].mxu0 %v4450
      %v4662 = vpop.f32.mrb[0].mxu0
      %v4663 = vadd.f32 %v4339, %v4662
      %v4664 = vpop.f32.mrb[0].mxu0
      %4665 = vmatprep.mubr.f32.mxu0 0.0
      %4666 = vmatmul.mubr.f32.gmra.mrb[0].mxu0 %v4453
      %v4667 = vpop.f32.mrb[0].mxu0
      %v4668 = vadd.f32 %v4344, %v4667
      %v4669 = vpop.f32.mrb[0].mxu0
      %4670 = vmatprep.mubr.f32.mxu0 0.0
      %4671 = vmatmul.mubr.f32.gmra.mrb[0].mxu0 %v4456
      %v4672 = vpop.f32.mrb[0].mxu0
      %v4673 = vadd.f32 %v4349, %v4672
      %v4674 = vpop.f32.mrb[0].mxu0
      %4675 = vmatprep.mubr.f32.mxu0 0.0
      %4676 = vmatmul.mubr.f32.gmra.mrb[0].mxu0 %v4459
      %v4677 = vpop.f32.mrb[0].mxu0
      %v4678 = vadd.f32 %v4354, %v4677
      %v4679 = vpop.f32.mrb[0].mxu0
      %4680 = vmatprep.mubr.f32.mxu0 0.0
      %4681 = vmatmul.mubr.f32.gmra.mrb[0].mxu0 %v4462
      %v4682 = vpop.f32.mrb[0].mxu0
      %v4683 = vadd.f32 %v4359, %v4682
      %v4684 = vpop.f32.mrb[0].mxu0
      %4685 = vmatprep.mubr.f32.mxu0 0.0
      %4686 = vmatmul.mubr.f32.gmra.mrb[0].mxu0 %v4465
      %v4687 = vpop.f32.mrb[0].mxu0
      %v4688 = vadd.f32 %v4364, %v4687
      %v4689 = vpop.f32.mrb[0].mxu0
      %4690 = vmatprep.mubr.f32.mxu0 0.0
      %4691 = vmatmul.mubr.f32.gmra.mrb[0].mxu0 %v4468
      %v4692 = vpop.f32.mrb[0].mxu0
      %v4693 = vadd.f32 %v4369, %v4692
      %v4694 = vpop.f32.mrb[0].mxu0
      %4695 = vmatprep.mubr.f32.mxu0 0.0
      %4696 = vmatmul.mubr.f32.gmra.mrb[0].mxu0 %v4471
      %v4697 = vpop.f32.mrb[0].mxu0
      %v4698 = vadd.f32 %v4374, %v4697
      %v4699 = vpop.f32.mrb[0].mxu0
      %4700 = vdwg.mxu0
      %v4701 = vld [vmem:[#allocation3 + $0x9] sm:$0xff]
      %v4702 = vld [vmem:[#allocation3 + $0x11] sm:$0xff]
      %v4703 = vld [vmem:[#allocation3 + $0x29] sm:$0xff]
      %v4704 = vld [vmem:[#allocation3 + $0x31] sm:$0xff]
      %v4705 = vld [vmem:[#allocation3 + $0x49] sm:$0xff]
      %v4706 = vld [vmem:[#allocation3 + $0x51] sm:$0xff]
      %v4707 = vld [vmem:[#allocation3 + $0x69] sm:$0xff]
      %v4708 = vld [vmem:[#allocation3 + $0x71] sm:$0xff]
      %v4709 = vld [vmem:[#allocation3 + $0x89] sm:$0xff]
      %v4710 = vld [vmem:[#allocation3 + $0x91] sm:$0xff]
      %v4711 = vld [vmem:[#allocation3 + $0xa9] sm:$0xff]
      %v4712 = vld [vmem:[#allocation3 + $0xb1] sm:$0xff]
      %v4713 = vld [vmem:[#allocation3 + $0xc9] sm:$0xff]
      %v4714 = vld [vmem:[#allocation3 + $0xd1] sm:$0xff]
      %v4715 = vld [vmem:[#allocation3 + $0xe9] sm:$0xff]
      %v4716 = vld [vmem:[#allocation3 + $0xf1] sm:$0xff]
      %v4717 = vld [vmem:[#allocation3 + $0x109] sm:$0xff]
      %v4718 = vld [vmem:[#allocation3 + $0x111] sm:$0xff]
      %v4719 = vld [vmem:[#allocation3 + $0x129] sm:$0xff]
      %v4720 = vld [vmem:[#allocation3 + $0x131] sm:$0xff]
      %v4721 = vld [vmem:[#allocation3 + $0x149] sm:$0xff]
      %v4722 = vld [vmem:[#allocation3 + $0x151] sm:$0xff]
      %v4723 = vld [vmem:[#allocation3 + $0x169] sm:$0xff]
      %v4724 = vld [vmem:[#allocation3 + $0x171] sm:$0xff]
      %v4725 = vld [vmem:[#allocation3 + $0x189] sm:$0xff]
      %v4726 = vld [vmem:[#allocation3 + $0x191] sm:$0xff]
      %v4727 = vld [vmem:[#allocation3 + $0x1a9] sm:$0xff]
      %v4728 = vld [vmem:[#allocation3 + $0x1b1] sm:$0xff]
      %v4729 = vld [vmem:[#allocation3 + $0x1c9] sm:$0xff]
      %v4730 = vld [vmem:[#allocation3 + $0x1d1] sm:$0xff]
      %v4731 = vld [vmem:[#allocation3 + $0x1e9] sm:$0xff]
      %v4732 = vld [vmem:[#allocation3 + $0x1f1] sm:$0xff]
      %s4733 = scalar_lea.vmem %s3, 8
      %v4734 = vld [vmem:[%s4733] sm:$0xf]
      %v4736 = vsel %vm225, %v4701, 0
      %v4739 = vsel %vm225, %v4702, 0
      %v4742 = vsel %vm225, %v4703, 0
      %v4745 = vsel %vm225, %v4704, 0
      %v4748 = vsel %vm225, %v4705, 0
      %v4751 = vsel %vm225, %v4706, 0
      %v4754 = vsel %vm225, %v4707, 0
      %v4757 = vsel %vm225, %v4708, 0
      %v4760 = vsel %vm225, %v4709, 0
      %v4763 = vsel %vm225, %v4710, 0
      %v4766 = vsel %vm225, %v4711, 0
      %v4769 = vsel %vm225, %v4712, 0
      %v4772 = vsel %vm225, %v4713, 0
      %v4775 = vsel %vm225, %v4714, 0
      %v4778 = vsel %vm225, %v4715, 0
      %v4781 = vsel %vm225, %v4716, 0
      %v4784 = vsel %vm225, %v4717, 0
      %v4787 = vsel %vm225, %v4718, 0
      %v4790 = vsel %vm225, %v4719, 0
      %v4793 = vsel %vm225, %v4720, 0
      %v4796 = vsel %vm225, %v4721, 0
      %v4799 = vsel %vm225, %v4722, 0
      %v4802 = vsel %vm225, %v4723, 0
      %v4805 = vsel %vm225, %v4724, 0
      %v4808 = vsel %vm225, %v4725, 0
      %v4811 = vsel %vm225, %v4726, 0
      %v4814 = vsel %vm225, %v4727, 0
      %v4817 = vsel %vm225, %v4728, 0
      %v4820 = vsel %vm225, %v4729, 0
      %v4823 = vsel %vm225, %v4730, 0
      %v4826 = vsel %vm225, %v4731, 0
      %v4829 = vsel %vm225, %v4732, 0
      %v4832 = vsel %vm598, %v4734, 0
      %4834 = vmatprep.subr.mxu0 0.0
      %4835 = vmatpush1.msra.mxu0 %v4832
      %4836 = vmatprep.subr.mxu0 0.0
      %4837 = vmatpush1.msra.mxu0 0.0
      %4838 = vmatprep.subr.mxu0 0.0
      %4839 = vmatpush1.msra.mxu0 0.0
      %4840 = vmatprep.subr.mxu0 0.0
      %4841 = vmatpush1.msra.mxu0 0.0
      %4842 = vmatprep.subr.mxu0 0.0
      %4843 = vmatpush1.msra.mxu0 0.0
      %4844 = vmatprep.subr.mxu0 0.0
      %4845 = vmatpush1.msra.mxu0 0.0
      %4846 = vmatprep.subr.mxu0 0.0
      %4847 = vmatpush1.msra.mxu0 0.0
      %4848 = vmatprep.subr.mxu0 0.0
      %4849 = vmatpush1.msra.mxu0 0.0
      %4850 = vmatprep.subr.mxu0 0.0
      %4851 = vmatpush1.msra.mxu0 0.0
      %4852 = vmatprep.subr.mxu0 0.0
      %4853 = vmatpush1.msra.mxu0 0.0
      %4854 = vmatprep.subr.mxu0 0.0
      %4855 = vmatpush1.msra.mxu0 0.0
      %4856 = vmatprep.subr.mxu0 0.0
      %4857 = vmatpush1.msra.mxu0 0.0
      %4858 = vmatprep.subr.mxu0 0.0
      %4859 = vmatpush1.msra.mxu0 0.0
      %4860 = vmatprep.subr.mxu0 0.0
      %4861 = vmatpush1.msra.mxu0 0.0
      %4862 = vmatprep.subr.mxu0 0.0
      %4863 = vmatpush1.msra.mxu0 0.0
      %4864 = vmatprep.subr.mxu0 0.0
      %4865 = vmatpush1.msra.mxu0 0.0
      %4866 = vmatprep.subr.mxu0 0.0
      %4867 = vmatpush1.msra.mxu0 0.0
      %4868 = vmatprep.subr.mxu0 0.0
      %4869 = vmatpush1.msra.mxu0 0.0
      %4870 = vmatprep.subr.mxu0 0.0
      %4871 = vmatpush1.msra.mxu0 0.0
      %4872 = vmatprep.subr.mxu0 0.0
      %4873 = vmatpush1.msra.mxu0 0.0
      %4874 = vmatprep.subr.mxu0 0.0
      %4875 = vmatpush1.msra.mxu0 0.0
      %4876 = vmatprep.subr.mxu0 0.0
      %4877 = vmatpush1.msra.mxu0 0.0
      %4878 = vmatprep.subr.mxu0 0.0
      %4879 = vmatpush1.msra.mxu0 0.0
      %4880 = vmatprep.subr.mxu0 0.0
      %4881 = vmatpush1.msra.mxu0 0.0
      %4882 = vmatprep.subr.mxu0 0.0
      %4883 = vmatpush1.msra.mxu0 0.0
      %4884 = vmatprep.subr.mxu0 0.0
      %4885 = vmatpush1.msra.mxu0 0.0
      %4886 = vmatprep.subr.mxu0 0.0
      %4887 = vmatpush1.msra.mxu0 0.0
      %4888 = vmatprep.subr.mxu0 0.0
      %4889 = vmatpush1.msra.mxu0 0.0
      %4890 = vmatprep.subr.mxu0 0.0
      %4891 = vmatpush1.msra.mxu0 0.0
      %4892 = vmatprep.subr.mxu0 0.0
      %4893 = vmatpush1.msra.mxu0 0.0
      %4894 = vmatprep.subr.mxu0 0.0
      %4895 = vmatpush1.msra.mxu0 0.0
      %4896 = vmatprep.subr.mxu0 0.0
      %4897 = vmatpush1.msra.mxu0 0.0
      %4898 = vmatprep.mubr.f32.mxu0 0.0
      %4899 = vmatmul.mubr.f32.gmra.mrb[0].mxu0 %v4736
      %v4900 = vpop.f32.mrb[0].mxu0
      %v4901 = vadd.f32 0.0, %v4900
      %v4902 = vpop.f32.mrb[0].mxu0
      %4903 = vmatprep.mubr.f32.mxu0 0.0
      %4904 = vmatmul.mubr.f32.gmra.mrb[0].mxu0 %v4739
      %v4905 = vpop.f32.mrb[0].mxu0
      %v4906 = vadd.f32 0.0, %v4905
      %v4907 = vpop.f32.mrb[0].mxu0
      %4908 = vmatprep.mubr.f32.mxu0 0.0
      %4909 = vmatmul.mubr.f32.gmra.mrb[0].mxu0 %v4742
      %v4910 = vpop.f32.mrb[0].mxu0
      %v4911 = vadd.f32 0.0, %v4910
      %v4912 = vpop.f32.mrb[0].mxu0
      %4913 = vmatprep.mubr.f32.mxu0 0.0
      %4914 = vmatmul.mubr.f32.gmra.mrb[0].mxu0 %v4745
      %v4915 = vpop.f32.mrb[0].mxu0
      %v4916 = vadd.f32 0.0, %v4915
      %v4917 = vpop.f32.mrb[0].mxu0
      %4918 = vmatprep.mubr.f32.mxu0 0.0
      %4919 = vmatmul.mubr.f32.gmra.mrb[0].mxu0 %v4748
      %v4920 = vpop.f32.mrb[0].mxu0
      %v4921 = vadd.f32 0.0, %v4920
      %v4922 = vpop.f32.mrb[0].mxu0
      %4923 = vmatprep.mubr.f32.mxu0 0.0
      %4924 = vmatmul.mubr.f32.gmra.mrb[0].mxu0 %v4751
      %v4925 = vpop.f32.mrb[0].mxu0
      %v4926 = vadd.f32 0.0, %v4925
      %v4927 = vpop.f32.mrb[0].mxu0
      %4928 = vmatprep.mubr.f32.mxu0 0.0
      %4929 = vmatmul.mubr.f32.gmra.mrb[0].mxu0 %v4754
      %v4930 = vpop.f32.mrb[0].mxu0
      %v4931 = vadd.f32 0.0, %v4930
      %v4932 = vpop.f32.mrb[0].mxu0
      %4933 = vmatprep.mubr.f32.mxu0 0.0
      %4934 = vmatmul.mubr.f32.gmra.mrb[0].mxu0 %v4757
      %v4935 = vpop.f32.mrb[0].mxu0
      %v4936 = vadd.f32 0.0, %v4935
      %v4937 = vpop.f32.mrb[0].mxu0
      %4938 = vmatprep.mubr.f32.mxu0 0.0
      %4939 = vmatmul.mubr.f32.gmra.mrb[0].mxu0 %v4760
      %v4940 = vpop.f32.mrb[0].mxu0
      %v4941 = vadd.f32 0.0, %v4940
      %v4942 = vpop.f32.mrb[0].mxu0
      %4943 = vmatprep.mubr.f32.mxu0 0.0
      %4944 = vmatmul.mubr.f32.gmra.mrb[0].mxu0 %v4763
      %v4945 = vpop.f32.mrb[0].mxu0
      %v4946 = vadd.f32 0.0, %v4945
      %v4947 = vpop.f32.mrb[0].mxu0
      %4948 = vmatprep.mubr.f32.mxu0 0.0
      %4949 = vmatmul.mubr.f32.gmra.mrb[0].mxu0 %v4766
      %v4950 = vpop.f32.mrb[0].mxu0
      %v4951 = vadd.f32 0.0, %v4950
      %v4952 = vpop.f32.mrb[0].mxu0
      %4953 = vmatprep.mubr.f32.mxu0 0.0
      %4954 = vmatmul.mubr.f32.gmra.mrb[0].mxu0 %v4769
      %v4955 = vpop.f32.mrb[0].mxu0
      %v4956 = vadd.f32 0.0, %v4955
      %v4957 = vpop.f32.mrb[0].mxu0
      %4958 = vmatprep.mubr.f32.mxu0 0.0
      %4959 = vmatmul.mubr.f32.gmra.mrb[0].mxu0 %v4772
      %v4960 = vpop.f32.mrb[0].mxu0
      %v4961 = vadd.f32 0.0, %v4960
      %v4962 = vpop.f32.mrb[0].mxu0
      %4963 = vmatprep.mubr.f32.mxu0 0.0
      %4964 = vmatmul.mubr.f32.gmra.mrb[0].mxu0 %v4775
      %v4965 = vpop.f32.mrb[0].mxu0
      %v4966 = vadd.f32 0.0, %v4965
      %v4967 = vpop.f32.mrb[0].mxu0
      %4968 = vmatprep.mubr.f32.mxu0 0.0
      %4969 = vmatmul.mubr.f32.gmra.mrb[0].mxu0 %v4778
      %v4970 = vpop.f32.mrb[0].mxu0
      %v4971 = vadd.f32 0.0, %v4970
      %v4972 = vpop.f32.mrb[0].mxu0
      %4973 = vmatprep.mubr.f32.mxu0 0.0
      %4974 = vmatmul.mubr.f32.gmra.mrb[0].mxu0 %v4781
      %v4975 = vpop.f32.mrb[0].mxu0
      %v4976 = vadd.f32 0.0, %v4975
      %v4977 = vpop.f32.mrb[0].mxu0
      %4978 = vmatprep.mubr.f32.mxu0 0.0
      %4979 = vmatmul.mubr.f32.gmra.mrb[0].mxu0 %v4784
      %v4980 = vpop.f32.mrb[0].mxu0
      %v4981 = vadd.f32 0.0, %v4980
      %v4982 = vpop.f32.mrb[0].mxu0
      %4983 = vmatprep.mubr.f32.mxu0 0.0
      %4984 = vmatmul.mubr.f32.gmra.mrb[0].mxu0 %v4787
      %v4985 = vpop.f32.mrb[0].mxu0
      %v4986 = vadd.f32 0.0, %v4985
      %v4987 = vpop.f32.mrb[0].mxu0
      %4988 = vmatprep.mubr.f32.mxu0 0.0
      %4989 = vmatmul.mubr.f32.gmra.mrb[0].mxu0 %v4790
      %v4990 = vpop.f32.mrb[0].mxu0
      %v4991 = vadd.f32 0.0, %v4990
      %v4992 = vpop.f32.mrb[0].mxu0
      %4993 = vmatprep.mubr.f32.mxu0 0.0
      %4994 = vmatmul.mubr.f32.gmra.mrb[0].mxu0 %v4793
      %v4995 = vpop.f32.mrb[0].mxu0
      %v4996 = vadd.f32 0.0, %v4995
      %v4997 = vpop.f32.mrb[0].mxu0
      %4998 = vmatprep.mubr.f32.mxu0 0.0
      %4999 = vmatmul.mubr.f32.gmra.mrb[0].mxu0 %v4796
      %v5000 = vpop.f32.mrb[0].mxu0
      %v5001 = vadd.f32 0.0, %v5000
      %v5002 = vpop.f32.mrb[0].mxu0
      %5003 = vmatprep.mubr.f32.mxu0 0.0
      %5004 = vmatmul.mubr.f32.gmra.mrb[0].mxu0 %v4799
      %v5005 = vpop.f32.mrb[0].mxu0
      %v5006 = vadd.f32 0.0, %v5005
      %v5007 = vpop.f32.mrb[0].mxu0
      %5008 = vmatprep.mubr.f32.mxu0 0.0
      %5009 = vmatmul.mubr.f32.gmra.mrb[0].mxu0 %v4802
      %v5010 = vpop.f32.mrb[0].mxu0
      %v5011 = vadd.f32 0.0, %v5010
      %v5012 = vpop.f32.mrb[0].mxu0
      %5013 = vmatprep.mubr.f32.mxu0 0.0
      %5014 = vmatmul.mubr.f32.gmra.mrb[0].mxu0 %v4805
      %v5015 = vpop.f32.mrb[0].mxu0
      %v5016 = vadd.f32 0.0, %v5015
      %v5017 = vpop.f32.mrb[0].mxu0
      %5018 = vmatprep.mubr.f32.mxu0 0.0
      %5019 = vmatmul.mubr.f32.gmra.mrb[0].mxu0 %v4808
      %v5020 = vpop.f32.mrb[0].mxu0
      %v5021 = vadd.f32 0.0, %v5020
      %v5022 = vpop.f32.mrb[0].mxu0
      %5023 = vmatprep.mubr.f32.mxu0 0.0
      %5024 = vmatmul.mubr.f32.gmra.mrb[0].mxu0 %v4811
      %v5025 = vpop.f32.mrb[0].mxu0
      %v5026 = vadd.f32 0.0, %v5025
      %v5027 = vpop.f32.mrb[0].mxu0
      %5028 = vmatprep.mubr.f32.mxu0 0.0
      %5029 = vmatmul.mubr.f32.gmra.mrb[0].mxu0 %v4814
      %v5030 = vpop.f32.mrb[0].mxu0
      %v5031 = vadd.f32 0.0, %v5030
      %v5032 = vpop.f32.mrb[0].mxu0
      %5033 = vmatprep.mubr.f32.mxu0 0.0
      %5034 = vmatmul.mubr.f32.gmra.mrb[0].mxu0 %v4817
      %v5035 = vpop.f32.mrb[0].mxu0
      %v5036 = vadd.f32 0.0, %v5035
      %v5037 = vpop.f32.mrb[0].mxu0
      %5038 = vmatprep.mubr.f32.mxu0 0.0
      %5039 = vmatmul.mubr.f32.gmra.mrb[0].mxu0 %v4820
      %v5040 = vpop.f32.mrb[0].mxu0
      %v5041 = vadd.f32 0.0, %v5040
      %v5042 = vpop.f32.mrb[0].mxu0
      %5043 = vmatprep.mubr.f32.mxu0 0.0
      %5044 = vmatmul.mubr.f32.gmra.mrb[0].mxu0 %v4823
      %v5045 = vpop.f32.mrb[0].mxu0
      %v5046 = vadd.f32 0.0, %v5045
      %v5047 = vpop.f32.mrb[0].mxu0
      %5048 = vmatprep.mubr.f32.mxu0 0.0
      %5049 = vmatmul.mubr.f32.gmra.mrb[0].mxu0 %v4826
      %v5050 = vpop.f32.mrb[0].mxu0
      %v5051 = vadd.f32 0.0, %v5050
      %v5052 = vpop.f32.mrb[0].mxu0
      %5053 = vmatprep.mubr.f32.mxu0 0.0
      %5054 = vmatmul.mubr.f32.gmra.mrb[0].mxu0 %v4829
      %v5055 = vpop.f32.mrb[0].mxu0
      %v5056 = vadd.f32 0.0, %v5055
      %v5057 = vpop.f32.mrb[0].mxu0
      %5058 = vdwg.mxu0
      %v5059 = vadd.f32 %v4543, %v4901
      %v5060 = vadd.f32 %v4548, %v4906
      %v5061 = vadd.f32 %v4553, %v4911
      %v5062 = vadd.f32 %v4558, %v4916
      %v5063 = vadd.f32 %v4563, %v4921
      %v5064 = vadd.f32 %v4568, %v4926
      %v5065 = vadd.f32 %v4573, %v4931
      %v5066 = vadd.f32 %v4578, %v4936
      %v5067 = vadd.f32 %v4583, %v4941
      %v5068 = vadd.f32 %v4588, %v4946
      %v5069 = vadd.f32 %v4593, %v4951
      %v5070 = vadd.f32 %v4598, %v4956
      %v5071 = vadd.f32 %v4603, %v4961
      %v5072 = vadd.f32 %v4608, %v4966
      %v5073 = vadd.f32 %v4613, %v4971
      %v5074 = vadd.f32 %v4618, %v4976
      %v5075 = vadd.f32 %v4623, %v4981
      %v5076 = vadd.f32 %v4628, %v4986
      %v5077 = vadd.f32 %v4633, %v4991
      %v5078 = vadd.f32 %v4638, %v4996
      %v5079 = vadd.f32 %v4643, %v5001
      %v5080 = vadd.f32 %v4648, %v5006
      %v5081 = vadd.f32 %v4653, %v5011
      %v5082 = vadd.f32 %v4658, %v5016
      %v5083 = vadd.f32 %v4663, %v5021
      %v5084 = vadd.f32 %v4668, %v5026
      %v5085 = vadd.f32 %v4673, %v5031
      %v5086 = vadd.f32 %v4678, %v5036
      %v5087 = vadd.f32 %v4683, %v5041
      %v5088 = vadd.f32 %v4688, %v5046
      %v5089 = vadd.f32 %v4693, %v5051
      %v5090 = vadd.f32 %v4698, %v5056
      %v5091 = vld [vmem:[%s3953 + $0x7] sm:$0xff]
      %v5092 = vld [vmem:[%s3953 + $0xf] sm:$0xff]
      %v5093 = vld [vmem:[%s3953 + $0x27] sm:$0xff]
      %v5094 = vld [vmem:[%s3953 + $0x2f] sm:$0xff]
      %v5095 = vld [vmem:[%s3953 + $0x47] sm:$0xff]
      %v5096 = vld [vmem:[%s3953 + $0x4f] sm:$0xff]
      %v5097 = vld [vmem:[%s3953 + $0x67] sm:$0xff]
      %v5098 = vld [vmem:[%s3953 + $0x6f] sm:$0xff]
      %v5099 = vld [vmem:[%s3953 + $0x87] sm:$0xff]
      %v5100 = vld [vmem:[%s3953 + $0x8f] sm:$0xff]
      %v5101 = vld [vmem:[%s3953 + $0xa7] sm:$0xff]
      %v5102 = vld [vmem:[%s3953 + $0xaf] sm:$0xff]
      %v5103 = vld [vmem:[%s3953 + $0xc7] sm:$0xff]
      %v5104 = vld [vmem:[%s3953 + $0xcf] sm:$0xff]
      %v5105 = vld [vmem:[%s3953 + $0xe7] sm:$0xff]
      %v5106 = vld [vmem:[%s3953 + $0xef] sm:$0xff]
      %v5107 = vld [vmem:[%s3953 + $0x107] sm:$0xff]
      %v5108 = vld [vmem:[%s3953 + $0x10f] sm:$0xff]
      %v5109 = vld [vmem:[%s3953 + $0x127] sm:$0xff]
      %v5110 = vld [vmem:[%s3953 + $0x12f] sm:$0xff]
      %v5111 = vld [vmem:[%s3953 + $0x147] sm:$0xff]
      %v5112 = vld [vmem:[%s3953 + $0x14f] sm:$0xff]
      %v5113 = vld [vmem:[%s3953 + $0x167] sm:$0xff]
      %v5114 = vld [vmem:[%s3953 + $0x16f] sm:$0xff]
      %v5115 = vld [vmem:[%s3953 + $0x187] sm:$0xff]
      %v5116 = vld [vmem:[%s3953 + $0x18f] sm:$0xff]
      %v5117 = vld [vmem:[%s3953 + $0x1a7] sm:$0xff]
      %v5118 = vld [vmem:[%s3953 + $0x1af] sm:$0xff]
      %v5119 = vld [vmem:[%s3953 + $0x1c7] sm:$0xff]
      %v5120 = vld [vmem:[%s3953 + $0x1cf] sm:$0xff]
      %v5121 = vld [vmem:[%s3953 + $0x1e7] sm:$0xff]
      %v5122 = vld [vmem:[%s3953 + $0x1ef] sm:$0xff]
      %s5123 = scalar_lea.vmem %s3, 12
      %v5124 = vld [vmem:[%s5123] sm:$0xf]
      %v5126 = vsel %vm225, %v5091, 0
      %v5129 = vsel %vm225, %v5092, 0
      %v5132 = vsel %vm225, %v5093, 0
      %v5135 = vsel %vm225, %v5094, 0
      %v5138 = vsel %vm225, %v5095, 0
      %v5141 = vsel %vm225, %v5096, 0
      %v5144 = vsel %vm225, %v5097, 0
      %v5147 = vsel %vm225, %v5098, 0
      %v5150 = vsel %vm225, %v5099, 0
      %v5153 = vsel %vm225, %v5100, 0
      %v5156 = vsel %vm225, %v5101, 0
      %v5159 = vsel %vm225, %v5102, 0
      %v5162 = vsel %vm225, %v5103, 0
      %v5165 = vsel %vm225, %v5104, 0
      %v5168 = vsel %vm225, %v5105, 0
      %v5171 = vsel %vm225, %v5106, 0
      %v5174 = vsel %vm225, %v5107, 0
      %v5177 = vsel %vm225, %v5108, 0
      %v5180 = vsel %vm225, %v5109, 0
      %v5183 = vsel %vm225, %v5110, 0
      %v5186 = vsel %vm225, %v5111, 0
      %v5189 = vsel %vm225, %v5112, 0
      %v5192 = vsel %vm225, %v5113, 0
      %v5195 = vsel %vm225, %v5114, 0
      %v5198 = vsel %vm225, %v5115, 0
      %v5201 = vsel %vm225, %v5116, 0
      %v5204 = vsel %vm225, %v5117, 0
      %v5207 = vsel %vm225, %v5118, 0
      %v5210 = vsel %vm225, %v5119, 0
      %v5213 = vsel %vm225, %v5120, 0
      %v5216 = vsel %vm225, %v5121, 0
      %v5219 = vsel %vm225, %v5122, 0
      %v5222 = vsel %vm598, %v5124, 0
      %5224 = vmatprep.subr.mxu0 0.0
      %5225 = vmatpush1.msra.mxu0 %v5222
      %5226 = vmatprep.subr.mxu0 0.0
      %5227 = vmatpush1.msra.mxu0 0.0
      %5228 = vmatprep.subr.mxu0 0.0
      %5229 = vmatpush1.msra.mxu0 0.0
      %5230 = vmatprep.subr.mxu0 0.0
      %5231 = vmatpush1.msra.mxu0 0.0
      %5232 = vmatprep.subr.mxu0 0.0
      %5233 = vmatpush1.msra.mxu0 0.0
      %5234 = vmatprep.subr.mxu0 0.0
      %5235 = vmatpush1.msra.mxu0 0.0
      %5236 = vmatprep.subr.mxu0 0.0
      %5237 = vmatpush1.msra.mxu0 0.0
      %5238 = vmatprep.subr.mxu0 0.0
      %5239 = vmatpush1.msra.mxu0 0.0
      %5240 = vmatprep.subr.mxu0 0.0
      %5241 = vmatpush1.msra.mxu0 0.0
      %5242 = vmatprep.subr.mxu0 0.0
      %5243 = vmatpush1.msra.mxu0 0.0
      %5244 = vmatprep.subr.mxu0 0.0
      %5245 = vmatpush1.msra.mxu0 0.0
      %5246 = vmatprep.subr.mxu0 0.0
      %5247 = vmatpush1.msra.mxu0 0.0
      %5248 = vmatprep.subr.mxu0 0.0
      %5249 = vmatpush1.msra.mxu0 0.0
      %5250 = vmatprep.subr.mxu0 0.0
      %5251 = vmatpush1.msra.mxu0 0.0
      %5252 = vmatprep.subr.mxu0 0.0
      %5253 = vmatpush1.msra.mxu0 0.0
      %5254 = vmatprep.subr.mxu0 0.0
      %5255 = vmatpush1.msra.mxu0 0.0
      %5256 = vmatprep.subr.mxu0 0.0
      %5257 = vmatpush1.msra.mxu0 0.0
      %5258 = vmatprep.subr.mxu0 0.0
      %5259 = vmatpush1.msra.mxu0 0.0
      %5260 = vmatprep.subr.mxu0 0.0
      %5261 = vmatpush1.msra.mxu0 0.0
      %5262 = vmatprep.subr.mxu0 0.0
      %5263 = vmatpush1.msra.mxu0 0.0
      %5264 = vmatprep.subr.mxu0 0.0
      %5265 = vmatpush1.msra.mxu0 0.0
      %5266 = vmatprep.subr.mxu0 0.0
      %5267 = vmatpush1.msra.mxu0 0.0
      %5268 = vmatprep.subr.mxu0 0.0
      %5269 = vmatpush1.msra.mxu0 0.0
      %5270 = vmatprep.subr.mxu0 0.0
      %5271 = vmatpush1.msra.mxu0 0.0
      %5272 = vmatprep.subr.mxu0 0.0
      %5273 = vmatpush1.msra.mxu0 0.0
      %5274 = vmatprep.subr.mxu0 0.0
      %5275 = vmatpush1.msra.mxu0 0.0
      %5276 = vmatprep.subr.mxu0 0.0
      %5277 = vmatpush1.msra.mxu0 0.0
      %5278 = vmatprep.subr.mxu0 0.0
      %5279 = vmatpush1.msra.mxu0 0.0
      %5280 = vmatprep.subr.mxu0 0.0
      %5281 = vmatpush1.msra.mxu0 0.0
      %5282 = vmatprep.subr.mxu0 0.0
      %5283 = vmatpush1.msra.mxu0 0.0
      %5284 = vmatprep.subr.mxu0 0.0
      %5285 = vmatpush1.msra.mxu0 0.0
      %5286 = vmatprep.subr.mxu0 0.0
      %5287 = vmatpush1.msra.mxu0 0.0
      %5288 = vmatprep.mubr.f32.mxu0 0.0
      %5289 = vmatmul.mubr.f32.gmra.mrb[0].mxu0 %v5126
      %v5290 = vpop.f32.mrb[0].mxu0
      %v5291 = vadd.f32 0.0, %v5290
      %v5292 = vpop.f32.mrb[0].mxu0
      %5293 = vmatprep.mubr.f32.mxu0 0.0
      %5294 = vmatmul.mubr.f32.gmra.mrb[0].mxu0 %v5129
      %v5295 = vpop.f32.mrb[0].mxu0
      %v5296 = vadd.f32 0.0, %v5295
      %v5297 = vpop.f32.mrb[0].mxu0
      %5298 = vmatprep.mubr.f32.mxu0 0.0
      %5299 = vmatmul.mubr.f32.gmra.mrb[0].mxu0 %v5132
      %v5300 = vpop.f32.mrb[0].mxu0
      %v5301 = vadd.f32 0.0, %v5300
      %v5302 = vpop.f32.mrb[0].mxu0
      %5303 = vmatprep.mubr.f32.mxu0 0.0
      %5304 = vmatmul.mubr.f32.gmra.mrb[0].mxu0 %v5135
      %v5305 = vpop.f32.mrb[0].mxu0
      %v5306 = vadd.f32 0.0, %v5305
      %v5307 = vpop.f32.mrb[0].mxu0
      %5308 = vmatprep.mubr.f32.mxu0 0.0
      %5309 = vmatmul.mubr.f32.gmra.mrb[0].mxu0 %v5138
      %v5310 = vpop.f32.mrb[0].mxu0
      %v5311 = vadd.f32 0.0, %v5310
      %v5312 = vpop.f32.mrb[0].mxu0
      %5313 = vmatprep.mubr.f32.mxu0 0.0
      %5314 = vmatmul.mubr.f32.gmra.mrb[0].mxu0 %v5141
      %v5315 = vpop.f32.mrb[0].mxu0
      %v5316 = vadd.f32 0.0, %v5315
      %v5317 = vpop.f32.mrb[0].mxu0
      %5318 = vmatprep.mubr.f32.mxu0 0.0
      %5319 = vmatmul.mubr.f32.gmra.mrb[0].mxu0 %v5144
      %v5320 = vpop.f32.mrb[0].mxu0
      %v5321 = vadd.f32 0.0, %v5320
      %v5322 = vpop.f32.mrb[0].mxu0
      %5323 = vmatprep.mubr.f32.mxu0 0.0
      %5324 = vmatmul.mubr.f32.gmra.mrb[0].mxu0 %v5147
      %v5325 = vpop.f32.mrb[0].mxu0
      %v5326 = vadd.f32 0.0, %v5325
      %v5327 = vpop.f32.mrb[0].mxu0
      %5328 = vmatprep.mubr.f32.mxu0 0.0
      %5329 = vmatmul.mubr.f32.gmra.mrb[0].mxu0 %v5150
      %v5330 = vpop.f32.mrb[0].mxu0
      %v5331 = vadd.f32 0.0, %v5330
      %v5332 = vpop.f32.mrb[0].mxu0
      %5333 = vmatprep.mubr.f32.mxu0 0.0
      %5334 = vmatmul.mubr.f32.gmra.mrb[0].mxu0 %v5153
      %v5335 = vpop.f32.mrb[0].mxu0
      %v5336 = vadd.f32 0.0, %v5335
      %v5337 = vpop.f32.mrb[0].mxu0
      %5338 = vmatprep.mubr.f32.mxu0 0.0
      %5339 = vmatmul.mubr.f32.gmra.mrb[0].mxu0 %v5156
      %v5340 = vpop.f32.mrb[0].mxu0
      %v5341 = vadd.f32 0.0, %v5340
      %v5342 = vpop.f32.mrb[0].mxu0
      %5343 = vmatprep.mubr.f32.mxu0 0.0
      %5344 = vmatmul.mubr.f32.gmra.mrb[0].mxu0 %v5159
      %v5345 = vpop.f32.mrb[0].mxu0
      %v5346 = vadd.f32 0.0, %v5345
      %v5347 = vpop.f32.mrb[0].mxu0
      %5348 = vmatprep.mubr.f32.mxu0 0.0
      %5349 = vmatmul.mubr.f32.gmra.mrb[0].mxu0 %v5162
      %v5350 = vpop.f32.mrb[0].mxu0
      %v5351 = vadd.f32 0.0, %v5350
      %v5352 = vpop.f32.mrb[0].mxu0
      %5353 = vmatprep.mubr.f32.mxu0 0.0
      %5354 = vmatmul.mubr.f32.gmra.mrb[0].mxu0 %v5165
      %v5355 = vpop.f32.mrb[0].mxu0
      %v5356 = vadd.f32 0.0, %v5355
      %v5357 = vpop.f32.mrb[0].mxu0
      %5358 = vmatprep.mubr.f32.mxu0 0.0
      %5359 = vmatmul.mubr.f32.gmra.mrb[0].mxu0 %v5168
      %v5360 = vpop.f32.mrb[0].mxu0
      %v5361 = vadd.f32 0.0, %v5360
      %v5362 = vpop.f32.mrb[0].mxu0
      %5363 = vmatprep.mubr.f32.mxu0 0.0
      %5364 = vmatmul.mubr.f32.gmra.mrb[0].mxu0 %v5171
      %v5365 = vpop.f32.mrb[0].mxu0
      %v5366 = vadd.f32 0.0, %v5365
      %v5367 = vpop.f32.mrb[0].mxu0
      %5368 = vmatprep.mubr.f32.mxu0 0.0
      %5369 = vmatmul.mubr.f32.gmra.mrb[0].mxu0 %v5174
      %v5370 = vpop.f32.mrb[0].mxu0
      %v5371 = vadd.f32 0.0, %v5370
      %v5372 = vpop.f32.mrb[0].mxu0
      %5373 = vmatprep.mubr.f32.mxu0 0.0
      %5374 = vmatmul.mubr.f32.gmra.mrb[0].mxu0 %v5177
      %v5375 = vpop.f32.mrb[0].mxu0
      %v5376 = vadd.f32 0.0, %v5375
      %v5377 = vpop.f32.mrb[0].mxu0
      %5378 = vmatprep.mubr.f32.mxu0 0.0
      %5379 = vmatmul.mubr.f32.gmra.mrb[0].mxu0 %v5180
      %v5380 = vpop.f32.mrb[0].mxu0
      %v5381 = vadd.f32 0.0, %v5380
      %v5382 = vpop.f32.mrb[0].mxu0
      %5383 = vmatprep.mubr.f32.mxu0 0.0
      %5384 = vmatmul.mubr.f32.gmra.mrb[0].mxu0 %v5183
      %v5385 = vpop.f32.mrb[0].mxu0
      %v5386 = vadd.f32 0.0, %v5385
      %v5387 = vpop.f32.mrb[0].mxu0
      %5388 = vmatprep.mubr.f32.mxu0 0.0
      %5389 = vmatmul.mubr.f32.gmra.mrb[0].mxu0 %v5186
      %v5390 = vpop.f32.mrb[0].mxu0
      %v5391 = vadd.f32 0.0, %v5390
      %v5392 = vpop.f32.mrb[0].mxu0
      %5393 = vmatprep.mubr.f32.mxu0 0.0
      %5394 = vmatmul.mubr.f32.gmra.mrb[0].mxu0 %v5189
      %v5395 = vpop.f32.mrb[0].mxu0
      %v5396 = vadd.f32 0.0, %v5395
      %v5397 = vpop.f32.mrb[0].mxu0
      %5398 = vmatprep.mubr.f32.mxu0 0.0
      %5399 = vmatmul.mubr.f32.gmra.mrb[0].mxu0 %v5192
      %v5400 = vpop.f32.mrb[0].mxu0
      %v5401 = vadd.f32 0.0, %v5400
      %v5402 = vpop.f32.mrb[0].mxu0
      %5403 = vmatprep.mubr.f32.mxu0 0.0
      %5404 = vmatmul.mubr.f32.gmra.mrb[0].mxu0 %v5195
      %v5405 = vpop.f32.mrb[0].mxu0
      %v5406 = vadd.f32 0.0, %v5405
      %v5407 = vpop.f32.mrb[0].mxu0
      %5408 = vmatprep.mubr.f32.mxu0 0.0
      %5409 = vmatmul.mubr.f32.gmra.mrb[0].mxu0 %v5198
      %v5410 = vpop.f32.mrb[0].mxu0
      %v5411 = vadd.f32 0.0, %v5410
      %v5412 = vpop.f32.mrb[0].mxu0
      %5413 = vmatprep.mubr.f32.mxu0 0.0
      %5414 = vmatmul.mubr.f32.gmra.mrb[0].mxu0 %v5201
      %v5415 = vpop.f32.mrb[0].mxu0
      %v5416 = vadd.f32 0.0, %v5415
      %v5417 = vpop.f32.mrb[0].mxu0
      %5418 = vmatprep.mubr.f32.mxu0 0.0
      %5419 = vmatmul.mubr.f32.gmra.mrb[0].mxu0 %v5204
      %v5420 = vpop.f32.mrb[0].mxu0
      %v5421 = vadd.f32 0.0, %v5420
      %v5422 = vpop.f32.mrb[0].mxu0
      %5423 = vmatprep.mubr.f32.mxu0 0.0
      %5424 = vmatmul.mubr.f32.gmra.mrb[0].mxu0 %v5207
      %v5425 = vpop.f32.mrb[0].mxu0
      %v5426 = vadd.f32 0.0, %v5425
      %v5427 = vpop.f32.mrb[0].mxu0
      %5428 = vmatprep.mubr.f32.mxu0 0.0
      %5429 = vmatmul.mubr.f32.gmra.mrb[0].mxu0 %v5210
      %v5430 = vpop.f32.mrb[0].mxu0
      %v5431 = vadd.f32 0.0, %v5430
      %v5432 = vpop.f32.mrb[0].mxu0
      %5433 = vmatprep.mubr.f32.mxu0 0.0
      %5434 = vmatmul.mubr.f32.gmra.mrb[0].mxu0 %v5213
      %v5435 = vpop.f32.mrb[0].mxu0
      %v5436 = vadd.f32 0.0, %v5435
      %v5437 = vpop.f32.mrb[0].mxu0
      %5438 = vmatprep.mubr.f32.mxu0 0.0
      %5439 = vmatmul.mubr.f32.gmra.mrb[0].mxu0 %v5216
      %v5440 = vpop.f32.mrb[0].mxu0
      %v5441 = vadd.f32 0.0, %v5440
      %v5442 = vpop.f32.mrb[0].mxu0
      %5443 = vmatprep.mubr.f32.mxu0 0.0
      %5444 = vmatmul.mubr.f32.gmra.mrb[0].mxu0 %v5219
      %v5445 = vpop.f32.mrb[0].mxu0
      %v5446 = vadd.f32 0.0, %v5445
      %v5447 = vpop.f32.mrb[0].mxu0
      %5448 = vdwg.mxu0
      %v5449 = vadd.f32 %v5059, %v5291
      %v5450 = vadd.f32 %v5060, %v5296
      %v5451 = vadd.f32 %v5061, %v5301
      %v5452 = vadd.f32 %v5062, %v5306
      %v5453 = vadd.f32 %v5063, %v5311
      %v5454 = vadd.f32 %v5064, %v5316
      %v5455 = vadd.f32 %v5065, %v5321
      %v5456 = vadd.f32 %v5066, %v5326
      %v5457 = vadd.f32 %v5067, %v5331
      %v5458 = vadd.f32 %v5068, %v5336
      %v5459 = vadd.f32 %v5069, %v5341
      %v5460 = vadd.f32 %v5070, %v5346
      %v5461 = vadd.f32 %v5071, %v5351
      %v5462 = vadd.f32 %v5072, %v5356
      %v5463 = vadd.f32 %v5073, %v5361
      %v5464 = vadd.f32 %v5074, %v5366
      %v5465 = vadd.f32 %v5075, %v5371
      %v5466 = vadd.f32 %v5076, %v5376
      %v5467 = vadd.f32 %v5077, %v5381
      %v5468 = vadd.f32 %v5078, %v5386
      %v5469 = vadd.f32 %v5079, %v5391
      %v5470 = vadd.f32 %v5080, %v5396
      %v5471 = vadd.f32 %v5081, %v5401
      %v5472 = vadd.f32 %v5082, %v5406
      %v5473 = vadd.f32 %v5083, %v5411
      %v5474 = vadd.f32 %v5084, %v5416
      %v5475 = vadd.f32 %v5085, %v5421
      %v5476 = vadd.f32 %v5086, %v5426
      %v5477 = vadd.f32 %v5087, %v5431
      %v5478 = vadd.f32 %v5088, %v5436
      %v5479 = vadd.f32 %v5089, %v5441
      %v5480 = vadd.f32 %v5090, %v5446
      %v5481 = vld [vmem:[%s3953 + $0x8] sm:$0xff]
      %v5482 = vld [vmem:[%s3953 + $0x10] sm:$0xff]
      %v5483 = vld [vmem:[%s3953 + $0x28] sm:$0xff]
      %v5484 = vld [vmem:[%s3953 + $0x30] sm:$0xff]
      %v5485 = vld [vmem:[%s3953 + $0x48] sm:$0xff]
      %v5486 = vld [vmem:[%s3953 + $0x50] sm:$0xff]
      %v5487 = vld [vmem:[%s3953 + $0x68] sm:$0xff]
      %v5488 = vld [vmem:[%s3953 + $0x70] sm:$0xff]
      %v5489 = vld [vmem:[%s3953 + $0x88] sm:$0xff]
      %v5490 = vld [vmem:[%s3953 + $0x90] sm:$0xff]
      %v5491 = vld [vmem:[%s3953 + $0xa8] sm:$0xff]
      %v5492 = vld [vmem:[%s3953 + $0xb0] sm:$0xff]
      %v5493 = vld [vmem:[%s3953 + $0xc8] sm:$0xff]
      %v5494 = vld [vmem:[%s3953 + $0xd0] sm:$0xff]
      %v5495 = vld [vmem:[%s3953 + $0xe8] sm:$0xff]
      %v5496 = vld [vmem:[%s3953 + $0xf0] sm:$0xff]
      %v5497 = vld [vmem:[%s3953 + $0x108] sm:$0xff]
      %v5498 = vld [vmem:[%s3953 + $0x110] sm:$0xff]
      %v5499 = vld [vmem:[%s3953 + $0x128] sm:$0xff]
      %v5500 = vld [vmem:[%s3953 + $0x130] sm:$0xff]
      %v5501 = vld [vmem:[%s3953 + $0x148] sm:$0xff]
      %v5502 = vld [vmem:[%s3953 + $0x150] sm:$0xff]
      %v5503 = vld [vmem:[%s3953 + $0x168] sm:$0xff]
      %v5504 = vld [vmem:[%s3953 + $0x170] sm:$0xff]
      %v5505 = vld [vmem:[%s3953 + $0x188] sm:$0xff]
      %v5506 = vld [vmem:[%s3953 + $0x190] sm:$0xff]
      %v5507 = vld [vmem:[%s3953 + $0x1a8] sm:$0xff]
      %v5508 = vld [vmem:[%s3953 + $0x1b0] sm:$0xff]
      %v5509 = vld [vmem:[%s3953 + $0x1c8] sm:$0xff]
      %v5510 = vld [vmem:[%s3953 + $0x1d0] sm:$0xff]
      %v5511 = vld [vmem:[%s3953 + $0x1e8] sm:$0xff]
      %v5512 = vld [vmem:[%s3953 + $0x1f0] sm:$0xff]
      %s5513 = scalar_lea.vmem %s3, 16
      %v5514 = vld [vmem:[%s5513] sm:$0xf]
      %v5516 = vsel %vm225, %v5481, 0
      %v5519 = vsel %vm225, %v5482, 0
      %v5522 = vsel %vm225, %v5483, 0
      %v5525 = vsel %vm225, %v5484, 0
      %v5528 = vsel %vm225, %v5485, 0
      %v5531 = vsel %vm225, %v5486, 0
      %v5534 = vsel %vm225, %v5487, 0
      %v5537 = vsel %vm225, %v5488, 0
      %v5540 = vsel %vm225, %v5489, 0
      %v5543 = vsel %vm225, %v5490, 0
      %v5546 = vsel %vm225, %v5491, 0
      %v5549 = vsel %vm225, %v5492, 0
      %v5552 = vsel %vm225, %v5493, 0
      %v5555 = vsel %vm225, %v5494, 0
      %v5558 = vsel %vm225, %v5495, 0
      %v5561 = vsel %vm225, %v5496, 0
      %v5564 = vsel %vm225, %v5497, 0
      %v5567 = vsel %vm225, %v5498, 0
      %v5570 = vsel %vm225, %v5499, 0
      %v5573 = vsel %vm225, %v5500, 0
      %v5576 = vsel %vm225, %v5501, 0
      %v5579 = vsel %vm225, %v5502, 0
      %v5582 = vsel %vm225, %v5503, 0
      %v5585 = vsel %vm225, %v5504, 0
      %v5588 = vsel %vm225, %v5505, 0
      %v5591 = vsel %vm225, %v5506, 0
      %v5594 = vsel %vm225, %v5507, 0
      %v5597 = vsel %vm225, %v5508, 0
      %v5600 = vsel %vm225, %v5509, 0
      %v5603 = vsel %vm225, %v5510, 0
      %v5606 = vsel %vm225, %v5511, 0
      %v5609 = vsel %vm225, %v5512, 0
      %v5612 = vsel %vm598, %v5514, 0
      %5614 = vmatprep.subr.mxu0 0.0
      %5615 = vmatpush1.msra.mxu0 %v5612
      %5616 = vmatprep.subr.mxu0 0.0
      %5617 = vmatpush1.msra.mxu0 0.0
      %5618 = vmatprep.subr.mxu0 0.0
      %5619 = vmatpush1.msra.mxu0 0.0
      %5620 = vmatprep.subr.mxu0 0.0
      %5621 = vmatpush1.msra.mxu0 0.0
      %5622 = vmatprep.subr.mxu0 0.0
      %5623 = vmatpush1.msra.mxu0 0.0
      %5624 = vmatprep.subr.mxu0 0.0
      %5625 = vmatpush1.msra.mxu0 0.0
      %5626 = vmatprep.subr.mxu0 0.0
      %5627 = vmatpush1.msra.mxu0 0.0
      %5628 = vmatprep.subr.mxu0 0.0
      %5629 = vmatpush1.msra.mxu0 0.0
      %5630 = vmatprep.subr.mxu0 0.0
      %5631 = vmatpush1.msra.mxu0 0.0
      %5632 = vmatprep.subr.mxu0 0.0
      %5633 = vmatpush1.msra.mxu0 0.0
      %5634 = vmatprep.subr.mxu0 0.0
      %5635 = vmatpush1.msra.mxu0 0.0
      %5636 = vmatprep.subr.mxu0 0.0
      %5637 = vmatpush1.msra.mxu0 0.0
      %5638 = vmatprep.subr.mxu0 0.0
      %5639 = vmatpush1.msra.mxu0 0.0
      %5640 = vmatprep.subr.mxu0 0.0
      %5641 = vmatpush1.msra.mxu0 0.0
      %5642 = vmatprep.subr.mxu0 0.0
      %5643 = vmatpush1.msra.mxu0 0.0
      %5644 = vmatprep.subr.mxu0 0.0
      %5645 = vmatpush1.msra.mxu0 0.0
      %5646 = vmatprep.subr.mxu0 0.0
      %5647 = vmatpush1.msra.mxu0 0.0
      %5648 = vmatprep.subr.mxu0 0.0
      %5649 = vmatpush1.msra.mxu0 0.0
      %5650 = vmatprep.subr.mxu0 0.0
      %5651 = vmatpush1.msra.mxu0 0.0
      %5652 = vmatprep.subr.mxu0 0.0
      %5653 = vmatpush1.msra.mxu0 0.0
      %5654 = vmatprep.subr.mxu0 0.0
      %5655 = vmatpush1.msra.mxu0 0.0
      %5656 = vmatprep.subr.mxu0 0.0
      %5657 = vmatpush1.msra.mxu0 0.0
      %5658 = vmatprep.subr.mxu0 0.0
      %5659 = vmatpush1.msra.mxu0 0.0
      %5660 = vmatprep.subr.mxu0 0.0
      %5661 = vmatpush1.msra.mxu0 0.0
      %5662 = vmatprep.subr.mxu0 0.0
      %5663 = vmatpush1.msra.mxu0 0.0
      %5664 = vmatprep.subr.mxu0 0.0
      %5665 = vmatpush1.msra.mxu0 0.0
      %5666 = vmatprep.subr.mxu0 0.0
      %5667 = vmatpush1.msra.mxu0 0.0
      %5668 = vmatprep.subr.mxu0 0.0
      %5669 = vmatpush1.msra.mxu0 0.0
      %5670 = vmatprep.subr.mxu0 0.0
      %5671 = vmatpush1.msra.mxu0 0.0
      %5672 = vmatprep.subr.mxu0 0.0
      %5673 = vmatpush1.msra.mxu0 0.0
      %5674 = vmatprep.subr.mxu0 0.0
      %5675 = vmatpush1.msra.mxu0 0.0
      %5676 = vmatprep.subr.mxu0 0.0
      %5677 = vmatpush1.msra.mxu0 0.0
      %5678 = vmatprep.mubr.f32.mxu0 0.0
      %5679 = vmatmul.mubr.f32.gmra.mrb[0].mxu0 %v5516
      %v5680 = vpop.f32.mrb[0].mxu0
      %v5681 = vadd.f32 0.0, %v5680
      %v5682 = vpop.f32.mrb[0].mxu0
      %5683 = vmatprep.mubr.f32.mxu0 0.0
      %5684 = vmatmul.mubr.f32.gmra.mrb[0].mxu0 %v5519
      %v5685 = vpop.f32.mrb[0].mxu0
      %v5686 = vadd.f32 0.0, %v5685
      %v5687 = vpop.f32.mrb[0].mxu0
      %5688 = vmatprep.mubr.f32.mxu0 0.0
      %5689 = vmatmul.mubr.f32.gmra.mrb[0].mxu0 %v5522
      %v5690 = vpop.f32.mrb[0].mxu0
      %v5691 = vadd.f32 0.0, %v5690
      %v5692 = vpop.f32.mrb[0].mxu0
      %5693 = vmatprep.mubr.f32.mxu0 0.0
      %5694 = vmatmul.mubr.f32.gmra.mrb[0].mxu0 %v5525
      %v5695 = vpop.f32.mrb[0].mxu0
      %v5696 = vadd.f32 0.0, %v5695
      %v5697 = vpop.f32.mrb[0].mxu0
      %5698 = vmatprep.mubr.f32.mxu0 0.0
      %5699 = vmatmul.mubr.f32.gmra.mrb[0].mxu0 %v5528
      %v5700 = vpop.f32.mrb[0].mxu0
      %v5701 = vadd.f32 0.0, %v5700
      %v5702 = vpop.f32.mrb[0].mxu0
      %5703 = vmatprep.mubr.f32.mxu0 0.0
      %5704 = vmatmul.mubr.f32.gmra.mrb[0].mxu0 %v5531
      %v5705 = vpop.f32.mrb[0].mxu0
      %v5706 = vadd.f32 0.0, %v5705
      %v5707 = vpop.f32.mrb[0].mxu0
      %5708 = vmatprep.mubr.f32.mxu0 0.0
      %5709 = vmatmul.mubr.f32.gmra.mrb[0].mxu0 %v5534
      %v5710 = vpop.f32.mrb[0].mxu0
      %v5711 = vadd.f32 0.0, %v5710
      %v5712 = vpop.f32.mrb[0].mxu0
      %5713 = vmatprep.mubr.f32.mxu0 0.0
      %5714 = vmatmul.mubr.f32.gmra.mrb[0].mxu0 %v5537
      %v5715 = vpop.f32.mrb[0].mxu0
      %v5716 = vadd.f32 0.0, %v5715
      %v5717 = vpop.f32.mrb[0].mxu0
      %5718 = vmatprep.mubr.f32.mxu0 0.0
      %5719 = vmatmul.mubr.f32.gmra.mrb[0].mxu0 %v5540
      %v5720 = vpop.f32.mrb[0].mxu0
      %v5721 = vadd.f32 0.0, %v5720
      %v5722 = vpop.f32.mrb[0].mxu0
      %5723 = vmatprep.mubr.f32.mxu0 0.0
      %5724 = vmatmul.mubr.f32.gmra.mrb[0].mxu0 %v5543
      %v5725 = vpop.f32.mrb[0].mxu0
      %v5726 = vadd.f32 0.0, %v5725
      %v5727 = vpop.f32.mrb[0].mxu0
      %5728 = vmatprep.mubr.f32.mxu0 0.0
      %5729 = vmatmul.mubr.f32.gmra.mrb[0].mxu0 %v5546
      %v5730 = vpop.f32.mrb[0].mxu0
      %v5731 = vadd.f32 0.0, %v5730
      %v5732 = vpop.f32.mrb[0].mxu0
      %5733 = vmatprep.mubr.f32.mxu0 0.0
      %5734 = vmatmul.mubr.f32.gmra.mrb[0].mxu0 %v5549
      %v5735 = vpop.f32.mrb[0].mxu0
      %v5736 = vadd.f32 0.0, %v5735
      %v5737 = vpop.f32.mrb[0].mxu0
      %5738 = vmatprep.mubr.f32.mxu0 0.0
      %5739 = vmatmul.mubr.f32.gmra.mrb[0].mxu0 %v5552
      %v5740 = vpop.f32.mrb[0].mxu0
      %v5741 = vadd.f32 0.0, %v5740
      %v5742 = vpop.f32.mrb[0].mxu0
      %5743 = vmatprep.mubr.f32.mxu0 0.0
      %5744 = vmatmul.mubr.f32.gmra.mrb[0].mxu0 %v5555
      %v5745 = vpop.f32.mrb[0].mxu0
      %v5746 = vadd.f32 0.0, %v5745
      %v5747 = vpop.f32.mrb[0].mxu0
      %5748 = vmatprep.mubr.f32.mxu0 0.0
      %5749 = vmatmul.mubr.f32.gmra.mrb[0].mxu0 %v5558
      %v5750 = vpop.f32.mrb[0].mxu0
      %v5751 = vadd.f32 0.0, %v5750
      %v5752 = vpop.f32.mrb[0].mxu0
      %5753 = vmatprep.mubr.f32.mxu0 0.0
      %5754 = vmatmul.mubr.f32.gmra.mrb[0].mxu0 %v5561
      %v5755 = vpop.f32.mrb[0].mxu0
      %v5756 = vadd.f32 0.0, %v5755
      %v5757 = vpop.f32.mrb[0].mxu0
      %5758 = vmatprep.mubr.f32.mxu0 0.0
      %5759 = vmatmul.mubr.f32.gmra.mrb[0].mxu0 %v5564
      %v5760 = vpop.f32.mrb[0].mxu0
      %v5761 = vadd.f32 0.0, %v5760
      %v5762 = vpop.f32.mrb[0].mxu0
      %5763 = vmatprep.mubr.f32.mxu0 0.0
      %5764 = vmatmul.mubr.f32.gmra.mrb[0].mxu0 %v5567
      %v5765 = vpop.f32.mrb[0].mxu0
      %v5766 = vadd.f32 0.0, %v5765
      %v5767 = vpop.f32.mrb[0].mxu0
      %5768 = vmatprep.mubr.f32.mxu0 0.0
      %5769 = vmatmul.mubr.f32.gmra.mrb[0].mxu0 %v5570
      %v5770 = vpop.f32.mrb[0].mxu0
      %v5771 = vadd.f32 0.0, %v5770
      %v5772 = vpop.f32.mrb[0].mxu0
      %5773 = vmatprep.mubr.f32.mxu0 0.0
      %5774 = vmatmul.mubr.f32.gmra.mrb[0].mxu0 %v5573
      %v5775 = vpop.f32.mrb[0].mxu0
      %v5776 = vadd.f32 0.0, %v5775
      %v5777 = vpop.f32.mrb[0].mxu0
      %5778 = vmatprep.mubr.f32.mxu0 0.0
      %5779 = vmatmul.mubr.f32.gmra.mrb[0].mxu0 %v5576
      %v5780 = vpop.f32.mrb[0].mxu0
      %v5781 = vadd.f32 0.0, %v5780
      %v5782 = vpop.f32.mrb[0].mxu0
      %5783 = vmatprep.mubr.f32.mxu0 0.0
      %5784 = vmatmul.mubr.f32.gmra.mrb[0].mxu0 %v5579
      %v5785 = vpop.f32.mrb[0].mxu0
      %v5786 = vadd.f32 0.0, %v5785
      %v5787 = vpop.f32.mrb[0].mxu0
      %5788 = vmatprep.mubr.f32.mxu0 0.0
      %5789 = vmatmul.mubr.f32.gmra.mrb[0].mxu0 %v5582
      %v5790 = vpop.f32.mrb[0].mxu0
      %v5791 = vadd.f32 0.0, %v5790
      %v5792 = vpop.f32.mrb[0].mxu0
      %5793 = vmatprep.mubr.f32.mxu0 0.0
      %5794 = vmatmul.mubr.f32.gmra.mrb[0].mxu0 %v5585
      %v5795 = vpop.f32.mrb[0].mxu0
      %v5796 = vadd.f32 0.0, %v5795
      %v5797 = vpop.f32.mrb[0].mxu0
      %5798 = vmatprep.mubr.f32.mxu0 0.0
      %5799 = vmatmul.mubr.f32.gmra.mrb[0].mxu0 %v5588
      %v5800 = vpop.f32.mrb[0].mxu0
      %v5801 = vadd.f32 0.0, %v5800
      %v5802 = vpop.f32.mrb[0].mxu0
      %5803 = vmatprep.mubr.f32.mxu0 0.0
      %5804 = vmatmul.mubr.f32.gmra.mrb[0].mxu0 %v5591
      %v5805 = vpop.f32.mrb[0].mxu0
      %v5806 = vadd.f32 0.0, %v5805
      %v5807 = vpop.f32.mrb[0].mxu0
      %5808 = vmatprep.mubr.f32.mxu0 0.0
      %5809 = vmatmul.mubr.f32.gmra.mrb[0].mxu0 %v5594
      %v5810 = vpop.f32.mrb[0].mxu0
      %v5811 = vadd.f32 0.0, %v5810
      %v5812 = vpop.f32.mrb[0].mxu0
      %5813 = vmatprep.mubr.f32.mxu0 0.0
      %5814 = vmatmul.mubr.f32.gmra.mrb[0].mxu0 %v5597
      %v5815 = vpop.f32.mrb[0].mxu0
      %v5816 = vadd.f32 0.0, %v5815
      %v5817 = vpop.f32.mrb[0].mxu0
      %5818 = vmatprep.mubr.f32.mxu0 0.0
      %5819 = vmatmul.mubr.f32.gmra.mrb[0].mxu0 %v5600
      %v5820 = vpop.f32.mrb[0].mxu0
      %v5821 = vadd.f32 0.0, %v5820
      %v5822 = vpop.f32.mrb[0].mxu0
      %5823 = vmatprep.mubr.f32.mxu0 0.0
      %5824 = vmatmul.mubr.f32.gmra.mrb[0].mxu0 %v5603
      %v5825 = vpop.f32.mrb[0].mxu0
      %v5826 = vadd.f32 0.0, %v5825
      %v5827 = vpop.f32.mrb[0].mxu0
      %5828 = vmatprep.mubr.f32.mxu0 0.0
      %5829 = vmatmul.mubr.f32.gmra.mrb[0].mxu0 %v5606
      %v5830 = vpop.f32.mrb[0].mxu0
      %v5831 = vadd.f32 0.0, %v5830
      %v5832 = vpop.f32.mrb[0].mxu0
      %5833 = vmatprep.mubr.f32.mxu0 0.0
      %5834 = vmatmul.mubr.f32.gmra.mrb[0].mxu0 %v5609
      %v5835 = vpop.f32.mrb[0].mxu0
      %v5836 = vadd.f32 0.0, %v5835
      %v5837 = vpop.f32.mrb[0].mxu0
      %5838 = vdwg.mxu0
      %v5839 = vadd.f32 %v5449, %v5681
      %v5840 = vadd.f32 %v5450, %v5686
      %v5841 = vadd.f32 %v5451, %v5691
      %v5842 = vadd.f32 %v5452, %v5696
      %v5843 = vadd.f32 %v5453, %v5701
      %v5844 = vadd.f32 %v5454, %v5706
      %v5845 = vadd.f32 %v5455, %v5711
      %v5846 = vadd.f32 %v5456, %v5716
      %v5847 = vadd.f32 %v5457, %v5721
      %v5848 = vadd.f32 %v5458, %v5726
      %v5849 = vadd.f32 %v5459, %v5731
      %v5850 = vadd.f32 %v5460, %v5736
      %v5851 = vadd.f32 %v5461, %v5741
      %v5852 = vadd.f32 %v5462, %v5746
      %v5853 = vadd.f32 %v5463, %v5751
      %v5854 = vadd.f32 %v5464, %v5756
      %v5855 = vadd.f32 %v5465, %v5761
      %v5856 = vadd.f32 %v5466, %v5766
      %v5857 = vadd.f32 %v5467, %v5771
      %v5858 = vadd.f32 %v5468, %v5776
      %v5859 = vadd.f32 %v5469, %v5781
      %v5860 = vadd.f32 %v5470, %v5786
      %v5861 = vadd.f32 %v5471, %v5791
      %v5862 = vadd.f32 %v5472, %v5796
      %v5863 = vadd.f32 %v5473, %v5801
      %v5864 = vadd.f32 %v5474, %v5806
      %v5865 = vadd.f32 %v5475, %v5811
      %v5866 = vadd.f32 %v5476, %v5816
      %v5867 = vadd.f32 %v5477, %v5821
      %v5868 = vadd.f32 %v5478, %v5826
      %v5869 = vadd.f32 %v5479, %v5831
      %v5870 = vadd.f32 %v5480, %v5836
      %v5871 = vld [vmem:[%s3953 + $0x9] sm:$0xff]
      %v5872 = vld [vmem:[%s3953 + $0x11] sm:$0xff]
      %v5873 = vld [vmem:[%s3953 + $0x29] sm:$0xff]
      %v5874 = vld [vmem:[%s3953 + $0x31] sm:$0xff]
      %v5875 = vld [vmem:[%s3953 + $0x49] sm:$0xff]
      %v5876 = vld [vmem:[%s3953 + $0x51] sm:$0xff]
      %v5877 = vld [vmem:[%s3953 + $0x69] sm:$0xff]
      %v5878 = vld [vmem:[%s3953 + $0x71] sm:$0xff]
      %v5879 = vld [vmem:[%s3953 + $0x89] sm:$0xff]
      %v5880 = vld [vmem:[%s3953 + $0x91] sm:$0xff]
      %v5881 = vld [vmem:[%s3953 + $0xa9] sm:$0xff]
      %v5882 = vld [vmem:[%s3953 + $0xb1] sm:$0xff]
      %v5883 = vld [vmem:[%s3953 + $0xc9] sm:$0xff]
      %v5884 = vld [vmem:[%s3953 + $0xd1] sm:$0xff]
      %v5885 = vld [vmem:[%s3953 + $0xe9] sm:$0xff]
      %v5886 = vld [vmem:[%s3953 + $0xf1] sm:$0xff]
      %v5887 = vld [vmem:[%s3953 + $0x109] sm:$0xff]
      %v5888 = vld [vmem:[%s3953 + $0x111] sm:$0xff]
      %v5889 = vld [vmem:[%s3953 + $0x129] sm:$0xff]
      %v5890 = vld [vmem:[%s3953 + $0x131] sm:$0xff]
      %v5891 = vld [vmem:[%s3953 + $0x149] sm:$0xff]
      %v5892 = vld [vmem:[%s3953 + $0x151] sm:$0xff]
      %v5893 = vld [vmem:[%s3953 + $0x169] sm:$0xff]
      %v5894 = vld [vmem:[%s3953 + $0x171] sm:$0xff]
      %v5895 = vld [vmem:[%s3953 + $0x189] sm:$0xff]
      %v5896 = vld [vmem:[%s3953 + $0x191] sm:$0xff]
      %v5897 = vld [vmem:[%s3953 + $0x1a9] sm:$0xff]
      %v5898 = vld [vmem:[%s3953 + $0x1b1] sm:$0xff]
      %v5899 = vld [vmem:[%s3953 + $0x1c9] sm:$0xff]
      %v5900 = vld [vmem:[%s3953 + $0x1d1] sm:$0xff]
      %v5901 = vld [vmem:[%s3953 + $0x1e9] sm:$0xff]
      %v5902 = vld [vmem:[%s3953 + $0x1f1] sm:$0xff]
      %s5903 = scalar_lea.vmem %s3, 20
      %v5904 = vld [vmem:[%s5903] sm:$0xf]
      %v5906 = vsel %vm225, %v5871, 0
      %v5909 = vsel %vm225, %v5872, 0
      %v5912 = vsel %vm225, %v5873, 0
      %v5915 = vsel %vm225, %v5874, 0
      %v5918 = vsel %vm225, %v5875, 0
      %v5921 = vsel %vm225, %v5876, 0
      %v5924 = vsel %vm225, %v5877, 0
      %v5927 = vsel %vm225, %v5878, 0
      %v5930 = vsel %vm225, %v5879, 0
      %v5933 = vsel %vm225, %v5880, 0
      %v5936 = vsel %vm225, %v5881, 0
      %v5939 = vsel %vm225, %v5882, 0
      %v5942 = vsel %vm225, %v5883, 0
      %v5945 = vsel %vm225, %v5884, 0
      %v5948 = vsel %vm225, %v5885, 0
      %v5951 = vsel %vm225, %v5886, 0
      %v5954 = vsel %vm225, %v5887, 0
      %v5957 = vsel %vm225, %v5888, 0
      %v5960 = vsel %vm225, %v5889, 0
      %v5963 = vsel %vm225, %v5890, 0
      %v5966 = vsel %vm225, %v5891, 0
      %v5969 = vsel %vm225, %v5892, 0
      %v5972 = vsel %vm225, %v5893, 0
      %v5975 = vsel %vm225, %v5894, 0
      %v5978 = vsel %vm225, %v5895, 0
      %v5981 = vsel %vm225, %v5896, 0
      %v5984 = vsel %vm225, %v5897, 0
      %v5987 = vsel %vm225, %v5898, 0
      %v5990 = vsel %vm225, %v5899, 0
      %v5993 = vsel %vm225, %v5900, 0
      %v5996 = vsel %vm225, %v5901, 0
      %v5999 = vsel %vm225, %v5902, 0
      %v6002 = vsel %vm598, %v5904, 0
      %6004 = vmatprep.subr.mxu0 0.0
      %6005 = vmatpush1.msra.mxu0 %v6002
      %6006 = vmatprep.subr.mxu0 0.0
      %6007 = vmatpush1.msra.mxu0 0.0
      %6008 = vmatprep.subr.mxu0 0.0
      %6009 = vmatpush1.msra.mxu0 0.0
      %6010 = vmatprep.subr.mxu0 0.0
      %6011 = vmatpush1.msra.mxu0 0.0
      %6012 = vmatprep.subr.mxu0 0.0
      %6013 = vmatpush1.msra.mxu0 0.0
      %6014 = vmatprep.subr.mxu0 0.0
      %6015 = vmatpush1.msra.mxu0 0.0
      %6016 = vmatprep.subr.mxu0 0.0
      %6017 = vmatpush1.msra.mxu0 0.0
      %6018 = vmatprep.subr.mxu0 0.0
      %6019 = vmatpush1.msra.mxu0 0.0
      %6020 = vmatprep.subr.mxu0 0.0
      %6021 = vmatpush1.msra.mxu0 0.0
      %6022 = vmatprep.subr.mxu0 0.0
      %6023 = vmatpush1.msra.mxu0 0.0
      %6024 = vmatprep.subr.mxu0 0.0
      %6025 = vmatpush1.msra.mxu0 0.0
      %6026 = vmatprep.subr.mxu0 0.0
      %6027 = vmatpush1.msra.mxu0 0.0
      %6028 = vmatprep.subr.mxu0 0.0
      %6029 = vmatpush1.msra.mxu0 0.0
      %6030 = vmatprep.subr.mxu0 0.0
      %6031 = vmatpush1.msra.mxu0 0.0
      %6032 = vmatprep.subr.mxu0 0.0
      %6033 = vmatpush1.msra.mxu0 0.0
      %6034 = vmatprep.subr.mxu0 0.0
      %6035 = vmatpush1.msra.mxu0 0.0
      %6036 = vmatprep.subr.mxu0 0.0
      %6037 = vmatpush1.msra.mxu0 0.0
      %6038 = vmatprep.subr.mxu0 0.0
      %6039 = vmatpush1.msra.mxu0 0.0
      %6040 = vmatprep.subr.mxu0 0.0
      %6041 = vmatpush1.msra.mxu0 0.0
      %6042 = vmatprep.subr.mxu0 0.0
      %6043 = vmatpush1.msra.mxu0 0.0
      %6044 = vmatprep.subr.mxu0 0.0
      %6045 = vmatpush1.msra.mxu0 0.0
      %6046 = vmatprep.subr.mxu0 0.0
      %6047 = vmatpush1.msra.mxu0 0.0
      %6048 = vmatprep.subr.mxu0 0.0
      %6049 = vmatpush1.msra.mxu0 0.0
      %6050 = vmatprep.subr.mxu0 0.0
      %6051 = vmatpush1.msra.mxu0 0.0
      %6052 = vmatprep.subr.mxu0 0.0
      %6053 = vmatpush1.msra.mxu0 0.0
      %6054 = vmatprep.subr.mxu0 0.0
      %6055 = vmatpush1.msra.mxu0 0.0
      %6056 = vmatprep.subr.mxu0 0.0
      %6057 = vmatpush1.msra.mxu0 0.0
      %6058 = vmatprep.subr.mxu0 0.0
      %6059 = vmatpush1.msra.mxu0 0.0
      %6060 = vmatprep.subr.mxu0 0.0
      %6061 = vmatpush1.msra.mxu0 0.0
      %6062 = vmatprep.subr.mxu0 0.0
      %6063 = vmatpush1.msra.mxu0 0.0
      %6064 = vmatprep.subr.mxu0 0.0
      %6065 = vmatpush1.msra.mxu0 0.0
      %6066 = vmatprep.subr.mxu0 0.0
      %6067 = vmatpush1.msra.mxu0 0.0
      %6068 = vmatprep.mubr.f32.mxu0 0.0
      %6069 = vmatmul.mubr.f32.gmra.mrb[0].mxu0 %v5906
      %v6070 = vpop.f32.mrb[0].mxu0
      %v6071 = vadd.f32 0.0, %v6070
      %v6072 = vpop.f32.mrb[0].mxu0
      %6073 = vmatprep.mubr.f32.mxu0 0.0
      %6074 = vmatmul.mubr.f32.gmra.mrb[0].mxu0 %v5909
      %v6075 = vpop.f32.mrb[0].mxu0
      %v6076 = vadd.f32 0.0, %v6075
      %v6077 = vpop.f32.mrb[0].mxu0
      %6078 = vmatprep.mubr.f32.mxu0 0.0
      %6079 = vmatmul.mubr.f32.gmra.mrb[0].mxu0 %v5912
      %v6080 = vpop.f32.mrb[0].mxu0
      %v6081 = vadd.f32 0.0, %v6080
      %v6082 = vpop.f32.mrb[0].mxu0
      %6083 = vmatprep.mubr.f32.mxu0 0.0
      %6084 = vmatmul.mubr.f32.gmra.mrb[0].mxu0 %v5915
      %v6085 = vpop.f32.mrb[0].mxu0
      %v6086 = vadd.f32 0.0, %v6085
      %v6087 = vpop.f32.mrb[0].mxu0
      %6088 = vmatprep.mubr.f32.mxu0 0.0
      %6089 = vmatmul.mubr.f32.gmra.mrb[0].mxu0 %v5918
      %v6090 = vpop.f32.mrb[0].mxu0
      %v6091 = vadd.f32 0.0, %v6090
      %v6092 = vpop.f32.mrb[0].mxu0
      %6093 = vmatprep.mubr.f32.mxu0 0.0
      %6094 = vmatmul.mubr.f32.gmra.mrb[0].mxu0 %v5921
      %v6095 = vpop.f32.mrb[0].mxu0
      %v6096 = vadd.f32 0.0, %v6095
      %v6097 = vpop.f32.mrb[0].mxu0
      %6098 = vmatprep.mubr.f32.mxu0 0.0
      %6099 = vmatmul.mubr.f32.gmra.mrb[0].mxu0 %v5924
      %v6100 = vpop.f32.mrb[0].mxu0
      %v6101 = vadd.f32 0.0, %v6100
      %v6102 = vpop.f32.mrb[0].mxu0
      %6103 = vmatprep.mubr.f32.mxu0 0.0
      %6104 = vmatmul.mubr.f32.gmra.mrb[0].mxu0 %v5927
      %v6105 = vpop.f32.mrb[0].mxu0
      %v6106 = vadd.f32 0.0, %v6105
      %v6107 = vpop.f32.mrb[0].mxu0
      %6108 = vmatprep.mubr.f32.mxu0 0.0
      %6109 = vmatmul.mubr.f32.gmra.mrb[0].mxu0 %v5930
      %v6110 = vpop.f32.mrb[0].mxu0
      %v6111 = vadd.f32 0.0, %v6110
      %v6112 = vpop.f32.mrb[0].mxu0
      %6113 = vmatprep.mubr.f32.mxu0 0.0
      %6114 = vmatmul.mubr.f32.gmra.mrb[0].mxu0 %v5933
      %v6115 = vpop.f32.mrb[0].mxu0
      %v6116 = vadd.f32 0.0, %v6115
      %v6117 = vpop.f32.mrb[0].mxu0
      %6118 = vmatprep.mubr.f32.mxu0 0.0
      %6119 = vmatmul.mubr.f32.gmra.mrb[0].mxu0 %v5936
      %v6120 = vpop.f32.mrb[0].mxu0
      %v6121 = vadd.f32 0.0, %v6120
      %v6122 = vpop.f32.mrb[0].mxu0
      %6123 = vmatprep.mubr.f32.mxu0 0.0
      %6124 = vmatmul.mubr.f32.gmra.mrb[0].mxu0 %v5939
      %v6125 = vpop.f32.mrb[0].mxu0
      %v6126 = vadd.f32 0.0, %v6125
      %v6127 = vpop.f32.mrb[0].mxu0
      %6128 = vmatprep.mubr.f32.mxu0 0.0
      %6129 = vmatmul.mubr.f32.gmra.mrb[0].mxu0 %v5942
      %v6130 = vpop.f32.mrb[0].mxu0
      %v6131 = vadd.f32 0.0, %v6130
      %v6132 = vpop.f32.mrb[0].mxu0
      %6133 = vmatprep.mubr.f32.mxu0 0.0
      %6134 = vmatmul.mubr.f32.gmra.mrb[0].mxu0 %v5945
      %v6135 = vpop.f32.mrb[0].mxu0
      %v6136 = vadd.f32 0.0, %v6135
      %v6137 = vpop.f32.mrb[0].mxu0
      %6138 = vmatprep.mubr.f32.mxu0 0.0
      %6139 = vmatmul.mubr.f32.gmra.mrb[0].mxu0 %v5948
      %v6140 = vpop.f32.mrb[0].mxu0
      %v6141 = vadd.f32 0.0, %v6140
      %v6142 = vpop.f32.mrb[0].mxu0
      %6143 = vmatprep.mubr.f32.mxu0 0.0
      %6144 = vmatmul.mubr.f32.gmra.mrb[0].mxu0 %v5951
      %v6145 = vpop.f32.mrb[0].mxu0
      %v6146 = vadd.f32 0.0, %v6145
      %v6147 = vpop.f32.mrb[0].mxu0
      %6148 = vmatprep.mubr.f32.mxu0 0.0
      %6149 = vmatmul.mubr.f32.gmra.mrb[0].mxu0 %v5954
      %v6150 = vpop.f32.mrb[0].mxu0
      %v6151 = vadd.f32 0.0, %v6150
      %v6152 = vpop.f32.mrb[0].mxu0
      %6153 = vmatprep.mubr.f32.mxu0 0.0
      %6154 = vmatmul.mubr.f32.gmra.mrb[0].mxu0 %v5957
      %v6155 = vpop.f32.mrb[0].mxu0
      %v6156 = vadd.f32 0.0, %v6155
      %v6157 = vpop.f32.mrb[0].mxu0
      %6158 = vmatprep.mubr.f32.mxu0 0.0
      %6159 = vmatmul.mubr.f32.gmra.mrb[0].mxu0 %v5960
      %v6160 = vpop.f32.mrb[0].mxu0
      %v6161 = vadd.f32 0.0, %v6160
      %v6162 = vpop.f32.mrb[0].mxu0
      %6163 = vmatprep.mubr.f32.mxu0 0.0
      %6164 = vmatmul.mubr.f32.gmra.mrb[0].mxu0 %v5963
      %v6165 = vpop.f32.mrb[0].mxu0
      %v6166 = vadd.f32 0.0, %v6165
      %v6167 = vpop.f32.mrb[0].mxu0
      %6168 = vmatprep.mubr.f32.mxu0 0.0
      %6169 = vmatmul.mubr.f32.gmra.mrb[0].mxu0 %v5966
      %v6170 = vpop.f32.mrb[0].mxu0
      %v6171 = vadd.f32 0.0, %v6170
      %v6172 = vpop.f32.mrb[0].mxu0
      %6173 = vmatprep.mubr.f32.mxu0 0.0
      %6174 = vmatmul.mubr.f32.gmra.mrb[0].mxu0 %v5969
      %v6175 = vpop.f32.mrb[0].mxu0
      %v6176 = vadd.f32 0.0, %v6175
      %v6177 = vpop.f32.mrb[0].mxu0
      %6178 = vmatprep.mubr.f32.mxu0 0.0
      %6179 = vmatmul.mubr.f32.gmra.mrb[0].mxu0 %v5972
      %v6180 = vpop.f32.mrb[0].mxu0
      %v6181 = vadd.f32 0.0, %v6180
      %v6182 = vpop.f32.mrb[0].mxu0
      %6183 = vmatprep.mubr.f32.mxu0 0.0
      %6184 = vmatmul.mubr.f32.gmra.mrb[0].mxu0 %v5975
      %v6185 = vpop.f32.mrb[0].mxu0
      %v6186 = vadd.f32 0.0, %v6185
      %v6187 = vpop.f32.mrb[0].mxu0
      %6188 = vmatprep.mubr.f32.mxu0 0.0
      %6189 = vmatmul.mubr.f32.gmra.mrb[0].mxu0 %v5978
      %v6190 = vpop.f32.mrb[0].mxu0
      %v6191 = vadd.f32 0.0, %v6190
      %v6192 = vpop.f32.mrb[0].mxu0
      %6193 = vmatprep.mubr.f32.mxu0 0.0
      %6194 = vmatmul.mubr.f32.gmra.mrb[0].mxu0 %v5981
      %v6195 = vpop.f32.mrb[0].mxu0
      %v6196 = vadd.f32 0.0, %v6195
      %v6197 = vpop.f32.mrb[0].mxu0
      %6198 = vmatprep.mubr.f32.mxu0 0.0
      %6199 = vmatmul.mubr.f32.gmra.mrb[0].mxu0 %v5984
      %v6200 = vpop.f32.mrb[0].mxu0
      %v6201 = vadd.f32 0.0, %v6200
      %v6202 = vpop.f32.mrb[0].mxu0
      %6203 = vmatprep.mubr.f32.mxu0 0.0
      %6204 = vmatmul.mubr.f32.gmra.mrb[0].mxu0 %v5987
      %v6205 = vpop.f32.mrb[0].mxu0
      %v6206 = vadd.f32 0.0, %v6205
      %v6207 = vpop.f32.mrb[0].mxu0
      %6208 = vmatprep.mubr.f32.mxu0 0.0
      %6209 = vmatmul.mubr.f32.gmra.mrb[0].mxu0 %v5990
      %v6210 = vpop.f32.mrb[0].mxu0
      %v6211 = vadd.f32 0.0, %v6210
      %v6212 = vpop.f32.mrb[0].mxu0
      %6213 = vmatprep.mubr.f32.mxu0 0.0
      %6214 = vmatmul.mubr.f32.gmra.mrb[0].mxu0 %v5993
      %v6215 = vpop.f32.mrb[0].mxu0
      %v6216 = vadd.f32 0.0, %v6215
      %v6217 = vpop.f32.mrb[0].mxu0
      %6218 = vmatprep.mubr.f32.mxu0 0.0
      %6219 = vmatmul.mubr.f32.gmra.mrb[0].mxu0 %v5996
      %v6220 = vpop.f32.mrb[0].mxu0
      %v6221 = vadd.f32 0.0, %v6220
      %v6222 = vpop.f32.mrb[0].mxu0
      %6223 = vmatprep.mubr.f32.mxu0 0.0
      %6224 = vmatmul.mubr.f32.gmra.mrb[0].mxu0 %v5999
      %v6225 = vpop.f32.mrb[0].mxu0
      %v6226 = vadd.f32 0.0, %v6225
      %v6227 = vpop.f32.mrb[0].mxu0
      %6228 = vdwg.mxu0
      %v6229 = vadd.f32 %v5839, %v6071
      %v6230 = vadd.f32 %v5840, %v6076
      %v6231 = vadd.f32 %v5841, %v6081
      %v6232 = vadd.f32 %v5842, %v6086
      %v6233 = vadd.f32 %v5843, %v6091
      %v6234 = vadd.f32 %v5844, %v6096
      %v6235 = vadd.f32 %v5845, %v6101
      %v6236 = vadd.f32 %v5846, %v6106
      %v6237 = vadd.f32 %v5847, %v6111
      %v6238 = vadd.f32 %v5848, %v6116
      %v6239 = vadd.f32 %v5849, %v6121
      %v6240 = vadd.f32 %v5850, %v6126
      %v6241 = vadd.f32 %v5851, %v6131
      %v6242 = vadd.f32 %v5852, %v6136
      %v6243 = vadd.f32 %v5853, %v6141
      %v6244 = vadd.f32 %v5854, %v6146
      %v6245 = vadd.f32 %v5855, %v6151
      %v6246 = vadd.f32 %v5856, %v6156
      %v6247 = vadd.f32 %v5857, %v6161
      %v6248 = vadd.f32 %v5858, %v6166
      %v6249 = vadd.f32 %v5859, %v6171
      %v6250 = vadd.f32 %v5860, %v6176
      %v6251 = vadd.f32 %v5861, %v6181
      %v6252 = vadd.f32 %v5862, %v6186
      %v6253 = vadd.f32 %v5863, %v6191
      %v6254 = vadd.f32 %v5864, %v6196
      %v6255 = vadd.f32 %v5865, %v6201
      %v6256 = vadd.f32 %v5866, %v6206
      %v6257 = vadd.f32 %v5867, %v6211
      %v6258 = vadd.f32 %v5868, %v6216
      %v6259 = vadd.f32 %v5869, %v6221
      %v6260 = vadd.f32 %v5870, %v6226
      %s6261 = scalar_lea.vmem [#allocation3], 64
      %v6262 = vld [vmem:[%s6261 + $0x7] sm:$0xff]
      %v6263 = vld [vmem:[%s6261 + $0xf] sm:$0xff]
      %v6264 = vld [vmem:[%s6261 + $0x27] sm:$0xff]
      %v6265 = vld [vmem:[%s6261 + $0x2f] sm:$0xff]
      %v6266 = vld [vmem:[%s6261 + $0x47] sm:$0xff]
      %v6267 = vld [vmem:[%s6261 + $0x4f] sm:$0xff]
      %v6268 = vld [vmem:[%s6261 + $0x67] sm:$0xff]
      %v6269 = vld [vmem:[%s6261 + $0x6f] sm:$0xff]
      %v6270 = vld [vmem:[%s6261 + $0x87] sm:$0xff]
      %v6271 = vld [vmem:[%s6261 + $0x8f] sm:$0xff]
      %v6272 = vld [vmem:[%s6261 + $0xa7] sm:$0xff]
      %v6273 = vld [vmem:[%s6261 + $0xaf] sm:$0xff]
      %v6274 = vld [vmem:[%s6261 + $0xc7] sm:$0xff]
      %v6275 = vld [vmem:[%s6261 + $0xcf] sm:$0xff]
      %v6276 = vld [vmem:[%s6261 + $0xe7] sm:$0xff]
      %v6277 = vld [vmem:[%s6261 + $0xef] sm:$0xff]
      %v6278 = vld [vmem:[%s6261 + $0x107] sm:$0xff]
      %v6279 = vld [vmem:[%s6261 + $0x10f] sm:$0xff]
      %v6280 = vld [vmem:[%s6261 + $0x127] sm:$0xff]
      %v6281 = vld [vmem:[%s6261 + $0x12f] sm:$0xff]
      %v6282 = vld [vmem:[%s6261 + $0x147] sm:$0xff]
      %v6283 = vld [vmem:[%s6261 + $0x14f] sm:$0xff]
      %v6284 = vld [vmem:[%s6261 + $0x167] sm:$0xff]
      %v6285 = vld [vmem:[%s6261 + $0x16f] sm:$0xff]
      %v6286 = vld [vmem:[%s6261 + $0x187] sm:$0xff]
      %v6287 = vld [vmem:[%s6261 + $0x18f] sm:$0xff]
      %v6288 = vld [vmem:[%s6261 + $0x1a7] sm:$0xff]
      %v6289 = vld [vmem:[%s6261 + $0x1af] sm:$0xff]
      %v6290 = vld [vmem:[%s6261 + $0x1c7] sm:$0xff]
      %v6291 = vld [vmem:[%s6261 + $0x1cf] sm:$0xff]
      %v6292 = vld [vmem:[%s6261 + $0x1e7] sm:$0xff]
      %v6293 = vld [vmem:[%s6261 + $0x1ef] sm:$0xff]
      %s6294 = scalar_lea.vmem %s3, 24
      %v6295 = vld [vmem:[%s6294] sm:$0xf]
      %v6297 = vsel %vm225, %v6262, 0
      %v6300 = vsel %vm225, %v6263, 0
      %v6303 = vsel %vm225, %v6264, 0
      %v6306 = vsel %vm225, %v6265, 0
      %v6309 = vsel %vm225, %v6266, 0
      %v6312 = vsel %vm225, %v6267, 0
      %v6315 = vsel %vm225, %v6268, 0
      %v6318 = vsel %vm225, %v6269, 0
      %v6321 = vsel %vm225, %v6270, 0
      %v6324 = vsel %vm225, %v6271, 0
      %v6327 = vsel %vm225, %v6272, 0
      %v6330 = vsel %vm225, %v6273, 0
      %v6333 = vsel %vm225, %v6274, 0
      %v6336 = vsel %vm225, %v6275, 0
      %v6339 = vsel %vm225, %v6276, 0
      %v6342 = vsel %vm225, %v6277, 0
      %v6345 = vsel %vm225, %v6278, 0
      %v6348 = vsel %vm225, %v6279, 0
      %v6351 = vsel %vm225, %v6280, 0
      %v6354 = vsel %vm225, %v6281, 0
      %v6357 = vsel %vm225, %v6282, 0
      %v6360 = vsel %vm225, %v6283, 0
      %v6363 = vsel %vm225, %v6284, 0
      %v6366 = vsel %vm225, %v6285, 0
      %v6369 = vsel %vm225, %v6286, 0
      %v6372 = vsel %vm225, %v6287, 0
      %v6375 = vsel %vm225, %v6288, 0
      %v6378 = vsel %vm225, %v6289, 0
      %v6381 = vsel %vm225, %v6290, 0
      %v6384 = vsel %vm225, %v6291, 0
      %v6387 = vsel %vm225, %v6292, 0
      %v6390 = vsel %vm225, %v6293, 0
      %v6393 = vsel %vm598, %v6295, 0
      %6395 = vmatprep.subr.mxu0 0.0
      %6396 = vmatpush1.msra.mxu0 %v6393
      %6397 = vmatprep.subr.mxu0 0.0
      %6398 = vmatpush1.msra.mxu0 0.0
      %6399 = vmatprep.subr.mxu0 0.0
      %6400 = vmatpush1.msra.mxu0 0.0
      %6401 = vmatprep.subr.mxu0 0.0
      %6402 = vmatpush1.msra.mxu0 0.0
      %6403 = vmatprep.subr.mxu0 0.0
      %6404 = vmatpush1.msra.mxu0 0.0
      %6405 = vmatprep.subr.mxu0 0.0
      %6406 = vmatpush1.msra.mxu0 0.0
      %6407 = vmatprep.subr.mxu0 0.0
      %6408 = vmatpush1.msra.mxu0 0.0
      %6409 = vmatprep.subr.mxu0 0.0
      %6410 = vmatpush1.msra.mxu0 0.0
      %6411 = vmatprep.subr.mxu0 0.0
      %6412 = vmatpush1.msra.mxu0 0.0
      %6413 = vmatprep.subr.mxu0 0.0
      %6414 = vmatpush1.msra.mxu0 0.0
      %6415 = vmatprep.subr.mxu0 0.0
      %6416 = vmatpush1.msra.mxu0 0.0
      %6417 = vmatprep.subr.mxu0 0.0
      %6418 = vmatpush1.msra.mxu0 0.0
      %6419 = vmatprep.subr.mxu0 0.0
      %6420 = vmatpush1.msra.mxu0 0.0
      %6421 = vmatprep.subr.mxu0 0.0
      %6422 = vmatpush1.msra.mxu0 0.0
      %6423 = vmatprep.subr.mxu0 0.0
      %6424 = vmatpush1.msra.mxu0 0.0
      %6425 = vmatprep.subr.mxu0 0.0
      %6426 = vmatpush1.msra.mxu0 0.0
      %6427 = vmatprep.subr.mxu0 0.0
      %6428 = vmatpush1.msra.mxu0 0.0
      %6429 = vmatprep.subr.mxu0 0.0
      %6430 = vmatpush1.msra.mxu0 0.0
      %6431 = vmatprep.subr.mxu0 0.0
      %6432 = vmatpush1.msra.mxu0 0.0
      %6433 = vmatprep.subr.mxu0 0.0
      %6434 = vmatpush1.msra.mxu0 0.0
      %6435 = vmatprep.subr.mxu0 0.0
      %6436 = vmatpush1.msra.mxu0 0.0
      %6437 = vmatprep.subr.mxu0 0.0
      %6438 = vmatpush1.msra.mxu0 0.0
      %6439 = vmatprep.subr.mxu0 0.0
      %6440 = vmatpush1.msra.mxu0 0.0
      %6441 = vmatprep.subr.mxu0 0.0
      %6442 = vmatpush1.msra.mxu0 0.0
      %6443 = vmatprep.subr.mxu0 0.0
      %6444 = vmatpush1.msra.mxu0 0.0
      %6445 = vmatprep.subr.mxu0 0.0
      %6446 = vmatpush1.msra.mxu0 0.0
      %6447 = vmatprep.subr.mxu0 0.0
      %6448 = vmatpush1.msra.mxu0 0.0
      %6449 = vmatprep.subr.mxu0 0.0
      %6450 = vmatpush1.msra.mxu0 0.0
      %6451 = vmatprep.subr.mxu0 0.0
      %6452 = vmatpush1.msra.mxu0 0.0
      %6453 = vmatprep.subr.mxu0 0.0
      %6454 = vmatpush1.msra.mxu0 0.0
      %6455 = vmatprep.subr.mxu0 0.0
      %6456 = vmatpush1.msra.mxu0 0.0
      %6457 = vmatprep.subr.mxu0 0.0
      %6458 = vmatpush1.msra.mxu0 0.0
      %6459 = vmatprep.mubr.f32.mxu0 0.0
      %6460 = vmatmul.mubr.f32.gmra.mrb[0].mxu0 %v6297
      %v6461 = vpop.f32.mrb[0].mxu0
      %v6462 = vadd.f32 0.0, %v6461
      %v6463 = vpop.f32.mrb[0].mxu0
      %6464 = vmatprep.mubr.f32.mxu0 0.0
      %6465 = vmatmul.mubr.f32.gmra.mrb[0].mxu0 %v6300
      %v6466 = vpop.f32.mrb[0].mxu0
      %v6467 = vadd.f32 0.0, %v6466
      %v6468 = vpop.f32.mrb[0].mxu0
      %6469 = vmatprep.mubr.f32.mxu0 0.0
      %6470 = vmatmul.mubr.f32.gmra.mrb[0].mxu0 %v6303
      %v6471 = vpop.f32.mrb[0].mxu0
      %v6472 = vadd.f32 0.0, %v6471
      %v6473 = vpop.f32.mrb[0].mxu0
      %6474 = vmatprep.mubr.f32.mxu0 0.0
      %6475 = vmatmul.mubr.f32.gmra.mrb[0].mxu0 %v6306
      %v6476 = vpop.f32.mrb[0].mxu0
      %v6477 = vadd.f32 0.0, %v6476
      %v6478 = vpop.f32.mrb[0].mxu0
      %6479 = vmatprep.mubr.f32.mxu0 0.0
      %6480 = vmatmul.mubr.f32.gmra.mrb[0].mxu0 %v6309
      %v6481 = vpop.f32.mrb[0].mxu0
      %v6482 = vadd.f32 0.0, %v6481
      %v6483 = vpop.f32.mrb[0].mxu0
      %6484 = vmatprep.mubr.f32.mxu0 0.0
      %6485 = vmatmul.mubr.f32.gmra.mrb[0].mxu0 %v6312
      %v6486 = vpop.f32.mrb[0].mxu0
      %v6487 = vadd.f32 0.0, %v6486
      %v6488 = vpop.f32.mrb[0].mxu0
      %6489 = vmatprep.mubr.f32.mxu0 0.0
      %6490 = vmatmul.mubr.f32.gmra.mrb[0].mxu0 %v6315
      %v6491 = vpop.f32.mrb[0].mxu0
      %v6492 = vadd.f32 0.0, %v6491
      %v6493 = vpop.f32.mrb[0].mxu0
      %6494 = vmatprep.mubr.f32.mxu0 0.0
      %6495 = vmatmul.mubr.f32.gmra.mrb[0].mxu0 %v6318
      %v6496 = vpop.f32.mrb[0].mxu0
      %v6497 = vadd.f32 0.0, %v6496
      %v6498 = vpop.f32.mrb[0].mxu0
      %6499 = vmatprep.mubr.f32.mxu0 0.0
      %6500 = vmatmul.mubr.f32.gmra.mrb[0].mxu0 %v6321
      %v6501 = vpop.f32.mrb[0].mxu0
      %v6502 = vadd.f32 0.0, %v6501
      %v6503 = vpop.f32.mrb[0].mxu0
      %6504 = vmatprep.mubr.f32.mxu0 0.0
      %6505 = vmatmul.mubr.f32.gmra.mrb[0].mxu0 %v6324
      %v6506 = vpop.f32.mrb[0].mxu0
      %v6507 = vadd.f32 0.0, %v6506
      %v6508 = vpop.f32.mrb[0].mxu0
      %6509 = vmatprep.mubr.f32.mxu0 0.0
      %6510 = vmatmul.mubr.f32.gmra.mrb[0].mxu0 %v6327
      %v6511 = vpop.f32.mrb[0].mxu0
      %v6512 = vadd.f32 0.0, %v6511
      %v6513 = vpop.f32.mrb[0].mxu0
      %6514 = vmatprep.mubr.f32.mxu0 0.0
      %6515 = vmatmul.mubr.f32.gmra.mrb[0].mxu0 %v6330
      %v6516 = vpop.f32.mrb[0].mxu0
      %v6517 = vadd.f32 0.0, %v6516
      %v6518 = vpop.f32.mrb[0].mxu0
      %6519 = vmatprep.mubr.f32.mxu0 0.0
      %6520 = vmatmul.mubr.f32.gmra.mrb[0].mxu0 %v6333
      %v6521 = vpop.f32.mrb[0].mxu0
      %v6522 = vadd.f32 0.0, %v6521
      %v6523 = vpop.f32.mrb[0].mxu0
      %6524 = vmatprep.mubr.f32.mxu0 0.0
      %6525 = vmatmul.mubr.f32.gmra.mrb[0].mxu0 %v6336
      %v6526 = vpop.f32.mrb[0].mxu0
      %v6527 = vadd.f32 0.0, %v6526
      %v6528 = vpop.f32.mrb[0].mxu0
      %6529 = vmatprep.mubr.f32.mxu0 0.0
      %6530 = vmatmul.mubr.f32.gmra.mrb[0].mxu0 %v6339
      %v6531 = vpop.f32.mrb[0].mxu0
      %v6532 = vadd.f32 0.0, %v6531
      %v6533 = vpop.f32.mrb[0].mxu0
      %6534 = vmatprep.mubr.f32.mxu0 0.0
      %6535 = vmatmul.mubr.f32.gmra.mrb[0].mxu0 %v6342
      %v6536 = vpop.f32.mrb[0].mxu0
      %v6537 = vadd.f32 0.0, %v6536
      %v6538 = vpop.f32.mrb[0].mxu0
      %6539 = vmatprep.mubr.f32.mxu0 0.0
      %6540 = vmatmul.mubr.f32.gmra.mrb[0].mxu0 %v6345
      %v6541 = vpop.f32.mrb[0].mxu0
      %v6542 = vadd.f32 0.0, %v6541
      %v6543 = vpop.f32.mrb[0].mxu0
      %6544 = vmatprep.mubr.f32.mxu0 0.0
      %6545 = vmatmul.mubr.f32.gmra.mrb[0].mxu0 %v6348
      %v6546 = vpop.f32.mrb[0].mxu0
      %v6547 = vadd.f32 0.0, %v6546
      %v6548 = vpop.f32.mrb[0].mxu0
      %6549 = vmatprep.mubr.f32.mxu0 0.0
      %6550 = vmatmul.mubr.f32.gmra.mrb[0].mxu0 %v6351
      %v6551 = vpop.f32.mrb[0].mxu0
      %v6552 = vadd.f32 0.0, %v6551
      %v6553 = vpop.f32.mrb[0].mxu0
      %6554 = vmatprep.mubr.f32.mxu0 0.0
      %6555 = vmatmul.mubr.f32.gmra.mrb[0].mxu0 %v6354
      %v6556 = vpop.f32.mrb[0].mxu0
      %v6557 = vadd.f32 0.0, %v6556
      %v6558 = vpop.f32.mrb[0].mxu0
      %6559 = vmatprep.mubr.f32.mxu0 0.0
      %6560 = vmatmul.mubr.f32.gmra.mrb[0].mxu0 %v6357
      %v6561 = vpop.f32.mrb[0].mxu0
      %v6562 = vadd.f32 0.0, %v6561
      %v6563 = vpop.f32.mrb[0].mxu0
      %6564 = vmatprep.mubr.f32.mxu0 0.0
      %6565 = vmatmul.mubr.f32.gmra.mrb[0].mxu0 %v6360
      %v6566 = vpop.f32.mrb[0].mxu0
      %v6567 = vadd.f32 0.0, %v6566
      %v6568 = vpop.f32.mrb[0].mxu0
      %6569 = vmatprep.mubr.f32.mxu0 0.0
      %6570 = vmatmul.mubr.f32.gmra.mrb[0].mxu0 %v6363
      %v6571 = vpop.f32.mrb[0].mxu0
      %v6572 = vadd.f32 0.0, %v6571
      %v6573 = vpop.f32.mrb[0].mxu0
      %6574 = vmatprep.mubr.f32.mxu0 0.0
      %6575 = vmatmul.mubr.f32.gmra.mrb[0].mxu0 %v6366
      %v6576 = vpop.f32.mrb[0].mxu0
      %v6577 = vadd.f32 0.0, %v6576
      %v6578 = vpop.f32.mrb[0].mxu0
      %6579 = vmatprep.mubr.f32.mxu0 0.0
      %6580 = vmatmul.mubr.f32.gmra.mrb[0].mxu0 %v6369
      %v6581 = vpop.f32.mrb[0].mxu0
      %v6582 = vadd.f32 0.0, %v6581
      %v6583 = vpop.f32.mrb[0].mxu0
      %6584 = vmatprep.mubr.f32.mxu0 0.0
      %6585 = vmatmul.mubr.f32.gmra.mrb[0].mxu0 %v6372
      %v6586 = vpop.f32.mrb[0].mxu0
      %v6587 = vadd.f32 0.0, %v6586
      %v6588 = vpop.f32.mrb[0].mxu0
      %6589 = vmatprep.mubr.f32.mxu0 0.0
      %6590 = vmatmul.mubr.f32.gmra.mrb[0].mxu0 %v6375
      %v6591 = vpop.f32.mrb[0].mxu0
      %v6592 = vadd.f32 0.0, %v6591
      %v6593 = vpop.f32.mrb[0].mxu0
      %6594 = vmatprep.mubr.f32.mxu0 0.0
      %6595 = vmatmul.mubr.f32.gmra.mrb[0].mxu0 %v6378
      %v6596 = vpop.f32.mrb[0].mxu0
      %v6597 = vadd.f32 0.0, %v6596
      %v6598 = vpop.f32.mrb[0].mxu0
      %6599 = vmatprep.mubr.f32.mxu0 0.0
      %6600 = vmatmul.mubr.f32.gmra.mrb[0].mxu0 %v6381
      %v6601 = vpop.f32.mrb[0].mxu0
      %v6602 = vadd.f32 0.0, %v6601
      %v6603 = vpop.f32.mrb[0].mxu0
      %6604 = vmatprep.mubr.f32.mxu0 0.0
      %6605 = vmatmul.mubr.f32.gmra.mrb[0].mxu0 %v6384
      %v6606 = vpop.f32.mrb[0].mxu0
      %v6607 = vadd.f32 0.0, %v6606
      %v6608 = vpop.f32.mrb[0].mxu0
      %6609 = vmatprep.mubr.f32.mxu0 0.0
      %6610 = vmatmul.mubr.f32.gmra.mrb[0].mxu0 %v6387
      %v6611 = vpop.f32.mrb[0].mxu0
      %v6612 = vadd.f32 0.0, %v6611
      %v6613 = vpop.f32.mrb[0].mxu0
      %6614 = vmatprep.mubr.f32.mxu0 0.0
      %6615 = vmatmul.mubr.f32.gmra.mrb[0].mxu0 %v6390
      %v6616 = vpop.f32.mrb[0].mxu0
      %v6617 = vadd.f32 0.0, %v6616
      %v6618 = vpop.f32.mrb[0].mxu0
      %6619 = vdwg.mxu0
      %v6620 = vadd.f32 %v6229, %v6462
      %v6621 = vadd.f32 %v6230, %v6467
      %v6622 = vadd.f32 %v6231, %v6472
      %v6623 = vadd.f32 %v6232, %v6477
      %v6624 = vadd.f32 %v6233, %v6482
      %v6625 = vadd.f32 %v6234, %v6487
      %v6626 = vadd.f32 %v6235, %v6492
      %v6627 = vadd.f32 %v6236, %v6497
      %v6628 = vadd.f32 %v6237, %v6502
      %v6629 = vadd.f32 %v6238, %v6507
      %v6630 = vadd.f32 %v6239, %v6512
      %v6631 = vadd.f32 %v6240, %v6517
      %v6632 = vadd.f32 %v6241, %v6522
      %v6633 = vadd.f32 %v6242, %v6527
      %v6634 = vadd.f32 %v6243, %v6532
      %v6635 = vadd.f32 %v6244, %v6537
      %v6636 = vadd.f32 %v6245, %v6542
      %v6637 = vadd.f32 %v6246, %v6547
      %v6638 = vadd.f32 %v6247, %v6552
      %v6639 = vadd.f32 %v6248, %v6557
      %v6640 = vadd.f32 %v6249, %v6562
      %v6641 = vadd.f32 %v6250, %v6567
      %v6642 = vadd.f32 %v6251, %v6572
      %v6643 = vadd.f32 %v6252, %v6577
      %v6644 = vadd.f32 %v6253, %v6582
      %v6645 = vadd.f32 %v6254, %v6587
      %v6646 = vadd.f32 %v6255, %v6592
      %v6647 = vadd.f32 %v6256, %v6597
      %v6648 = vadd.f32 %v6257, %v6602
      %v6649 = vadd.f32 %v6258, %v6607
      %v6650 = vadd.f32 %v6259, %v6612
      %v6651 = vadd.f32 %v6260, %v6617
      %v6652 = vld [vmem:[%s6261 + $0x8] sm:$0xff]
      %v6653 = vld [vmem:[%s6261 + $0x10] sm:$0xff]
      %v6654 = vld [vmem:[%s6261 + $0x28] sm:$0xff]
      %v6655 = vld [vmem:[%s6261 + $0x30] sm:$0xff]
      %v6656 = vld [vmem:[%s6261 + $0x48] sm:$0xff]
      %v6657 = vld [vmem:[%s6261 + $0x50] sm:$0xff]
      %v6658 = vld [vmem:[%s6261 + $0x68] sm:$0xff]
      %v6659 = vld [vmem:[%s6261 + $0x70] sm:$0xff]
      %v6660 = vld [vmem:[%s6261 + $0x88] sm:$0xff]
      %v6661 = vld [vmem:[%s6261 + $0x90] sm:$0xff]
      %v6662 = vld [vmem:[%s6261 + $0xa8] sm:$0xff]
      %v6663 = vld [vmem:[%s6261 + $0xb0] sm:$0xff]
      %v6664 = vld [vmem:[%s6261 + $0xc8] sm:$0xff]
      %v6665 = vld [vmem:[%s6261 + $0xd0] sm:$0xff]
      %v6666 = vld [vmem:[%s6261 + $0xe8] sm:$0xff]
      %v6667 = vld [vmem:[%s6261 + $0xf0] sm:$0xff]
      %v6668 = vld [vmem:[%s6261 + $0x108] sm:$0xff]
      %v6669 = vld [vmem:[%s6261 + $0x110] sm:$0xff]
      %v6670 = vld [vmem:[%s6261 + $0x128] sm:$0xff]
      %v6671 = vld [vmem:[%s6261 + $0x130] sm:$0xff]
      %v6672 = vld [vmem:[%s6261 + $0x148] sm:$0xff]
      %v6673 = vld [vmem:[%s6261 + $0x150] sm:$0xff]
      %v6674 = vld [vmem:[%s6261 + $0x168] sm:$0xff]
      %v6675 = vld [vmem:[%s6261 + $0x170] sm:$0xff]
      %v6676 = vld [vmem:[%s6261 + $0x188] sm:$0xff]
      %v6677 = vld [vmem:[%s6261 + $0x190] sm:$0xff]
      %v6678 = vld [vmem:[%s6261 + $0x1a8] sm:$0xff]
      %v6679 = vld [vmem:[%s6261 + $0x1b0] sm:$0xff]
      %v6680 = vld [vmem:[%s6261 + $0x1c8] sm:$0xff]
      %v6681 = vld [vmem:[%s6261 + $0x1d0] sm:$0xff]
      %v6682 = vld [vmem:[%s6261 + $0x1e8] sm:$0xff]
      %v6683 = vld [vmem:[%s6261 + $0x1f0] sm:$0xff]
      %s6684 = scalar_lea.vmem %s3, 28
      %v6685 = vld [vmem:[%s6684] sm:$0xf]
      %v6687 = vsel %vm225, %v6652, 0
      %v6690 = vsel %vm225, %v6653, 0
      %v6693 = vsel %vm225, %v6654, 0
      %v6696 = vsel %vm225, %v6655, 0
      %v6699 = vsel %vm225, %v6656, 0
      %v6702 = vsel %vm225, %v6657, 0
      %v6705 = vsel %vm225, %v6658, 0
      %v6708 = vsel %vm225, %v6659, 0
      %v6711 = vsel %vm225, %v6660, 0
      %v6714 = vsel %vm225, %v6661, 0
      %v6717 = vsel %vm225, %v6662, 0
      %v6720 = vsel %vm225, %v6663, 0
      %v6723 = vsel %vm225, %v6664, 0
      %v6726 = vsel %vm225, %v6665, 0
      %v6729 = vsel %vm225, %v6666, 0
      %v6732 = vsel %vm225, %v6667, 0
      %v6735 = vsel %vm225, %v6668, 0
      %v6738 = vsel %vm225, %v6669, 0
      %v6741 = vsel %vm225, %v6670, 0
      %v6744 = vsel %vm225, %v6671, 0
      %v6747 = vsel %vm225, %v6672, 0
      %v6750 = vsel %vm225, %v6673, 0
      %v6753 = vsel %vm225, %v6674, 0
      %v6756 = vsel %vm225, %v6675, 0
      %v6759 = vsel %vm225, %v6676, 0
      %v6762 = vsel %vm225, %v6677, 0
      %v6765 = vsel %vm225, %v6678, 0
      %v6768 = vsel %vm225, %v6679, 0
      %v6771 = vsel %vm225, %v6680, 0
      %v6774 = vsel %vm225, %v6681, 0
      %v6777 = vsel %vm225, %v6682, 0
      %v6780 = vsel %vm225, %v6683, 0
      %v6783 = vsel %vm598, %v6685, 0
      %6785 = vmatprep.subr.mxu0 0.0
      %6786 = vmatpush1.msra.mxu0 %v6783
      %6787 = vmatprep.subr.mxu0 0.0
      %6788 = vmatpush1.msra.mxu0 0.0
      %6789 = vmatprep.subr.mxu0 0.0
      %6790 = vmatpush1.msra.mxu0 0.0
      %6791 = vmatprep.subr.mxu0 0.0
      %6792 = vmatpush1.msra.mxu0 0.0
      %6793 = vmatprep.subr.mxu0 0.0
      %6794 = vmatpush1.msra.mxu0 0.0
      %6795 = vmatprep.subr.mxu0 0.0
      %6796 = vmatpush1.msra.mxu0 0.0
      %6797 = vmatprep.subr.mxu0 0.0
      %6798 = vmatpush1.msra.mxu0 0.0
      %6799 = vmatprep.subr.mxu0 0.0
      %6800 = vmatpush1.msra.mxu0 0.0
      %6801 = vmatprep.subr.mxu0 0.0
      %6802 = vmatpush1.msra.mxu0 0.0
      %6803 = vmatprep.subr.mxu0 0.0
      %6804 = vmatpush1.msra.mxu0 0.0
      %6805 = vmatprep.subr.mxu0 0.0
      %6806 = vmatpush1.msra.mxu0 0.0
      %6807 = vmatprep.subr.mxu0 0.0
      %6808 = vmatpush1.msra.mxu0 0.0
      %6809 = vmatprep.subr.mxu0 0.0
      %6810 = vmatpush1.msra.mxu0 0.0
      %6811 = vmatprep.subr.mxu0 0.0
      %6812 = vmatpush1.msra.mxu0 0.0
      %6813 = vmatprep.subr.mxu0 0.0
      %6814 = vmatpush1.msra.mxu0 0.0
      %6815 = vmatprep.subr.mxu0 0.0
      %6816 = vmatpush1.msra.mxu0 0.0
      %6817 = vmatprep.subr.mxu0 0.0
      %6818 = vmatpush1.msra.mxu0 0.0
      %6819 = vmatprep.subr.mxu0 0.0
      %6820 = vmatpush1.msra.mxu0 0.0
      %6821 = vmatprep.subr.mxu0 0.0
      %6822 = vmatpush1.msra.mxu0 0.0
      %6823 = vmatprep.subr.mxu0 0.0
      %6824 = vmatpush1.msra.mxu0 0.0
      %6825 = vmatprep.subr.mxu0 0.0
      %6826 = vmatpush1.msra.mxu0 0.0
      %6827 = vmatprep.subr.mxu0 0.0
      %6828 = vmatpush1.msra.mxu0 0.0
      %6829 = vmatprep.subr.mxu0 0.0
      %6830 = vmatpush1.msra.mxu0 0.0
      %6831 = vmatprep.subr.mxu0 0.0
      %6832 = vmatpush1.msra.mxu0 0.0
      %6833 = vmatprep.subr.mxu0 0.0
      %6834 = vmatpush1.msra.mxu0 0.0
      %6835 = vmatprep.subr.mxu0 0.0
      %6836 = vmatpush1.msra.mxu0 0.0
      %6837 = vmatprep.subr.mxu0 0.0
      %6838 = vmatpush1.msra.mxu0 0.0
      %6839 = vmatprep.subr.mxu0 0.0
      %6840 = vmatpush1.msra.mxu0 0.0
      %6841 = vmatprep.subr.mxu0 0.0
      %6842 = vmatpush1.msra.mxu0 0.0
      %6843 = vmatprep.subr.mxu0 0.0
      %6844 = vmatpush1.msra.mxu0 0.0
      %6845 = vmatprep.subr.mxu0 0.0
      %6846 = vmatpush1.msra.mxu0 0.0
      %6847 = vmatprep.subr.mxu0 0.0
      %6848 = vmatpush1.msra.mxu0 0.0
      %6849 = vmatprep.mubr.f32.mxu0 0.0
      %6850 = vmatmul.mubr.f32.gmra.mrb[0].mxu0 %v6687
      %v6851 = vpop.f32.mrb[0].mxu0
      %v6852 = vadd.f32 0.0, %v6851
      %v6853 = vpop.f32.mrb[0].mxu0
      %6854 = vmatprep.mubr.f32.mxu0 0.0
      %6855 = vmatmul.mubr.f32.gmra.mrb[0].mxu0 %v6690
      %v6856 = vpop.f32.mrb[0].mxu0
      %v6857 = vadd.f32 0.0, %v6856
      %v6858 = vpop.f32.mrb[0].mxu0
      %6859 = vmatprep.mubr.f32.mxu0 0.0
      %6860 = vmatmul.mubr.f32.gmra.mrb[0].mxu0 %v6693
      %v6861 = vpop.f32.mrb[0].mxu0
      %v6862 = vadd.f32 0.0, %v6861
      %v6863 = vpop.f32.mrb[0].mxu0
      %6864 = vmatprep.mubr.f32.mxu0 0.0
      %6865 = vmatmul.mubr.f32.gmra.mrb[0].mxu0 %v6696
      %v6866 = vpop.f32.mrb[0].mxu0
      %v6867 = vadd.f32 0.0, %v6866
      %v6868 = vpop.f32.mrb[0].mxu0
      %6869 = vmatprep.mubr.f32.mxu0 0.0
      %6870 = vmatmul.mubr.f32.gmra.mrb[0].mxu0 %v6699
      %v6871 = vpop.f32.mrb[0].mxu0
      %v6872 = vadd.f32 0.0, %v6871
      %v6873 = vpop.f32.mrb[0].mxu0
      %6874 = vmatprep.mubr.f32.mxu0 0.0
      %6875 = vmatmul.mubr.f32.gmra.mrb[0].mxu0 %v6702
      %v6876 = vpop.f32.mrb[0].mxu0
      %v6877 = vadd.f32 0.0, %v6876
      %v6878 = vpop.f32.mrb[0].mxu0
      %6879 = vmatprep.mubr.f32.mxu0 0.0
      %6880 = vmatmul.mubr.f32.gmra.mrb[0].mxu0 %v6705
      %v6881 = vpop.f32.mrb[0].mxu0
      %v6882 = vadd.f32 0.0, %v6881
      %v6883 = vpop.f32.mrb[0].mxu0
      %6884 = vmatprep.mubr.f32.mxu0 0.0
      %6885 = vmatmul.mubr.f32.gmra.mrb[0].mxu0 %v6708
      %v6886 = vpop.f32.mrb[0].mxu0
      %v6887 = vadd.f32 0.0, %v6886
      %v6888 = vpop.f32.mrb[0].mxu0
      %6889 = vmatprep.mubr.f32.mxu0 0.0
      %6890 = vmatmul.mubr.f32.gmra.mrb[0].mxu0 %v6711
      %v6891 = vpop.f32.mrb[0].mxu0
      %v6892 = vadd.f32 0.0, %v6891
      %v6893 = vpop.f32.mrb[0].mxu0
      %6894 = vmatprep.mubr.f32.mxu0 0.0
      %6895 = vmatmul.mubr.f32.gmra.mrb[0].mxu0 %v6714
      %v6896 = vpop.f32.mrb[0].mxu0
      %v6897 = vadd.f32 0.0, %v6896
      %v6898 = vpop.f32.mrb[0].mxu0
      %6899 = vmatprep.mubr.f32.mxu0 0.0
      %6900 = vmatmul.mubr.f32.gmra.mrb[0].mxu0 %v6717
      %v6901 = vpop.f32.mrb[0].mxu0
      %v6902 = vadd.f32 0.0, %v6901
      %v6903 = vpop.f32.mrb[0].mxu0
      %6904 = vmatprep.mubr.f32.mxu0 0.0
      %6905 = vmatmul.mubr.f32.gmra.mrb[0].mxu0 %v6720
      %v6906 = vpop.f32.mrb[0].mxu0
      %v6907 = vadd.f32 0.0, %v6906
      %v6908 = vpop.f32.mrb[0].mxu0
      %6909 = vmatprep.mubr.f32.mxu0 0.0
      %6910 = vmatmul.mubr.f32.gmra.mrb[0].mxu0 %v6723
      %v6911 = vpop.f32.mrb[0].mxu0
      %v6912 = vadd.f32 0.0, %v6911
      %v6913 = vpop.f32.mrb[0].mxu0
      %6914 = vmatprep.mubr.f32.mxu0 0.0
      %6915 = vmatmul.mubr.f32.gmra.mrb[0].mxu0 %v6726
      %v6916 = vpop.f32.mrb[0].mxu0
      %v6917 = vadd.f32 0.0, %v6916
      %v6918 = vpop.f32.mrb[0].mxu0
      %6919 = vmatprep.mubr.f32.mxu0 0.0
      %6920 = vmatmul.mubr.f32.gmra.mrb[0].mxu0 %v6729
      %v6921 = vpop.f32.mrb[0].mxu0
      %v6922 = vadd.f32 0.0, %v6921
      %v6923 = vpop.f32.mrb[0].mxu0
      %6924 = vmatprep.mubr.f32.mxu0 0.0
      %6925 = vmatmul.mubr.f32.gmra.mrb[0].mxu0 %v6732
      %v6926 = vpop.f32.mrb[0].mxu0
      %v6927 = vadd.f32 0.0, %v6926
      %v6928 = vpop.f32.mrb[0].mxu0
      %6929 = vmatprep.mubr.f32.mxu0 0.0
      %6930 = vmatmul.mubr.f32.gmra.mrb[0].mxu0 %v6735
      %v6931 = vpop.f32.mrb[0].mxu0
      %v6932 = vadd.f32 0.0, %v6931
      %v6933 = vpop.f32.mrb[0].mxu0
      %6934 = vmatprep.mubr.f32.mxu0 0.0
      %6935 = vmatmul.mubr.f32.gmra.mrb[0].mxu0 %v6738
      %v6936 = vpop.f32.mrb[0].mxu0
      %v6937 = vadd.f32 0.0, %v6936
      %v6938 = vpop.f32.mrb[0].mxu0
      %6939 = vmatprep.mubr.f32.mxu0 0.0
      %6940 = vmatmul.mubr.f32.gmra.mrb[0].mxu0 %v6741
      %v6941 = vpop.f32.mrb[0].mxu0
      %v6942 = vadd.f32 0.0, %v6941
      %v6943 = vpop.f32.mrb[0].mxu0
      %6944 = vmatprep.mubr.f32.mxu0 0.0
      %6945 = vmatmul.mubr.f32.gmra.mrb[0].mxu0 %v6744
      %v6946 = vpop.f32.mrb[0].mxu0
      %v6947 = vadd.f32 0.0, %v6946
      %v6948 = vpop.f32.mrb[0].mxu0
      %6949 = vmatprep.mubr.f32.mxu0 0.0
      %6950 = vmatmul.mubr.f32.gmra.mrb[0].mxu0 %v6747
      %v6951 = vpop.f32.mrb[0].mxu0
      %v6952 = vadd.f32 0.0, %v6951
      %v6953 = vpop.f32.mrb[0].mxu0
      %6954 = vmatprep.mubr.f32.mxu0 0.0
      %6955 = vmatmul.mubr.f32.gmra.mrb[0].mxu0 %v6750
      %v6956 = vpop.f32.mrb[0].mxu0
      %v6957 = vadd.f32 0.0, %v6956
      %v6958 = vpop.f32.mrb[0].mxu0
      %6959 = vmatprep.mubr.f32.mxu0 0.0
      %6960 = vmatmul.mubr.f32.gmra.mrb[0].mxu0 %v6753
      %v6961 = vpop.f32.mrb[0].mxu0
      %v6962 = vadd.f32 0.0, %v6961
      %v6963 = vpop.f32.mrb[0].mxu0
      %6964 = vmatprep.mubr.f32.mxu0 0.0
      %6965 = vmatmul.mubr.f32.gmra.mrb[0].mxu0 %v6756
      %v6966 = vpop.f32.mrb[0].mxu0
      %v6967 = vadd.f32 0.0, %v6966
      %v6968 = vpop.f32.mrb[0].mxu0
      %6969 = vmatprep.mubr.f32.mxu0 0.0
      %6970 = vmatmul.mubr.f32.gmra.mrb[0].mxu0 %v6759
      %v6971 = vpop.f32.mrb[0].mxu0
      %v6972 = vadd.f32 0.0, %v6971
      %v6973 = vpop.f32.mrb[0].mxu0
      %6974 = vmatprep.mubr.f32.mxu0 0.0
      %6975 = vmatmul.mubr.f32.gmra.mrb[0].mxu0 %v6762
      %v6976 = vpop.f32.mrb[0].mxu0
      %v6977 = vadd.f32 0.0, %v6976
      %v6978 = vpop.f32.mrb[0].mxu0
      %6979 = vmatprep.mubr.f32.mxu0 0.0
      %6980 = vmatmul.mubr.f32.gmra.mrb[0].mxu0 %v6765
      %v6981 = vpop.f32.mrb[0].mxu0
      %v6982 = vadd.f32 0.0, %v6981
      %v6983 = vpop.f32.mrb[0].mxu0
      %6984 = vmatprep.mubr.f32.mxu0 0.0
      %6985 = vmatmul.mubr.f32.gmra.mrb[0].mxu0 %v6768
      %v6986 = vpop.f32.mrb[0].mxu0
      %v6987 = vadd.f32 0.0, %v6986
      %v6988 = vpop.f32.mrb[0].mxu0
      %6989 = vmatprep.mubr.f32.mxu0 0.0
      %6990 = vmatmul.mubr.f32.gmra.mrb[0].mxu0 %v6771
      %v6991 = vpop.f32.mrb[0].mxu0
      %v6992 = vadd.f32 0.0, %v6991
      %v6993 = vpop.f32.mrb[0].mxu0
      %6994 = vmatprep.mubr.f32.mxu0 0.0
      %6995 = vmatmul.mubr.f32.gmra.mrb[0].mxu0 %v6774
      %v6996 = vpop.f32.mrb[0].mxu0
      %v6997 = vadd.f32 0.0, %v6996
      %v6998 = vpop.f32.mrb[0].mxu0
      %6999 = vmatprep.mubr.f32.mxu0 0.0
      %7000 = vmatmul.mubr.f32.gmra.mrb[0].mxu0 %v6777
      %v7001 = vpop.f32.mrb[0].mxu0
      %v7002 = vadd.f32 0.0, %v7001
      %v7003 = vpop.f32.mrb[0].mxu0
      %7004 = vmatprep.mubr.f32.mxu0 0.0
      %7005 = vmatmul.mubr.f32.gmra.mrb[0].mxu0 %v6780
      %v7006 = vpop.f32.mrb[0].mxu0
      %v7007 = vadd.f32 0.0, %v7006
      %v7008 = vpop.f32.mrb[0].mxu0
      %7009 = vdwg.mxu0
      %v7010 = vadd.f32 %v6620, %v6852
      %v7011 = vadd.f32 %v6621, %v6857
      %v7012 = vadd.f32 %v6622, %v6862
      %v7013 = vadd.f32 %v6623, %v6867
      %v7014 = vadd.f32 %v6624, %v6872
      %v7015 = vadd.f32 %v6625, %v6877
      %v7016 = vadd.f32 %v6626, %v6882
      %v7017 = vadd.f32 %v6627, %v6887
      %v7018 = vadd.f32 %v6628, %v6892
      %v7019 = vadd.f32 %v6629, %v6897
      %v7020 = vadd.f32 %v6630, %v6902
      %v7021 = vadd.f32 %v6631, %v6907
      %v7022 = vadd.f32 %v6632, %v6912
      %v7023 = vadd.f32 %v6633, %v6917
      %v7024 = vadd.f32 %v6634, %v6922
      %v7025 = vadd.f32 %v6635, %v6927
      %v7026 = vadd.f32 %v6636, %v6932
      %v7027 = vadd.f32 %v6637, %v6937
      %v7028 = vadd.f32 %v6638, %v6942
      %v7029 = vadd.f32 %v6639, %v6947
      %v7030 = vadd.f32 %v6640, %v6952
      %v7031 = vadd.f32 %v6641, %v6957
      %v7032 = vadd.f32 %v6642, %v6962
      %v7033 = vadd.f32 %v6643, %v6967
      %v7034 = vadd.f32 %v6644, %v6972
      %v7035 = vadd.f32 %v6645, %v6977
      %v7036 = vadd.f32 %v6646, %v6982
      %v7037 = vadd.f32 %v6647, %v6987
      %v7038 = vadd.f32 %v6648, %v6992
      %v7039 = vadd.f32 %v6649, %v6997
      %v7040 = vadd.f32 %v6650, %v7002
      %v7041 = vadd.f32 %v6651, %v7007
      %v7042 = vld [vmem:[%s6261 + $0x9] sm:$0xff]
      %v7043 = vld [vmem:[%s6261 + $0x11] sm:$0xff]
      %v7044 = vld [vmem:[%s6261 + $0x29] sm:$0xff]
      %v7045 = vld [vmem:[%s6261 + $0x31] sm:$0xff]
      %v7046 = vld [vmem:[%s6261 + $0x49] sm:$0xff]
      %v7047 = vld [vmem:[%s6261 + $0x51] sm:$0xff]
      %v7048 = vld [vmem:[%s6261 + $0x69] sm:$0xff]
      %v7049 = vld [vmem:[%s6261 + $0x71] sm:$0xff]
      %v7050 = vld [vmem:[%s6261 + $0x89] sm:$0xff]
      %v7051 = vld [vmem:[%s6261 + $0x91] sm:$0xff]
      %v7052 = vld [vmem:[%s6261 + $0xa9] sm:$0xff]
      %v7053 = vld [vmem:[%s6261 + $0xb1] sm:$0xff]
      %v7054 = vld [vmem:[%s6261 + $0xc9] sm:$0xff]
      %v7055 = vld [vmem:[%s6261 + $0xd1] sm:$0xff]
      %v7056 = vld [vmem:[%s6261 + $0xe9] sm:$0xff]
      %v7057 = vld [vmem:[%s6261 + $0xf1] sm:$0xff]
      %v7058 = vld [vmem:[%s6261 + $0x109] sm:$0xff]
      %v7059 = vld [vmem:[%s6261 + $0x111] sm:$0xff]
      %v7060 = vld [vmem:[%s6261 + $0x129] sm:$0xff]
      %v7061 = vld [vmem:[%s6261 + $0x131] sm:$0xff]
      %v7062 = vld [vmem:[%s6261 + $0x149] sm:$0xff]
      %v7063 = vld [vmem:[%s6261 + $0x151] sm:$0xff]
      %v7064 = vld [vmem:[%s6261 + $0x169] sm:$0xff]
      %v7065 = vld [vmem:[%s6261 + $0x171] sm:$0xff]
      %v7066 = vld [vmem:[%s6261 + $0x189] sm:$0xff]
      %v7067 = vld [vmem:[%s6261 + $0x191] sm:$0xff]
      %v7068 = vld [vmem:[%s6261 + $0x1a9] sm:$0xff]
      %v7069 = vld [vmem:[%s6261 + $0x1b1] sm:$0xff]
      %v7070 = vld [vmem:[%s6261 + $0x1c9] sm:$0xff]
      %v7071 = vld [vmem:[%s6261 + $0x1d1] sm:$0xff]
      %v7072 = vld [vmem:[%s6261 + $0x1e9] sm:$0xff]
      %v7073 = vld [vmem:[%s6261 + $0x1f1] sm:$0xff]
      %s7074 = scalar_lea.vmem %s3, 32
      %v7075 = vld [vmem:[%s7074] sm:$0xf]
      %v7077 = vsel %vm225, %v7042, 0
      %v7080 = vsel %vm225, %v7043, 0
      %v7083 = vsel %vm225, %v7044, 0
      %v7086 = vsel %vm225, %v7045, 0
      %v7089 = vsel %vm225, %v7046, 0
      %v7092 = vsel %vm225, %v7047, 0
      %v7095 = vsel %vm225, %v7048, 0
      %v7098 = vsel %vm225, %v7049, 0
      %v7101 = vsel %vm225, %v7050, 0
      %v7104 = vsel %vm225, %v7051, 0
      %v7107 = vsel %vm225, %v7052, 0
      %v7110 = vsel %vm225, %v7053, 0
      %v7113 = vsel %vm225, %v7054, 0
      %v7116 = vsel %vm225, %v7055, 0
      %v7119 = vsel %vm225, %v7056, 0
      %v7122 = vsel %vm225, %v7057, 0
      %v7125 = vsel %vm225, %v7058, 0
      %v7128 = vsel %vm225, %v7059, 0
      %v7131 = vsel %vm225, %v7060, 0
      %v7134 = vsel %vm225, %v7061, 0
      %v7137 = vsel %vm225, %v7062, 0
      %v7140 = vsel %vm225, %v7063, 0
      %v7143 = vsel %vm225, %v7064, 0
      %v7146 = vsel %vm225, %v7065, 0
      %v7149 = vsel %vm225, %v7066, 0
      %v7152 = vsel %vm225, %v7067, 0
      %v7155 = vsel %vm225, %v7068, 0
      %v7158 = vsel %vm225, %v7069, 0
      %v7161 = vsel %vm225, %v7070, 0
      %v7164 = vsel %vm225, %v7071, 0
      %v7167 = vsel %vm225, %v7072, 0
      %v7170 = vsel %vm225, %v7073, 0
      %v7173 = vsel %vm598, %v7075, 0
      %7175 = vmatprep.subr.mxu0 0.0
      %7176 = vmatpush1.msra.mxu0 %v7173
      %7177 = vmatprep.subr.mxu0 0.0
      %7178 = vmatpush1.msra.mxu0 0.0
      %7179 = vmatprep.subr.mxu0 0.0
      %7180 = vmatpush1.msra.mxu0 0.0
      %7181 = vmatprep.subr.mxu0 0.0
      %7182 = vmatpush1.msra.mxu0 0.0
      %7183 = vmatprep.subr.mxu0 0.0
      %7184 = vmatpush1.msra.mxu0 0.0
      %7185 = vmatprep.subr.mxu0 0.0
      %7186 = vmatpush1.msra.mxu0 0.0
      %7187 = vmatprep.subr.mxu0 0.0
      %7188 = vmatpush1.msra.mxu0 0.0
      %7189 = vmatprep.subr.mxu0 0.0
      %7190 = vmatpush1.msra.mxu0 0.0
      %7191 = vmatprep.subr.mxu0 0.0
      %7192 = vmatpush1.msra.mxu0 0.0
      %7193 = vmatprep.subr.mxu0 0.0
      %7194 = vmatpush1.msra.mxu0 0.0
      %7195 = vmatprep.subr.mxu0 0.0
      %7196 = vmatpush1.msra.mxu0 0.0
      %7197 = vmatprep.subr.mxu0 0.0
      %7198 = vmatpush1.msra.mxu0 0.0
      %7199 = vmatprep.subr.mxu0 0.0
      %7200 = vmatpush1.msra.mxu0 0.0
      %7201 = vmatprep.subr.mxu0 0.0
      %7202 = vmatpush1.msra.mxu0 0.0
      %7203 = vmatprep.subr.mxu0 0.0
      %7204 = vmatpush1.msra.mxu0 0.0
      %7205 = vmatprep.subr.mxu0 0.0
      %7206 = vmatpush1.msra.mxu0 0.0
      %7207 = vmatprep.subr.mxu0 0.0
      %7208 = vmatpush1.msra.mxu0 0.0
      %7209 = vmatprep.subr.mxu0 0.0
      %7210 = vmatpush1.msra.mxu0 0.0
      %7211 = vmatprep.subr.mxu0 0.0
      %7212 = vmatpush1.msra.mxu0 0.0
      %7213 = vmatprep.subr.mxu0 0.0
      %7214 = vmatpush1.msra.mxu0 0.0
      %7215 = vmatprep.subr.mxu0 0.0
      %7216 = vmatpush1.msra.mxu0 0.0
      %7217 = vmatprep.subr.mxu0 0.0
      %7218 = vmatpush1.msra.mxu0 0.0
      %7219 = vmatprep.subr.mxu0 0.0
      %7220 = vmatpush1.msra.mxu0 0.0
      %7221 = vmatprep.subr.mxu0 0.0
      %7222 = vmatpush1.msra.mxu0 0.0
      %7223 = vmatprep.subr.mxu0 0.0
      %7224 = vmatpush1.msra.mxu0 0.0
      %7225 = vmatprep.subr.mxu0 0.0
      %7226 = vmatpush1.msra.mxu0 0.0
      %7227 = vmatprep.subr.mxu0 0.0
      %7228 = vmatpush1.msra.mxu0 0.0
      %7229 = vmatprep.subr.mxu0 0.0
      %7230 = vmatpush1.msra.mxu0 0.0
      %7231 = vmatprep.subr.mxu0 0.0
      %7232 = vmatpush1.msra.mxu0 0.0
      %7233 = vmatprep.subr.mxu0 0.0
      %7234 = vmatpush1.msra.mxu0 0.0
      %7235 = vmatprep.subr.mxu0 0.0
      %7236 = vmatpush1.msra.mxu0 0.0
      %7237 = vmatprep.subr.mxu0 0.0
      %7238 = vmatpush1.msra.mxu0 0.0
      %7239 = vmatprep.mubr.f32.mxu0 0.0
      %7240 = vmatmul.mubr.f32.gmra.mrb[0].mxu0 %v7077
      %v7241 = vpop.f32.mrb[0].mxu0
      %v7242 = vadd.f32 0.0, %v7241
      %v7243 = vpop.f32.mrb[0].mxu0
      %7244 = vmatprep.mubr.f32.mxu0 0.0
      %7245 = vmatmul.mubr.f32.gmra.mrb[0].mxu0 %v7080
      %v7246 = vpop.f32.mrb[0].mxu0
      %v7247 = vadd.f32 0.0, %v7246
      %v7248 = vpop.f32.mrb[0].mxu0
      %7249 = vmatprep.mubr.f32.mxu0 0.0
      %7250 = vmatmul.mubr.f32.gmra.mrb[0].mxu0 %v7083
      %v7251 = vpop.f32.mrb[0].mxu0
      %v7252 = vadd.f32 0.0, %v7251
      %v7253 = vpop.f32.mrb[0].mxu0
      %7254 = vmatprep.mubr.f32.mxu0 0.0
      %7255 = vmatmul.mubr.f32.gmra.mrb[0].mxu0 %v7086
      %v7256 = vpop.f32.mrb[0].mxu0
      %v7257 = vadd.f32 0.0, %v7256
      %v7258 = vpop.f32.mrb[0].mxu0
      %7259 = vmatprep.mubr.f32.mxu0 0.0
      %7260 = vmatmul.mubr.f32.gmra.mrb[0].mxu0 %v7089
      %v7261 = vpop.f32.mrb[0].mxu0
      %v7262 = vadd.f32 0.0, %v7261
      %v7263 = vpop.f32.mrb[0].mxu0
      %7264 = vmatprep.mubr.f32.mxu0 0.0
      %7265 = vmatmul.mubr.f32.gmra.mrb[0].mxu0 %v7092
      %v7266 = vpop.f32.mrb[0].mxu0
      %v7267 = vadd.f32 0.0, %v7266
      %v7268 = vpop.f32.mrb[0].mxu0
      %7269 = vmatprep.mubr.f32.mxu0 0.0
      %7270 = vmatmul.mubr.f32.gmra.mrb[0].mxu0 %v7095
      %v7271 = vpop.f32.mrb[0].mxu0
      %v7272 = vadd.f32 0.0, %v7271
      %v7273 = vpop.f32.mrb[0].mxu0
      %7274 = vmatprep.mubr.f32.mxu0 0.0
      %7275 = vmatmul.mubr.f32.gmra.mrb[0].mxu0 %v7098
      %v7276 = vpop.f32.mrb[0].mxu0
      %v7277 = vadd.f32 0.0, %v7276
      %v7278 = vpop.f32.mrb[0].mxu0
      %7279 = vmatprep.mubr.f32.mxu0 0.0
      %7280 = vmatmul.mubr.f32.gmra.mrb[0].mxu0 %v7101
      %v7281 = vpop.f32.mrb[0].mxu0
      %v7282 = vadd.f32 0.0, %v7281
      %v7283 = vpop.f32.mrb[0].mxu0
      %7284 = vmatprep.mubr.f32.mxu0 0.0
      %7285 = vmatmul.mubr.f32.gmra.mrb[0].mxu0 %v7104
      %v7286 = vpop.f32.mrb[0].mxu0
      %v7287 = vadd.f32 0.0, %v7286
      %v7288 = vpop.f32.mrb[0].mxu0
      %7289 = vmatprep.mubr.f32.mxu0 0.0
      %7290 = vmatmul.mubr.f32.gmra.mrb[0].mxu0 %v7107
      %v7291 = vpop.f32.mrb[0].mxu0
      %v7292 = vadd.f32 0.0, %v7291
      %v7293 = vpop.f32.mrb[0].mxu0
      %7294 = vmatprep.mubr.f32.mxu0 0.0
      %7295 = vmatmul.mubr.f32.gmra.mrb[0].mxu0 %v7110
      %v7296 = vpop.f32.mrb[0].mxu0
      %v7297 = vadd.f32 0.0, %v7296
      %v7298 = vpop.f32.mrb[0].mxu0
      %7299 = vmatprep.mubr.f32.mxu0 0.0
      %7300 = vmatmul.mubr.f32.gmra.mrb[0].mxu0 %v7113
      %v7301 = vpop.f32.mrb[0].mxu0
      %v7302 = vadd.f32 0.0, %v7301
      %v7303 = vpop.f32.mrb[0].mxu0
      %7304 = vmatprep.mubr.f32.mxu0 0.0
      %7305 = vmatmul.mubr.f32.gmra.mrb[0].mxu0 %v7116
      %v7306 = vpop.f32.mrb[0].mxu0
      %v7307 = vadd.f32 0.0, %v7306
      %v7308 = vpop.f32.mrb[0].mxu0
      %7309 = vmatprep.mubr.f32.mxu0 0.0
      %7310 = vmatmul.mubr.f32.gmra.mrb[0].mxu0 %v7119
      %v7311 = vpop.f32.mrb[0].mxu0
      %v7312 = vadd.f32 0.0, %v7311
      %v7313 = vpop.f32.mrb[0].mxu0
      %7314 = vmatprep.mubr.f32.mxu0 0.0
      %7315 = vmatmul.mubr.f32.gmra.mrb[0].mxu0 %v7122
      %v7316 = vpop.f32.mrb[0].mxu0
      %v7317 = vadd.f32 0.0, %v7316
      %v7318 = vpop.f32.mrb[0].mxu0
      %7319 = vmatprep.mubr.f32.mxu0 0.0
      %7320 = vmatmul.mubr.f32.gmra.mrb[0].mxu0 %v7125
      %v7321 = vpop.f32.mrb[0].mxu0
      %v7322 = vadd.f32 0.0, %v7321
      %v7323 = vpop.f32.mrb[0].mxu0
      %7324 = vmatprep.mubr.f32.mxu0 0.0
      %7325 = vmatmul.mubr.f32.gmra.mrb[0].mxu0 %v7128
      %v7326 = vpop.f32.mrb[0].mxu0
      %v7327 = vadd.f32 0.0, %v7326
      %v7328 = vpop.f32.mrb[0].mxu0
      %7329 = vmatprep.mubr.f32.mxu0 0.0
      %7330 = vmatmul.mubr.f32.gmra.mrb[0].mxu0 %v7131
      %v7331 = vpop.f32.mrb[0].mxu0
      %v7332 = vadd.f32 0.0, %v7331
      %v7333 = vpop.f32.mrb[0].mxu0
      %7334 = vmatprep.mubr.f32.mxu0 0.0
      %7335 = vmatmul.mubr.f32.gmra.mrb[0].mxu0 %v7134
      %v7336 = vpop.f32.mrb[0].mxu0
      %v7337 = vadd.f32 0.0, %v7336
      %v7338 = vpop.f32.mrb[0].mxu0
      %7339 = vmatprep.mubr.f32.mxu0 0.0
      %7340 = vmatmul.mubr.f32.gmra.mrb[0].mxu0 %v7137
      %v7341 = vpop.f32.mrb[0].mxu0
      %v7342 = vadd.f32 0.0, %v7341
      %v7343 = vpop.f32.mrb[0].mxu0
      %7344 = vmatprep.mubr.f32.mxu0 0.0
      %7345 = vmatmul.mubr.f32.gmra.mrb[0].mxu0 %v7140
      %v7346 = vpop.f32.mrb[0].mxu0
      %v7347 = vadd.f32 0.0, %v7346
      %v7348 = vpop.f32.mrb[0].mxu0
      %7349 = vmatprep.mubr.f32.mxu0 0.0
      %7350 = vmatmul.mubr.f32.gmra.mrb[0].mxu0 %v7143
      %v7351 = vpop.f32.mrb[0].mxu0
      %v7352 = vadd.f32 0.0, %v7351
      %v7353 = vpop.f32.mrb[0].mxu0
      %7354 = vmatprep.mubr.f32.mxu0 0.0
      %7355 = vmatmul.mubr.f32.gmra.mrb[0].mxu0 %v7146
      %v7356 = vpop.f32.mrb[0].mxu0
      %v7357 = vadd.f32 0.0, %v7356
      %v7358 = vpop.f32.mrb[0].mxu0
      %7359 = vmatprep.mubr.f32.mxu0 0.0
      %7360 = vmatmul.mubr.f32.gmra.mrb[0].mxu0 %v7149
      %v7361 = vpop.f32.mrb[0].mxu0
      %v7362 = vadd.f32 0.0, %v7361
      %v7363 = vpop.f32.mrb[0].mxu0
      %7364 = vmatprep.mubr.f32.mxu0 0.0
      %7365 = vmatmul.mubr.f32.gmra.mrb[0].mxu0 %v7152
      %v7366 = vpop.f32.mrb[0].mxu0
      %v7367 = vadd.f32 0.0, %v7366
      %v7368 = vpop.f32.mrb[0].mxu0
      %7369 = vmatprep.mubr.f32.mxu0 0.0
      %7370 = vmatmul.mubr.f32.gmra.mrb[0].mxu0 %v7155
      %v7371 = vpop.f32.mrb[0].mxu0
      %v7372 = vadd.f32 0.0, %v7371
      %v7373 = vpop.f32.mrb[0].mxu0
      %7374 = vmatprep.mubr.f32.mxu0 0.0
      %7375 = vmatmul.mubr.f32.gmra.mrb[0].mxu0 %v7158
      %v7376 = vpop.f32.mrb[0].mxu0
      %v7377 = vadd.f32 0.0, %v7376
      %v7378 = vpop.f32.mrb[0].mxu0
      %7379 = vmatprep.mubr.f32.mxu0 0.0
      %7380 = vmatmul.mubr.f32.gmra.mrb[0].mxu0 %v7161
      %v7381 = vpop.f32.mrb[0].mxu0
      %v7382 = vadd.f32 0.0, %v7381
      %v7383 = vpop.f32.mrb[0].mxu0
      %7384 = vmatprep.mubr.f32.mxu0 0.0
      %7385 = vmatmul.mubr.f32.gmra.mrb[0].mxu0 %v7164
      %v7386 = vpop.f32.mrb[0].mxu0
      %v7387 = vadd.f32 0.0, %v7386
      %v7388 = vpop.f32.mrb[0].mxu0
      %7389 = vmatprep.mubr.f32.mxu0 0.0
      %7390 = vmatmul.mubr.f32.gmra.mrb[0].mxu0 %v7167
      %v7391 = vpop.f32.mrb[0].mxu0
      %v7392 = vadd.f32 0.0, %v7391
      %v7393 = vpop.f32.mrb[0].mxu0
      %7394 = vmatprep.mubr.f32.mxu0 0.0
      %7395 = vmatmul.mubr.f32.gmra.mrb[0].mxu0 %v7170
      %v7396 = vpop.f32.mrb[0].mxu0
      %v7397 = vadd.f32 0.0, %v7396
      %v7398 = vpop.f32.mrb[0].mxu0
      %7399 = vdwg.mxu0
      %v7400 = vadd.f32 %v7010, %v7242
      %v7401 = vadd.f32 %v7011, %v7247
      %v7402 = vadd.f32 %v7012, %v7252
      %v7403 = vadd.f32 %v7013, %v7257
      %v7404 = vadd.f32 %v7014, %v7262
      %v7405 = vadd.f32 %v7015, %v7267
      %v7406 = vadd.f32 %v7016, %v7272
      %v7407 = vadd.f32 %v7017, %v7277
      %v7408 = vadd.f32 %v7018, %v7282
      %v7409 = vadd.f32 %v7019, %v7287
      %v7410 = vadd.f32 %v7020, %v7292
      %v7411 = vadd.f32 %v7021, %v7297
      %v7412 = vadd.f32 %v7022, %v7302
      %v7413 = vadd.f32 %v7023, %v7307
      %v7414 = vadd.f32 %v7024, %v7312
      %v7415 = vadd.f32 %v7025, %v7317
      %v7416 = vadd.f32 %v7026, %v7322
      %v7417 = vadd.f32 %v7027, %v7327
      %v7418 = vadd.f32 %v7028, %v7332
      %v7419 = vadd.f32 %v7029, %v7337
      %v7420 = vadd.f32 %v7030, %v7342
      %v7421 = vadd.f32 %v7031, %v7347
      %v7422 = vadd.f32 %v7032, %v7352
      %v7423 = vadd.f32 %v7033, %v7357
      %v7424 = vadd.f32 %v7034, %v7362
      %v7425 = vadd.f32 %v7035, %v7367
      %v7426 = vadd.f32 %v7036, %v7372
      %v7427 = vadd.f32 %v7037, %v7377
      %v7428 = vadd.f32 %v7038, %v7382
      %v7429 = vadd.f32 %v7039, %v7387
      %v7430 = vadd.f32 %v7040, %v7392
      %v7431 = vadd.f32 %v7041, %v7397
      %v7432 = vld [vmem:[%s4] sm:$0x1]
      %v7434 = vlaneseq
      %v7435 = vshrl.u32 %v7434, 7
      %v7436 = vsub.s32 0, %v7435
      %v7437 = vrot.slane %v7432, %v7436
      %v7439 = vadd.f32 %v7400, %v7437
      %v7440 = vadd.f32 %v7401, %v7437
      %v7441 = vadd.f32 %v7402, %v7437
      %v7442 = vadd.f32 %v7403, %v7437
      %v7443 = vadd.f32 %v7404, %v7437
      %v7444 = vadd.f32 %v7405, %v7437
      %v7445 = vadd.f32 %v7406, %v7437
      %v7446 = vadd.f32 %v7407, %v7437
      %v7447 = vadd.f32 %v7408, %v7437
      %v7448 = vadd.f32 %v7409, %v7437
      %v7449 = vadd.f32 %v7410, %v7437
      %v7450 = vadd.f32 %v7411, %v7437
      %v7451 = vadd.f32 %v7412, %v7437
      %v7452 = vadd.f32 %v7413, %v7437
      %v7453 = vadd.f32 %v7414, %v7437
      %v7454 = vadd.f32 %v7415, %v7437
      %v7455 = vadd.f32 %v7416, %v7437
      %v7456 = vadd.f32 %v7417, %v7437
      %v7457 = vadd.f32 %v7418, %v7437
      %v7458 = vadd.f32 %v7419, %v7437
      %v7459 = vadd.f32 %v7420, %v7437
      %v7460 = vadd.f32 %v7421, %v7437
      %v7461 = vadd.f32 %v7422, %v7437
      %v7462 = vadd.f32 %v7423, %v7437
      %v7463 = vadd.f32 %v7424, %v7437
      %v7464 = vadd.f32 %v7425, %v7437
      %v7465 = vadd.f32 %v7426, %v7437
      %v7466 = vadd.f32 %v7427, %v7437
      %v7467 = vadd.f32 %v7428, %v7437
      %v7468 = vadd.f32 %v7429, %v7437
      %v7469 = vadd.f32 %v7430, %v7437
      %v7470 = vadd.f32 %v7431, %v7437
      %v7471 = vadd.f32 %v7439, %v370
      %v7472 = vadd.f32 %v7440, %v371
      %v7473 = vadd.f32 %v7441, %v372
      %v7474 = vadd.f32 %v7442, %v373
      %v7475 = vadd.f32 %v7443, %v374
      %v7476 = vadd.f32 %v7444, %v375
      %v7477 = vadd.f32 %v7445, %v376
      %v7478 = vadd.f32 %v7446, %v377
      %v7479 = vadd.f32 %v7447, %v378
      %v7480 = vadd.f32 %v7448, %v379
      %v7481 = vadd.f32 %v7449, %v380
      %v7482 = vadd.f32 %v7450, %v381
      %v7483 = vadd.f32 %v7451, %v382
      %v7484 = vadd.f32 %v7452, %v383
      %v7485 = vadd.f32 %v7453, %v384
      %v7486 = vadd.f32 %v7454, %v385
      %v7487 = vadd.f32 %v7455, %v386
      %v7488 = vadd.f32 %v7456, %v387
      %v7489 = vadd.f32 %v7457, %v388
      %v7490 = vadd.f32 %v7458, %v389
      %v7491 = vadd.f32 %v7459, %v390
      %v7492 = vadd.f32 %v7460, %v391
      %v7493 = vadd.f32 %v7461, %v392
      %v7494 = vadd.f32 %v7462, %v393
      %v7495 = vadd.f32 %v7463, %v394
      %v7496 = vadd.f32 %v7464, %v395
      %v7497 = vadd.f32 %v7465, %v396
      %v7498 = vadd.f32 %v7466, %v397
      %v7499 = vadd.f32 %v7467, %v398
      %v7500 = vadd.f32 %v7468, %v399
      %v7501 = vadd.f32 %v7469, %v400
      %v7502 = vadd.f32 %v7470, %v401
      %v7503 = vmax.f32 %v7471, 0.0
      %v7504 = vmax.f32 %v7472, 0.0
      %v7505 = vmax.f32 %v7473, 0.0
      %v7506 = vmax.f32 %v7474, 0.0
      %v7507 = vmax.f32 %v7475, 0.0
      %v7508 = vmax.f32 %v7476, 0.0
      %v7509 = vmax.f32 %v7477, 0.0
      %v7510 = vmax.f32 %v7478, 0.0
      %v7511 = vmax.f32 %v7479, 0.0
      %v7512 = vmax.f32 %v7480, 0.0
      %v7513 = vmax.f32 %v7481, 0.0
      %v7514 = vmax.f32 %v7482, 0.0
      %v7515 = vmax.f32 %v7483, 0.0
      %v7516 = vmax.f32 %v7484, 0.0
      %v7517 = vmax.f32 %v7485, 0.0
      %v7518 = vmax.f32 %v7486, 0.0
      %v7519 = vmax.f32 %v7487, 0.0
      %v7520 = vmax.f32 %v7488, 0.0
      %v7521 = vmax.f32 %v7489, 0.0
      %v7522 = vmax.f32 %v7490, 0.0
      %v7523 = vmax.f32 %v7491, 0.0
      %v7524 = vmax.f32 %v7492, 0.0
      %v7525 = vmax.f32 %v7493, 0.0
      %v7526 = vmax.f32 %v7494, 0.0
      %v7527 = vmax.f32 %v7495, 0.0
      %v7528 = vmax.f32 %v7496, 0.0
      %v7529 = vmax.f32 %v7497, 0.0
      %v7530 = vmax.f32 %v7498, 0.0
      %v7531 = vmax.f32 %v7499, 0.0
      %v7532 = vmax.f32 %v7500, 0.0
      %v7533 = vmax.f32 %v7501, 0.0
      %v7534 = vmax.f32 %v7502, 0.0
      %7535 = vst.msk [vmem:[%s224] sm:$0xff] %vm225, %v7503
      %7536 = vst.msk [vmem:[%s224 + $0x8] sm:$0xff] %vm225, %v7504
      %7537 = vst.msk [vmem:[%s224 + $0x10] sm:$0xff] %vm225, %v7505
      %7538 = vst.msk [vmem:[%s224 + $0x18] sm:$0xff] %vm225, %v7506
      %7539 = vst.msk [vmem:[%s224 + $0x20] sm:$0xff] %vm225, %v7507
      %7540 = vst.msk [vmem:[%s224 + $0x28] sm:$0xff] %vm225, %v7508
      %7541 = vst.msk [vmem:[%s224 + $0x30] sm:$0xff] %vm225, %v7509
      %7542 = vst.msk [vmem:[%s224 + $0x38] sm:$0xff] %vm225, %v7510
      %7543 = vst.msk [vmem:[%s224 + $0x40] sm:$0xff] %vm225, %v7511
      %7544 = vst.msk [vmem:[%s224 + $0x48] sm:$0xff] %vm225, %v7512
      %7545 = vst.msk [vmem:[%s224 + $0x50] sm:$0xff] %vm225, %v7513
      %7546 = vst.msk [vmem:[%s224 + $0x58] sm:$0xff] %vm225, %v7514
      %7547 = vst.msk [vmem:[%s224 + $0x60] sm:$0xff] %vm225, %v7515
      %7548 = vst.msk [vmem:[%s224 + $0x68] sm:$0xff] %vm225, %v7516
      %7549 = vst.msk [vmem:[%s224 + $0x70] sm:$0xff] %vm225, %v7517
      %7550 = vst.msk [vmem:[%s224 + $0x78] sm:$0xff] %vm225, %v7518
      %7551 = vst.msk [vmem:[%s224 + $0x80] sm:$0xff] %vm225, %v7519
      %7552 = vst.msk [vmem:[%s224 + $0x88] sm:$0xff] %vm225, %v7520
      %7553 = vst.msk [vmem:[%s224 + $0x90] sm:$0xff] %vm225, %v7521
      %7554 = vst.msk [vmem:[%s224 + $0x98] sm:$0xff] %vm225, %v7522
      %7555 = vst.msk [vmem:[%s224 + $0xa0] sm:$0xff] %vm225, %v7523
      %7556 = vst.msk [vmem:[%s224 + $0xa8] sm:$0xff] %vm225, %v7524
      %7557 = vst.msk [vmem:[%s224 + $0xb0] sm:$0xff] %vm225, %v7525
      %7558 = vst.msk [vmem:[%s224 + $0xb8] sm:$0xff] %vm225, %v7526
      %7559 = vst.msk [vmem:[%s224 + $0xc0] sm:$0xff] %vm225, %v7527
      %7560 = vst.msk [vmem:[%s224 + $0xc8] sm:$0xff] %vm225, %v7528
      %7561 = vst.msk [vmem:[%s224 + $0xd0] sm:$0xff] %vm225, %v7529
      %7562 = vst.msk [vmem:[%s224 + $0xd8] sm:$0xff] %vm225, %v7530
      %7563 = vst.msk [vmem:[%s224 + $0xe0] sm:$0xff] %vm225, %v7531
      %7564 = vst.msk [vmem:[%s224 + $0xe8] sm:$0xff] %vm225, %v7532
      %7565 = vst.msk [vmem:[%s224 + $0xf0] sm:$0xff] %vm225, %v7533
      %7566 = vst.msk [vmem:[%s224 + $0xf8] sm:$0xff] %vm225, %v7534
      %p7567 = scmp.lt.s32.totalorder %s16, 1
      %s7568 = scalar_select %p7567, %s16, 1
      %s7569 = smul.addr %s7568, 32
      %s7570 = smul.addr %s7569, 8
      %s7571 = scalar_lea.vmem %s5, %s7570
      // Predicated region
      $region41: #{tpu_custom_call.1} parent=39 // pred_check
        %p7572 = pneg %p144
      $region42: #{tpu_custom_call.1} parent=39 // pred_check_branch
        %7574 = sbr.rel (%p7572) target = $region44
      $region43: #{tpu_custom_call.1} parent=39 // pred_region
        _
      $region44: #{tpu_custom_call.1} parent=39 // pred_fallthru
        _
    $region40: #{tpu_custom_call.1} parent=5 // pred_fallthru
      _
    %p7575 = scmp.le.s32.totalorder 2, %s11
    // Predicated region
    $region45: #{tpu_custom_call.1} parent=5 // pred_check
      %p7576 = pneg %p7575
    $region46: #{tpu_custom_call.1} parent=5 // pred_check_branch
      %7578 = sbr.rel (%p7576) target = $region48
    $region47: #{tpu_custom_call.1} parent=5 // pred_region
      %s7579 = ssub.s32 %s11, 2
      // Predicated region
      $region49: #{tpu_custom_call.1} parent=47 // pred_check
        %p7580 = pneg %p150
      $region50: #{tpu_custom_call.1} parent=47 // pred_check_branch
        %7582 = sbr.rel (%p7580) target = $region52
      $region51: #{tpu_custom_call.1} parent=47 // pred_region
        %p7583 = scmp.lt.s32.totalorder %s17, 1
        %s7584 = scalar_select %p7583, %s17, 1
        %s7585 = smul.addr %s7584, 32
        %s7586 = smul.addr %s7585, 8
        %s7587 = scalar_lea.vmem %s5, %s7586
      $region52: #{tpu_custom_call.1} parent=47 // pred_fallthru
        _
    $region48: #{tpu_custom_call.1} parent=5 // pred_fallthru
      _
  $region6: #{tpu_custom_call.1} parent=0 // loop_footer
    %s15 = sadd.s32 1, %s11
  $region7: #{tpu_custom_call.1} parent=0 // loop_footer_branch
    %10 = sbr.rel target = $region3
  $region8: #{tpu_custom_call.1} parent=0 // loop_exit
    _

</llo_original>
